<compile_context>
chip_gen: v7x
topology: tpu7x:2x2x1
jax: 0.10.0
libtpu: 0.0.40
codegen_flags: <defaults>
</compile_context>

<pallas_src>
import functools

import jax
import jax.numpy as jnp
from jax.experimental import pallas as pl
from jax.experimental.pallas import tpu as pltpu


# ---------------------------------------------------------------------------
# Fused LeNet forward kernel (one grid step == one image)
# ---------------------------------------------------------------------------
def _lenet_kernel(patches_ref, w1_ref, b1_ref, w2_ref, b2_ref,
                  fc1w_ref, fc1b_ref, fc2w_ref, fc2b_ref, fc3w_ref, fc3b_ref,
                  out_ref,
                  fcin_ref, pool1_ref, h2_ref, pm2_ref,
                  *, inv_temp):
    f32 = jnp.float32

    # ---- conv1 (5x5, 1->6) + bias + ReLU + 2x2/2 max-pool -------------------
    # patches_ref is (4, 144, 25): 4 pooling phases x (12*12 pooled positions)
    # x 25 filter taps.  conv == matmul; the pool is a max over the 4 phases.
    m = jnp.dot(patches_ref[0], w1_ref[...], preferred_element_type=f32)
    for p in range(1, 4):
        m = jnp.maximum(
            m, jnp.dot(patches_ref[p], w1_ref[...], preferred_element_type=f32))
    pool1_ref[...] = jnp.maximum(m + b1_ref[...], 0.0)              # (144, 6)

    # ---- conv2 (5x5, 6->16) + bias + ReLU -----------------------------------
    # pool1 rows are ph*12 + pw (12x12 map, channels on lanes).  Accumulator
    # rows are r = oh*12 + ow; only ow < 8 (r < 92) rows are ever read.
    acc = jnp.zeros((92, 16), f32) + b2_ref[...]
    for i in range(5):
        for j in range(5):
            lhs = pool1_ref[i * 12 + j: i * 12 + j + 92, :]            # (92, 6)
            rhs = w2_ref[:, (i * 5 + j) * 16: (i * 5 + j + 1) * 16]    # (6, 16)
            acc = acc + jnp.dot(lhs, rhs, preferred_element_type=f32)
    h2_ref[...] = jnp.maximum(acc, 0.0)                             # (92, 16)

    # ---- 2x2/2 max-pool on the 8x8 map (window-corner max, then gather) -----
    pm2_ref[...] = jnp.maximum(
        jnp.maximum(h2_ref[0:79, :], h2_ref[1:80, :]),
        jnp.maximum(h2_ref[12:91, :], h2_ref[13:92, :]))            # (79, 16)

    # gather the 16 valid pooled positions into the flattened (1, 256) fc input
    for ph in range(4):
        for pw in range(4):
            a = 24 * ph + 2 * pw
            k = (ph * 4 + pw) * 16
            fcin_ref[:, k: k + 16] = pm2_ref[a: a + 1, :]

    # ---- classifier: fc1+ReLU, fc2+ReLU, fc3, /temperature ------------------
    h = jnp.dot(fcin_ref[...], fc1w_ref[...], preferred_element_type=f32)
    h = jnp.maximum(h + fc1b_ref[...], 0.0)
    h = jnp.dot(h, fc2w_ref[...], preferred_element_type=f32)
    h = jnp.maximum(h + fc2b_ref[...], 0.0)
    logits = jnp.dot(h, fc3w_ref[...], preferred_element_type=f32) + fc3b_ref[...]
    out_ref[...] = (logits * inv_temp).astype(out_ref.dtype)


# ---------------------------------------------------------------------------
# Host-side glue: one im2col op for the input layer + one-time weight permutes
# ---------------------------------------------------------------------------
def _prep_inputs(params, x):
    B = x.shape[0]
    # im2col for conv1 as a single XLA op; then reorder rows pooling-phase-major
    # so the in-kernel pool1 is a max over 4 contiguous 144-row blocks.
    pat = jax.lax.conv_general_dilated_patches(
        x, filter_shape=(5, 5), window_strides=(1, 1), padding="VALID")
    pat = pat.transpose(0, 2, 3, 1)                              # (B, 24, 24, 25)
    pat = pat.reshape(B, 12, 2, 12, 2, 25).transpose(0, 2, 4, 1, 3, 5)
    pat = pat.reshape(B, 4, 144, 25)                             # (B, phase, ph*12+pw, tap)

    w1 = params["conv1_w"].reshape(6, 25).T                      # (25, 6)
    b1 = params["conv1_b"].reshape(1, 6)
    w2 = params["conv2_w"].transpose(1, 2, 3, 0).reshape(6, 400)  # (ci, (i,j,co))
    b2 = params["conv2_b"].reshape(1, 16)
    # PyTorch flattens NCHW (c*16 + h*4 + w); the kernel flattens (h*4+w)*16 + c,
    # so permute fc1's weight once on the host.
    fc1w = params["fc1_w"].reshape(120, 16, 4, 4).transpose(0, 2, 3, 1)
    fc1w = fc1w.reshape(120, 256).T                              # (256, 120)
    fc1b = params["fc1_b"].reshape(1, 120)
    fc2w = params["fc2_w"].T                                     # (120, 84)
    fc2b = params["fc2_b"].reshape(1, 84)
    fc3w = params["fc3_w"].T                                     # (84, 10)
    fc3b = params["fc3_b"].reshape(1, 10)
    return pat, w1, b1, w2, b2, fc1w, fc1b, fc2w, fc2b, fc3w, fc3b


def lenet_forward(params, x, temperature):
    B = x.shape[0]
    args = _prep_inputs(params, x)

    def whole(a):  # full-array VMEM-resident block (weights / biases)
        return pl.BlockSpec(a.shape, lambda b: (0, 0))

    in_specs = [pl.BlockSpec((None, 4, 144, 25), lambda b: (b, 0, 0, 0))]
    in_specs += [whole(a) for a in args[1:]]

    out = pl.pallas_call(
        functools.partial(_lenet_kernel, inv_temp=1.0 / temperature),
        grid=(B,),
        in_specs=in_specs,
        out_specs=pl.BlockSpec((None, 1, 10), lambda b: (b, 0, 0)),
        out_shape=jax.ShapeDtypeStruct((B, 1, 10), jnp.float32),
        scratch_shapes=[
            pltpu.VMEM((1, 256), jnp.float32),   # flattened fc input
            pltpu.VMEM((144, 6), jnp.float32),   # pooled conv1 map (12x12x6)
            pltpu.VMEM((92, 16), jnp.float32),   # conv2 map (row stride 12)
            pltpu.VMEM((79, 16), jnp.float32),   # 2x2-window maxima
        ],
        compiler_params=pltpu.CompilerParams(
            dimension_semantics=("parallel",)),
    )(*args)
    return out.reshape(B, 10)


# ---------------------------------------------------------------------------
# Parameters + pure-JAX reference (PyTorch semantics)
# ---------------------------------------------------------------------------
def init_params(key):
    ks = jax.random.split(key, 10)

    def w(k, shape, fan_in):
        return jax.random.normal(k, shape, jnp.float32) / jnp.sqrt(float(fan_in))

    return {
        "conv1_w": w(ks[0], (6, 1, 5, 5), 1 * 5 * 5),
        "conv1_b": w(ks[1], (6,), 1 * 5 * 5),
        "conv2_w": w(ks[2], (16, 6, 5, 5), 6 * 5 * 5),
        "conv2_b": w(ks[3], (16,), 6 * 5 * 5),
        "fc1_w": w(ks[4], (120, 256), 256),
        "fc1_b": w(ks[5], (120,), 256),
        "fc2_w": w(ks[6], (84, 120), 120),
        "fc2_b": w(ks[7], (84,), 120),
        "fc3_w": w(ks[8], (10, 84), 84),
        "fc3_b": w(ks[9], (10,), 84),
    }


def lenet_reference(params, x, temperature):
    def conv(x, w, b):
        y = jax.lax.conv_general_dilated(
            x, w, (1, 1), "VALID", dimension_numbers=("NCHW", "OIHW", "NCHW"))
        return jax.nn.relu(y + b.reshape(1, -1, 1, 1))

    def pool(x):
        return jax.lax.reduce_window(
            x, -jnp.inf, jax.lax.max, (1, 1, 2, 2), (1, 1, 2, 2), "VALID")

    x = pool(conv(x, params["conv1_w"], params["conv1_b"]))
    x = pool(conv(x, params["conv2_w"], params["conv2_b"]))
    x = x.reshape(x.shape[0], -1)
    x = jax.nn.relu(x @ params["fc1_w"].T + params["fc1_b"])
    x = jax.nn.relu(x @ params["fc2_w"].T + params["fc2_b"])
    x = x @ params["fc3_w"].T + params["fc3_b"]
    return x / temperature


if __name__ == "__main__":
    key = jax.random.PRNGKey(0)
    kp, kx = jax.random.split(key)
    params = init_params(kp)

    B = 2
    temperature = 2.0
    # LeNet's classifier hard-codes 16*4*4, which requires 28x28 (MNIST) input.
    x = jax.random.normal(kx, (B, 1, 28, 28), jnp.float32)

    fwd = jax.jit(lambda p, xx: lenet_forward(p, xx, temperature))
    out = jax.block_until_ready(fwd(params, x))
    assert out.shape == (B, 10), out.shape

    ref = lenet_reference(params, x, temperature)
    max_err = float(jnp.max(jnp.abs(out - ref)))
    assert jnp.allclose(out, ref, atol=1e-2, rtol=1e-2), max_err
    print("KERNEL_OK")
</pallas_src>

<mosaic_0001>
module attributes {stable_mosaic.version = 11 : i64} {
  func.func @_lenet_kernel(%arg0: i32, %arg1: memref<1x4x144x25xf32, #tpu.memory_space<vmem>>, %arg2: memref<25x6xf32, #tpu.memory_space<vmem>>, %arg3: memref<1x6xf32, #tpu.memory_space<vmem>>, %arg4: memref<6x400xf32, #tpu.memory_space<vmem>>, %arg5: memref<1x16xf32, #tpu.memory_space<vmem>>, %arg6: memref<256x120xf32, #tpu.memory_space<vmem>>, %arg7: memref<1x120xf32, #tpu.memory_space<vmem>>, %arg8: memref<120x84xf32, #tpu.memory_space<vmem>>, %arg9: memref<1x84xf32, #tpu.memory_space<vmem>>, %arg10: memref<84x10xf32, #tpu.memory_space<vmem>>, %arg11: memref<1x10xf32, #tpu.memory_space<vmem>>, %arg12: memref<1x1x10xf32, #tpu.memory_space<vmem>>, %arg13: memref<1x256xf32, #tpu.memory_space<vmem>>, %arg14: memref<144x6xf32, #tpu.memory_space<vmem>>, %arg15: memref<92x16xf32, #tpu.memory_space<vmem>>, %arg16: memref<79x16xf32, #tpu.memory_space<vmem>>) attributes {dimension_semantics = [#tpu.dimension_semantics<parallel>], iteration_bounds = array<i64: 2>, scalar_prefetch = 0 : i64, scratch_operands = 4 : i64, tpu.core_type = #tpu.core_type<tc>, window_params = [{transform_indices = @transform_0, window_bounds = array<i64: 1, 4, 144, 25>}, {pipeline_mode = #tpu.pipeline_mode<synchronous>, transform_indices = @transform_1, window_bounds = array<i64: 25, 6>}, {pipeline_mode = #tpu.pipeline_mode<synchronous>, transform_indices = @transform_2, window_bounds = array<i64: 1, 6>}, {pipeline_mode = #tpu.pipeline_mode<synchronous>, transform_indices = @transform_3, window_bounds = array<i64: 6, 400>}, {pipeline_mode = #tpu.pipeline_mode<synchronous>, transform_indices = @transform_4, window_bounds = array<i64: 1, 16>}, {pipeline_mode = #tpu.pipeline_mode<synchronous>, transform_indices = @transform_5, window_bounds = array<i64: 256, 120>}, {pipeline_mode = #tpu.pipeline_mode<synchronous>, transform_indices = @transform_6, window_bounds = array<i64: 1, 120>}, {pipeline_mode = #tpu.pipeline_mode<synchronous>, transform_indices = @transform_7, window_bounds = array<i64: 120, 84>}, {pipeline_mode = #tpu.pipeline_mode<synchronous>, transform_indices = @transform_8, window_bounds = array<i64: 1, 84>}, {pipeline_mode = #tpu.pipeline_mode<synchronous>, transform_indices = @transform_9, window_bounds = array<i64: 84, 10>}, {pipeline_mode = #tpu.pipeline_mode<synchronous>, transform_indices = @transform_10, window_bounds = array<i64: 1, 10>}, {transform_indices = @transform_11, window_bounds = array<i64: 1, 1, 10>}]} {
    %c0 = arith.constant 0 : index
    %c0_0 = arith.constant 0 : index
    %c0_1 = arith.constant 0 : index
    %c0_2 = arith.constant 0 : index
    %0 = vector.load %arg1[%c0, %c0_0, %c0_1, %c0_2] : memref<1x4x144x25xf32, #tpu.memory_space<vmem>>, vector<1x1x144x25xf32>
    %1 = vector.shape_cast %0 : vector<1x1x144x25xf32> to vector<144x25xf32>
    %c0_3 = arith.constant 0 : index
    %c0_4 = arith.constant 0 : index
    %2 = vector.load %arg2[%c0_3, %c0_4] : memref<25x6xf32, #tpu.memory_space<vmem>>, vector<25x6xf32>
    %cst = arith.constant dense<0.000000e+00> : vector<144x6xf32>
    %3 = tpu.matmul %1, %2, %cst {dimension_numbers = #tpu.dot_dimension_numbers<[1], [0], [0], [1], [0, 0, 1, 1], [], []>} : vector<144x25xf32>, vector<25x6xf32>, vector<144x6xf32> -> vector<144x6xf32>
    %c0_5 = arith.constant 0 : index
    %c1 = arith.constant 1 : index
    %c0_6 = arith.constant 0 : index
    %c0_7 = arith.constant 0 : index
    %4 = vector.load %arg1[%c0_5, %c1, %c0_6, %c0_7] : memref<1x4x144x25xf32, #tpu.memory_space<vmem>>, vector<1x1x144x25xf32>
    %5 = vector.shape_cast %4 : vector<1x1x144x25xf32> to vector<144x25xf32>
    %c0_8 = arith.constant 0 : index
    %c0_9 = arith.constant 0 : index
    %6 = vector.load %arg2[%c0_8, %c0_9] : memref<25x6xf32, #tpu.memory_space<vmem>>, vector<25x6xf32>
    %cst_10 = arith.constant dense<0.000000e+00> : vector<144x6xf32>
    %7 = tpu.matmul %5, %6, %cst_10 {dimension_numbers = #tpu.dot_dimension_numbers<[1], [0], [0], [1], [0, 0, 1, 1], [], []>} : vector<144x25xf32>, vector<25x6xf32>, vector<144x6xf32> -> vector<144x6xf32>
    %8 = arith.maximumf %3, %7 : vector<144x6xf32>
    %c0_11 = arith.constant 0 : index
    %c2 = arith.constant 2 : index
    %c0_12 = arith.constant 0 : index
    %c0_13 = arith.constant 0 : index
    %9 = vector.load %arg1[%c0_11, %c2, %c0_12, %c0_13] : memref<1x4x144x25xf32, #tpu.memory_space<vmem>>, vector<1x1x144x25xf32>
    %10 = vector.shape_cast %9 : vector<1x1x144x25xf32> to vector<144x25xf32>
    %c0_14 = arith.constant 0 : index
    %c0_15 = arith.constant 0 : index
    %11 = vector.load %arg2[%c0_14, %c0_15] : memref<25x6xf32, #tpu.memory_space<vmem>>, vector<25x6xf32>
    %cst_16 = arith.constant dense<0.000000e+00> : vector<144x6xf32>
    %12 = tpu.matmul %10, %11, %cst_16 {dimension_numbers = #tpu.dot_dimension_numbers<[1], [0], [0], [1], [0, 0, 1, 1], [], []>} : vector<144x25xf32>, vector<25x6xf32>, vector<144x6xf32> -> vector<144x6xf32>
    %13 = arith.maximumf %8, %12 : vector<144x6xf32>
    %c0_17 = arith.constant 0 : index
    %c3 = arith.constant 3 : index
    %c0_18 = arith.constant 0 : index
    %c0_19 = arith.constant 0 : index
    %14 = vector.load %arg1[%c0_17, %c3, %c0_18, %c0_19] : memref<1x4x144x25xf32, #tpu.memory_space<vmem>>, vector<1x1x144x25xf32>
    %15 = vector.shape_cast %14 : vector<1x1x144x25xf32> to vector<144x25xf32>
    %c0_20 = arith.constant 0 : index
    %c0_21 = arith.constant 0 : index
    %16 = vector.load %arg2[%c0_20, %c0_21] : memref<25x6xf32, #tpu.memory_space<vmem>>, vector<25x6xf32>
    %cst_22 = arith.constant dense<0.000000e+00> : vector<144x6xf32>
    %17 = tpu.matmul %15, %16, %cst_22 {dimension_numbers = #tpu.dot_dimension_numbers<[1], [0], [0], [1], [0, 0, 1, 1], [], []>} : vector<144x25xf32>, vector<25x6xf32>, vector<144x6xf32> -> vector<144x6xf32>
    %18 = arith.maximumf %13, %17 : vector<144x6xf32>
    %c0_23 = arith.constant 0 : index
    %c0_24 = arith.constant 0 : index
    %19 = vector.load %arg3[%c0_23, %c0_24] : memref<1x6xf32, #tpu.memory_space<vmem>>, vector<1x6xf32>
    %20 = vector.broadcast %19 : vector<1x6xf32> to vector<144x6xf32>
    %21 = arith.addf %18, %20 : vector<144x6xf32>
    %cst_25 = arith.constant 0.000000e+00 : f32
    %22 = vector.broadcast %cst_25 : f32 to vector<144x6xf32>
    %23 = arith.maximumf %21, %22 : vector<144x6xf32>
    %c0_26 = arith.constant 0 : index
    %c0_27 = arith.constant 0 : index
    %24 = vector.load %arg14[%c0_26, %c0_27] : memref<144x6xf32, #tpu.memory_space<vmem>>, vector<144x6xf32>
    tpu.vector_store %arg14[%c0_26, %c0_27], %23 {strides = array<i32>} : memref<144x6xf32, #tpu.memory_space<vmem>>, vector<144x6xf32>,
    %cst_28 = arith.constant 0.000000e+00 : f32
    %25 = vector.broadcast %cst_28 : f32 to vector<92x16xf32>
    %c0_29 = arith.constant 0 : index
    %c0_30 = arith.constant 0 : index
    %26 = vector.load %arg5[%c0_29, %c0_30] : memref<1x16xf32, #tpu.memory_space<vmem>>, vector<1x16xf32>
    %27 = vector.broadcast %26 : vector<1x16xf32> to vector<92x16xf32>
    %28 = arith.addf %25, %27 : vector<92x16xf32>
    %c0_31 = arith.constant 0 : index
    %c0_32 = arith.constant 0 : index
    %29 = vector.load %arg14[%c0_31, %c0_32] : memref<144x6xf32, #tpu.memory_space<vmem>>, vector<92x6xf32>
    %c0_33 = arith.constant 0 : index
    %c0_34 = arith.constant 0 : index
    %30 = vector.load %arg4[%c0_33, %c0_34] : memref<6x400xf32, #tpu.memory_space<vmem>>, vector<6x16xf32>
    %cst_35 = arith.constant dense<0.000000e+00> : vector<92x16xf32>
    %31 = tpu.matmul %29, %30, %cst_35 {dimension_numbers = #tpu.dot_dimension_numbers<[1], [0], [0], [1], [0, 0, 1, 1], [], []>} : vector<92x6xf32>, vector<6x16xf32>, vector<92x16xf32> -> vector<92x16xf32>
    %32 = arith.addf %28, %31 : vector<92x16xf32>
    %c1_36 = arith.constant 1 : index
    %c0_37 = arith.constant 0 : index
    %33 = vector.load %arg14[%c1_36, %c0_37] : memref<144x6xf32, #tpu.memory_space<vmem>>, vector<92x6xf32>
    %c0_38 = arith.constant 0 : index
    %c16 = arith.constant 16 : index
    %34 = vector.load %arg4[%c0_38, %c16] : memref<6x400xf32, #tpu.memory_space<vmem>>, vector<6x16xf32>
    %cst_39 = arith.constant dense<0.000000e+00> : vector<92x16xf32>
    %35 = tpu.matmul %33, %34, %cst_39 {dimension_numbers = #tpu.dot_dimension_numbers<[1], [0], [0], [1], [0, 0, 1, 1], [], []>} : vector<92x6xf32>, vector<6x16xf32>, vector<92x16xf32> -> vector<92x16xf32>
    %36 = arith.addf %32, %35 : vector<92x16xf32>
    %c2_40 = arith.constant 2 : index
    %c0_41 = arith.constant 0 : index
    %37 = vector.load %arg14[%c2_40, %c0_41] : memref<144x6xf32, #tpu.memory_space<vmem>>, vector<92x6xf32>
    %c0_42 = arith.constant 0 : index
    %c32 = arith.constant 32 : index
    %38 = vector.load %arg4[%c0_42, %c32] : memref<6x400xf32, #tpu.memory_space<vmem>>, vector<6x16xf32>
    %cst_43 = arith.constant dense<0.000000e+00> : vector<92x16xf32>
    %39 = tpu.matmul %37, %38, %cst_43 {dimension_numbers = #tpu.dot_dimension_numbers<[1], [0], [0], [1], [0, 0, 1, 1], [], []>} : vector<92x6xf32>, vector<6x16xf32>, vector<92x16xf32> -> vector<92x16xf32>
    %40 = arith.addf %36, %39 : vector<92x16xf32>
    %c3_44 = arith.constant 3 : index
    %c0_45 = arith.constant 0 : index
    %41 = vector.load %arg14[%c3_44, %c0_45] : memref<144x6xf32, #tpu.memory_space<vmem>>, vector<92x6xf32>
    %c0_46 = arith.constant 0 : index
    %c48 = arith.constant 48 : index
    %42 = vector.load %arg4[%c0_46, %c48] : memref<6x400xf32, #tpu.memory_space<vmem>>, vector<6x16xf32>
    %cst_47 = arith.constant dense<0.000000e+00> : vector<92x16xf32>
    %43 = tpu.matmul %41, %42, %cst_47 {dimension_numbers = #tpu.dot_dimension_numbers<[1], [0], [0], [1], [0, 0, 1, 1], [], []>} : vector<92x6xf32>, vector<6x16xf32>, vector<92x16xf32> -> vector<92x16xf32>
    %44 = arith.addf %40, %43 : vector<92x16xf32>
    %c4 = arith.constant 4 : index
    %c0_48 = arith.constant 0 : index
    %45 = vector.load %arg14[%c4, %c0_48] : memref<144x6xf32, #tpu.memory_space<vmem>>, vector<92x6xf32>
    %c0_49 = arith.constant 0 : index
    %c64 = arith.constant 64 : index
    %46 = vector.load %arg4[%c0_49, %c64] : memref<6x400xf32, #tpu.memory_space<vmem>>, vector<6x16xf32>
    %cst_50 = arith.constant dense<0.000000e+00> : vector<92x16xf32>
    %47 = tpu.matmul %45, %46, %cst_50 {dimension_numbers = #tpu.dot_dimension_numbers<[1], [0], [0], [1], [0, 0, 1, 1], [], []>} : vector<92x6xf32>, vector<6x16xf32>, vector<92x16xf32> -> vector<92x16xf32>
    %48 = arith.addf %44, %47 : vector<92x16xf32>
    %c12 = arith.constant 12 : index
    %c0_51 = arith.constant 0 : index
    %49 = vector.load %arg14[%c12, %c0_51] : memref<144x6xf32, #tpu.memory_space<vmem>>, vector<92x6xf32>
    %c0_52 = arith.constant 0 : index
    %c80 = arith.constant 80 : index
    %50 = vector.load %arg4[%c0_52, %c80] : memref<6x400xf32, #tpu.memory_space<vmem>>, vector<6x16xf32>
    %cst_53 = arith.constant dense<0.000000e+00> : vector<92x16xf32>
    %51 = tpu.matmul %49, %50, %cst_53 {dimension_numbers = #tpu.dot_dimension_numbers<[1], [0], [0], [1], [0, 0, 1, 1], [], []>} : vector<92x6xf32>, vector<6x16xf32>, vector<92x16xf32> -> vector<92x16xf32>
    %52 = arith.addf %48, %51 : vector<92x16xf32>
    %c13 = arith.constant 13 : index
    %c0_54 = arith.constant 0 : index
    %53 = vector.load %arg14[%c13, %c0_54] : memref<144x6xf32, #tpu.memory_space<vmem>>, vector<92x6xf32>
    %c0_55 = arith.constant 0 : index
    %c96 = arith.constant 96 : index
    %54 = vector.load %arg4[%c0_55, %c96] : memref<6x400xf32, #tpu.memory_space<vmem>>, vector<6x16xf32>
    %cst_56 = arith.constant dense<0.000000e+00> : vector<92x16xf32>
    %55 = tpu.matmul %53, %54, %cst_56 {dimension_numbers = #tpu.dot_dimension_numbers<[1], [0], [0], [1], [0, 0, 1, 1], [], []>} : vector<92x6xf32>, vector<6x16xf32>, vector<92x16xf32> -> vector<92x16xf32>
    %56 = arith.addf %52, %55 : vector<92x16xf32>
    %c14 = arith.constant 14 : index
    %c0_57 = arith.constant 0 : index
    %57 = vector.load %arg14[%c14, %c0_57] : memref<144x6xf32, #tpu.memory_space<vmem>>, vector<92x6xf32>
    %c0_58 = arith.constant 0 : index
    %c112 = arith.constant 112 : index
    %58 = vector.load %arg4[%c0_58, %c112] : memref<6x400xf32, #tpu.memory_space<vmem>>, vector<6x16xf32>
    %cst_59 = arith.constant dense<0.000000e+00> : vector<92x16xf32>
    %59 = tpu.matmul %57, %58, %cst_59 {dimension_numbers = #tpu.dot_dimension_numbers<[1], [0], [0], [1], [0, 0, 1, 1], [], []>} : vector<92x6xf32>, vector<6x16xf32>, vector<92x16xf32> -> vector<92x16xf32>
    %60 = arith.addf %56, %59 : vector<92x16xf32>
    %c15 = arith.constant 15 : index
    %c0_60 = arith.constant 0 : index
    %61 = vector.load %arg14[%c15, %c0_60] : memref<144x6xf32, #tpu.memory_space<vmem>>, vector<92x6xf32>
    %c0_61 = arith.constant 0 : index
    %c128 = arith.constant 128 : index
    %62 = vector.load %arg4[%c0_61, %c128] : memref<6x400xf32, #tpu.memory_space<vmem>>, vector<6x16xf32>
    %cst_62 = arith.constant dense<0.000000e+00> : vector<92x16xf32>
    %63 = tpu.matmul %61, %62, %cst_62 {dimension_numbers = #tpu.dot_dimension_numbers<[1], [0], [0], [1], [0, 0, 1, 1], [], []>} : vector<92x6xf32>, vector<6x16xf32>, vector<92x16xf32> -> vector<92x16xf32>
    %64 = arith.addf %60, %63 : vector<92x16xf32>
    %c16_63 = arith.constant 16 : index
    %c0_64 = arith.constant 0 : index
    %65 = vector.load %arg14[%c16_63, %c0_64] : memref<144x6xf32, #tpu.memory_space<vmem>>, vector<92x6xf32>
    %c0_65 = arith.constant 0 : index
    %c144 = arith.constant 144 : index
    %66 = vector.load %arg4[%c0_65, %c144] : memref<6x400xf32, #tpu.memory_space<vmem>>, vector<6x16xf32>
    %cst_66 = arith.constant dense<0.000000e+00> : vector<92x16xf32>
    %67 = tpu.matmul %65, %66, %cst_66 {dimension_numbers = #tpu.dot_dimension_numbers<[1], [0], [0], [1], [0, 0, 1, 1], [], []>} : vector<92x6xf32>, vector<6x16xf32>, vector<92x16xf32> -> vector<92x16xf32>
    %68 = arith.addf %64, %67 : vector<92x16xf32>
    %c24 = arith.constant 24 : index
    %c0_67 = arith.constant 0 : index
    %69 = vector.load %arg14[%c24, %c0_67] : memref<144x6xf32, #tpu.memory_space<vmem>>, vector<92x6xf32>
    %c0_68 = arith.constant 0 : index
    %c160 = arith.constant 160 : index
    %70 = vector.load %arg4[%c0_68, %c160] : memref<6x400xf32, #tpu.memory_space<vmem>>, vector<6x16xf32>
    %cst_69 = arith.constant dense<0.000000e+00> : vector<92x16xf32>
    %71 = tpu.matmul %69, %70, %cst_69 {dimension_numbers = #tpu.dot_dimension_numbers<[1], [0], [0], [1], [0, 0, 1, 1], [], []>} : vector<92x6xf32>, vector<6x16xf32>, vector<92x16xf32> -> vector<92x16xf32>
    %72 = arith.addf %68, %71 : vector<92x16xf32>
    %c25 = arith.constant 25 : index
    %c0_70 = arith.constant 0 : index
    %73 = vector.load %arg14[%c25, %c0_70] : memref<144x6xf32, #tpu.memory_space<vmem>>, vector<92x6xf32>
    %c0_71 = arith.constant 0 : index
    %c176 = arith.constant 176 : index
    %74 = vector.load %arg4[%c0_71, %c176] : memref<6x400xf32, #tpu.memory_space<vmem>>, vector<6x16xf32>
    %cst_72 = arith.constant dense<0.000000e+00> : vector<92x16xf32>
    %75 = tpu.matmul %73, %74, %cst_72 {dimension_numbers = #tpu.dot_dimension_numbers<[1], [0], [0], [1], [0, 0, 1, 1], [], []>} : vector<92x6xf32>, vector<6x16xf32>, vector<92x16xf32> -> vector<92x16xf32>
    %76 = arith.addf %72, %75 : vector<92x16xf32>
    %c26 = arith.constant 26 : index
    %c0_73 = arith.constant 0 : index
    %77 = vector.load %arg14[%c26, %c0_73] : memref<144x6xf32, #tpu.memory_space<vmem>>, vector<92x6xf32>
    %c0_74 = arith.constant 0 : index
    %c192 = arith.constant 192 : index
    %78 = vector.load %arg4[%c0_74, %c192] : memref<6x400xf32, #tpu.memory_space<vmem>>, vector<6x16xf32>
    %cst_75 = arith.constant dense<0.000000e+00> : vector<92x16xf32>
    %79 = tpu.matmul %77, %78, %cst_75 {dimension_numbers = #tpu.dot_dimension_numbers<[1], [0], [0], [1], [0, 0, 1, 1], [], []>} : vector<92x6xf32>, vector<6x16xf32>, vector<92x16xf32> -> vector<92x16xf32>
    %80 = arith.addf %76, %79 : vector<92x16xf32>
    %c27 = arith.constant 27 : index
    %c0_76 = arith.constant 0 : index
    %81 = vector.load %arg14[%c27, %c0_76] : memref<144x6xf32, #tpu.memory_space<vmem>>, vector<92x6xf32>
    %c0_77 = arith.constant 0 : index
    %c208 = arith.constant 208 : index
    %82 = vector.load %arg4[%c0_77, %c208] : memref<6x400xf32, #tpu.memory_space<vmem>>, vector<6x16xf32>
    %cst_78 = arith.constant dense<0.000000e+00> : vector<92x16xf32>
    %83 = tpu.matmul %81, %82, %cst_78 {dimension_numbers = #tpu.dot_dimension_numbers<[1], [0], [0], [1], [0, 0, 1, 1], [], []>} : vector<92x6xf32>, vector<6x16xf32>, vector<92x16xf32> -> vector<92x16xf32>
    %84 = arith.addf %80, %83 : vector<92x16xf32>
    %c28 = arith.constant 28 : index
    %c0_79 = arith.constant 0 : index
    %85 = vector.load %arg14[%c28, %c0_79] : memref<144x6xf32, #tpu.memory_space<vmem>>, vector<92x6xf32>
    %c0_80 = arith.constant 0 : index
    %c224 = arith.constant 224 : index
    %86 = vector.load %arg4[%c0_80, %c224] : memref<6x400xf32, #tpu.memory_space<vmem>>, vector<6x16xf32>
    %cst_81 = arith.constant dense<0.000000e+00> : vector<92x16xf32>
    %87 = tpu.matmul %85, %86, %cst_81 {dimension_numbers = #tpu.dot_dimension_numbers<[1], [0], [0], [1], [0, 0, 1, 1], [], []>} : vector<92x6xf32>, vector<6x16xf32>, vector<92x16xf32> -> vector<92x16xf32>
    %88 = arith.addf %84, %87 : vector<92x16xf32>
    %c36 = arith.constant 36 : index
    %c0_82 = arith.constant 0 : index
    %89 = vector.load %arg14[%c36, %c0_82] : memref<144x6xf32, #tpu.memory_space<vmem>>, vector<92x6xf32>
    %c0_83 = arith.constant 0 : index
    %c240 = arith.constant 240 : index
    %90 = vector.load %arg4[%c0_83, %c240] : memref<6x400xf32, #tpu.memory_space<vmem>>, vector<6x16xf32>
    %cst_84 = arith.constant dense<0.000000e+00> : vector<92x16xf32>
    %91 = tpu.matmul %89, %90, %cst_84 {dimension_numbers = #tpu.dot_dimension_numbers<[1], [0], [0], [1], [0, 0, 1, 1], [], []>} : vector<92x6xf32>, vector<6x16xf32>, vector<92x16xf32> -> vector<92x16xf32>
    %92 = arith.addf %88, %91 : vector<92x16xf32>
    %c37 = arith.constant 37 : index
    %c0_85 = arith.constant 0 : index
    %93 = vector.load %arg14[%c37, %c0_85] : memref<144x6xf32, #tpu.memory_space<vmem>>, vector<92x6xf32>
    %c0_86 = arith.constant 0 : index
    %c256 = arith.constant 256 : index
    %94 = vector.load %arg4[%c0_86, %c256] : memref<6x400xf32, #tpu.memory_space<vmem>>, vector<6x16xf32>
    %cst_87 = arith.constant dense<0.000000e+00> : vector<92x16xf32>
    %95 = tpu.matmul %93, %94, %cst_87 {dimension_numbers = #tpu.dot_dimension_numbers<[1], [0], [0], [1], [0, 0, 1, 1], [], []>} : vector<92x6xf32>, vector<6x16xf32>, vector<92x16xf32> -> vector<92x16xf32>
    %96 = arith.addf %92, %95 : vector<92x16xf32>
    %c38 = arith.constant 38 : index
    %c0_88 = arith.constant 0 : index
    %97 = vector.load %arg14[%c38, %c0_88] : memref<144x6xf32, #tpu.memory_space<vmem>>, vector<92x6xf32>
    %c0_89 = arith.constant 0 : index
    %c272 = arith.constant 272 : index
    %98 = vector.load %arg4[%c0_89, %c272] : memref<6x400xf32, #tpu.memory_space<vmem>>, vector<6x16xf32>
    %cst_90 = arith.constant dense<0.000000e+00> : vector<92x16xf32>
    %99 = tpu.matmul %97, %98, %cst_90 {dimension_numbers = #tpu.dot_dimension_numbers<[1], [0], [0], [1], [0, 0, 1, 1], [], []>} : vector<92x6xf32>, vector<6x16xf32>, vector<92x16xf32> -> vector<92x16xf32>
    %100 = arith.addf %96, %99 : vector<92x16xf32>
    %c39 = arith.constant 39 : index
    %c0_91 = arith.constant 0 : index
    %101 = vector.load %arg14[%c39, %c0_91] : memref<144x6xf32, #tpu.memory_space<vmem>>, vector<92x6xf32>
    %c0_92 = arith.constant 0 : index
    %c288 = arith.constant 288 : index
    %102 = vector.load %arg4[%c0_92, %c288] : memref<6x400xf32, #tpu.memory_space<vmem>>, vector<6x16xf32>
    %cst_93 = arith.constant dense<0.000000e+00> : vector<92x16xf32>
    %103 = tpu.matmul %101, %102, %cst_93 {dimension_numbers = #tpu.dot_dimension_numbers<[1], [0], [0], [1], [0, 0, 1, 1], [], []>} : vector<92x6xf32>, vector<6x16xf32>, vector<92x16xf32> -> vector<92x16xf32>
    %104 = arith.addf %100, %103 : vector<92x16xf32>
    %c40 = arith.constant 40 : index
    %c0_94 = arith.constant 0 : index
    %105 = vector.load %arg14[%c40, %c0_94] : memref<144x6xf32, #tpu.memory_space<vmem>>, vector<92x6xf32>
    %c0_95 = arith.constant 0 : index
    %c304 = arith.constant 304 : index
    %106 = vector.load %arg4[%c0_95, %c304] : memref<6x400xf32, #tpu.memory_space<vmem>>, vector<6x16xf32>
    %cst_96 = arith.constant dense<0.000000e+00> : vector<92x16xf32>
    %107 = tpu.matmul %105, %106, %cst_96 {dimension_numbers = #tpu.dot_dimension_numbers<[1], [0], [0], [1], [0, 0, 1, 1], [], []>} : vector<92x6xf32>, vector<6x16xf32>, vector<92x16xf32> -> vector<92x16xf32>
    %108 = arith.addf %104, %107 : vector<92x16xf32>
    %c48_97 = arith.constant 48 : index
    %c0_98 = arith.constant 0 : index
    %109 = vector.load %arg14[%c48_97, %c0_98] : memref<144x6xf32, #tpu.memory_space<vmem>>, vector<92x6xf32>
    %c0_99 = arith.constant 0 : index
    %c320 = arith.constant 320 : index
    %110 = vector.load %arg4[%c0_99, %c320] : memref<6x400xf32, #tpu.memory_space<vmem>>, vector<6x16xf32>
    %cst_100 = arith.constant dense<0.000000e+00> : vector<92x16xf32>
    %111 = tpu.matmul %109, %110, %cst_100 {dimension_numbers = #tpu.dot_dimension_numbers<[1], [0], [0], [1], [0, 0, 1, 1], [], []>} : vector<92x6xf32>, vector<6x16xf32>, vector<92x16xf32> -> vector<92x16xf32>
    %112 = arith.addf %108, %111 : vector<92x16xf32>
    %c49 = arith.constant 49 : index
    %c0_101 = arith.constant 0 : index
    %113 = vector.load %arg14[%c49, %c0_101] : memref<144x6xf32, #tpu.memory_space<vmem>>, vector<92x6xf32>
    %c0_102 = arith.constant 0 : index
    %c336 = arith.constant 336 : index
    %114 = vector.load %arg4[%c0_102, %c336] : memref<6x400xf32, #tpu.memory_space<vmem>>, vector<6x16xf32>
    %cst_103 = arith.constant dense<0.000000e+00> : vector<92x16xf32>
    %115 = tpu.matmul %113, %114, %cst_103 {dimension_numbers = #tpu.dot_dimension_numbers<[1], [0], [0], [1], [0, 0, 1, 1], [], []>} : vector<92x6xf32>, vector<6x16xf32>, vector<92x16xf32> -> vector<92x16xf32>
    %116 = arith.addf %112, %115 : vector<92x16xf32>
    %c50 = arith.constant 50 : index
    %c0_104 = arith.constant 0 : index
    %117 = vector.load %arg14[%c50, %c0_104] : memref<144x6xf32, #tpu.memory_space<vmem>>, vector<92x6xf32>
    %c0_105 = arith.constant 0 : index
    %c352 = arith.constant 352 : index
    %118 = vector.load %arg4[%c0_105, %c352] : memref<6x400xf32, #tpu.memory_space<vmem>>, vector<6x16xf32>
    %cst_106 = arith.constant dense<0.000000e+00> : vector<92x16xf32>
    %119 = tpu.matmul %117, %118, %cst_106 {dimension_numbers = #tpu.dot_dimension_numbers<[1], [0], [0], [1], [0, 0, 1, 1], [], []>} : vector<92x6xf32>, vector<6x16xf32>, vector<92x16xf32> -> vector<92x16xf32>
    %120 = arith.addf %116, %119 : vector<92x16xf32>
    %c51 = arith.constant 51 : index
    %c0_107 = arith.constant 0 : index
    %121 = vector.load %arg14[%c51, %c0_107] : memref<144x6xf32, #tpu.memory_space<vmem>>, vector<92x6xf32>
    %c0_108 = arith.constant 0 : index
    %c368 = arith.constant 368 : index
    %122 = vector.load %arg4[%c0_108, %c368] : memref<6x400xf32, #tpu.memory_space<vmem>>, vector<6x16xf32>
    %cst_109 = arith.constant dense<0.000000e+00> : vector<92x16xf32>
    %123 = tpu.matmul %121, %122, %cst_109 {dimension_numbers = #tpu.dot_dimension_numbers<[1], [0], [0], [1], [0, 0, 1, 1], [], []>} : vector<92x6xf32>, vector<6x16xf32>, vector<92x16xf32> -> vector<92x16xf32>
    %124 = arith.addf %120, %123 : vector<92x16xf32>
    %c52 = arith.constant 52 : index
    %c0_110 = arith.constant 0 : index
    %125 = vector.load %arg14[%c52, %c0_110] : memref<144x6xf32, #tpu.memory_space<vmem>>, vector<92x6xf32>
    %c0_111 = arith.constant 0 : index
    %c384 = arith.constant 384 : index
    %126 = vector.load %arg4[%c0_111, %c384] : memref<6x400xf32, #tpu.memory_space<vmem>>, vector<6x16xf32>
    %cst_112 = arith.constant dense<0.000000e+00> : vector<92x16xf32>
    %127 = tpu.matmul %125, %126, %cst_112 {dimension_numbers = #tpu.dot_dimension_numbers<[1], [0], [0], [1], [0, 0, 1, 1], [], []>} : vector<92x6xf32>, vector<6x16xf32>, vector<92x16xf32> -> vector<92x16xf32>
    %128 = arith.addf %124, %127 : vector<92x16xf32>
    %cst_113 = arith.constant 0.000000e+00 : f32
    %129 = vector.broadcast %cst_113 : f32 to vector<92x16xf32>
    %130 = arith.maximumf %128, %129 : vector<92x16xf32>
    %c0_114 = arith.constant 0 : index
    %c0_115 = arith.constant 0 : index
    %131 = vector.load %arg15[%c0_114, %c0_115] : memref<92x16xf32, #tpu.memory_space<vmem>>, vector<92x16xf32>
    tpu.vector_store %arg15[%c0_114, %c0_115], %130 {strides = array<i32>} : memref<92x16xf32, #tpu.memory_space<vmem>>, vector<92x16xf32>,
    %c0_116 = arith.constant 0 : index
    %c0_117 = arith.constant 0 : index
    %132 = vector.load %arg15[%c0_116, %c0_117] : memref<92x16xf32, #tpu.memory_space<vmem>>, vector<79x16xf32>
    %c1_118 = arith.constant 1 : index
    %c0_119 = arith.constant 0 : index
    %133 = vector.load %arg15[%c1_118, %c0_119] : memref<92x16xf32, #tpu.memory_space<vmem>>, vector<79x16xf32>
    %134 = arith.maximumf %132, %133 : vector<79x16xf32>
    %c12_120 = arith.constant 12 : index
    %c0_121 = arith.constant 0 : index
    %135 = vector.load %arg15[%c12_120, %c0_121] : memref<92x16xf32, #tpu.memory_space<vmem>>, vector<79x16xf32>
    %c13_122 = arith.constant 13 : index
    %c0_123 = arith.constant 0 : index
    %136 = vector.load %arg15[%c13_122, %c0_123] : memref<92x16xf32, #tpu.memory_space<vmem>>, vector<79x16xf32>
    %137 = arith.maximumf %135, %136 : vector<79x16xf32>
    %138 = arith.maximumf %134, %137 : vector<79x16xf32>
    %c0_124 = arith.constant 0 : index
    %c0_125 = arith.constant 0 : index
    %139 = vector.load %arg16[%c0_124, %c0_125] : memref<79x16xf32, #tpu.memory_space<vmem>>, vector<79x16xf32>
    tpu.vector_store %arg16[%c0_124, %c0_125], %138 {strides = array<i32>} : memref<79x16xf32, #tpu.memory_space<vmem>>, vector<79x16xf32>,
    %c0_126 = arith.constant 0 : index
    %c0_127 = arith.constant 0 : index
    %140 = vector.load %arg16[%c0_126, %c0_127] : memref<79x16xf32, #tpu.memory_space<vmem>>, vector<1x16xf32>
    %c0_128 = arith.constant 0 : index
    %c0_129 = arith.constant 0 : index
    %141 = vector.load %arg13[%c0_128, %c0_129] : memref<1x256xf32, #tpu.memory_space<vmem>>, vector<1x16xf32>
    tpu.vector_store %arg13[%c0_128, %c0_129], %140 {strides = array<i32>} : memref<1x256xf32, #tpu.memory_space<vmem>>, vector<1x16xf32>,
    %c2_130 = arith.constant 2 : index
    %c0_131 = arith.constant 0 : index
    %142 = vector.load %arg16[%c2_130, %c0_131] : memref<79x16xf32, #tpu.memory_space<vmem>>, vector<1x16xf32>
    %c0_132 = arith.constant 0 : index
    %c16_133 = arith.constant 16 : index
    %143 = vector.load %arg13[%c0_132, %c16_133] : memref<1x256xf32, #tpu.memory_space<vmem>>, vector<1x16xf32>
    tpu.vector_store %arg13[%c0_132, %c16_133], %142 {strides = array<i32>} : memref<1x256xf32, #tpu.memory_space<vmem>>, vector<1x16xf32>,
    %c4_134 = arith.constant 4 : index
    %c0_135 = arith.constant 0 : index
    %144 = vector.load %arg16[%c4_134, %c0_135] : memref<79x16xf32, #tpu.memory_space<vmem>>, vector<1x16xf32>
    %c0_136 = arith.constant 0 : index
    %c32_137 = arith.constant 32 : index
    %145 = vector.load %arg13[%c0_136, %c32_137] : memref<1x256xf32, #tpu.memory_space<vmem>>, vector<1x16xf32>
    tpu.vector_store %arg13[%c0_136, %c32_137], %144 {strides = array<i32>} : memref<1x256xf32, #tpu.memory_space<vmem>>, vector<1x16xf32>,
    %c6 = arith.constant 6 : index
    %c0_138 = arith.constant 0 : index
    %146 = vector.load %arg16[%c6, %c0_138] : memref<79x16xf32, #tpu.memory_space<vmem>>, vector<1x16xf32>
    %c0_139 = arith.constant 0 : index
    %c48_140 = arith.constant 48 : index
    %147 = vector.load %arg13[%c0_139, %c48_140] : memref<1x256xf32, #tpu.memory_space<vmem>>, vector<1x16xf32>
    tpu.vector_store %arg13[%c0_139, %c48_140], %146 {strides = array<i32>} : memref<1x256xf32, #tpu.memory_space<vmem>>, vector<1x16xf32>,
    %c24_141 = arith.constant 24 : index
    %c0_142 = arith.constant 0 : index
    %148 = vector.load %arg16[%c24_141, %c0_142] : memref<79x16xf32, #tpu.memory_space<vmem>>, vector<1x16xf32>
    %c0_143 = arith.constant 0 : index
    %c64_144 = arith.constant 64 : index
    %149 = vector.load %arg13[%c0_143, %c64_144] : memref<1x256xf32, #tpu.memory_space<vmem>>, vector<1x16xf32>
    tpu.vector_store %arg13[%c0_143, %c64_144], %148 {strides = array<i32>} : memref<1x256xf32, #tpu.memory_space<vmem>>, vector<1x16xf32>,
    %c26_145 = arith.constant 26 : index
    %c0_146 = arith.constant 0 : index
    %150 = vector.load %arg16[%c26_145, %c0_146] : memref<79x16xf32, #tpu.memory_space<vmem>>, vector<1x16xf32>
    %c0_147 = arith.constant 0 : index
    %c80_148 = arith.constant 80 : index
    %151 = vector.load %arg13[%c0_147, %c80_148] : memref<1x256xf32, #tpu.memory_space<vmem>>, vector<1x16xf32>
    tpu.vector_store %arg13[%c0_147, %c80_148], %150 {strides = array<i32>} : memref<1x256xf32, #tpu.memory_space<vmem>>, vector<1x16xf32>,
    %c28_149 = arith.constant 28 : index
    %c0_150 = arith.constant 0 : index
    %152 = vector.load %arg16[%c28_149, %c0_150] : memref<79x16xf32, #tpu.memory_space<vmem>>, vector<1x16xf32>
    %c0_151 = arith.constant 0 : index
    %c96_152 = arith.constant 96 : index
    %153 = vector.load %arg13[%c0_151, %c96_152] : memref<1x256xf32, #tpu.memory_space<vmem>>, vector<1x16xf32>
    tpu.vector_store %arg13[%c0_151, %c96_152], %152 {strides = array<i32>} : memref<1x256xf32, #tpu.memory_space<vmem>>, vector<1x16xf32>,
    %c30 = arith.constant 30 : index
    %c0_153 = arith.constant 0 : index
    %154 = vector.load %arg16[%c30, %c0_153] : memref<79x16xf32, #tpu.memory_space<vmem>>, vector<1x16xf32>
    %c0_154 = arith.constant 0 : index
    %c112_155 = arith.constant 112 : index
    %155 = vector.load %arg13[%c0_154, %c112_155] : memref<1x256xf32, #tpu.memory_space<vmem>>, vector<1x16xf32>
    tpu.vector_store %arg13[%c0_154, %c112_155], %154 {strides = array<i32>} : memref<1x256xf32, #tpu.memory_space<vmem>>, vector<1x16xf32>,
    %c48_156 = arith.constant 48 : index
    %c0_157 = arith.constant 0 : index
    %156 = vector.load %arg16[%c48_156, %c0_157] : memref<79x16xf32, #tpu.memory_space<vmem>>, vector<1x16xf32>
    %c0_158 = arith.constant 0 : index
    %c128_159 = arith.constant 128 : index
    %157 = vector.load %arg13[%c0_158, %c128_159] : memref<1x256xf32, #tpu.memory_space<vmem>>, vector<1x16xf32>
    tpu.vector_store %arg13[%c0_158, %c128_159], %156 {strides = array<i32>} : memref<1x256xf32, #tpu.memory_space<vmem>>, vector<1x16xf32>,
    %c50_160 = arith.constant 50 : index
    %c0_161 = arith.constant 0 : index
    %158 = vector.load %arg16[%c50_160, %c0_161] : memref<79x16xf32, #tpu.memory_space<vmem>>, vector<1x16xf32>
    %c0_162 = arith.constant 0 : index
    %c144_163 = arith.constant 144 : index
    %159 = vector.load %arg13[%c0_162, %c144_163] : memref<1x256xf32, #tpu.memory_space<vmem>>, vector<1x16xf32>
    tpu.vector_store %arg13[%c0_162, %c144_163], %158 {strides = array<i32>} : memref<1x256xf32, #tpu.memory_space<vmem>>, vector<1x16xf32>,
    %c52_164 = arith.constant 52 : index
    %c0_165 = arith.constant 0 : index
    %160 = vector.load %arg16[%c52_164, %c0_165] : memref<79x16xf32, #tpu.memory_space<vmem>>, vector<1x16xf32>
    %c0_166 = arith.constant 0 : index
    %c160_167 = arith.constant 160 : index
    %161 = vector.load %arg13[%c0_166, %c160_167] : memref<1x256xf32, #tpu.memory_space<vmem>>, vector<1x16xf32>
    tpu.vector_store %arg13[%c0_166, %c160_167], %160 {strides = array<i32>} : memref<1x256xf32, #tpu.memory_space<vmem>>, vector<1x16xf32>,
    %c54 = arith.constant 54 : index
    %c0_168 = arith.constant 0 : index
    %162 = vector.load %arg16[%c54, %c0_168] : memref<79x16xf32, #tpu.memory_space<vmem>>, vector<1x16xf32>
    %c0_169 = arith.constant 0 : index
    %c176_170 = arith.constant 176 : index
    %163 = vector.load %arg13[%c0_169, %c176_170] : memref<1x256xf32, #tpu.memory_space<vmem>>, vector<1x16xf32>
    tpu.vector_store %arg13[%c0_169, %c176_170], %162 {strides = array<i32>} : memref<1x256xf32, #tpu.memory_space<vmem>>, vector<1x16xf32>,
    %c72 = arith.constant 72 : index
    %c0_171 = arith.constant 0 : index
    %164 = vector.load %arg16[%c72, %c0_171] : memref<79x16xf32, #tpu.memory_space<vmem>>, vector<1x16xf32>
    %c0_172 = arith.constant 0 : index
    %c192_173 = arith.constant 192 : index
    %165 = vector.load %arg13[%c0_172, %c192_173] : memref<1x256xf32, #tpu.memory_space<vmem>>, vector<1x16xf32>
    tpu.vector_store %arg13[%c0_172, %c192_173], %164 {strides = array<i32>} : memref<1x256xf32, #tpu.memory_space<vmem>>, vector<1x16xf32>,
    %c74 = arith.constant 74 : index
    %c0_174 = arith.constant 0 : index
    %166 = vector.load %arg16[%c74, %c0_174] : memref<79x16xf32, #tpu.memory_space<vmem>>, vector<1x16xf32>
    %c0_175 = arith.constant 0 : index
    %c208_176 = arith.constant 208 : index
    %167 = vector.load %arg13[%c0_175, %c208_176] : memref<1x256xf32, #tpu.memory_space<vmem>>, vector<1x16xf32>
    tpu.vector_store %arg13[%c0_175, %c208_176], %166 {strides = array<i32>} : memref<1x256xf32, #tpu.memory_space<vmem>>, vector<1x16xf32>,
    %c76 = arith.constant 76 : index
    %c0_177 = arith.constant 0 : index
    %168 = vector.load %arg16[%c76, %c0_177] : memref<79x16xf32, #tpu.memory_space<vmem>>, vector<1x16xf32>
    %c0_178 = arith.constant 0 : index
    %c224_179 = arith.constant 224 : index
    %169 = vector.load %arg13[%c0_178, %c224_179] : memref<1x256xf32, #tpu.memory_space<vmem>>, vector<1x16xf32>
    tpu.vector_store %arg13[%c0_178, %c224_179], %168 {strides = array<i32>} : memref<1x256xf32, #tpu.memory_space<vmem>>, vector<1x16xf32>,
    %c78 = arith.constant 78 : index
    %c0_180 = arith.constant 0 : index
    %170 = vector.load %arg16[%c78, %c0_180] : memref<79x16xf32, #tpu.memory_space<vmem>>, vector<1x16xf32>
    %c0_181 = arith.constant 0 : index
    %c240_182 = arith.constant 240 : index
    %171 = vector.load %arg13[%c0_181, %c240_182] : memref<1x256xf32, #tpu.memory_space<vmem>>, vector<1x16xf32>
    tpu.vector_store %arg13[%c0_181, %c240_182], %170 {strides = array<i32>} : memref<1x256xf32, #tpu.memory_space<vmem>>, vector<1x16xf32>,
    %c0_183 = arith.constant 0 : index
    %c0_184 = arith.constant 0 : index
    %172 = vector.load %arg13[%c0_183, %c0_184] : memref<1x256xf32, #tpu.memory_space<vmem>>, vector<1x256xf32>
    %c0_185 = arith.constant 0 : index
    %c0_186 = arith.constant 0 : index
    %173 = vector.load %arg6[%c0_185, %c0_186] : memref<256x120xf32, #tpu.memory_space<vmem>>, vector<256x120xf32>
    %cst_187 = arith.constant dense<0.000000e+00> : vector<1x120xf32>
    %174 = tpu.matmul %172, %173, %cst_187 {dimension_numbers = #tpu.dot_dimension_numbers<[1], [0], [0], [1], [0, 0, 1, 1], [], []>} : vector<1x256xf32>, vector<256x120xf32>, vector<1x120xf32> -> vector<1x120xf32>
    %c0_188 = arith.constant 0 : index
    %c0_189 = arith.constant 0 : index
    %175 = vector.load %arg7[%c0_188, %c0_189] : memref<1x120xf32, #tpu.memory_space<vmem>>, vector<1x120xf32>
    %176 = arith.addf %174, %175 : vector<1x120xf32>
    %cst_190 = arith.constant 0.000000e+00 : f32
    %177 = vector.broadcast %cst_190 : f32 to vector<1x120xf32>
    %178 = arith.maximumf %176, %177 : vector<1x120xf32>
    %c0_191 = arith.constant 0 : index
    %c0_192 = arith.constant 0 : index
    %179 = vector.load %arg8[%c0_191, %c0_192] : memref<120x84xf32, #tpu.memory_space<vmem>>, vector<120x84xf32>
    %cst_193 = arith.constant dense<0.000000e+00> : vector<1x84xf32>
    %180 = tpu.matmul %178, %179, %cst_193 {dimension_numbers = #tpu.dot_dimension_numbers<[1], [0], [0], [1], [0, 0, 1, 1], [], []>} : vector<1x120xf32>, vector<120x84xf32>, vector<1x84xf32> -> vector<1x84xf32>
    %c0_194 = arith.constant 0 : index
    %c0_195 = arith.constant 0 : index
    %181 = vector.load %arg9[%c0_194, %c0_195] : memref<1x84xf32, #tpu.memory_space<vmem>>, vector<1x84xf32>
    %182 = arith.addf %180, %181 : vector<1x84xf32>
    %cst_196 = arith.constant 0.000000e+00 : f32
    %183 = vector.broadcast %cst_196 : f32 to vector<1x84xf32>
    %184 = arith.maximumf %182, %183 : vector<1x84xf32>
    %c0_197 = arith.constant 0 : index
    %c0_198 = arith.constant 0 : index
    %185 = vector.load %arg10[%c0_197, %c0_198] : memref<84x10xf32, #tpu.memory_space<vmem>>, vector<84x10xf32>
    %cst_199 = arith.constant dense<0.000000e+00> : vector<1x10xf32>
    %186 = tpu.matmul %184, %185, %cst_199 {dimension_numbers = #tpu.dot_dimension_numbers<[1], [0], [0], [1], [0, 0, 1, 1], [], []>} : vector<1x84xf32>, vector<84x10xf32>, vector<1x10xf32> -> vector<1x10xf32>
    %c0_200 = arith.constant 0 : index
    %c0_201 = arith.constant 0 : index
    %187 = vector.load %arg11[%c0_200, %c0_201] : memref<1x10xf32, #tpu.memory_space<vmem>>, vector<1x10xf32>
    %188 = arith.addf %186, %187 : vector<1x10xf32>
    %cst_202 = arith.constant 5.000000e-01 : f32
    %189 = vector.broadcast %cst_202 : f32 to vector<1x10xf32>
    %190 = arith.mulf %188, %189 : vector<1x10xf32>
    %c0_203 = arith.constant 0 : index
    %c0_204 = arith.constant 0 : index
    %c0_205 = arith.constant 0 : index
    %191 = vector.load %arg12[%c0_203, %c0_204, %c0_205] : memref<1x1x10xf32, #tpu.memory_space<vmem>>, vector<1x1x10xf32>
    %192 = vector.shape_cast %191 : vector<1x1x10xf32> to vector<1x10xf32>
    %193 = vector.shape_cast %190 : vector<1x10xf32> to vector<1x1x10xf32>
    tpu.vector_store %arg12[%c0_203, %c0_204, %c0_205], %193 {strides = array<i32>} : memref<1x1x10xf32, #tpu.memory_space<vmem>>, vector<1x1x10xf32>,
    return
  }
  func.func @transform_0(%arg0: i32) -> (i32, i32, i32, i32) {
    %c0_i32 = arith.constant 0 : i32
    %c0_i32_0 = arith.constant 0 : i32
    %c0_i32_1 = arith.constant 0 : i32
    %c0_i32_2 = arith.constant 0 : i32
    return %arg0, %c0_i32, %c0_i32_0, %c0_i32_1 : i32, i32, i32, i32
  }
  func.func @transform_1(%arg0: i32) -> (i32, i32) {
    %c0_i32 = arith.constant 0 : i32
    %c0_i32_0 = arith.constant 0 : i32
    %c0_i32_1 = arith.constant 0 : i32
    return %c0_i32, %c0_i32_0 : i32, i32
  }
  func.func @transform_2(%arg0: i32) -> (i32, i32) {
    %c0_i32 = arith.constant 0 : i32
    %c0_i32_0 = arith.constant 0 : i32
    %c0_i32_1 = arith.constant 0 : i32
    return %c0_i32, %c0_i32_0 : i32, i32
  }
  func.func @transform_3(%arg0: i32) -> (i32, i32) {
    %c0_i32 = arith.constant 0 : i32
    %c0_i32_0 = arith.constant 0 : i32
    %c0_i32_1 = arith.constant 0 : i32
    return %c0_i32, %c0_i32_0 : i32, i32
  }
  func.func @transform_4(%arg0: i32) -> (i32, i32) {
    %c0_i32 = arith.constant 0 : i32
    %c0_i32_0 = arith.constant 0 : i32
    %c0_i32_1 = arith.constant 0 : i32
    return %c0_i32, %c0_i32_0 : i32, i32
  }
  func.func @transform_5(%arg0: i32) -> (i32, i32) {
    %c0_i32 = arith.constant 0 : i32
    %c0_i32_0 = arith.constant 0 : i32
    %c0_i32_1 = arith.constant 0 : i32
    return %c0_i32, %c0_i32_0 : i32, i32
  }
  func.func @transform_6(%arg0: i32) -> (i32, i32) {
    %c0_i32 = arith.constant 0 : i32
    %c0_i32_0 = arith.constant 0 : i32
    %c0_i32_1 = arith.constant 0 : i32
    return %c0_i32, %c0_i32_0 : i32, i32
  }
  func.func @transform_7(%arg0: i32) -> (i32, i32) {
    %c0_i32 = arith.constant 0 : i32
    %c0_i32_0 = arith.constant 0 : i32
    %c0_i32_1 = arith.constant 0 : i32
    return %c0_i32, %c0_i32_0 : i32, i32
  }
  func.func @transform_8(%arg0: i32) -> (i32, i32) {
    %c0_i32 = arith.constant 0 : i32
    %c0_i32_0 = arith.constant 0 : i32
    %c0_i32_1 = arith.constant 0 : i32
    return %c0_i32, %c0_i32_0 : i32, i32
  }
  func.func @transform_9(%arg0: i32) -> (i32, i32) {
    %c0_i32 = arith.constant 0 : i32
    %c0_i32_0 = arith.constant 0 : i32
    %c0_i32_1 = arith.constant 0 : i32
    return %c0_i32, %c0_i32_0 : i32, i32
  }
  func.func @transform_10(%arg0: i32) -> (i32, i32) {
    %c0_i32 = arith.constant 0 : i32
    %c0_i32_0 = arith.constant 0 : i32
    %c0_i32_1 = arith.constant 0 : i32
    return %c0_i32, %c0_i32_0 : i32, i32
  }
  func.func @transform_11(%arg0: i32) -> (i32, i32, i32) {
    %c0_i32 = arith.constant 0 : i32
    %c0_i32_0 = arith.constant 0 : i32
    %c0_i32_1 = arith.constant 0 : i32
    return %arg0, %c0_i32, %c0_i32_0 : i32, i32, i32
  }
}

</mosaic_0001>

<llo_original>
// kernel: _lambda_.1
$region0: #{_lambda_.1}
  #allocation0 [shape = 'u32[]', space=smem, size = 0x4, offset = 0x4, fixed_abs, tag = 'smem constant byte address 0x4 - core index']
  #allocation1 [shape = 'u32[144,128]{1,0:T(1,128)}', space=vmem, size = 0x12000, scoped, tag = 'internal scratch']
  #allocation2 [shape = 'f32[1,256]{1,0:T(1,128)}', space=vmem, size = 0x400, scoped, tag = 'scratch operand']
  #allocation3 [shape = 'f32[144,6]{1,0:T(8,128)}', space=vmem, size = 0x12000, scoped, tag = 'scratch operand']
  #allocation4 [shape = 'f32[92,16]{1,0:T(8,128)}', space=vmem, size = 0xc000, scoped, tag = 'scratch operand']
  #allocation5 [shape = 'f32[79,16]{1,0:T(8,128)}', space=vmem, size = 0xa000, scoped, tag = 'scratch operand']
  %s0 = inlined_call_operand.vmem [shape: f32[2,4,144,25], index: 0, kind: input, shape index: {}]
  %s1 = inlined_call_operand.vmem [shape: f32[25,6], index: 1, kind: input, shape index: {}]
  %s2 = inlined_call_operand.vmem [shape: f32[1,6], index: 2, kind: input, shape index: {}]
  %s3 = inlined_call_operand.vmem [shape: f32[6,400], index: 3, kind: input, shape index: {}]
  %s4 = inlined_call_operand.vmem [shape: f32[1,16], index: 4, kind: input, shape index: {}]
  %s5 = inlined_call_operand.vmem [shape: f32[256,120], index: 5, kind: input, shape index: {}]
  %s6 = inlined_call_operand.vmem [shape: f32[1,120], index: 6, kind: input, shape index: {}]
  %s7 = inlined_call_operand.vmem [shape: f32[120,84], index: 7, kind: input, shape index: {}]
  %s8 = inlined_call_operand.vmem [shape: f32[1,84], index: 8, kind: input, shape index: {}]
  %s9 = inlined_call_operand.vmem [shape: f32[84,10], index: 9, kind: input, shape index: {}]
  %s10 = inlined_call_operand.vmem [shape: f32[1,10], index: 10, kind: input, shape index: {}]
  %s11 = inlined_call_operand.hbm [shape: f32[2,1,10], index: 11, kind: output, shape index: {}]
  %s12 = sld [smem:[#allocation0]]
  $region77: #{_lambda_.1} parent=0
    _
  %s14 = ssub.s32 1, %s12
  %s15 = scalar_select 0, %s14, %s12
  $region1: #{_lambda_.1} parent=0
    #allocation6 [shape = 'u8[1024]{0}', space=vmem, size = 0x400, scoped, tag = 'output window, operand 0']
    #allocation7 [shape = 's32[2]{0}', space=sflag, size = 0x8, scoped, tag = 'scoped memory for _lambda_.1']
    %16 = vsyncpa [#allocation7], 0
    %s17 = scalar_lea.sflag [#allocation7], 1
    %18 = vsyncpa %s17, 0
    loop: start=0, step=1, limit=4
    $region2: #{_lambda_.1} parent=1 // loop_pre_header
      _
    $region3: #{_lambda_.1} parent=1 // loop_header
      %s20 = sphi 0, %s24
      %p21 = scmp.ge.s32.totalorder %s20, 4
      %s30 = sphi 0, %s32
      %s33 = sphi 0, %s30
      %s34 = sphi 0, %s33
      %s50 = sphi 0, %s34
      %s54 = sphi 0, %s54
      %s56 = sphi 0, %s54
      %s57 = sphi 0, %s56
      %s71 = sphi 0, %s57
      %s75 = sphi 0, %s75
      %s77 = sphi 0, %s75
      %s78 = sphi 0, %s77
      %s92 = sphi 0, %s78
      %s96 = sphi 0, %s96
      %s98 = sphi 0, %s96
      %s99 = sphi 0, %s98
      %s113 = sphi 0, %s99
      %s117 = sphi 0, %s117
      %s119 = sphi 0, %s117
      %s120 = sphi 0, %s119
      %s134 = sphi 0, %s120
      %s138 = sphi 0, %s138
      %s140 = sphi 0, %s138
      %s141 = sphi 0, %s140
      %s155 = sphi 0, %s141
      %s159 = sphi 0, %s159
      %s161 = sphi 0, %s159
      %s162 = sphi 0, %s161
      %s176 = sphi 0, %s162
      %s180 = sphi 0, %s180
      %s182 = sphi 0, %s180
      %s183 = sphi 0, %s182
      %s197 = sphi 0, %s183
      %s201 = sphi 0, %s201
      %s203 = sphi 0, %s201
      %s204 = sphi 0, %s203
      %s218 = sphi 0, %s204
      %s222 = sphi 0, %s222
      %s224 = sphi 0, %s222
      %s225 = sphi 0, %s224
      %s239 = sphi 0, %s225
      %s243 = sphi 0, %s243
      %s245 = sphi 0, %s243
      %s246 = sphi 0, %s245
      %s260 = sphi 0, %s246
      %s266 = sphi 0, %s268
      %s269 = sphi 0, %s266
      %s270 = sphi 0, %s269
      %s286 = sphi 0, %s270
    $region4: #{_lambda_.1} parent=1 // loop_header_branch
      %23 = sbr.rel (%p21) target = $region8
    $region5: #{_lambda_.1} parent=1 // loop_body
      %s25 = ssub.s32 %s20, 1
      %s26 = ssub.s32 %s20, 2
      %s27 = sadd.s32 %s20, 1
      %s28 = ssub.s32 %s20, %s27
      %p29 = scmp.eq.s32.totalorder %s28, 0
      %s31 = sadd.s32 %s30, 1
      %s32 = scalar_select %p29, %s30, %s31
      %p35 = pneg %p29
      %p36 = scmp.eq.s32.totalorder %s20, 1
      %p37 = por %p35, %p36
      %p38 = scmp.ne.s32.totalorder %s30, %s33
      %p39 = scmp.eq.s32.totalorder %s20, 0
      %p40 = por %p38, %p39
      %p41 = scmp.ne.s32.totalorder %s30, %s33
      %p42 = scmp.eq.s32.totalorder %s25, 1
      %p43 = por %p41, %p42
      %p44 = scmp.ne.s32.totalorder %s33, %s34
      %p45 = scmp.eq.s32.totalorder %s25, 0
      %p46 = por %p44, %p45
      %p47 = scmp.ne.s32.totalorder %s33, %s34
      %p48 = scmp.eq.s32.totalorder %s26, 1
      %p49 = por %p47, %p48
      %p51 = scmp.ne.s32.totalorder %s34, %s50
      %p52 = scmp.eq.s32.totalorder %s26, 0
      %p53 = por %p51, %p52
      %s55 = sadd.s32 %s54, 1
      %p58 = scmp.eq.s32.totalorder %s20, 1
      %p59 = scmp.ne.s32.totalorder %s54, %s56
      %p60 = scmp.eq.s32.totalorder %s20, 0
      %p61 = por %p59, %p60
      %p62 = scmp.ne.s32.totalorder %s54, %s56
      %p63 = scmp.eq.s32.totalorder %s25, 1
      %p64 = por %p62, %p63
      %p65 = scmp.ne.s32.totalorder %s56, %s57
      %p66 = scmp.eq.s32.totalorder %s25, 0
      %p67 = por %p65, %p66
      %p68 = scmp.ne.s32.totalorder %s56, %s57
      %p69 = scmp.eq.s32.totalorder %s26, 1
      %p70 = por %p68, %p69
      %p72 = scmp.ne.s32.totalorder %s57, %s71
      %p73 = scmp.eq.s32.totalorder %s26, 0
      %p74 = por %p72, %p73
      %s76 = sadd.s32 %s75, 1
      %p79 = scmp.eq.s32.totalorder %s20, 1
      %p80 = scmp.ne.s32.totalorder %s75, %s77
      %p81 = scmp.eq.s32.totalorder %s20, 0
      %p82 = por %p80, %p81
      %p83 = scmp.ne.s32.totalorder %s75, %s77
      %p84 = scmp.eq.s32.totalorder %s25, 1
      %p85 = por %p83, %p84
      %p86 = scmp.ne.s32.totalorder %s77, %s78
      %p87 = scmp.eq.s32.totalorder %s25, 0
      %p88 = por %p86, %p87
      %p89 = scmp.ne.s32.totalorder %s77, %s78
      %p90 = scmp.eq.s32.totalorder %s26, 1
      %p91 = por %p89, %p90
      %p93 = scmp.ne.s32.totalorder %s78, %s92
      %p94 = scmp.eq.s32.totalorder %s26, 0
      %p95 = por %p93, %p94
      %s97 = sadd.s32 %s96, 1
      %p100 = scmp.eq.s32.totalorder %s20, 1
      %p101 = scmp.ne.s32.totalorder %s96, %s98
      %p102 = scmp.eq.s32.totalorder %s20, 0
      %p103 = por %p101, %p102
      %p104 = scmp.ne.s32.totalorder %s96, %s98
      %p105 = scmp.eq.s32.totalorder %s25, 1
      %p106 = por %p104, %p105
      %p107 = scmp.ne.s32.totalorder %s98, %s99
      %p108 = scmp.eq.s32.totalorder %s25, 0
      %p109 = por %p107, %p108
      %p110 = scmp.ne.s32.totalorder %s98, %s99
      %p111 = scmp.eq.s32.totalorder %s26, 1
      %p112 = por %p110, %p111
      %p114 = scmp.ne.s32.totalorder %s99, %s113
      %p115 = scmp.eq.s32.totalorder %s26, 0
      %p116 = por %p114, %p115
      %s118 = sadd.s32 %s117, 1
      %p121 = scmp.eq.s32.totalorder %s20, 1
      %p122 = scmp.ne.s32.totalorder %s117, %s119
      %p123 = scmp.eq.s32.totalorder %s20, 0
      %p124 = por %p122, %p123
      %p125 = scmp.ne.s32.totalorder %s117, %s119
      %p126 = scmp.eq.s32.totalorder %s25, 1
      %p127 = por %p125, %p126
      %p128 = scmp.ne.s32.totalorder %s119, %s120
      %p129 = scmp.eq.s32.totalorder %s25, 0
      %p130 = por %p128, %p129
      %p131 = scmp.ne.s32.totalorder %s119, %s120
      %p132 = scmp.eq.s32.totalorder %s26, 1
      %p133 = por %p131, %p132
      %p135 = scmp.ne.s32.totalorder %s120, %s134
      %p136 = scmp.eq.s32.totalorder %s26, 0
      %p137 = por %p135, %p136
      %s139 = sadd.s32 %s138, 1
      %p142 = scmp.eq.s32.totalorder %s20, 1
      %p143 = scmp.ne.s32.totalorder %s138, %s140
      %p144 = scmp.eq.s32.totalorder %s20, 0
      %p145 = por %p143, %p144
      %p146 = scmp.ne.s32.totalorder %s138, %s140
      %p147 = scmp.eq.s32.totalorder %s25, 1
      %p148 = por %p146, %p147
      %p149 = scmp.ne.s32.totalorder %s140, %s141
      %p150 = scmp.eq.s32.totalorder %s25, 0
      %p151 = por %p149, %p150
      %p152 = scmp.ne.s32.totalorder %s140, %s141
      %p153 = scmp.eq.s32.totalorder %s26, 1
      %p154 = por %p152, %p153
      %p156 = scmp.ne.s32.totalorder %s141, %s155
      %p157 = scmp.eq.s32.totalorder %s26, 0
      %p158 = por %p156, %p157
      %s160 = sadd.s32 %s159, 1
      %p163 = scmp.eq.s32.totalorder %s20, 1
      %p164 = scmp.ne.s32.totalorder %s159, %s161
      %p165 = scmp.eq.s32.totalorder %s20, 0
      %p166 = por %p164, %p165
      %p167 = scmp.ne.s32.totalorder %s159, %s161
      %p168 = scmp.eq.s32.totalorder %s25, 1
      %p169 = por %p167, %p168
      %p170 = scmp.ne.s32.totalorder %s161, %s162
      %p171 = scmp.eq.s32.totalorder %s25, 0
      %p172 = por %p170, %p171
      %p173 = scmp.ne.s32.totalorder %s161, %s162
      %p174 = scmp.eq.s32.totalorder %s26, 1
      %p175 = por %p173, %p174
      %p177 = scmp.ne.s32.totalorder %s162, %s176
      %p178 = scmp.eq.s32.totalorder %s26, 0
      %p179 = por %p177, %p178
      %s181 = sadd.s32 %s180, 1
      %p184 = scmp.eq.s32.totalorder %s20, 1
      %p185 = scmp.ne.s32.totalorder %s180, %s182
      %p186 = scmp.eq.s32.totalorder %s20, 0
      %p187 = por %p185, %p186
      %p188 = scmp.ne.s32.totalorder %s180, %s182
      %p189 = scmp.eq.s32.totalorder %s25, 1
      %p190 = por %p188, %p189
      %p191 = scmp.ne.s32.totalorder %s182, %s183
      %p192 = scmp.eq.s32.totalorder %s25, 0
      %p193 = por %p191, %p192
      %p194 = scmp.ne.s32.totalorder %s182, %s183
      %p195 = scmp.eq.s32.totalorder %s26, 1
      %p196 = por %p194, %p195
      %p198 = scmp.ne.s32.totalorder %s183, %s197
      %p199 = scmp.eq.s32.totalorder %s26, 0
      %p200 = por %p198, %p199
      %s202 = sadd.s32 %s201, 1
      %p205 = scmp.eq.s32.totalorder %s20, 1
      %p206 = scmp.ne.s32.totalorder %s201, %s203
      %p207 = scmp.eq.s32.totalorder %s20, 0
      %p208 = por %p206, %p207
      %p209 = scmp.ne.s32.totalorder %s201, %s203
      %p210 = scmp.eq.s32.totalorder %s25, 1
      %p211 = por %p209, %p210
      %p212 = scmp.ne.s32.totalorder %s203, %s204
      %p213 = scmp.eq.s32.totalorder %s25, 0
      %p214 = por %p212, %p213
      %p215 = scmp.ne.s32.totalorder %s203, %s204
      %p216 = scmp.eq.s32.totalorder %s26, 1
      %p217 = por %p215, %p216
      %p219 = scmp.ne.s32.totalorder %s204, %s218
      %p220 = scmp.eq.s32.totalorder %s26, 0
      %p221 = por %p219, %p220
      %s223 = sadd.s32 %s222, 1
      %p226 = scmp.eq.s32.totalorder %s20, 1
      %p227 = scmp.ne.s32.totalorder %s222, %s224
      %p228 = scmp.eq.s32.totalorder %s20, 0
      %p229 = por %p227, %p228
      %p230 = scmp.ne.s32.totalorder %s222, %s224
      %p231 = scmp.eq.s32.totalorder %s25, 1
      %p232 = por %p230, %p231
      %p233 = scmp.ne.s32.totalorder %s224, %s225
      %p234 = scmp.eq.s32.totalorder %s25, 0
      %p235 = por %p233, %p234
      %p236 = scmp.ne.s32.totalorder %s224, %s225
      %p237 = scmp.eq.s32.totalorder %s26, 1
      %p238 = por %p236, %p237
      %p240 = scmp.ne.s32.totalorder %s225, %s239
      %p241 = scmp.eq.s32.totalorder %s26, 0
      %p242 = por %p240, %p241
      %s244 = sadd.s32 %s243, 1
      %p247 = scmp.eq.s32.totalorder %s20, 1
      %p248 = scmp.ne.s32.totalorder %s243, %s245
      %p249 = scmp.eq.s32.totalorder %s20, 0
      %p250 = por %p248, %p249
      %p251 = scmp.ne.s32.totalorder %s243, %s245
      %p252 = scmp.eq.s32.totalorder %s25, 1
      %p253 = por %p251, %p252
      %p254 = scmp.ne.s32.totalorder %s245, %s246
      %p255 = scmp.eq.s32.totalorder %s25, 0
      %p256 = por %p254, %p255
      %p257 = scmp.ne.s32.totalorder %s245, %s246
      %p258 = scmp.eq.s32.totalorder %s26, 1
      %p259 = por %p257, %p258
      %p261 = scmp.ne.s32.totalorder %s246, %s260
      %p262 = scmp.eq.s32.totalorder %s26, 0
      %p263 = por %p261, %p262
      %s264 = ssub.s32 %s20, %s27
      %p265 = scmp.eq.s32.totalorder %s264, 0
      %s267 = sadd.s32 %s266, 1
      %s268 = scalar_select %p265, %s266, %s267
      %p271 = pneg %p265
      %p272 = scmp.eq.s32.totalorder %s20, 1
      %p273 = por %p271, %p272
      %p274 = scmp.ne.s32.totalorder %s266, %s269
      %p275 = scmp.eq.s32.totalorder %s20, 0
      %p276 = por %p274, %p275
      %p277 = scmp.ne.s32.totalorder %s266, %s269
      %p278 = scmp.eq.s32.totalorder %s25, 1
      %p279 = por %p277, %p278
      %p280 = scmp.ne.s32.totalorder %s269, %s270
      %p281 = scmp.eq.s32.totalorder %s25, 0
      %p282 = por %p280, %p281
      %p283 = scmp.ne.s32.totalorder %s269, %s270
      %p284 = scmp.eq.s32.totalorder %s26, 1
      %p285 = por %p283, %p284
      %p287 = scmp.ne.s32.totalorder %s270, %s286
      %p288 = scmp.eq.s32.totalorder %s26, 0
      %p289 = por %p287, %p288
      %p290 = scmp.le.s32.totalorder 1, %s20
      %p291 = scmp.lt.s32.totalorder %s20, 3
      %p292 = pnand %p290, %p291
      %p293 = pneg %p292
      // Predicated region
      $region9: #{_lambda_.1} parent=5 // pred_check
        _
      $region10: #{_lambda_.1} parent=5 // pred_check_branch
        %295 = sbr.rel (%p292) target = $region12
      $region11: #{_lambda_.1} parent=5 // pred_region
        %s296 = ssub.s32 %s20, 1
        // Predicated region
        $region13: #{_lambda_.1} parent=11 // pred_check
          %p297 = pneg %p67
        $region14: #{_lambda_.1} parent=11 // pred_check_branch
          %299 = sbr.rel (%p297) target = $region16
        $region15: #{_lambda_.1} parent=11 // pred_region
          _
        $region16: #{_lambda_.1} parent=11 // pred_fallthru
          _
        // Predicated region
        $region17: #{_lambda_.1} parent=11 // pred_check
          %p300 = pneg %p88
        $region18: #{_lambda_.1} parent=11 // pred_check_branch
          %302 = sbr.rel (%p300) target = $region20
        $region19: #{_lambda_.1} parent=11 // pred_region
          _
        $region20: #{_lambda_.1} parent=11 // pred_fallthru
          _
        // Predicated region
        $region21: #{_lambda_.1} parent=11 // pred_check
          %p303 = pneg %p109
        $region22: #{_lambda_.1} parent=11 // pred_check_branch
          %305 = sbr.rel (%p303) target = $region24
        $region23: #{_lambda_.1} parent=11 // pred_region
          _
        $region24: #{_lambda_.1} parent=11 // pred_fallthru
          _
        // Predicated region
        $region25: #{_lambda_.1} parent=11 // pred_check
          %p306 = pneg %p130
        $region26: #{_lambda_.1} parent=11 // pred_check_branch
          %308 = sbr.rel (%p306) target = $region28
        $region27: #{_lambda_.1} parent=11 // pred_region
          _
        $region28: #{_lambda_.1} parent=11 // pred_fallthru
          _
        // Predicated region
        $region29: #{_lambda_.1} parent=11 // pred_check
          %p309 = pneg %p151
        $region30: #{_lambda_.1} parent=11 // pred_check_branch
          %311 = sbr.rel (%p309) target = $region32
        $region31: #{_lambda_.1} parent=11 // pred_region
          _
        $region32: #{_lambda_.1} parent=11 // pred_fallthru
          _
        // Predicated region
        $region33: #{_lambda_.1} parent=11 // pred_check
          %p312 = pneg %p172
        $region34: #{_lambda_.1} parent=11 // pred_check_branch
          %314 = sbr.rel (%p312) target = $region36
        $region35: #{_lambda_.1} parent=11 // pred_region
          _
        $region36: #{_lambda_.1} parent=11 // pred_fallthru
          _
        // Predicated region
        $region37: #{_lambda_.1} parent=11 // pred_check
          %p315 = pneg %p193
        $region38: #{_lambda_.1} parent=11 // pred_check_branch
          %317 = sbr.rel (%p315) target = $region40
        $region39: #{_lambda_.1} parent=11 // pred_region
          _
        $region40: #{_lambda_.1} parent=11 // pred_fallthru
          _
        // Predicated region
        $region41: #{_lambda_.1} parent=11 // pred_check
          %p318 = pneg %p214
        $region42: #{_lambda_.1} parent=11 // pred_check_branch
          %320 = sbr.rel (%p318) target = $region44
        $region43: #{_lambda_.1} parent=11 // pred_region
          _
        $region44: #{_lambda_.1} parent=11 // pred_fallthru
          _
        // Predicated region
        $region45: #{_lambda_.1} parent=11 // pred_check
          %p321 = pneg %p235
        $region46: #{_lambda_.1} parent=11 // pred_check_branch
          %323 = sbr.rel (%p321) target = $region48
        $region47: #{_lambda_.1} parent=11 // pred_region
          _
        $region48: #{_lambda_.1} parent=11 // pred_fallthru
          _
        // Predicated region
        $region49: #{_lambda_.1} parent=11 // pred_check
          %p324 = pneg %p256
        $region50: #{_lambda_.1} parent=11 // pred_check_branch
          %326 = sbr.rel (%p324) target = $region52
        $region51: #{_lambda_.1} parent=11 // pred_region
          _
        $region52: #{_lambda_.1} parent=11 // pred_fallthru
          _
      $region12: #{_lambda_.1} parent=5 // pred_fallthru
        _
      %p327 = scmp.lt.s32.totalorder %s20, 2
      // Predicated region
      $region53: #{_lambda_.1} parent=5 // pred_check
        %p328 = pneg %p327
      $region54: #{_lambda_.1} parent=5 // pred_check_branch
        %330 = sbr.rel (%p328) target = $region56
      $region55: #{_lambda_.1} parent=5 // pred_region
        // Predicated region
        $region57: #{_lambda_.1} parent=55 // pred_check
          %p331 = pneg %p40
        $region58: #{_lambda_.1} parent=55 // pred_check_branch
          %333 = sbr.rel (%p331) target = $region60
        $region59: #{_lambda_.1} parent=55 // pred_region
          %p334 = scmp.lt.s32.totalorder %s20, 1
          %s335 = scalar_select %p334, %s20, 1
          %s336 = smul.addr %s335, 72
          %s337 = smul.addr %s336, 8
          %s338 = scalar_lea.vmem %s0, %s337
        $region60: #{_lambda_.1} parent=55 // pred_fallthru
          _
      $region56: #{_lambda_.1} parent=5 // pred_fallthru
        _
      %p339 = scmp.le.s32.totalorder 1, %s20
      %p340 = scmp.lt.s32.totalorder %s20, 3
      %p341 = pnand %p339, %p340
      %p342 = pneg %p341
      // Predicated region
      $region61: #{_lambda_.1} parent=5 // pred_check
        _
      $region62: #{_lambda_.1} parent=5 // pred_check_branch
        %344 = sbr.rel (%p341) target = $region64
      $region63: #{_lambda_.1} parent=5 // pred_region
        %s345 = ssub.s32 %s20, 1
        %p346 = scmp.lt.s32.totalorder %s25, 1
        %s347 = scalar_select %p346, %s25, 1
        %s348 = smul.addr %s347, 72
        %s349 = smul.addr %s348, 8
        %s350 = scalar_lea.vmem %s0, %s349
        %p351 = pneg %p46
        %p352 = pneg %p43
        %p353 = pneg %p67
        %p354 = pneg %p64
        %p355 = pneg %p88
        %p356 = pneg %p85
        %p357 = pneg %p109
        %p358 = pneg %p106
        %p359 = pneg %p130
        %p360 = pneg %p127
        %p361 = pneg %p151
        %p362 = pneg %p148
        %p363 = pneg %p172
        %p364 = pneg %p169
        %p365 = pneg %p193
        %p366 = pneg %p190
        %p367 = pneg %p214
        %p368 = pneg %p211
        %p369 = pneg %p235
        %p370 = pneg %p232
        %p371 = pneg %p256
        %p372 = pneg %p253
        %p373 = pneg %p282
        %p374 = pneg %p279
        %s375 = sand.u32 %s269, 1
        %s376 = scalar_lea.sflag [#allocation7], %s375
        %s377 = sand.u32 %s269, 1
        %s378 = scalar_lea.vmem [#allocation6], %s377
        %p379 = scmp.lt.s32.totalorder %s25, 1
        %s380 = scalar_select %p379, %s25, 1
        %s381 = smul.addr %s380, 72
        %s382 = smul.addr %s381, 8
        %s383 = scalar_lea.vmem %s0, %s382
        %v384 = vld [vmem:[%s383] sm:$0xff]
        %v385 = vld [vmem:[%s383 + $0x8] sm:$0xff]
        %v386 = vld [vmem:[%s383 + $0x10] sm:$0xff]
        %v387 = vld [vmem:[%s383 + $0x18] sm:$0xff]
        %v388 = vld [vmem:[%s383 + $0x20] sm:$0xff]
        %v389 = vld [vmem:[%s383 + $0x28] sm:$0xff]
        %v390 = vld [vmem:[%s383 + $0x30] sm:$0xff]
        %v391 = vld [vmem:[%s383 + $0x38] sm:$0xff]
        %v392 = vld [vmem:[%s383 + $0x40] sm:$0xff]
        %v393 = vld [vmem:[%s383 + $0x48] sm:$0xff]
        %v394 = vld [vmem:[%s383 + $0x50] sm:$0xff]
        %v395 = vld [vmem:[%s383 + $0x58] sm:$0xff]
        %v396 = vld [vmem:[%s383 + $0x60] sm:$0xff]
        %v397 = vld [vmem:[%s383 + $0x68] sm:$0xff]
        %v398 = vld [vmem:[%s383 + $0x70] sm:$0xff]
        %v399 = vld [vmem:[%s383 + $0x78] sm:$0xff]
        %v400 = vld [vmem:[%s383 + $0x80] sm:$0xff]
        %v401 = vld [vmem:[%s383 + $0x88] sm:$0xff]
        %v402 = vld [vmem:[%s1] sm:$0xff]
        %v403 = vld [vmem:[%s1 + $0x8] sm:$0xff]
        %v404 = vld [vmem:[%s1 + $0x10] sm:$0xff]
        %v405 = vld [vmem:[%s1 + $0x18] sm:$0x1]
        %vm406 = vcmask 203776
        %v408 = vsel %vm406, %v384, 0
        %v411 = vsel %vm406, %v385, 0
        %v414 = vsel %vm406, %v386, 0
        %v417 = vsel %vm406, %v387, 0
        %v420 = vsel %vm406, %v388, 0
        %v423 = vsel %vm406, %v389, 0
        %v426 = vsel %vm406, %v390, 0
        %v429 = vsel %vm406, %v391, 0
        %v432 = vsel %vm406, %v392, 0
        %v435 = vsel %vm406, %v393, 0
        %v438 = vsel %vm406, %v394, 0
        %v441 = vsel %vm406, %v395, 0
        %v444 = vsel %vm406, %v396, 0
        %v447 = vsel %vm406, %v397, 0
        %v450 = vsel %vm406, %v398, 0
        %v453 = vsel %vm406, %v399, 0
        %v456 = vsel %vm406, %v400, 0
        %v459 = vsel %vm406, %v401, 0
        %vm461 = vcmask 1040384
        %v463 = vsel %vm461, %v405, 0
        %465 = vmatprep.subr.mxu0 0.0
        %466 = vmatpush1.msra.mxu0 %v402
        %467 = vmatprep.subr.mxu0 0.0
        %468 = vmatpush1.msra.mxu0 %v403
        %469 = vmatprep.subr.mxu0 0.0
        %470 = vmatpush1.msra.mxu0 %v404
        %471 = vmatprep.subr.mxu0 0.0
        %472 = vmatpush1.msra.mxu0 %v463
        %473 = vmatprep.subr.mxu0 0.0
        %474 = vmatpush1.msra.mxu0 0.0
        %475 = vmatprep.subr.mxu0 0.0
        %476 = vmatpush1.msra.mxu0 0.0
        %477 = vmatprep.subr.mxu0 0.0
        %478 = vmatpush1.msra.mxu0 0.0
        %479 = vmatprep.subr.mxu0 0.0
        %480 = vmatpush1.msra.mxu0 0.0
        %481 = vmatprep.subr.mxu0 0.0
        %482 = vmatpush1.msra.mxu0 0.0
        %483 = vmatprep.subr.mxu0 0.0
        %484 = vmatpush1.msra.mxu0 0.0
        %485 = vmatprep.subr.mxu0 0.0
        %486 = vmatpush1.msra.mxu0 0.0
        %487 = vmatprep.subr.mxu0 0.0
        %488 = vmatpush1.msra.mxu0 0.0
        %489 = vmatprep.subr.mxu0 0.0
        %490 = vmatpush1.msra.mxu0 0.0
        %491 = vmatprep.subr.mxu0 0.0
        %492 = vmatpush1.msra.mxu0 0.0
        %493 = vmatprep.subr.mxu0 0.0
        %494 = vmatpush1.msra.mxu0 0.0
        %495 = vmatprep.subr.mxu0 0.0
        %496 = vmatpush1.msra.mxu0 0.0
        %497 = vmatprep.subr.mxu0 0.0
        %498 = vmatpush1.msra.mxu0 0.0
        %499 = vmatprep.subr.mxu0 0.0
        %500 = vmatpush1.msra.mxu0 0.0
        %501 = vmatprep.subr.mxu0 0.0
        %502 = vmatpush1.msra.mxu0 0.0
        %503 = vmatprep.subr.mxu0 0.0
        %504 = vmatpush1.msra.mxu0 0.0
        %505 = vmatprep.subr.mxu0 0.0
        %506 = vmatpush1.msra.mxu0 0.0
        %507 = vmatprep.subr.mxu0 0.0
        %508 = vmatpush1.msra.mxu0 0.0
        %509 = vmatprep.subr.mxu0 0.0
        %510 = vmatpush1.msra.mxu0 0.0
        %511 = vmatprep.subr.mxu0 0.0
        %512 = vmatpush1.msra.mxu0 0.0
        %513 = vmatprep.subr.mxu0 0.0
        %514 = vmatpush1.msra.mxu0 0.0
        %515 = vmatprep.subr.mxu0 0.0
        %516 = vmatpush1.msra.mxu0 0.0
        %517 = vmatprep.subr.mxu0 0.0
        %518 = vmatpush1.msra.mxu0 0.0
        %519 = vmatprep.subr.mxu0 0.0
        %520 = vmatpush1.msra.mxu0 0.0
        %521 = vmatprep.subr.mxu0 0.0
        %522 = vmatpush1.msra.mxu0 0.0
        %523 = vmatprep.subr.mxu0 0.0
        %524 = vmatpush1.msra.mxu0 0.0
        %525 = vmatprep.subr.mxu0 0.0
        %526 = vmatpush1.msra.mxu0 0.0
        %527 = vmatprep.subr.mxu0 0.0
        %528 = vmatpush1.msra.mxu0 0.0
        %529 = vmatprep.mubr.f32.mxu0 0.0
        %530 = vmatmul.mubr.f32.gmra.mrb[0].mxu0 %v408
        %v531 = vpop.f32.mrb[0].mxu0
        %v532 = vadd.f32 0.0, %v531
        %v533 = vpop.f32.mrb[0].mxu0
        %534 = vmatprep.mubr.f32.mxu0 0.0
        %535 = vmatmul.mubr.f32.gmra.mrb[0].mxu0 %v411
        %v536 = vpop.f32.mrb[0].mxu0
        %v537 = vadd.f32 0.0, %v536
        %v538 = vpop.f32.mrb[0].mxu0
        %539 = vmatprep.mubr.f32.mxu0 0.0
        %540 = vmatmul.mubr.f32.gmra.mrb[0].mxu0 %v414
        %v541 = vpop.f32.mrb[0].mxu0
        %v542 = vadd.f32 0.0, %v541
        %v543 = vpop.f32.mrb[0].mxu0
        %544 = vmatprep.mubr.f32.mxu0 0.0
        %545 = vmatmul.mubr.f32.gmra.mrb[0].mxu0 %v417
        %v546 = vpop.f32.mrb[0].mxu0
        %v547 = vadd.f32 0.0, %v546
        %v548 = vpop.f32.mrb[0].mxu0
        %549 = vmatprep.mubr.f32.mxu0 0.0
        %550 = vmatmul.mubr.f32.gmra.mrb[0].mxu0 %v420
        %v551 = vpop.f32.mrb[0].mxu0
        %v552 = vadd.f32 0.0, %v551
        %v553 = vpop.f32.mrb[0].mxu0
        %554 = vmatprep.mubr.f32.mxu0 0.0
        %555 = vmatmul.mubr.f32.gmra.mrb[0].mxu0 %v423
        %v556 = vpop.f32.mrb[0].mxu0
        %v557 = vadd.f32 0.0, %v556
        %v558 = vpop.f32.mrb[0].mxu0
        %559 = vmatprep.mubr.f32.mxu0 0.0
        %560 = vmatmul.mubr.f32.gmra.mrb[0].mxu0 %v426
        %v561 = vpop.f32.mrb[0].mxu0
        %v562 = vadd.f32 0.0, %v561
        %v563 = vpop.f32.mrb[0].mxu0
        %564 = vmatprep.mubr.f32.mxu0 0.0
        %565 = vmatmul.mubr.f32.gmra.mrb[0].mxu0 %v429
        %v566 = vpop.f32.mrb[0].mxu0
        %v567 = vadd.f32 0.0, %v566
        %v568 = vpop.f32.mrb[0].mxu0
        %569 = vmatprep.mubr.f32.mxu0 0.0
        %570 = vmatmul.mubr.f32.gmra.mrb[0].mxu0 %v432
        %v571 = vpop.f32.mrb[0].mxu0
        %v572 = vadd.f32 0.0, %v571
        %v573 = vpop.f32.mrb[0].mxu0
        %574 = vmatprep.mubr.f32.mxu0 0.0
        %575 = vmatmul.mubr.f32.gmra.mrb[0].mxu0 %v435
        %v576 = vpop.f32.mrb[0].mxu0
        %v577 = vadd.f32 0.0, %v576
        %v578 = vpop.f32.mrb[0].mxu0
        %579 = vmatprep.mubr.f32.mxu0 0.0
        %580 = vmatmul.mubr.f32.gmra.mrb[0].mxu0 %v438
        %v581 = vpop.f32.mrb[0].mxu0
        %v582 = vadd.f32 0.0, %v581
        %v583 = vpop.f32.mrb[0].mxu0
        %584 = vmatprep.mubr.f32.mxu0 0.0
        %585 = vmatmul.mubr.f32.gmra.mrb[0].mxu0 %v441
        %v586 = vpop.f32.mrb[0].mxu0
        %v587 = vadd.f32 0.0, %v586
        %v588 = vpop.f32.mrb[0].mxu0
        %589 = vmatprep.mubr.f32.mxu0 0.0
        %590 = vmatmul.mubr.f32.gmra.mrb[0].mxu0 %v444
        %v591 = vpop.f32.mrb[0].mxu0
        %v592 = vadd.f32 0.0, %v591
        %v593 = vpop.f32.mrb[0].mxu0
        %594 = vmatprep.mubr.f32.mxu0 0.0
        %595 = vmatmul.mubr.f32.gmra.mrb[0].mxu0 %v447
        %v596 = vpop.f32.mrb[0].mxu0
        %v597 = vadd.f32 0.0, %v596
        %v598 = vpop.f32.mrb[0].mxu0
        %599 = vmatprep.mubr.f32.mxu0 0.0
        %600 = vmatmul.mubr.f32.gmra.mrb[0].mxu0 %v450
        %v601 = vpop.f32.mrb[0].mxu0
        %v602 = vadd.f32 0.0, %v601
        %v603 = vpop.f32.mrb[0].mxu0
        %604 = vmatprep.mubr.f32.mxu0 0.0
        %605 = vmatmul.mubr.f32.gmra.mrb[0].mxu0 %v453
        %v606 = vpop.f32.mrb[0].mxu0
        %v607 = vadd.f32 0.0, %v606
        %v608 = vpop.f32.mrb[0].mxu0
        %609 = vmatprep.mubr.f32.mxu0 0.0
        %610 = vmatmul.mubr.f32.gmra.mrb[0].mxu0 %v456
        %v611 = vpop.f32.mrb[0].mxu0
        %v612 = vadd.f32 0.0, %v611
        %v613 = vpop.f32.mrb[0].mxu0
        %614 = vmatprep.mubr.f32.mxu0 0.0
        %615 = vmatmul.mubr.f32.gmra.mrb[0].mxu0 %v459
        %v616 = vpop.f32.mrb[0].mxu0
        %v617 = vadd.f32 0.0, %v616
        %v618 = vpop.f32.mrb[0].mxu0
        %619 = vdwg.mxu0
        %s620 = scalar_lea.vmem %s383, 144
        %v621 = vld [vmem:[%s620] sm:$0xff]
        %v622 = vld [vmem:[%s620 + $0x8] sm:$0xff]
        %v623 = vld [vmem:[%s620 + $0x10] sm:$0xff]
        %v624 = vld [vmem:[%s620 + $0x18] sm:$0xff]
        %v625 = vld [vmem:[%s620 + $0x20] sm:$0xff]
        %v626 = vld [vmem:[%s620 + $0x28] sm:$0xff]
        %v627 = vld [vmem:[%s620 + $0x30] sm:$0xff]
        %v628 = vld [vmem:[%s620 + $0x38] sm:$0xff]
        %v629 = vld [vmem:[%s620 + $0x40] sm:$0xff]
        %v630 = vld [vmem:[%s620 + $0x48] sm:$0xff]
        %v631 = vld [vmem:[%s620 + $0x50] sm:$0xff]
        %v632 = vld [vmem:[%s620 + $0x58] sm:$0xff]
        %v633 = vld [vmem:[%s620 + $0x60] sm:$0xff]
        %v634 = vld [vmem:[%s620 + $0x68] sm:$0xff]
        %v635 = vld [vmem:[%s620 + $0x70] sm:$0xff]
        %v636 = vld [vmem:[%s620 + $0x78] sm:$0xff]
        %v637 = vld [vmem:[%s620 + $0x80] sm:$0xff]
        %v638 = vld [vmem:[%s620 + $0x88] sm:$0xff]
        %v640 = vsel %vm406, %v621, 0
        %v643 = vsel %vm406, %v622, 0
        %v646 = vsel %vm406, %v623, 0
        %v649 = vsel %vm406, %v624, 0
        %v652 = vsel %vm406, %v625, 0
        %v655 = vsel %vm406, %v626, 0
        %v658 = vsel %vm406, %v627, 0
        %v661 = vsel %vm406, %v628, 0
        %v664 = vsel %vm406, %v629, 0
        %v667 = vsel %vm406, %v630, 0
        %v670 = vsel %vm406, %v631, 0
        %v673 = vsel %vm406, %v632, 0
        %v676 = vsel %vm406, %v633, 0
        %v679 = vsel %vm406, %v634, 0
        %v682 = vsel %vm406, %v635, 0
        %v685 = vsel %vm406, %v636, 0
        %v688 = vsel %vm406, %v637, 0
        %v691 = vsel %vm406, %v638, 0
        %693 = vmatprep.subr.mxu0 0.0
        %694 = vmatpush1.msra.mxu0 %v402
        %695 = vmatprep.subr.mxu0 0.0
        %696 = vmatpush1.msra.mxu0 %v403
        %697 = vmatprep.subr.mxu0 0.0
        %698 = vmatpush1.msra.mxu0 %v404
        %699 = vmatprep.subr.mxu0 0.0
        %700 = vmatpush1.msra.mxu0 %v463
        %701 = vmatprep.subr.mxu0 0.0
        %702 = vmatpush1.msra.mxu0 0.0
        %703 = vmatprep.subr.mxu0 0.0
        %704 = vmatpush1.msra.mxu0 0.0
        %705 = vmatprep.subr.mxu0 0.0
        %706 = vmatpush1.msra.mxu0 0.0
        %707 = vmatprep.subr.mxu0 0.0
        %708 = vmatpush1.msra.mxu0 0.0
        %709 = vmatprep.subr.mxu0 0.0
        %710 = vmatpush1.msra.mxu0 0.0
        %711 = vmatprep.subr.mxu0 0.0
        %712 = vmatpush1.msra.mxu0 0.0
        %713 = vmatprep.subr.mxu0 0.0
        %714 = vmatpush1.msra.mxu0 0.0
        %715 = vmatprep.subr.mxu0 0.0
        %716 = vmatpush1.msra.mxu0 0.0
        %717 = vmatprep.subr.mxu0 0.0
        %718 = vmatpush1.msra.mxu0 0.0
        %719 = vmatprep.subr.mxu0 0.0
        %720 = vmatpush1.msra.mxu0 0.0
        %721 = vmatprep.subr.mxu0 0.0
        %722 = vmatpush1.msra.mxu0 0.0
        %723 = vmatprep.subr.mxu0 0.0
        %724 = vmatpush1.msra.mxu0 0.0
        %725 = vmatprep.subr.mxu0 0.0
        %726 = vmatpush1.msra.mxu0 0.0
        %727 = vmatprep.subr.mxu0 0.0
        %728 = vmatpush1.msra.mxu0 0.0
        %729 = vmatprep.subr.mxu0 0.0
        %730 = vmatpush1.msra.mxu0 0.0
        %731 = vmatprep.subr.mxu0 0.0
        %732 = vmatpush1.msra.mxu0 0.0
        %733 = vmatprep.subr.mxu0 0.0
        %734 = vmatpush1.msra.mxu0 0.0
        %735 = vmatprep.subr.mxu0 0.0
        %736 = vmatpush1.msra.mxu0 0.0
        %737 = vmatprep.subr.mxu0 0.0
        %738 = vmatpush1.msra.mxu0 0.0
        %739 = vmatprep.subr.mxu0 0.0
        %740 = vmatpush1.msra.mxu0 0.0
        %741 = vmatprep.subr.mxu0 0.0
        %742 = vmatpush1.msra.mxu0 0.0
        %743 = vmatprep.subr.mxu0 0.0
        %744 = vmatpush1.msra.mxu0 0.0
        %745 = vmatprep.subr.mxu0 0.0
        %746 = vmatpush1.msra.mxu0 0.0
        %747 = vmatprep.subr.mxu0 0.0
        %748 = vmatpush1.msra.mxu0 0.0
        %749 = vmatprep.subr.mxu0 0.0
        %750 = vmatpush1.msra.mxu0 0.0
        %751 = vmatprep.subr.mxu0 0.0
        %752 = vmatpush1.msra.mxu0 0.0
        %753 = vmatprep.subr.mxu0 0.0
        %754 = vmatpush1.msra.mxu0 0.0
        %755 = vmatprep.subr.mxu0 0.0
        %756 = vmatpush1.msra.mxu0 0.0
        %757 = vmatprep.mubr.f32.mxu0 0.0
        %758 = vmatmul.mubr.f32.gmra.mrb[0].mxu0 %v640
        %v759 = vpop.f32.mrb[0].mxu0
        %v760 = vadd.f32 0.0, %v759
        %v761 = vpop.f32.mrb[0].mxu0
        %762 = vmatprep.mubr.f32.mxu0 0.0
        %763 = vmatmul.mubr.f32.gmra.mrb[0].mxu0 %v643
        %v764 = vpop.f32.mrb[0].mxu0
        %v765 = vadd.f32 0.0, %v764
        %v766 = vpop.f32.mrb[0].mxu0
        %767 = vmatprep.mubr.f32.mxu0 0.0
        %768 = vmatmul.mubr.f32.gmra.mrb[0].mxu0 %v646
        %v769 = vpop.f32.mrb[0].mxu0
        %v770 = vadd.f32 0.0, %v769
        %v771 = vpop.f32.mrb[0].mxu0
        %772 = vmatprep.mubr.f32.mxu0 0.0
        %773 = vmatmul.mubr.f32.gmra.mrb[0].mxu0 %v649
        %v774 = vpop.f32.mrb[0].mxu0
        %v775 = vadd.f32 0.0, %v774
        %v776 = vpop.f32.mrb[0].mxu0
        %777 = vmatprep.mubr.f32.mxu0 0.0
        %778 = vmatmul.mubr.f32.gmra.mrb[0].mxu0 %v652
        %v779 = vpop.f32.mrb[0].mxu0
        %v780 = vadd.f32 0.0, %v779
        %v781 = vpop.f32.mrb[0].mxu0
        %782 = vmatprep.mubr.f32.mxu0 0.0
        %783 = vmatmul.mubr.f32.gmra.mrb[0].mxu0 %v655
        %v784 = vpop.f32.mrb[0].mxu0
        %v785 = vadd.f32 0.0, %v784
        %v786 = vpop.f32.mrb[0].mxu0
        %787 = vmatprep.mubr.f32.mxu0 0.0
        %788 = vmatmul.mubr.f32.gmra.mrb[0].mxu0 %v658
        %v789 = vpop.f32.mrb[0].mxu0
        %v790 = vadd.f32 0.0, %v789
        %v791 = vpop.f32.mrb[0].mxu0
        %792 = vmatprep.mubr.f32.mxu0 0.0
        %793 = vmatmul.mubr.f32.gmra.mrb[0].mxu0 %v661
        %v794 = vpop.f32.mrb[0].mxu0
        %v795 = vadd.f32 0.0, %v794
        %v796 = vpop.f32.mrb[0].mxu0
        %797 = vmatprep.mubr.f32.mxu0 0.0
        %798 = vmatmul.mubr.f32.gmra.mrb[0].mxu0 %v664
        %v799 = vpop.f32.mrb[0].mxu0
        %v800 = vadd.f32 0.0, %v799
        %v801 = vpop.f32.mrb[0].mxu0
        %802 = vmatprep.mubr.f32.mxu0 0.0
        %803 = vmatmul.mubr.f32.gmra.mrb[0].mxu0 %v667
        %v804 = vpop.f32.mrb[0].mxu0
        %v805 = vadd.f32 0.0, %v804
        %v806 = vpop.f32.mrb[0].mxu0
        %807 = vmatprep.mubr.f32.mxu0 0.0
        %808 = vmatmul.mubr.f32.gmra.mrb[0].mxu0 %v670
        %v809 = vpop.f32.mrb[0].mxu0
        %v810 = vadd.f32 0.0, %v809
        %v811 = vpop.f32.mrb[0].mxu0
        %812 = vmatprep.mubr.f32.mxu0 0.0
        %813 = vmatmul.mubr.f32.gmra.mrb[0].mxu0 %v673
        %v814 = vpop.f32.mrb[0].mxu0
        %v815 = vadd.f32 0.0, %v814
        %v816 = vpop.f32.mrb[0].mxu0
        %817 = vmatprep.mubr.f32.mxu0 0.0
        %818 = vmatmul.mubr.f32.gmra.mrb[0].mxu0 %v676
        %v819 = vpop.f32.mrb[0].mxu0
        %v820 = vadd.f32 0.0, %v819
        %v821 = vpop.f32.mrb[0].mxu0
        %822 = vmatprep.mubr.f32.mxu0 0.0
        %823 = vmatmul.mubr.f32.gmra.mrb[0].mxu0 %v679
        %v824 = vpop.f32.mrb[0].mxu0
        %v825 = vadd.f32 0.0, %v824
        %v826 = vpop.f32.mrb[0].mxu0
        %827 = vmatprep.mubr.f32.mxu0 0.0
        %828 = vmatmul.mubr.f32.gmra.mrb[0].mxu0 %v682
        %v829 = vpop.f32.mrb[0].mxu0
        %v830 = vadd.f32 0.0, %v829
        %v831 = vpop.f32.mrb[0].mxu0
        %832 = vmatprep.mubr.f32.mxu0 0.0
        %833 = vmatmul.mubr.f32.gmra.mrb[0].mxu0 %v685
        %v834 = vpop.f32.mrb[0].mxu0
        %v835 = vadd.f32 0.0, %v834
        %v836 = vpop.f32.mrb[0].mxu0
        %837 = vmatprep.mubr.f32.mxu0 0.0
        %838 = vmatmul.mubr.f32.gmra.mrb[0].mxu0 %v688
        %v839 = vpop.f32.mrb[0].mxu0
        %v840 = vadd.f32 0.0, %v839
        %v841 = vpop.f32.mrb[0].mxu0
        %842 = vmatprep.mubr.f32.mxu0 0.0
        %843 = vmatmul.mubr.f32.gmra.mrb[0].mxu0 %v691
        %v844 = vpop.f32.mrb[0].mxu0
        %v845 = vadd.f32 0.0, %v844
        %v846 = vpop.f32.mrb[0].mxu0
        %847 = vdwg.mxu0
        %v848 = vmax.f32 %v532, %v760
        %v849 = vmax.f32 %v537, %v765
        %v850 = vmax.f32 %v542, %v770
        %v851 = vmax.f32 %v547, %v775
        %v852 = vmax.f32 %v552, %v780
        %v853 = vmax.f32 %v557, %v785
        %v854 = vmax.f32 %v562, %v790
        %v855 = vmax.f32 %v567, %v795
        %v856 = vmax.f32 %v572, %v800
        %v857 = vmax.f32 %v577, %v805
        %v858 = vmax.f32 %v582, %v810
        %v859 = vmax.f32 %v587, %v815
        %v860 = vmax.f32 %v592, %v820
        %v861 = vmax.f32 %v597, %v825
        %v862 = vmax.f32 %v602, %v830
        %v863 = vmax.f32 %v607, %v835
        %v864 = vmax.f32 %v612, %v840
        %v865 = vmax.f32 %v617, %v845
        %s866 = scalar_lea.vmem %s383, 288
        %v867 = vld [vmem:[%s866] sm:$0xff]
        %v868 = vld [vmem:[%s866 + $0x8] sm:$0xff]
        %v869 = vld [vmem:[%s866 + $0x10] sm:$0xff]
        %v870 = vld [vmem:[%s866 + $0x18] sm:$0xff]
        %v871 = vld [vmem:[%s866 + $0x20] sm:$0xff]
        %v872 = vld [vmem:[%s866 + $0x28] sm:$0xff]
        %v873 = vld [vmem:[%s866 + $0x30] sm:$0xff]
        %v874 = vld [vmem:[%s866 + $0x38] sm:$0xff]
        %v875 = vld [vmem:[%s866 + $0x40] sm:$0xff]
        %v876 = vld [vmem:[%s866 + $0x48] sm:$0xff]
        %v877 = vld [vmem:[%s866 + $0x50] sm:$0xff]
        %v878 = vld [vmem:[%s866 + $0x58] sm:$0xff]
        %v879 = vld [vmem:[%s866 + $0x60] sm:$0xff]
        %v880 = vld [vmem:[%s866 + $0x68] sm:$0xff]
        %v881 = vld [vmem:[%s866 + $0x70] sm:$0xff]
        %v882 = vld [vmem:[%s866 + $0x78] sm:$0xff]
        %v883 = vld [vmem:[%s866 + $0x80] sm:$0xff]
        %v884 = vld [vmem:[%s866 + $0x88] sm:$0xff]
        %v886 = vsel %vm406, %v867, 0
        %v889 = vsel %vm406, %v868, 0
        %v892 = vsel %vm406, %v869, 0
        %v895 = vsel %vm406, %v870, 0
        %v898 = vsel %vm406, %v871, 0
        %v901 = vsel %vm406, %v872, 0
        %v904 = vsel %vm406, %v873, 0
        %v907 = vsel %vm406, %v874, 0
        %v910 = vsel %vm406, %v875, 0
        %v913 = vsel %vm406, %v876, 0
        %v916 = vsel %vm406, %v877, 0
        %v919 = vsel %vm406, %v878, 0
        %v922 = vsel %vm406, %v879, 0
        %v925 = vsel %vm406, %v880, 0
        %v928 = vsel %vm406, %v881, 0
        %v931 = vsel %vm406, %v882, 0
        %v934 = vsel %vm406, %v883, 0
        %v937 = vsel %vm406, %v884, 0
        %939 = vmatprep.subr.mxu0 0.0
        %940 = vmatpush1.msra.mxu0 %v402
        %941 = vmatprep.subr.mxu0 0.0
        %942 = vmatpush1.msra.mxu0 %v403
        %943 = vmatprep.subr.mxu0 0.0
        %944 = vmatpush1.msra.mxu0 %v404
        %945 = vmatprep.subr.mxu0 0.0
        %946 = vmatpush1.msra.mxu0 %v463
        %947 = vmatprep.subr.mxu0 0.0
        %948 = vmatpush1.msra.mxu0 0.0
        %949 = vmatprep.subr.mxu0 0.0
        %950 = vmatpush1.msra.mxu0 0.0
        %951 = vmatprep.subr.mxu0 0.0
        %952 = vmatpush1.msra.mxu0 0.0
        %953 = vmatprep.subr.mxu0 0.0
        %954 = vmatpush1.msra.mxu0 0.0
        %955 = vmatprep.subr.mxu0 0.0
        %956 = vmatpush1.msra.mxu0 0.0
        %957 = vmatprep.subr.mxu0 0.0
        %958 = vmatpush1.msra.mxu0 0.0
        %959 = vmatprep.subr.mxu0 0.0
        %960 = vmatpush1.msra.mxu0 0.0
        %961 = vmatprep.subr.mxu0 0.0
        %962 = vmatpush1.msra.mxu0 0.0
        %963 = vmatprep.subr.mxu0 0.0
        %964 = vmatpush1.msra.mxu0 0.0
        %965 = vmatprep.subr.mxu0 0.0
        %966 = vmatpush1.msra.mxu0 0.0
        %967 = vmatprep.subr.mxu0 0.0
        %968 = vmatpush1.msra.mxu0 0.0
        %969 = vmatprep.subr.mxu0 0.0
        %970 = vmatpush1.msra.mxu0 0.0
        %971 = vmatprep.subr.mxu0 0.0
        %972 = vmatpush1.msra.mxu0 0.0
        %973 = vmatprep.subr.mxu0 0.0
        %974 = vmatpush1.msra.mxu0 0.0
        %975 = vmatprep.subr.mxu0 0.0
        %976 = vmatpush1.msra.mxu0 0.0
        %977 = vmatprep.subr.mxu0 0.0
        %978 = vmatpush1.msra.mxu0 0.0
        %979 = vmatprep.subr.mxu0 0.0
        %980 = vmatpush1.msra.mxu0 0.0
        %981 = vmatprep.subr.mxu0 0.0
        %982 = vmatpush1.msra.mxu0 0.0
        %983 = vmatprep.subr.mxu0 0.0
        %984 = vmatpush1.msra.mxu0 0.0
        %985 = vmatprep.subr.mxu0 0.0
        %986 = vmatpush1.msra.mxu0 0.0
        %987 = vmatprep.subr.mxu0 0.0
        %988 = vmatpush1.msra.mxu0 0.0
        %989 = vmatprep.subr.mxu0 0.0
        %990 = vmatpush1.msra.mxu0 0.0
        %991 = vmatprep.subr.mxu0 0.0
        %992 = vmatpush1.msra.mxu0 0.0
        %993 = vmatprep.subr.mxu0 0.0
        %994 = vmatpush1.msra.mxu0 0.0
        %995 = vmatprep.subr.mxu0 0.0
        %996 = vmatpush1.msra.mxu0 0.0
        %997 = vmatprep.subr.mxu0 0.0
        %998 = vmatpush1.msra.mxu0 0.0
        %999 = vmatprep.subr.mxu0 0.0
        %1000 = vmatpush1.msra.mxu0 0.0
        %1001 = vmatprep.subr.mxu0 0.0
        %1002 = vmatpush1.msra.mxu0 0.0
        %1003 = vmatprep.mubr.f32.mxu0 0.0
        %1004 = vmatmul.mubr.f32.gmra.mrb[0].mxu0 %v886
        %v1005 = vpop.f32.mrb[0].mxu0
        %v1006 = vadd.f32 0.0, %v1005
        %v1007 = vpop.f32.mrb[0].mxu0
        %1008 = vmatprep.mubr.f32.mxu0 0.0
        %1009 = vmatmul.mubr.f32.gmra.mrb[0].mxu0 %v889
        %v1010 = vpop.f32.mrb[0].mxu0
        %v1011 = vadd.f32 0.0, %v1010
        %v1012 = vpop.f32.mrb[0].mxu0
        %1013 = vmatprep.mubr.f32.mxu0 0.0
        %1014 = vmatmul.mubr.f32.gmra.mrb[0].mxu0 %v892
        %v1015 = vpop.f32.mrb[0].mxu0
        %v1016 = vadd.f32 0.0, %v1015
        %v1017 = vpop.f32.mrb[0].mxu0
        %1018 = vmatprep.mubr.f32.mxu0 0.0
        %1019 = vmatmul.mubr.f32.gmra.mrb[0].mxu0 %v895
        %v1020 = vpop.f32.mrb[0].mxu0
        %v1021 = vadd.f32 0.0, %v1020
        %v1022 = vpop.f32.mrb[0].mxu0
        %1023 = vmatprep.mubr.f32.mxu0 0.0
        %1024 = vmatmul.mubr.f32.gmra.mrb[0].mxu0 %v898
        %v1025 = vpop.f32.mrb[0].mxu0
        %v1026 = vadd.f32 0.0, %v1025
        %v1027 = vpop.f32.mrb[0].mxu0
        %1028 = vmatprep.mubr.f32.mxu0 0.0
        %1029 = vmatmul.mubr.f32.gmra.mrb[0].mxu0 %v901
        %v1030 = vpop.f32.mrb[0].mxu0
        %v1031 = vadd.f32 0.0, %v1030
        %v1032 = vpop.f32.mrb[0].mxu0
        %1033 = vmatprep.mubr.f32.mxu0 0.0
        %1034 = vmatmul.mubr.f32.gmra.mrb[0].mxu0 %v904
        %v1035 = vpop.f32.mrb[0].mxu0
        %v1036 = vadd.f32 0.0, %v1035
        %v1037 = vpop.f32.mrb[0].mxu0
        %1038 = vmatprep.mubr.f32.mxu0 0.0
        %1039 = vmatmul.mubr.f32.gmra.mrb[0].mxu0 %v907
        %v1040 = vpop.f32.mrb[0].mxu0
        %v1041 = vadd.f32 0.0, %v1040
        %v1042 = vpop.f32.mrb[0].mxu0
        %1043 = vmatprep.mubr.f32.mxu0 0.0
        %1044 = vmatmul.mubr.f32.gmra.mrb[0].mxu0 %v910
        %v1045 = vpop.f32.mrb[0].mxu0
        %v1046 = vadd.f32 0.0, %v1045
        %v1047 = vpop.f32.mrb[0].mxu0
        %1048 = vmatprep.mubr.f32.mxu0 0.0
        %1049 = vmatmul.mubr.f32.gmra.mrb[0].mxu0 %v913
        %v1050 = vpop.f32.mrb[0].mxu0
        %v1051 = vadd.f32 0.0, %v1050
        %v1052 = vpop.f32.mrb[0].mxu0
        %1053 = vmatprep.mubr.f32.mxu0 0.0
        %1054 = vmatmul.mubr.f32.gmra.mrb[0].mxu0 %v916
        %v1055 = vpop.f32.mrb[0].mxu0
        %v1056 = vadd.f32 0.0, %v1055
        %v1057 = vpop.f32.mrb[0].mxu0
        %1058 = vmatprep.mubr.f32.mxu0 0.0
        %1059 = vmatmul.mubr.f32.gmra.mrb[0].mxu0 %v919
        %v1060 = vpop.f32.mrb[0].mxu0
        %v1061 = vadd.f32 0.0, %v1060
        %v1062 = vpop.f32.mrb[0].mxu0
        %1063 = vmatprep.mubr.f32.mxu0 0.0
        %1064 = vmatmul.mubr.f32.gmra.mrb[0].mxu0 %v922
        %v1065 = vpop.f32.mrb[0].mxu0
        %v1066 = vadd.f32 0.0, %v1065
        %v1067 = vpop.f32.mrb[0].mxu0
        %1068 = vmatprep.mubr.f32.mxu0 0.0
        %1069 = vmatmul.mubr.f32.gmra.mrb[0].mxu0 %v925
        %v1070 = vpop.f32.mrb[0].mxu0
        %v1071 = vadd.f32 0.0, %v1070
        %v1072 = vpop.f32.mrb[0].mxu0
        %1073 = vmatprep.mubr.f32.mxu0 0.0
        %1074 = vmatmul.mubr.f32.gmra.mrb[0].mxu0 %v928
        %v1075 = vpop.f32.mrb[0].mxu0
        %v1076 = vadd.f32 0.0, %v1075
        %v1077 = vpop.f32.mrb[0].mxu0
        %1078 = vmatprep.mubr.f32.mxu0 0.0
        %1079 = vmatmul.mubr.f32.gmra.mrb[0].mxu0 %v931
        %v1080 = vpop.f32.mrb[0].mxu0
        %v1081 = vadd.f32 0.0, %v1080
        %v1082 = vpop.f32.mrb[0].mxu0
        %1083 = vmatprep.mubr.f32.mxu0 0.0
        %1084 = vmatmul.mubr.f32.gmra.mrb[0].mxu0 %v934
        %v1085 = vpop.f32.mrb[0].mxu0
        %v1086 = vadd.f32 0.0, %v1085
        %v1087 = vpop.f32.mrb[0].mxu0
        %1088 = vmatprep.mubr.f32.mxu0 0.0
        %1089 = vmatmul.mubr.f32.gmra.mrb[0].mxu0 %v937
        %v1090 = vpop.f32.mrb[0].mxu0
        %v1091 = vadd.f32 0.0, %v1090
        %v1092 = vpop.f32.mrb[0].mxu0
        %1093 = vdwg.mxu0
        %v1094 = vmax.f32 %v848, %v1006
        %v1095 = vmax.f32 %v849, %v1011
        %v1096 = vmax.f32 %v850, %v1016
        %v1097 = vmax.f32 %v851, %v1021
        %v1098 = vmax.f32 %v852, %v1026
        %v1099 = vmax.f32 %v853, %v1031
        %v1100 = vmax.f32 %v854, %v1036
        %v1101 = vmax.f32 %v855, %v1041
        %v1102 = vmax.f32 %v856, %v1046
        %v1103 = vmax.f32 %v857, %v1051
        %v1104 = vmax.f32 %v858, %v1056
        %v1105 = vmax.f32 %v859, %v1061
        %v1106 = vmax.f32 %v860, %v1066
        %v1107 = vmax.f32 %v861, %v1071
        %v1108 = vmax.f32 %v862, %v1076
        %v1109 = vmax.f32 %v863, %v1081
        %v1110 = vmax.f32 %v864, %v1086
        %v1111 = vmax.f32 %v865, %v1091
        %s1112 = scalar_lea.vmem %s383, 432
        %v1113 = vld [vmem:[%s1112] sm:$0xff]
        %v1114 = vld [vmem:[%s1112 + $0x8] sm:$0xff]
        %v1115 = vld [vmem:[%s1112 + $0x10] sm:$0xff]
        %v1116 = vld [vmem:[%s1112 + $0x18] sm:$0xff]
        %v1117 = vld [vmem:[%s1112 + $0x20] sm:$0xff]
        %v1118 = vld [vmem:[%s1112 + $0x28] sm:$0xff]
        %v1119 = vld [vmem:[%s1112 + $0x30] sm:$0xff]
        %v1120 = vld [vmem:[%s1112 + $0x38] sm:$0xff]
        %v1121 = vld [vmem:[%s1112 + $0x40] sm:$0xff]
        %v1122 = vld [vmem:[%s1112 + $0x48] sm:$0xff]
        %v1123 = vld [vmem:[%s1112 + $0x50] sm:$0xff]
        %v1124 = vld [vmem:[%s1112 + $0x58] sm:$0xff]
        %v1125 = vld [vmem:[%s1112 + $0x60] sm:$0xff]
        %v1126 = vld [vmem:[%s1112 + $0x68] sm:$0xff]
        %v1127 = vld [vmem:[%s1112 + $0x70] sm:$0xff]
        %v1128 = vld [vmem:[%s1112 + $0x78] sm:$0xff]
        %v1129 = vld [vmem:[%s1112 + $0x80] sm:$0xff]
        %v1130 = vld [vmem:[%s1112 + $0x88] sm:$0xff]
        %v1132 = vsel %vm406, %v1113, 0
        %v1135 = vsel %vm406, %v1114, 0
        %v1138 = vsel %vm406, %v1115, 0
        %v1141 = vsel %vm406, %v1116, 0
        %v1144 = vsel %vm406, %v1117, 0
        %v1147 = vsel %vm406, %v1118, 0
        %v1150 = vsel %vm406, %v1119, 0
        %v1153 = vsel %vm406, %v1120, 0
        %v1156 = vsel %vm406, %v1121, 0
        %v1159 = vsel %vm406, %v1122, 0
        %v1162 = vsel %vm406, %v1123, 0
        %v1165 = vsel %vm406, %v1124, 0
        %v1168 = vsel %vm406, %v1125, 0
        %v1171 = vsel %vm406, %v1126, 0
        %v1174 = vsel %vm406, %v1127, 0
        %v1177 = vsel %vm406, %v1128, 0
        %v1180 = vsel %vm406, %v1129, 0
        %v1183 = vsel %vm406, %v1130, 0
        %1185 = vmatprep.subr.mxu0 0.0
        %1186 = vmatpush1.msra.mxu0 %v402
        %1187 = vmatprep.subr.mxu0 0.0
        %1188 = vmatpush1.msra.mxu0 %v403
        %1189 = vmatprep.subr.mxu0 0.0
        %1190 = vmatpush1.msra.mxu0 %v404
        %1191 = vmatprep.subr.mxu0 0.0
        %1192 = vmatpush1.msra.mxu0 %v463
        %1193 = vmatprep.subr.mxu0 0.0
        %1194 = vmatpush1.msra.mxu0 0.0
        %1195 = vmatprep.subr.mxu0 0.0
        %1196 = vmatpush1.msra.mxu0 0.0
        %1197 = vmatprep.subr.mxu0 0.0
        %1198 = vmatpush1.msra.mxu0 0.0
        %1199 = vmatprep.subr.mxu0 0.0
        %1200 = vmatpush1.msra.mxu0 0.0
        %1201 = vmatprep.subr.mxu0 0.0
        %1202 = vmatpush1.msra.mxu0 0.0
        %1203 = vmatprep.subr.mxu0 0.0
        %1204 = vmatpush1.msra.mxu0 0.0
        %1205 = vmatprep.subr.mxu0 0.0
        %1206 = vmatpush1.msra.mxu0 0.0
        %1207 = vmatprep.subr.mxu0 0.0
        %1208 = vmatpush1.msra.mxu0 0.0
        %1209 = vmatprep.subr.mxu0 0.0
        %1210 = vmatpush1.msra.mxu0 0.0
        %1211 = vmatprep.subr.mxu0 0.0
        %1212 = vmatpush1.msra.mxu0 0.0
        %1213 = vmatprep.subr.mxu0 0.0
        %1214 = vmatpush1.msra.mxu0 0.0
        %1215 = vmatprep.subr.mxu0 0.0
        %1216 = vmatpush1.msra.mxu0 0.0
        %1217 = vmatprep.subr.mxu0 0.0
        %1218 = vmatpush1.msra.mxu0 0.0
        %1219 = vmatprep.subr.mxu0 0.0
        %1220 = vmatpush1.msra.mxu0 0.0
        %1221 = vmatprep.subr.mxu0 0.0
        %1222 = vmatpush1.msra.mxu0 0.0
        %1223 = vmatprep.subr.mxu0 0.0
        %1224 = vmatpush1.msra.mxu0 0.0
        %1225 = vmatprep.subr.mxu0 0.0
        %1226 = vmatpush1.msra.mxu0 0.0
        %1227 = vmatprep.subr.mxu0 0.0
        %1228 = vmatpush1.msra.mxu0 0.0
        %1229 = vmatprep.subr.mxu0 0.0
        %1230 = vmatpush1.msra.mxu0 0.0
        %1231 = vmatprep.subr.mxu0 0.0
        %1232 = vmatpush1.msra.mxu0 0.0
        %1233 = vmatprep.subr.mxu0 0.0
        %1234 = vmatpush1.msra.mxu0 0.0
        %1235 = vmatprep.subr.mxu0 0.0
        %1236 = vmatpush1.msra.mxu0 0.0
        %1237 = vmatprep.subr.mxu0 0.0
        %1238 = vmatpush1.msra.mxu0 0.0
        %1239 = vmatprep.subr.mxu0 0.0
        %1240 = vmatpush1.msra.mxu0 0.0
        %1241 = vmatprep.subr.mxu0 0.0
        %1242 = vmatpush1.msra.mxu0 0.0
        %1243 = vmatprep.subr.mxu0 0.0
        %1244 = vmatpush1.msra.mxu0 0.0
        %1245 = vmatprep.subr.mxu0 0.0
        %1246 = vmatpush1.msra.mxu0 0.0
        %1247 = vmatprep.subr.mxu0 0.0
        %1248 = vmatpush1.msra.mxu0 0.0
        %1249 = vmatprep.mubr.f32.mxu0 0.0
        %1250 = vmatmul.mubr.f32.gmra.mrb[0].mxu0 %v1132
        %v1251 = vpop.f32.mrb[0].mxu0
        %v1252 = vadd.f32 0.0, %v1251
        %v1253 = vpop.f32.mrb[0].mxu0
        %1254 = vmatprep.mubr.f32.mxu0 0.0
        %1255 = vmatmul.mubr.f32.gmra.mrb[0].mxu0 %v1135
        %v1256 = vpop.f32.mrb[0].mxu0
        %v1257 = vadd.f32 0.0, %v1256
        %v1258 = vpop.f32.mrb[0].mxu0
        %1259 = vmatprep.mubr.f32.mxu0 0.0
        %1260 = vmatmul.mubr.f32.gmra.mrb[0].mxu0 %v1138
        %v1261 = vpop.f32.mrb[0].mxu0
        %v1262 = vadd.f32 0.0, %v1261
        %v1263 = vpop.f32.mrb[0].mxu0
        %1264 = vmatprep.mubr.f32.mxu0 0.0
        %1265 = vmatmul.mubr.f32.gmra.mrb[0].mxu0 %v1141
        %v1266 = vpop.f32.mrb[0].mxu0
        %v1267 = vadd.f32 0.0, %v1266
        %v1268 = vpop.f32.mrb[0].mxu0
        %1269 = vmatprep.mubr.f32.mxu0 0.0
        %1270 = vmatmul.mubr.f32.gmra.mrb[0].mxu0 %v1144
        %v1271 = vpop.f32.mrb[0].mxu0
        %v1272 = vadd.f32 0.0, %v1271
        %v1273 = vpop.f32.mrb[0].mxu0
        %1274 = vmatprep.mubr.f32.mxu0 0.0
        %1275 = vmatmul.mubr.f32.gmra.mrb[0].mxu0 %v1147
        %v1276 = vpop.f32.mrb[0].mxu0
        %v1277 = vadd.f32 0.0, %v1276
        %v1278 = vpop.f32.mrb[0].mxu0
        %1279 = vmatprep.mubr.f32.mxu0 0.0
        %1280 = vmatmul.mubr.f32.gmra.mrb[0].mxu0 %v1150
        %v1281 = vpop.f32.mrb[0].mxu0
        %v1282 = vadd.f32 0.0, %v1281
        %v1283 = vpop.f32.mrb[0].mxu0
        %1284 = vmatprep.mubr.f32.mxu0 0.0
        %1285 = vmatmul.mubr.f32.gmra.mrb[0].mxu0 %v1153
        %v1286 = vpop.f32.mrb[0].mxu0
        %v1287 = vadd.f32 0.0, %v1286
        %v1288 = vpop.f32.mrb[0].mxu0
        %1289 = vmatprep.mubr.f32.mxu0 0.0
        %1290 = vmatmul.mubr.f32.gmra.mrb[0].mxu0 %v1156
        %v1291 = vpop.f32.mrb[0].mxu0
        %v1292 = vadd.f32 0.0, %v1291
        %v1293 = vpop.f32.mrb[0].mxu0
        %1294 = vmatprep.mubr.f32.mxu0 0.0
        %1295 = vmatmul.mubr.f32.gmra.mrb[0].mxu0 %v1159
        %v1296 = vpop.f32.mrb[0].mxu0
        %v1297 = vadd.f32 0.0, %v1296
        %v1298 = vpop.f32.mrb[0].mxu0
        %1299 = vmatprep.mubr.f32.mxu0 0.0
        %1300 = vmatmul.mubr.f32.gmra.mrb[0].mxu0 %v1162
        %v1301 = vpop.f32.mrb[0].mxu0
        %v1302 = vadd.f32 0.0, %v1301
        %v1303 = vpop.f32.mrb[0].mxu0
        %1304 = vmatprep.mubr.f32.mxu0 0.0
        %1305 = vmatmul.mubr.f32.gmra.mrb[0].mxu0 %v1165
        %v1306 = vpop.f32.mrb[0].mxu0
        %v1307 = vadd.f32 0.0, %v1306
        %v1308 = vpop.f32.mrb[0].mxu0
        %1309 = vmatprep.mubr.f32.mxu0 0.0
        %1310 = vmatmul.mubr.f32.gmra.mrb[0].mxu0 %v1168
        %v1311 = vpop.f32.mrb[0].mxu0
        %v1312 = vadd.f32 0.0, %v1311
        %v1313 = vpop.f32.mrb[0].mxu0
        %1314 = vmatprep.mubr.f32.mxu0 0.0
        %1315 = vmatmul.mubr.f32.gmra.mrb[0].mxu0 %v1171
        %v1316 = vpop.f32.mrb[0].mxu0
        %v1317 = vadd.f32 0.0, %v1316
        %v1318 = vpop.f32.mrb[0].mxu0
        %1319 = vmatprep.mubr.f32.mxu0 0.0
        %1320 = vmatmul.mubr.f32.gmra.mrb[0].mxu0 %v1174
        %v1321 = vpop.f32.mrb[0].mxu0
        %v1322 = vadd.f32 0.0, %v1321
        %v1323 = vpop.f32.mrb[0].mxu0
        %1324 = vmatprep.mubr.f32.mxu0 0.0
        %1325 = vmatmul.mubr.f32.gmra.mrb[0].mxu0 %v1177
        %v1326 = vpop.f32.mrb[0].mxu0
        %v1327 = vadd.f32 0.0, %v1326
        %v1328 = vpop.f32.mrb[0].mxu0
        %1329 = vmatprep.mubr.f32.mxu0 0.0
        %1330 = vmatmul.mubr.f32.gmra.mrb[0].mxu0 %v1180
        %v1331 = vpop.f32.mrb[0].mxu0
        %v1332 = vadd.f32 0.0, %v1331
        %v1333 = vpop.f32.mrb[0].mxu0
        %1334 = vmatprep.mubr.f32.mxu0 0.0
        %1335 = vmatmul.mubr.f32.gmra.mrb[0].mxu0 %v1183
        %v1336 = vpop.f32.mrb[0].mxu0
        %v1337 = vadd.f32 0.0, %v1336
        %v1338 = vpop.f32.mrb[0].mxu0
        %1339 = vdwg.mxu0
        %v1340 = vmax.f32 %v1094, %v1252
        %v1341 = vmax.f32 %v1095, %v1257
        %v1342 = vmax.f32 %v1096, %v1262
        %v1343 = vmax.f32 %v1097, %v1267
        %v1344 = vmax.f32 %v1098, %v1272
        %v1345 = vmax.f32 %v1099, %v1277
        %v1346 = vmax.f32 %v1100, %v1282
        %v1347 = vmax.f32 %v1101, %v1287
        %v1348 = vmax.f32 %v1102, %v1292
        %v1349 = vmax.f32 %v1103, %v1297
        %v1350 = vmax.f32 %v1104, %v1302
        %v1351 = vmax.f32 %v1105, %v1307
        %v1352 = vmax.f32 %v1106, %v1312
        %v1353 = vmax.f32 %v1107, %v1317
        %v1354 = vmax.f32 %v1108, %v1322
        %v1355 = vmax.f32 %v1109, %v1327
        %v1356 = vmax.f32 %v1110, %v1332
        %v1357 = vmax.f32 %v1111, %v1337
        %v1358 = vld [vmem:[%s2] sm:$0x1]
        %v1360 = vlaneseq
        %v1361 = vshrl.u32 %v1360, 7
        %v1362 = vsub.s32 0, %v1361
        %v1363 = vrot.slane %v1358, %v1362
        %v1365 = vadd.f32 %v1340, %v1363
        %v1366 = vadd.f32 %v1341, %v1363
        %v1367 = vadd.f32 %v1342, %v1363
        %v1368 = vadd.f32 %v1343, %v1363
        %v1369 = vadd.f32 %v1344, %v1363
        %v1370 = vadd.f32 %v1345, %v1363
        %v1371 = vadd.f32 %v1346, %v1363
        %v1372 = vadd.f32 %v1347, %v1363
        %v1373 = vadd.f32 %v1348, %v1363
        %v1374 = vadd.f32 %v1349, %v1363
        %v1375 = vadd.f32 %v1350, %v1363
        %v1376 = vadd.f32 %v1351, %v1363
        %v1377 = vadd.f32 %v1352, %v1363
        %v1378 = vadd.f32 %v1353, %v1363
        %v1379 = vadd.f32 %v1354, %v1363
        %v1380 = vadd.f32 %v1355, %v1363
        %v1381 = vadd.f32 %v1356, %v1363
        %v1382 = vadd.f32 %v1357, %v1363
        %v1383 = vmax.f32 %v1365, 0.0
        %v1384 = vmax.f32 %v1366, 0.0
        %v1385 = vmax.f32 %v1367, 0.0
        %v1386 = vmax.f32 %v1368, 0.0
        %v1387 = vmax.f32 %v1369, 0.0
        %v1388 = vmax.f32 %v1370, 0.0
        %v1389 = vmax.f32 %v1371, 0.0
        %v1390 = vmax.f32 %v1372, 0.0
        %v1391 = vmax.f32 %v1373, 0.0
        %v1392 = vmax.f32 %v1374, 0.0
        %v1393 = vmax.f32 %v1375, 0.0
        %v1394 = vmax.f32 %v1376, 0.0
        %v1395 = vmax.f32 %v1377, 0.0
        %v1396 = vmax.f32 %v1378, 0.0
        %v1397 = vmax.f32 %v1379, 0.0
        %v1398 = vmax.f32 %v1380, 0.0
        %v1399 = vmax.f32 %v1381, 0.0
        %v1400 = vmax.f32 %v1382, 0.0
        %vm1401 = vcmask 48128
        %1402 = vst.msk [vmem:[#allocation3] sm:$0xff] %vm1401, %v1383
        %1403 = vst.msk [vmem:[#allocation3 + $0x8] sm:$0xff] %vm1401, %v1384
        %1404 = vst.msk [vmem:[#allocation3 + $0x10] sm:$0xff] %vm1401, %v1385
        %1405 = vst.msk [vmem:[#allocation3 + $0x18] sm:$0xff] %vm1401, %v1386
        %1406 = vst.msk [vmem:[#allocation3 + $0x20] sm:$0xff] %vm1401, %v1387
        %1407 = vst.msk [vmem:[#allocation3 + $0x28] sm:$0xff] %vm1401, %v1388
        %1408 = vst.msk [vmem:[#allocation3 + $0x30] sm:$0xff] %vm1401, %v1389
        %1409 = vst.msk [vmem:[#allocation3 + $0x38] sm:$0xff] %vm1401, %v1390
        %1410 = vst.msk [vmem:[#allocation3 + $0x40] sm:$0xff] %vm1401, %v1391
        %1411 = vst.msk [vmem:[#allocation3 + $0x48] sm:$0xff] %vm1401, %v1392
        %1412 = vst.msk [vmem:[#allocation3 + $0x50] sm:$0xff] %vm1401, %v1393
        %1413 = vst.msk [vmem:[#allocation3 + $0x58] sm:$0xff] %vm1401, %v1394
        %1414 = vst.msk [vmem:[#allocation3 + $0x60] sm:$0xff] %vm1401, %v1395
        %1415 = vst.msk [vmem:[#allocation3 + $0x68] sm:$0xff] %vm1401, %v1396
        %1416 = vst.msk [vmem:[#allocation3 + $0x70] sm:$0xff] %vm1401, %v1397
        %1417 = vst.msk [vmem:[#allocation3 + $0x78] sm:$0xff] %vm1401, %v1398
        %1418 = vst.msk [vmem:[#allocation3 + $0x80] sm:$0xff] %vm1401, %v1399
        %1419 = vst.msk [vmem:[#allocation3 + $0x88] sm:$0xff] %vm1401, %v1400
        %v1420 = vld [vmem:[%s4] sm:$0x1]
        %v1422 = vlaneseq
        %v1423 = vshrl.u32 %v1422, 7
        %v1424 = vsub.s32 0, %v1423
        %v1425 = vrot.slane %v1420, %v1424
        %v1427 = vadd.f32 %v1425, 0.0
        %v1428 = vld [vmem:[#allocation3] sm:$0xff]
        %v1429 = vld [vmem:[#allocation3 + $0x8] sm:$0xff]
        %v1430 = vld [vmem:[#allocation3 + $0x10] sm:$0xff]
        %v1431 = vld [vmem:[#allocation3 + $0x18] sm:$0xff]
        %v1432 = vld [vmem:[#allocation3 + $0x20] sm:$0xff]
        %v1433 = vld [vmem:[#allocation3 + $0x28] sm:$0xff]
        %v1434 = vld [vmem:[#allocation3 + $0x30] sm:$0xff]
        %v1435 = vld [vmem:[#allocation3 + $0x38] sm:$0xff]
        %v1436 = vld [vmem:[#allocation3 + $0x40] sm:$0xff]
        %v1437 = vld [vmem:[#allocation3 + $0x48] sm:$0xff]
        %v1438 = vld [vmem:[#allocation3 + $0x50] sm:$0xff]
        %v1439 = vld [vmem:[#allocation3 + $0x58] sm:$0xf]
        %v1440 = vld [vmem:[%s3] sm:$0x3f]
        %v1442 = vsel %vm1401, %v1428, 0
        %v1445 = vsel %vm1401, %v1429, 0
        %v1448 = vsel %vm1401, %v1430, 0
        %v1451 = vsel %vm1401, %v1431, 0
        %v1454 = vsel %vm1401, %v1432, 0
        %v1457 = vsel %vm1401, %v1433, 0
        %v1460 = vsel %vm1401, %v1434, 0
        %v1463 = vsel %vm1401, %v1435, 0
        %v1466 = vsel %vm1401, %v1436, 0
        %v1469 = vsel %vm1401, %v1437, 0
        %v1472 = vsel %vm1401, %v1438, 0
        %v1475 = vsel %vm1401, %v1439, 0
        %vm1477 = vcmask 1045504
        %v1479 = vsel %vm1477, %v1440, 0
        %1481 = vmatprep.subr.mxu0 0.0
        %1482 = vmatpush1.msra.mxu0 %v1479
        %1483 = vmatprep.subr.mxu0 0.0
        %1484 = vmatpush1.msra.mxu0 0.0
        %1485 = vmatprep.subr.mxu0 0.0
        %1486 = vmatpush1.msra.mxu0 0.0
        %1487 = vmatprep.subr.mxu0 0.0
        %1488 = vmatpush1.msra.mxu0 0.0
        %1489 = vmatprep.subr.mxu0 0.0
        %1490 = vmatpush1.msra.mxu0 0.0
        %1491 = vmatprep.subr.mxu0 0.0
        %1492 = vmatpush1.msra.mxu0 0.0
        %1493 = vmatprep.subr.mxu0 0.0
        %1494 = vmatpush1.msra.mxu0 0.0
        %1495 = vmatprep.subr.mxu0 0.0
        %1496 = vmatpush1.msra.mxu0 0.0
        %1497 = vmatprep.subr.mxu0 0.0
        %1498 = vmatpush1.msra.mxu0 0.0
        %1499 = vmatprep.subr.mxu0 0.0
        %1500 = vmatpush1.msra.mxu0 0.0
        %1501 = vmatprep.subr.mxu0 0.0
        %1502 = vmatpush1.msra.mxu0 0.0
        %1503 = vmatprep.subr.mxu0 0.0
        %1504 = vmatpush1.msra.mxu0 0.0
        %1505 = vmatprep.subr.mxu0 0.0
        %1506 = vmatpush1.msra.mxu0 0.0
        %1507 = vmatprep.subr.mxu0 0.0
        %1508 = vmatpush1.msra.mxu0 0.0
        %1509 = vmatprep.subr.mxu0 0.0
        %1510 = vmatpush1.msra.mxu0 0.0
        %1511 = vmatprep.subr.mxu0 0.0
        %1512 = vmatpush1.msra.mxu0 0.0
        %1513 = vmatprep.subr.mxu0 0.0
        %1514 = vmatpush1.msra.mxu0 0.0
        %1515 = vmatprep.subr.mxu0 0.0
        %1516 = vmatpush1.msra.mxu0 0.0
        %1517 = vmatprep.subr.mxu0 0.0
        %1518 = vmatpush1.msra.mxu0 0.0
        %1519 = vmatprep.subr.mxu0 0.0
        %1520 = vmatpush1.msra.mxu0 0.0
        %1521 = vmatprep.subr.mxu0 0.0
        %1522 = vmatpush1.msra.mxu0 0.0
        %1523 = vmatprep.subr.mxu0 0.0
        %1524 = vmatpush1.msra.mxu0 0.0
        %1525 = vmatprep.subr.mxu0 0.0
        %1526 = vmatpush1.msra.mxu0 0.0
        %1527 = vmatprep.subr.mxu0 0.0
        %1528 = vmatpush1.msra.mxu0 0.0
        %1529 = vmatprep.subr.mxu0 0.0
        %1530 = vmatpush1.msra.mxu0 0.0
        %1531 = vmatprep.subr.mxu0 0.0
        %1532 = vmatpush1.msra.mxu0 0.0
        %1533 = vmatprep.subr.mxu0 0.0
        %1534 = vmatpush1.msra.mxu0 0.0
        %1535 = vmatprep.subr.mxu0 0.0
        %1536 = vmatpush1.msra.mxu0 0.0
        %1537 = vmatprep.subr.mxu0 0.0
        %1538 = vmatpush1.msra.mxu0 0.0
        %1539 = vmatprep.subr.mxu0 0.0
        %1540 = vmatpush1.msra.mxu0 0.0
        %1541 = vmatprep.subr.mxu0 0.0
        %1542 = vmatpush1.msra.mxu0 0.0
        %1543 = vmatprep.subr.mxu0 0.0
        %1544 = vmatpush1.msra.mxu0 0.0
        %1545 = vmatprep.mubr.f32.mxu0 0.0
        %1546 = vmatmul.mubr.f32.gmra.mrb[0].mxu0 %v1442
        %v1547 = vpop.f32.mrb[0].mxu0
        %v1548 = vadd.f32 0.0, %v1547
        %v1549 = vpop.f32.mrb[0].mxu0
        %1550 = vmatprep.mubr.f32.mxu0 0.0
        %1551 = vmatmul.mubr.f32.gmra.mrb[0].mxu0 %v1445
        %v1552 = vpop.f32.mrb[0].mxu0
        %v1553 = vadd.f32 0.0, %v1552
        %v1554 = vpop.f32.mrb[0].mxu0
        %1555 = vmatprep.mubr.f32.mxu0 0.0
        %1556 = vmatmul.mubr.f32.gmra.mrb[0].mxu0 %v1448
        %v1557 = vpop.f32.mrb[0].mxu0
        %v1558 = vadd.f32 0.0, %v1557
        %v1559 = vpop.f32.mrb[0].mxu0
        %1560 = vmatprep.mubr.f32.mxu0 0.0
        %1561 = vmatmul.mubr.f32.gmra.mrb[0].mxu0 %v1451
        %v1562 = vpop.f32.mrb[0].mxu0
        %v1563 = vadd.f32 0.0, %v1562
        %v1564 = vpop.f32.mrb[0].mxu0
        %1565 = vmatprep.mubr.f32.mxu0 0.0
        %1566 = vmatmul.mubr.f32.gmra.mrb[0].mxu0 %v1454
        %v1567 = vpop.f32.mrb[0].mxu0
        %v1568 = vadd.f32 0.0, %v1567
        %v1569 = vpop.f32.mrb[0].mxu0
        %1570 = vmatprep.mubr.f32.mxu0 0.0
        %1571 = vmatmul.mubr.f32.gmra.mrb[0].mxu0 %v1457
        %v1572 = vpop.f32.mrb[0].mxu0
        %v1573 = vadd.f32 0.0, %v1572
        %v1574 = vpop.f32.mrb[0].mxu0
        %1575 = vmatprep.mubr.f32.mxu0 0.0
        %1576 = vmatmul.mubr.f32.gmra.mrb[0].mxu0 %v1460
        %v1577 = vpop.f32.mrb[0].mxu0
        %v1578 = vadd.f32 0.0, %v1577
        %v1579 = vpop.f32.mrb[0].mxu0
        %1580 = vmatprep.mubr.f32.mxu0 0.0
        %1581 = vmatmul.mubr.f32.gmra.mrb[0].mxu0 %v1463
        %v1582 = vpop.f32.mrb[0].mxu0
        %v1583 = vadd.f32 0.0, %v1582
        %v1584 = vpop.f32.mrb[0].mxu0
        %1585 = vmatprep.mubr.f32.mxu0 0.0
        %1586 = vmatmul.mubr.f32.gmra.mrb[0].mxu0 %v1466
        %v1587 = vpop.f32.mrb[0].mxu0
        %v1588 = vadd.f32 0.0, %v1587
        %v1589 = vpop.f32.mrb[0].mxu0
        %1590 = vmatprep.mubr.f32.mxu0 0.0
        %1591 = vmatmul.mubr.f32.gmra.mrb[0].mxu0 %v1469
        %v1592 = vpop.f32.mrb[0].mxu0
        %v1593 = vadd.f32 0.0, %v1592
        %v1594 = vpop.f32.mrb[0].mxu0
        %1595 = vmatprep.mubr.f32.mxu0 0.0
        %1596 = vmatmul.mubr.f32.gmra.mrb[0].mxu0 %v1472
        %v1597 = vpop.f32.mrb[0].mxu0
        %v1598 = vadd.f32 0.0, %v1597
        %v1599 = vpop.f32.mrb[0].mxu0
        %1600 = vmatprep.mubr.f32.mxu0 0.0
        %1601 = vmatmul.mubr.f32.gmra.mrb[0].mxu0 %v1475
        %v1602 = vpop.f32.mrb[0].mxu0
        %v1603 = vadd.f32 0.0, %v1602
        %v1604 = vpop.f32.mrb[0].mxu0
        %1605 = vdwg.mxu0
        %v1606 = vadd.f32 %v1427, %v1548
        %v1607 = vadd.f32 %v1427, %v1553
        %v1608 = vadd.f32 %v1427, %v1558
        %v1609 = vadd.f32 %v1427, %v1563
        %v1610 = vadd.f32 %v1427, %v1568
        %v1611 = vadd.f32 %v1427, %v1573
        %v1612 = vadd.f32 %v1427, %v1578
        %v1613 = vadd.f32 %v1427, %v1583
        %v1614 = vadd.f32 %v1427, %v1588
        %v1615 = vadd.f32 %v1427, %v1593
        %v1616 = vadd.f32 %v1427, %v1598
        %v1617 = vadd.f32 %v1427, %v1603
        %v1618 = vld [vmem:[#allocation3 + $0x1] sm:$0xff]
        %v1619 = vld [vmem:[#allocation3 + $0x9] sm:$0xff]
        %v1620 = vld [vmem:[#allocation3 + $0x11] sm:$0xff]
        %v1621 = vld [vmem:[#allocation3 + $0x19] sm:$0xff]
        %v1622 = vld [vmem:[#allocation3 + $0x21] sm:$0xff]
        %v1623 = vld [vmem:[#allocation3 + $0x29] sm:$0xff]
        %v1624 = vld [vmem:[#allocation3 + $0x31] sm:$0xff]
        %v1625 = vld [vmem:[#allocation3 + $0x39] sm:$0xff]
        %v1626 = vld [vmem:[#allocation3 + $0x41] sm:$0xff]
        %v1627 = vld [vmem:[#allocation3 + $0x49] sm:$0xff]
        %v1628 = vld [vmem:[#allocation3 + $0x51] sm:$0xff]
        %v1629 = vld [vmem:[#allocation3 + $0x59] sm:$0xf]
        %1630 = vrot.lane.b32.xlu0 %v1440, 112
        %v1631 = vpop.permute.xlu0 %1630
        %v1633 = vsel %vm1401, %v1618, 0
        %v1636 = vsel %vm1401, %v1619, 0
        %v1639 = vsel %vm1401, %v1620, 0
        %v1642 = vsel %vm1401, %v1621, 0
        %v1645 = vsel %vm1401, %v1622, 0
        %v1648 = vsel %vm1401, %v1623, 0
        %v1651 = vsel %vm1401, %v1624, 0
        %v1654 = vsel %vm1401, %v1625, 0
        %v1657 = vsel %vm1401, %v1626, 0
        %v1660 = vsel %vm1401, %v1627, 0
        %v1663 = vsel %vm1401, %v1628, 0
        %v1666 = vsel %vm1401, %v1629, 0
        %v1668 = vsel %vm1477, %v1631, 0
        %1670 = vmatprep.subr.mxu0 0.0
        %1671 = vmatpush1.msra.mxu0 %v1668
        %1672 = vmatprep.subr.mxu0 0.0
        %1673 = vmatpush1.msra.mxu0 0.0
        %1674 = vmatprep.subr.mxu0 0.0
        %1675 = vmatpush1.msra.mxu0 0.0
        %1676 = vmatprep.subr.mxu0 0.0
        %1677 = vmatpush1.msra.mxu0 0.0
        %1678 = vmatprep.subr.mxu0 0.0
        %1679 = vmatpush1.msra.mxu0 0.0
        %1680 = vmatprep.subr.mxu0 0.0
        %1681 = vmatpush1.msra.mxu0 0.0
        %1682 = vmatprep.subr.mxu0 0.0
        %1683 = vmatpush1.msra.mxu0 0.0
        %1684 = vmatprep.subr.mxu0 0.0
        %1685 = vmatpush1.msra.mxu0 0.0
        %1686 = vmatprep.subr.mxu0 0.0
        %1687 = vmatpush1.msra.mxu0 0.0
        %1688 = vmatprep.subr.mxu0 0.0
        %1689 = vmatpush1.msra.mxu0 0.0
        %1690 = vmatprep.subr.mxu0 0.0
        %1691 = vmatpush1.msra.mxu0 0.0
        %1692 = vmatprep.subr.mxu0 0.0
        %1693 = vmatpush1.msra.mxu0 0.0
        %1694 = vmatprep.subr.mxu0 0.0
        %1695 = vmatpush1.msra.mxu0 0.0
        %1696 = vmatprep.subr.mxu0 0.0
        %1697 = vmatpush1.msra.mxu0 0.0
        %1698 = vmatprep.subr.mxu0 0.0
        %1699 = vmatpush1.msra.mxu0 0.0
        %1700 = vmatprep.subr.mxu0 0.0
        %1701 = vmatpush1.msra.mxu0 0.0
        %1702 = vmatprep.subr.mxu0 0.0
        %1703 = vmatpush1.msra.mxu0 0.0
        %1704 = vmatprep.subr.mxu0 0.0
        %1705 = vmatpush1.msra.mxu0 0.0
        %1706 = vmatprep.subr.mxu0 0.0
        %1707 = vmatpush1.msra.mxu0 0.0
        %1708 = vmatprep.subr.mxu0 0.0
        %1709 = vmatpush1.msra.mxu0 0.0
        %1710 = vmatprep.subr.mxu0 0.0
        %1711 = vmatpush1.msra.mxu0 0.0
        %1712 = vmatprep.subr.mxu0 0.0
        %1713 = vmatpush1.msra.mxu0 0.0
        %1714 = vmatprep.subr.mxu0 0.0
        %1715 = vmatpush1.msra.mxu0 0.0
        %1716 = vmatprep.subr.mxu0 0.0
        %1717 = vmatpush1.msra.mxu0 0.0
        %1718 = vmatprep.subr.mxu0 0.0
        %1719 = vmatpush1.msra.mxu0 0.0
        %1720 = vmatprep.subr.mxu0 0.0
        %1721 = vmatpush1.msra.mxu0 0.0
        %1722 = vmatprep.subr.mxu0 0.0
        %1723 = vmatpush1.msra.mxu0 0.0
        %1724 = vmatprep.subr.mxu0 0.0
        %1725 = vmatpush1.msra.mxu0 0.0
        %1726 = vmatprep.subr.mxu0 0.0
        %1727 = vmatpush1.msra.mxu0 0.0
        %1728 = vmatprep.subr.mxu0 0.0
        %1729 = vmatpush1.msra.mxu0 0.0
        %1730 = vmatprep.subr.mxu0 0.0
        %1731 = vmatpush1.msra.mxu0 0.0
        %1732 = vmatprep.subr.mxu0 0.0
        %1733 = vmatpush1.msra.mxu0 0.0
        %1734 = vmatprep.mubr.f32.mxu0 0.0
        %1735 = vmatmul.mubr.f32.gmra.mrb[0].mxu0 %v1633
        %v1736 = vpop.f32.mrb[0].mxu0
        %v1737 = vadd.f32 0.0, %v1736
        %v1738 = vpop.f32.mrb[0].mxu0
        %1739 = vmatprep.mubr.f32.mxu0 0.0
        %1740 = vmatmul.mubr.f32.gmra.mrb[0].mxu0 %v1636
        %v1741 = vpop.f32.mrb[0].mxu0
        %v1742 = vadd.f32 0.0, %v1741
        %v1743 = vpop.f32.mrb[0].mxu0
        %1744 = vmatprep.mubr.f32.mxu0 0.0
        %1745 = vmatmul.mubr.f32.gmra.mrb[0].mxu0 %v1639
        %v1746 = vpop.f32.mrb[0].mxu0
        %v1747 = vadd.f32 0.0, %v1746
        %v1748 = vpop.f32.mrb[0].mxu0
        %1749 = vmatprep.mubr.f32.mxu0 0.0
        %1750 = vmatmul.mubr.f32.gmra.mrb[0].mxu0 %v1642
        %v1751 = vpop.f32.mrb[0].mxu0
        %v1752 = vadd.f32 0.0, %v1751
        %v1753 = vpop.f32.mrb[0].mxu0
        %1754 = vmatprep.mubr.f32.mxu0 0.0
        %1755 = vmatmul.mubr.f32.gmra.mrb[0].mxu0 %v1645
        %v1756 = vpop.f32.mrb[0].mxu0
        %v1757 = vadd.f32 0.0, %v1756
        %v1758 = vpop.f32.mrb[0].mxu0
        %1759 = vmatprep.mubr.f32.mxu0 0.0
        %1760 = vmatmul.mubr.f32.gmra.mrb[0].mxu0 %v1648
        %v1761 = vpop.f32.mrb[0].mxu0
        %v1762 = vadd.f32 0.0, %v1761
        %v1763 = vpop.f32.mrb[0].mxu0
        %1764 = vmatprep.mubr.f32.mxu0 0.0
        %1765 = vmatmul.mubr.f32.gmra.mrb[0].mxu0 %v1651
        %v1766 = vpop.f32.mrb[0].mxu0
        %v1767 = vadd.f32 0.0, %v1766
        %v1768 = vpop.f32.mrb[0].mxu0
        %1769 = vmatprep.mubr.f32.mxu0 0.0
        %1770 = vmatmul.mubr.f32.gmra.mrb[0].mxu0 %v1654
        %v1771 = vpop.f32.mrb[0].mxu0
        %v1772 = vadd.f32 0.0, %v1771
        %v1773 = vpop.f32.mrb[0].mxu0
        %1774 = vmatprep.mubr.f32.mxu0 0.0
        %1775 = vmatmul.mubr.f32.gmra.mrb[0].mxu0 %v1657
        %v1776 = vpop.f32.mrb[0].mxu0
        %v1777 = vadd.f32 0.0, %v1776
        %v1778 = vpop.f32.mrb[0].mxu0
        %1779 = vmatprep.mubr.f32.mxu0 0.0
        %1780 = vmatmul.mubr.f32.gmra.mrb[0].mxu0 %v1660
        %v1781 = vpop.f32.mrb[0].mxu0
        %v1782 = vadd.f32 0.0, %v1781
        %v1783 = vpop.f32.mrb[0].mxu0
        %1784 = vmatprep.mubr.f32.mxu0 0.0
        %1785 = vmatmul.mubr.f32.gmra.mrb[0].mxu0 %v1663
        %v1786 = vpop.f32.mrb[0].mxu0
        %v1787 = vadd.f32 0.0, %v1786
        %v1788 = vpop.f32.mrb[0].mxu0
        %1789 = vmatprep.mubr.f32.mxu0 0.0
        %1790 = vmatmul.mubr.f32.gmra.mrb[0].mxu0 %v1666
        %v1791 = vpop.f32.mrb[0].mxu0
        %v1792 = vadd.f32 0.0, %v1791
        %v1793 = vpop.f32.mrb[0].mxu0
        %1794 = vdwg.mxu0
        %v1795 = vadd.f32 %v1606, %v1737
        %v1796 = vadd.f32 %v1607, %v1742
        %v1797 = vadd.f32 %v1608, %v1747
        %v1798 = vadd.f32 %v1609, %v1752
        %v1799 = vadd.f32 %v1610, %v1757
        %v1800 = vadd.f32 %v1611, %v1762
        %v1801 = vadd.f32 %v1612, %v1767
        %v1802 = vadd.f32 %v1613, %v1772
        %v1803 = vadd.f32 %v1614, %v1777
        %v1804 = vadd.f32 %v1615, %v1782
        %v1805 = vadd.f32 %v1616, %v1787
        %v1806 = vadd.f32 %v1617, %v1792
        %v1807 = vld [vmem:[#allocation3 + $0x2] sm:$0xff]
        %v1808 = vld [vmem:[#allocation3 + $0xa] sm:$0xff]
        %v1809 = vld [vmem:[#allocation3 + $0x12] sm:$0xff]
        %v1810 = vld [vmem:[#allocation3 + $0x1a] sm:$0xff]
        %v1811 = vld [vmem:[#allocation3 + $0x22] sm:$0xff]
        %v1812 = vld [vmem:[#allocation3 + $0x2a] sm:$0xff]
        %v1813 = vld [vmem:[#allocation3 + $0x32] sm:$0xff]
        %v1814 = vld [vmem:[#allocation3 + $0x3a] sm:$0xff]
        %v1815 = vld [vmem:[#allocation3 + $0x42] sm:$0xff]
        %v1816 = vld [vmem:[#allocation3 + $0x4a] sm:$0xff]
        %v1817 = vld [vmem:[#allocation3 + $0x52] sm:$0xff]
        %v1818 = vld [vmem:[#allocation3 + $0x5a] sm:$0xf]
        %1819 = vrot.lane.b32.xlu0 %v1440, 96
        %v1820 = vpop.permute.xlu0 %1819
        %v1822 = vsel %vm1401, %v1807, 0
        %v1825 = vsel %vm1401, %v1808, 0
        %v1828 = vsel %vm1401, %v1809, 0
        %v1831 = vsel %vm1401, %v1810, 0
        %v1834 = vsel %vm1401, %v1811, 0
        %v1837 = vsel %vm1401, %v1812, 0
        %v1840 = vsel %vm1401, %v1813, 0
        %v1843 = vsel %vm1401, %v1814, 0
        %v1846 = vsel %vm1401, %v1815, 0
        %v1849 = vsel %vm1401, %v1816, 0
        %v1852 = vsel %vm1401, %v1817, 0
        %v1855 = vsel %vm1401, %v1818, 0
        %v1857 = vsel %vm1477, %v1820, 0
        %1859 = vmatprep.subr.mxu0 0.0
        %1860 = vmatpush1.msra.mxu0 %v1857
        %1861 = vmatprep.subr.mxu0 0.0
        %1862 = vmatpush1.msra.mxu0 0.0
        %1863 = vmatprep.subr.mxu0 0.0
        %1864 = vmatpush1.msra.mxu0 0.0
        %1865 = vmatprep.subr.mxu0 0.0
        %1866 = vmatpush1.msra.mxu0 0.0
        %1867 = vmatprep.subr.mxu0 0.0
        %1868 = vmatpush1.msra.mxu0 0.0
        %1869 = vmatprep.subr.mxu0 0.0
        %1870 = vmatpush1.msra.mxu0 0.0
        %1871 = vmatprep.subr.mxu0 0.0
        %1872 = vmatpush1.msra.mxu0 0.0
        %1873 = vmatprep.subr.mxu0 0.0
        %1874 = vmatpush1.msra.mxu0 0.0
        %1875 = vmatprep.subr.mxu0 0.0
        %1876 = vmatpush1.msra.mxu0 0.0
        %1877 = vmatprep.subr.mxu0 0.0
        %1878 = vmatpush1.msra.mxu0 0.0
        %1879 = vmatprep.subr.mxu0 0.0
        %1880 = vmatpush1.msra.mxu0 0.0
        %1881 = vmatprep.subr.mxu0 0.0
        %1882 = vmatpush1.msra.mxu0 0.0
        %1883 = vmatprep.subr.mxu0 0.0
        %1884 = vmatpush1.msra.mxu0 0.0
        %1885 = vmatprep.subr.mxu0 0.0
        %1886 = vmatpush1.msra.mxu0 0.0
        %1887 = vmatprep.subr.mxu0 0.0
        %1888 = vmatpush1.msra.mxu0 0.0
        %1889 = vmatprep.subr.mxu0 0.0
        %1890 = vmatpush1.msra.mxu0 0.0
        %1891 = vmatprep.subr.mxu0 0.0
        %1892 = vmatpush1.msra.mxu0 0.0
        %1893 = vmatprep.subr.mxu0 0.0
        %1894 = vmatpush1.msra.mxu0 0.0
        %1895 = vmatprep.subr.mxu0 0.0
        %1896 = vmatpush1.msra.mxu0 0.0
        %1897 = vmatprep.subr.mxu0 0.0
        %1898 = vmatpush1.msra.mxu0 0.0
        %1899 = vmatprep.subr.mxu0 0.0
        %1900 = vmatpush1.msra.mxu0 0.0
        %1901 = vmatprep.subr.mxu0 0.0
        %1902 = vmatpush1.msra.mxu0 0.0
        %1903 = vmatprep.subr.mxu0 0.0
        %1904 = vmatpush1.msra.mxu0 0.0
        %1905 = vmatprep.subr.mxu0 0.0
        %1906 = vmatpush1.msra.mxu0 0.0
        %1907 = vmatprep.subr.mxu0 0.0
        %1908 = vmatpush1.msra.mxu0 0.0
        %1909 = vmatprep.subr.mxu0 0.0
        %1910 = vmatpush1.msra.mxu0 0.0
        %1911 = vmatprep.subr.mxu0 0.0
        %1912 = vmatpush1.msra.mxu0 0.0
        %1913 = vmatprep.subr.mxu0 0.0
        %1914 = vmatpush1.msra.mxu0 0.0
        %1915 = vmatprep.subr.mxu0 0.0
        %1916 = vmatpush1.msra.mxu0 0.0
        %1917 = vmatprep.subr.mxu0 0.0
        %1918 = vmatpush1.msra.mxu0 0.0
        %1919 = vmatprep.subr.mxu0 0.0
        %1920 = vmatpush1.msra.mxu0 0.0
        %1921 = vmatprep.subr.mxu0 0.0
        %1922 = vmatpush1.msra.mxu0 0.0
        %1923 = vmatprep.mubr.f32.mxu0 0.0
        %1924 = vmatmul.mubr.f32.gmra.mrb[0].mxu0 %v1822
        %v1925 = vpop.f32.mrb[0].mxu0
        %v1926 = vadd.f32 0.0, %v1925
        %v1927 = vpop.f32.mrb[0].mxu0
        %1928 = vmatprep.mubr.f32.mxu0 0.0
        %1929 = vmatmul.mubr.f32.gmra.mrb[0].mxu0 %v1825
        %v1930 = vpop.f32.mrb[0].mxu0
        %v1931 = vadd.f32 0.0, %v1930
        %v1932 = vpop.f32.mrb[0].mxu0
        %1933 = vmatprep.mubr.f32.mxu0 0.0
        %1934 = vmatmul.mubr.f32.gmra.mrb[0].mxu0 %v1828
        %v1935 = vpop.f32.mrb[0].mxu0
        %v1936 = vadd.f32 0.0, %v1935
        %v1937 = vpop.f32.mrb[0].mxu0
        %1938 = vmatprep.mubr.f32.mxu0 0.0
        %1939 = vmatmul.mubr.f32.gmra.mrb[0].mxu0 %v1831
        %v1940 = vpop.f32.mrb[0].mxu0
        %v1941 = vadd.f32 0.0, %v1940
        %v1942 = vpop.f32.mrb[0].mxu0
        %1943 = vmatprep.mubr.f32.mxu0 0.0
        %1944 = vmatmul.mubr.f32.gmra.mrb[0].mxu0 %v1834
        %v1945 = vpop.f32.mrb[0].mxu0
        %v1946 = vadd.f32 0.0, %v1945
        %v1947 = vpop.f32.mrb[0].mxu0
        %1948 = vmatprep.mubr.f32.mxu0 0.0
        %1949 = vmatmul.mubr.f32.gmra.mrb[0].mxu0 %v1837
        %v1950 = vpop.f32.mrb[0].mxu0
        %v1951 = vadd.f32 0.0, %v1950
        %v1952 = vpop.f32.mrb[0].mxu0
        %1953 = vmatprep.mubr.f32.mxu0 0.0
        %1954 = vmatmul.mubr.f32.gmra.mrb[0].mxu0 %v1840
        %v1955 = vpop.f32.mrb[0].mxu0
        %v1956 = vadd.f32 0.0, %v1955
        %v1957 = vpop.f32.mrb[0].mxu0
        %1958 = vmatprep.mubr.f32.mxu0 0.0
        %1959 = vmatmul.mubr.f32.gmra.mrb[0].mxu0 %v1843
        %v1960 = vpop.f32.mrb[0].mxu0
        %v1961 = vadd.f32 0.0, %v1960
        %v1962 = vpop.f32.mrb[0].mxu0
        %1963 = vmatprep.mubr.f32.mxu0 0.0
        %1964 = vmatmul.mubr.f32.gmra.mrb[0].mxu0 %v1846
        %v1965 = vpop.f32.mrb[0].mxu0
        %v1966 = vadd.f32 0.0, %v1965
        %v1967 = vpop.f32.mrb[0].mxu0
        %1968 = vmatprep.mubr.f32.mxu0 0.0
        %1969 = vmatmul.mubr.f32.gmra.mrb[0].mxu0 %v1849
        %v1970 = vpop.f32.mrb[0].mxu0
        %v1971 = vadd.f32 0.0, %v1970
        %v1972 = vpop.f32.mrb[0].mxu0
        %1973 = vmatprep.mubr.f32.mxu0 0.0
        %1974 = vmatmul.mubr.f32.gmra.mrb[0].mxu0 %v1852
        %v1975 = vpop.f32.mrb[0].mxu0
        %v1976 = vadd.f32 0.0, %v1975
        %v1977 = vpop.f32.mrb[0].mxu0
        %1978 = vmatprep.mubr.f32.mxu0 0.0
        %1979 = vmatmul.mubr.f32.gmra.mrb[0].mxu0 %v1855
        %v1980 = vpop.f32.mrb[0].mxu0
        %v1981 = vadd.f32 0.0, %v1980
        %v1982 = vpop.f32.mrb[0].mxu0
        %1983 = vdwg.mxu0
        %v1984 = vadd.f32 %v1795, %v1926
        %v1985 = vadd.f32 %v1796, %v1931
        %v1986 = vadd.f32 %v1797, %v1936
        %v1987 = vadd.f32 %v1798, %v1941
        %v1988 = vadd.f32 %v1799, %v1946
        %v1989 = vadd.f32 %v1800, %v1951
        %v1990 = vadd.f32 %v1801, %v1956
        %v1991 = vadd.f32 %v1802, %v1961
        %v1992 = vadd.f32 %v1803, %v1966
        %v1993 = vadd.f32 %v1804, %v1971
        %v1994 = vadd.f32 %v1805, %v1976
        %v1995 = vadd.f32 %v1806, %v1981
        %v1996 = vld [vmem:[#allocation3 + $0x3] sm:$0xff]
        %v1997 = vld [vmem:[#allocation3 + $0xb] sm:$0xff]
        %v1998 = vld [vmem:[#allocation3 + $0x13] sm:$0xff]
        %v1999 = vld [vmem:[#allocation3 + $0x1b] sm:$0xff]
        %v2000 = vld [vmem:[#allocation3 + $0x23] sm:$0xff]
        %v2001 = vld [vmem:[#allocation3 + $0x2b] sm:$0xff]
        %v2002 = vld [vmem:[#allocation3 + $0x33] sm:$0xff]
        %v2003 = vld [vmem:[#allocation3 + $0x3b] sm:$0xff]
        %v2004 = vld [vmem:[#allocation3 + $0x43] sm:$0xff]
        %v2005 = vld [vmem:[#allocation3 + $0x4b] sm:$0xff]
        %v2006 = vld [vmem:[#allocation3 + $0x53] sm:$0xff]
        %v2007 = vld [vmem:[#allocation3 + $0x5b] sm:$0xf]
        %2008 = vrot.lane.b32.xlu0 %v1440, 80
        %v2009 = vpop.permute.xlu0 %2008
        %v2011 = vsel %vm1401, %v1996, 0
        %v2014 = vsel %vm1401, %v1997, 0
        %v2017 = vsel %vm1401, %v1998, 0
        %v2020 = vsel %vm1401, %v1999, 0
        %v2023 = vsel %vm1401, %v2000, 0
        %v2026 = vsel %vm1401, %v2001, 0
        %v2029 = vsel %vm1401, %v2002, 0
        %v2032 = vsel %vm1401, %v2003, 0
        %v2035 = vsel %vm1401, %v2004, 0
        %v2038 = vsel %vm1401, %v2005, 0
        %v2041 = vsel %vm1401, %v2006, 0
        %v2044 = vsel %vm1401, %v2007, 0
        %v2046 = vsel %vm1477, %v2009, 0
        %2048 = vmatprep.subr.mxu0 0.0
        %2049 = vmatpush1.msra.mxu0 %v2046
        %2050 = vmatprep.subr.mxu0 0.0
        %2051 = vmatpush1.msra.mxu0 0.0
        %2052 = vmatprep.subr.mxu0 0.0
        %2053 = vmatpush1.msra.mxu0 0.0
        %2054 = vmatprep.subr.mxu0 0.0
        %2055 = vmatpush1.msra.mxu0 0.0
        %2056 = vmatprep.subr.mxu0 0.0
        %2057 = vmatpush1.msra.mxu0 0.0
        %2058 = vmatprep.subr.mxu0 0.0
        %2059 = vmatpush1.msra.mxu0 0.0
        %2060 = vmatprep.subr.mxu0 0.0
        %2061 = vmatpush1.msra.mxu0 0.0
        %2062 = vmatprep.subr.mxu0 0.0
        %2063 = vmatpush1.msra.mxu0 0.0
        %2064 = vmatprep.subr.mxu0 0.0
        %2065 = vmatpush1.msra.mxu0 0.0
        %2066 = vmatprep.subr.mxu0 0.0
        %2067 = vmatpush1.msra.mxu0 0.0
        %2068 = vmatprep.subr.mxu0 0.0
        %2069 = vmatpush1.msra.mxu0 0.0
        %2070 = vmatprep.subr.mxu0 0.0
        %2071 = vmatpush1.msra.mxu0 0.0
        %2072 = vmatprep.subr.mxu0 0.0
        %2073 = vmatpush1.msra.mxu0 0.0
        %2074 = vmatprep.subr.mxu0 0.0
        %2075 = vmatpush1.msra.mxu0 0.0
        %2076 = vmatprep.subr.mxu0 0.0
        %2077 = vmatpush1.msra.mxu0 0.0
        %2078 = vmatprep.subr.mxu0 0.0
        %2079 = vmatpush1.msra.mxu0 0.0
        %2080 = vmatprep.subr.mxu0 0.0
        %2081 = vmatpush1.msra.mxu0 0.0
        %2082 = vmatprep.subr.mxu0 0.0
        %2083 = vmatpush1.msra.mxu0 0.0
        %2084 = vmatprep.subr.mxu0 0.0
        %2085 = vmatpush1.msra.mxu0 0.0
        %2086 = vmatprep.subr.mxu0 0.0
        %2087 = vmatpush1.msra.mxu0 0.0
        %2088 = vmatprep.subr.mxu0 0.0
        %2089 = vmatpush1.msra.mxu0 0.0
        %2090 = vmatprep.subr.mxu0 0.0
        %2091 = vmatpush1.msra.mxu0 0.0
        %2092 = vmatprep.subr.mxu0 0.0
        %2093 = vmatpush1.msra.mxu0 0.0
        %2094 = vmatprep.subr.mxu0 0.0
        %2095 = vmatpush1.msra.mxu0 0.0
        %2096 = vmatprep.subr.mxu0 0.0
        %2097 = vmatpush1.msra.mxu0 0.0
        %2098 = vmatprep.subr.mxu0 0.0
        %2099 = vmatpush1.msra.mxu0 0.0
        %2100 = vmatprep.subr.mxu0 0.0
        %2101 = vmatpush1.msra.mxu0 0.0
        %2102 = vmatprep.subr.mxu0 0.0
        %2103 = vmatpush1.msra.mxu0 0.0
        %2104 = vmatprep.subr.mxu0 0.0
        %2105 = vmatpush1.msra.mxu0 0.0
        %2106 = vmatprep.subr.mxu0 0.0
        %2107 = vmatpush1.msra.mxu0 0.0
        %2108 = vmatprep.subr.mxu0 0.0
        %2109 = vmatpush1.msra.mxu0 0.0
        %2110 = vmatprep.subr.mxu0 0.0
        %2111 = vmatpush1.msra.mxu0 0.0
        %2112 = vmatprep.mubr.f32.mxu0 0.0
        %2113 = vmatmul.mubr.f32.gmra.mrb[0].mxu0 %v2011
        %v2114 = vpop.f32.mrb[0].mxu0
        %v2115 = vadd.f32 0.0, %v2114
        %v2116 = vpop.f32.mrb[0].mxu0
        %2117 = vmatprep.mubr.f32.mxu0 0.0
        %2118 = vmatmul.mubr.f32.gmra.mrb[0].mxu0 %v2014
        %v2119 = vpop.f32.mrb[0].mxu0
        %v2120 = vadd.f32 0.0, %v2119
        %v2121 = vpop.f32.mrb[0].mxu0
        %2122 = vmatprep.mubr.f32.mxu0 0.0
        %2123 = vmatmul.mubr.f32.gmra.mrb[0].mxu0 %v2017
        %v2124 = vpop.f32.mrb[0].mxu0
        %v2125 = vadd.f32 0.0, %v2124
        %v2126 = vpop.f32.mrb[0].mxu0
        %2127 = vmatprep.mubr.f32.mxu0 0.0
        %2128 = vmatmul.mubr.f32.gmra.mrb[0].mxu0 %v2020
        %v2129 = vpop.f32.mrb[0].mxu0
        %v2130 = vadd.f32 0.0, %v2129
        %v2131 = vpop.f32.mrb[0].mxu0
        %2132 = vmatprep.mubr.f32.mxu0 0.0
        %2133 = vmatmul.mubr.f32.gmra.mrb[0].mxu0 %v2023
        %v2134 = vpop.f32.mrb[0].mxu0
        %v2135 = vadd.f32 0.0, %v2134
        %v2136 = vpop.f32.mrb[0].mxu0
        %2137 = vmatprep.mubr.f32.mxu0 0.0
        %2138 = vmatmul.mubr.f32.gmra.mrb[0].mxu0 %v2026
        %v2139 = vpop.f32.mrb[0].mxu0
        %v2140 = vadd.f32 0.0, %v2139
        %v2141 = vpop.f32.mrb[0].mxu0
        %2142 = vmatprep.mubr.f32.mxu0 0.0
        %2143 = vmatmul.mubr.f32.gmra.mrb[0].mxu0 %v2029
        %v2144 = vpop.f32.mrb[0].mxu0
        %v2145 = vadd.f32 0.0, %v2144
        %v2146 = vpop.f32.mrb[0].mxu0
        %2147 = vmatprep.mubr.f32.mxu0 0.0
        %2148 = vmatmul.mubr.f32.gmra.mrb[0].mxu0 %v2032
        %v2149 = vpop.f32.mrb[0].mxu0
        %v2150 = vadd.f32 0.0, %v2149
        %v2151 = vpop.f32.mrb[0].mxu0
        %2152 = vmatprep.mubr.f32.mxu0 0.0
        %2153 = vmatmul.mubr.f32.gmra.mrb[0].mxu0 %v2035
        %v2154 = vpop.f32.mrb[0].mxu0
        %v2155 = vadd.f32 0.0, %v2154
        %v2156 = vpop.f32.mrb[0].mxu0
        %2157 = vmatprep.mubr.f32.mxu0 0.0
        %2158 = vmatmul.mubr.f32.gmra.mrb[0].mxu0 %v2038
        %v2159 = vpop.f32.mrb[0].mxu0
        %v2160 = vadd.f32 0.0, %v2159
        %v2161 = vpop.f32.mrb[0].mxu0
        %2162 = vmatprep.mubr.f32.mxu0 0.0
        %2163 = vmatmul.mubr.f32.gmra.mrb[0].mxu0 %v2041
        %v2164 = vpop.f32.mrb[0].mxu0
        %v2165 = vadd.f32 0.0, %v2164
        %v2166 = vpop.f32.mrb[0].mxu0
        %2167 = vmatprep.mubr.f32.mxu0 0.0
        %2168 = vmatmul.mubr.f32.gmra.mrb[0].mxu0 %v2044
        %v2169 = vpop.f32.mrb[0].mxu0
        %v2170 = vadd.f32 0.0, %v2169
        %v2171 = vpop.f32.mrb[0].mxu0
        %2172 = vdwg.mxu0
        %v2173 = vadd.f32 %v1984, %v2115
        %v2174 = vadd.f32 %v1985, %v2120
        %v2175 = vadd.f32 %v1986, %v2125
        %v2176 = vadd.f32 %v1987, %v2130
        %v2177 = vadd.f32 %v1988, %v2135
        %v2178 = vadd.f32 %v1989, %v2140
        %v2179 = vadd.f32 %v1990, %v2145
        %v2180 = vadd.f32 %v1991, %v2150
        %v2181 = vadd.f32 %v1992, %v2155
        %v2182 = vadd.f32 %v1993, %v2160
        %v2183 = vadd.f32 %v1994, %v2165
        %v2184 = vadd.f32 %v1995, %v2170
        %v2185 = vld [vmem:[#allocation3 + $0x4] sm:$0xff]
        %v2186 = vld [vmem:[#allocation3 + $0xc] sm:$0xff]
        %v2187 = vld [vmem:[#allocation3 + $0x14] sm:$0xff]
        %v2188 = vld [vmem:[#allocation3 + $0x1c] sm:$0xff]
        %v2189 = vld [vmem:[#allocation3 + $0x24] sm:$0xff]
        %v2190 = vld [vmem:[#allocation3 + $0x2c] sm:$0xff]
        %v2191 = vld [vmem:[#allocation3 + $0x34] sm:$0xff]
        %v2192 = vld [vmem:[#allocation3 + $0x3c] sm:$0xff]
        %v2193 = vld [vmem:[#allocation3 + $0x44] sm:$0xff]
        %v2194 = vld [vmem:[#allocation3 + $0x4c] sm:$0xff]
        %v2195 = vld [vmem:[#allocation3 + $0x54] sm:$0xff]
        %v2196 = vld [vmem:[#allocation3 + $0x5c] sm:$0xf]
        %2197 = vrot.lane.b32.xlu0 %v1440, 64
        %v2198 = vpop.permute.xlu0 %2197
        %v2200 = vsel %vm1401, %v2185, 0
        %v2203 = vsel %vm1401, %v2186, 0
        %v2206 = vsel %vm1401, %v2187, 0
        %v2209 = vsel %vm1401, %v2188, 0
        %v2212 = vsel %vm1401, %v2189, 0
        %v2215 = vsel %vm1401, %v2190, 0
        %v2218 = vsel %vm1401, %v2191, 0
        %v2221 = vsel %vm1401, %v2192, 0
        %v2224 = vsel %vm1401, %v2193, 0
        %v2227 = vsel %vm1401, %v2194, 0
        %v2230 = vsel %vm1401, %v2195, 0
        %v2233 = vsel %vm1401, %v2196, 0
        %v2235 = vsel %vm1477, %v2198, 0
        %2237 = vmatprep.subr.mxu0 0.0
        %2238 = vmatpush1.msra.mxu0 %v2235
        %2239 = vmatprep.subr.mxu0 0.0
        %2240 = vmatpush1.msra.mxu0 0.0
        %2241 = vmatprep.subr.mxu0 0.0
        %2242 = vmatpush1.msra.mxu0 0.0
        %2243 = vmatprep.subr.mxu0 0.0
        %2244 = vmatpush1.msra.mxu0 0.0
        %2245 = vmatprep.subr.mxu0 0.0
        %2246 = vmatpush1.msra.mxu0 0.0
        %2247 = vmatprep.subr.mxu0 0.0
        %2248 = vmatpush1.msra.mxu0 0.0
        %2249 = vmatprep.subr.mxu0 0.0
        %2250 = vmatpush1.msra.mxu0 0.0
        %2251 = vmatprep.subr.mxu0 0.0
        %2252 = vmatpush1.msra.mxu0 0.0
        %2253 = vmatprep.subr.mxu0 0.0
        %2254 = vmatpush1.msra.mxu0 0.0
        %2255 = vmatprep.subr.mxu0 0.0
        %2256 = vmatpush1.msra.mxu0 0.0
        %2257 = vmatprep.subr.mxu0 0.0
        %2258 = vmatpush1.msra.mxu0 0.0
        %2259 = vmatprep.subr.mxu0 0.0
        %2260 = vmatpush1.msra.mxu0 0.0
        %2261 = vmatprep.subr.mxu0 0.0
        %2262 = vmatpush1.msra.mxu0 0.0
        %2263 = vmatprep.subr.mxu0 0.0
        %2264 = vmatpush1.msra.mxu0 0.0
        %2265 = vmatprep.subr.mxu0 0.0
        %2266 = vmatpush1.msra.mxu0 0.0
        %2267 = vmatprep.subr.mxu0 0.0
        %2268 = vmatpush1.msra.mxu0 0.0
        %2269 = vmatprep.subr.mxu0 0.0
        %2270 = vmatpush1.msra.mxu0 0.0
        %2271 = vmatprep.subr.mxu0 0.0
        %2272 = vmatpush1.msra.mxu0 0.0
        %2273 = vmatprep.subr.mxu0 0.0
        %2274 = vmatpush1.msra.mxu0 0.0
        %2275 = vmatprep.subr.mxu0 0.0
        %2276 = vmatpush1.msra.mxu0 0.0
        %2277 = vmatprep.subr.mxu0 0.0
        %2278 = vmatpush1.msra.mxu0 0.0
        %2279 = vmatprep.subr.mxu0 0.0
        %2280 = vmatpush1.msra.mxu0 0.0
        %2281 = vmatprep.subr.mxu0 0.0
        %2282 = vmatpush1.msra.mxu0 0.0
        %2283 = vmatprep.subr.mxu0 0.0
        %2284 = vmatpush1.msra.mxu0 0.0
        %2285 = vmatprep.subr.mxu0 0.0
        %2286 = vmatpush1.msra.mxu0 0.0
        %2287 = vmatprep.subr.mxu0 0.0
        %2288 = vmatpush1.msra.mxu0 0.0
        %2289 = vmatprep.subr.mxu0 0.0
        %2290 = vmatpush1.msra.mxu0 0.0
        %2291 = vmatprep.subr.mxu0 0.0
        %2292 = vmatpush1.msra.mxu0 0.0
        %2293 = vmatprep.subr.mxu0 0.0
        %2294 = vmatpush1.msra.mxu0 0.0
        %2295 = vmatprep.subr.mxu0 0.0
        %2296 = vmatpush1.msra.mxu0 0.0
        %2297 = vmatprep.subr.mxu0 0.0
        %2298 = vmatpush1.msra.mxu0 0.0
        %2299 = vmatprep.subr.mxu0 0.0
        %2300 = vmatpush1.msra.mxu0 0.0
        %2301 = vmatprep.mubr.f32.mxu0 0.0
        %2302 = vmatmul.mubr.f32.gmra.mrb[0].mxu0 %v2200
        %v2303 = vpop.f32.mrb[0].mxu0
        %v2304 = vadd.f32 0.0, %v2303
        %v2305 = vpop.f32.mrb[0].mxu0
        %2306 = vmatprep.mubr.f32.mxu0 0.0
        %2307 = vmatmul.mubr.f32.gmra.mrb[0].mxu0 %v2203
        %v2308 = vpop.f32.mrb[0].mxu0
        %v2309 = vadd.f32 0.0, %v2308
        %v2310 = vpop.f32.mrb[0].mxu0
        %2311 = vmatprep.mubr.f32.mxu0 0.0
        %2312 = vmatmul.mubr.f32.gmra.mrb[0].mxu0 %v2206
        %v2313 = vpop.f32.mrb[0].mxu0
        %v2314 = vadd.f32 0.0, %v2313
        %v2315 = vpop.f32.mrb[0].mxu0
        %2316 = vmatprep.mubr.f32.mxu0 0.0
        %2317 = vmatmul.mubr.f32.gmra.mrb[0].mxu0 %v2209
        %v2318 = vpop.f32.mrb[0].mxu0
        %v2319 = vadd.f32 0.0, %v2318
        %v2320 = vpop.f32.mrb[0].mxu0
        %2321 = vmatprep.mubr.f32.mxu0 0.0
        %2322 = vmatmul.mubr.f32.gmra.mrb[0].mxu0 %v2212
        %v2323 = vpop.f32.mrb[0].mxu0
        %v2324 = vadd.f32 0.0, %v2323
        %v2325 = vpop.f32.mrb[0].mxu0
        %2326 = vmatprep.mubr.f32.mxu0 0.0
        %2327 = vmatmul.mubr.f32.gmra.mrb[0].mxu0 %v2215
        %v2328 = vpop.f32.mrb[0].mxu0
        %v2329 = vadd.f32 0.0, %v2328
        %v2330 = vpop.f32.mrb[0].mxu0
        %2331 = vmatprep.mubr.f32.mxu0 0.0
        %2332 = vmatmul.mubr.f32.gmra.mrb[0].mxu0 %v2218
        %v2333 = vpop.f32.mrb[0].mxu0
        %v2334 = vadd.f32 0.0, %v2333
        %v2335 = vpop.f32.mrb[0].mxu0
        %2336 = vmatprep.mubr.f32.mxu0 0.0
        %2337 = vmatmul.mubr.f32.gmra.mrb[0].mxu0 %v2221
        %v2338 = vpop.f32.mrb[0].mxu0
        %v2339 = vadd.f32 0.0, %v2338
        %v2340 = vpop.f32.mrb[0].mxu0
        %2341 = vmatprep.mubr.f32.mxu0 0.0
        %2342 = vmatmul.mubr.f32.gmra.mrb[0].mxu0 %v2224
        %v2343 = vpop.f32.mrb[0].mxu0
        %v2344 = vadd.f32 0.0, %v2343
        %v2345 = vpop.f32.mrb[0].mxu0
        %2346 = vmatprep.mubr.f32.mxu0 0.0
        %2347 = vmatmul.mubr.f32.gmra.mrb[0].mxu0 %v2227
        %v2348 = vpop.f32.mrb[0].mxu0
        %v2349 = vadd.f32 0.0, %v2348
        %v2350 = vpop.f32.mrb[0].mxu0
        %2351 = vmatprep.mubr.f32.mxu0 0.0
        %2352 = vmatmul.mubr.f32.gmra.mrb[0].mxu0 %v2230
        %v2353 = vpop.f32.mrb[0].mxu0
        %v2354 = vadd.f32 0.0, %v2353
        %v2355 = vpop.f32.mrb[0].mxu0
        %2356 = vmatprep.mubr.f32.mxu0 0.0
        %2357 = vmatmul.mubr.f32.gmra.mrb[0].mxu0 %v2233
        %v2358 = vpop.f32.mrb[0].mxu0
        %v2359 = vadd.f32 0.0, %v2358
        %v2360 = vpop.f32.mrb[0].mxu0
        %2361 = vdwg.mxu0
        %v2362 = vadd.f32 %v2173, %v2304
        %v2363 = vadd.f32 %v2174, %v2309
        %v2364 = vadd.f32 %v2175, %v2314
        %v2365 = vadd.f32 %v2176, %v2319
        %v2366 = vadd.f32 %v2177, %v2324
        %v2367 = vadd.f32 %v2178, %v2329
        %v2368 = vadd.f32 %v2179, %v2334
        %v2369 = vadd.f32 %v2180, %v2339
        %v2370 = vadd.f32 %v2181, %v2344
        %v2371 = vadd.f32 %v2182, %v2349
        %v2372 = vadd.f32 %v2183, %v2354
        %v2373 = vadd.f32 %v2184, %v2359
        %v2374 = vld [vmem:[#allocation3 + $0xc] sm:$0xff]
        %v2375 = vld [vmem:[#allocation3 + $0x14] sm:$0xff]
        %v2376 = vld [vmem:[#allocation3 + $0x1c] sm:$0xff]
        %v2377 = vld [vmem:[#allocation3 + $0x24] sm:$0xff]
        %v2378 = vld [vmem:[#allocation3 + $0x2c] sm:$0xff]
        %v2379 = vld [vmem:[#allocation3 + $0x34] sm:$0xff]
        %v2380 = vld [vmem:[#allocation3 + $0x3c] sm:$0xff]
        %v2381 = vld [vmem:[#allocation3 + $0x44] sm:$0xff]
        %v2382 = vld [vmem:[#allocation3 + $0x4c] sm:$0xff]
        %v2383 = vld [vmem:[#allocation3 + $0x54] sm:$0xff]
        %v2384 = vld [vmem:[#allocation3 + $0x5c] sm:$0xff]
        %v2385 = vld [vmem:[#allocation3 + $0x64] sm:$0xf]
        %2386 = vrot.lane.b32.xlu0 %v1440, 48
        %v2387 = vpop.permute.xlu0 %2386
        %v2389 = vsel %vm1401, %v2374, 0
        %v2392 = vsel %vm1401, %v2375, 0
        %v2395 = vsel %vm1401, %v2376, 0
        %v2398 = vsel %vm1401, %v2377, 0
        %v2401 = vsel %vm1401, %v2378, 0
        %v2404 = vsel %vm1401, %v2379, 0
        %v2407 = vsel %vm1401, %v2380, 0
        %v2410 = vsel %vm1401, %v2381, 0
        %v2413 = vsel %vm1401, %v2382, 0
        %v2416 = vsel %vm1401, %v2383, 0
        %v2419 = vsel %vm1401, %v2384, 0
        %v2422 = vsel %vm1401, %v2385, 0
        %v2424 = vsel %vm1477, %v2387, 0
        %2426 = vmatprep.subr.mxu0 0.0
        %2427 = vmatpush1.msra.mxu0 %v2424
        %2428 = vmatprep.subr.mxu0 0.0
        %2429 = vmatpush1.msra.mxu0 0.0
        %2430 = vmatprep.subr.mxu0 0.0
        %2431 = vmatpush1.msra.mxu0 0.0
        %2432 = vmatprep.subr.mxu0 0.0
        %2433 = vmatpush1.msra.mxu0 0.0
        %2434 = vmatprep.subr.mxu0 0.0
        %2435 = vmatpush1.msra.mxu0 0.0
        %2436 = vmatprep.subr.mxu0 0.0
        %2437 = vmatpush1.msra.mxu0 0.0
        %2438 = vmatprep.subr.mxu0 0.0
        %2439 = vmatpush1.msra.mxu0 0.0
        %2440 = vmatprep.subr.mxu0 0.0
        %2441 = vmatpush1.msra.mxu0 0.0
        %2442 = vmatprep.subr.mxu0 0.0
        %2443 = vmatpush1.msra.mxu0 0.0
        %2444 = vmatprep.subr.mxu0 0.0
        %2445 = vmatpush1.msra.mxu0 0.0
        %2446 = vmatprep.subr.mxu0 0.0
        %2447 = vmatpush1.msra.mxu0 0.0
        %2448 = vmatprep.subr.mxu0 0.0
        %2449 = vmatpush1.msra.mxu0 0.0
        %2450 = vmatprep.subr.mxu0 0.0
        %2451 = vmatpush1.msra.mxu0 0.0
        %2452 = vmatprep.subr.mxu0 0.0
        %2453 = vmatpush1.msra.mxu0 0.0
        %2454 = vmatprep.subr.mxu0 0.0
        %2455 = vmatpush1.msra.mxu0 0.0
        %2456 = vmatprep.subr.mxu0 0.0
        %2457 = vmatpush1.msra.mxu0 0.0
        %2458 = vmatprep.subr.mxu0 0.0
        %2459 = vmatpush1.msra.mxu0 0.0
        %2460 = vmatprep.subr.mxu0 0.0
        %2461 = vmatpush1.msra.mxu0 0.0
        %2462 = vmatprep.subr.mxu0 0.0
        %2463 = vmatpush1.msra.mxu0 0.0
        %2464 = vmatprep.subr.mxu0 0.0
        %2465 = vmatpush1.msra.mxu0 0.0
        %2466 = vmatprep.subr.mxu0 0.0
        %2467 = vmatpush1.msra.mxu0 0.0
        %2468 = vmatprep.subr.mxu0 0.0
        %2469 = vmatpush1.msra.mxu0 0.0
        %2470 = vmatprep.subr.mxu0 0.0
        %2471 = vmatpush1.msra.mxu0 0.0
        %2472 = vmatprep.subr.mxu0 0.0
        %2473 = vmatpush1.msra.mxu0 0.0
        %2474 = vmatprep.subr.mxu0 0.0
        %2475 = vmatpush1.msra.mxu0 0.0
        %2476 = vmatprep.subr.mxu0 0.0
        %2477 = vmatpush1.msra.mxu0 0.0
        %2478 = vmatprep.subr.mxu0 0.0
        %2479 = vmatpush1.msra.mxu0 0.0
        %2480 = vmatprep.subr.mxu0 0.0
        %2481 = vmatpush1.msra.mxu0 0.0
        %2482 = vmatprep.subr.mxu0 0.0
        %2483 = vmatpush1.msra.mxu0 0.0
        %2484 = vmatprep.subr.mxu0 0.0
        %2485 = vmatpush1.msra.mxu0 0.0
        %2486 = vmatprep.subr.mxu0 0.0
        %2487 = vmatpush1.msra.mxu0 0.0
        %2488 = vmatprep.subr.mxu0 0.0
        %2489 = vmatpush1.msra.mxu0 0.0
        %2490 = vmatprep.mubr.f32.mxu0 0.0
        %2491 = vmatmul.mubr.f32.gmra.mrb[0].mxu0 %v2389
        %v2492 = vpop.f32.mrb[0].mxu0
        %v2493 = vadd.f32 0.0, %v2492
        %v2494 = vpop.f32.mrb[0].mxu0
        %2495 = vmatprep.mubr.f32.mxu0 0.0
        %2496 = vmatmul.mubr.f32.gmra.mrb[0].mxu0 %v2392
        %v2497 = vpop.f32.mrb[0].mxu0
        %v2498 = vadd.f32 0.0, %v2497
        %v2499 = vpop.f32.mrb[0].mxu0
        %2500 = vmatprep.mubr.f32.mxu0 0.0
        %2501 = vmatmul.mubr.f32.gmra.mrb[0].mxu0 %v2395
        %v2502 = vpop.f32.mrb[0].mxu0
        %v2503 = vadd.f32 0.0, %v2502
        %v2504 = vpop.f32.mrb[0].mxu0
        %2505 = vmatprep.mubr.f32.mxu0 0.0
        %2506 = vmatmul.mubr.f32.gmra.mrb[0].mxu0 %v2398
        %v2507 = vpop.f32.mrb[0].mxu0
        %v2508 = vadd.f32 0.0, %v2507
        %v2509 = vpop.f32.mrb[0].mxu0
        %2510 = vmatprep.mubr.f32.mxu0 0.0
        %2511 = vmatmul.mubr.f32.gmra.mrb[0].mxu0 %v2401
        %v2512 = vpop.f32.mrb[0].mxu0
        %v2513 = vadd.f32 0.0, %v2512
        %v2514 = vpop.f32.mrb[0].mxu0
        %2515 = vmatprep.mubr.f32.mxu0 0.0
        %2516 = vmatmul.mubr.f32.gmra.mrb[0].mxu0 %v2404
        %v2517 = vpop.f32.mrb[0].mxu0
        %v2518 = vadd.f32 0.0, %v2517
        %v2519 = vpop.f32.mrb[0].mxu0
        %2520 = vmatprep.mubr.f32.mxu0 0.0
        %2521 = vmatmul.mubr.f32.gmra.mrb[0].mxu0 %v2407
        %v2522 = vpop.f32.mrb[0].mxu0
        %v2523 = vadd.f32 0.0, %v2522
        %v2524 = vpop.f32.mrb[0].mxu0
        %2525 = vmatprep.mubr.f32.mxu0 0.0
        %2526 = vmatmul.mubr.f32.gmra.mrb[0].mxu0 %v2410
        %v2527 = vpop.f32.mrb[0].mxu0
        %v2528 = vadd.f32 0.0, %v2527
        %v2529 = vpop.f32.mrb[0].mxu0
        %2530 = vmatprep.mubr.f32.mxu0 0.0
        %2531 = vmatmul.mubr.f32.gmra.mrb[0].mxu0 %v2413
        %v2532 = vpop.f32.mrb[0].mxu0
        %v2533 = vadd.f32 0.0, %v2532
        %v2534 = vpop.f32.mrb[0].mxu0
        %2535 = vmatprep.mubr.f32.mxu0 0.0
        %2536 = vmatmul.mubr.f32.gmra.mrb[0].mxu0 %v2416
        %v2537 = vpop.f32.mrb[0].mxu0
        %v2538 = vadd.f32 0.0, %v2537
        %v2539 = vpop.f32.mrb[0].mxu0
        %2540 = vmatprep.mubr.f32.mxu0 0.0
        %2541 = vmatmul.mubr.f32.gmra.mrb[0].mxu0 %v2419
        %v2542 = vpop.f32.mrb[0].mxu0
        %v2543 = vadd.f32 0.0, %v2542
        %v2544 = vpop.f32.mrb[0].mxu0
        %2545 = vmatprep.mubr.f32.mxu0 0.0
        %2546 = vmatmul.mubr.f32.gmra.mrb[0].mxu0 %v2422
        %v2547 = vpop.f32.mrb[0].mxu0
        %v2548 = vadd.f32 0.0, %v2547
        %v2549 = vpop.f32.mrb[0].mxu0
        %2550 = vdwg.mxu0
        %v2551 = vadd.f32 %v2362, %v2493
        %v2552 = vadd.f32 %v2363, %v2498
        %v2553 = vadd.f32 %v2364, %v2503
        %v2554 = vadd.f32 %v2365, %v2508
        %v2555 = vadd.f32 %v2366, %v2513
        %v2556 = vadd.f32 %v2367, %v2518
        %v2557 = vadd.f32 %v2368, %v2523
        %v2558 = vadd.f32 %v2369, %v2528
        %v2559 = vadd.f32 %v2370, %v2533
        %v2560 = vadd.f32 %v2371, %v2538
        %v2561 = vadd.f32 %v2372, %v2543
        %v2562 = vadd.f32 %v2373, %v2548
        %v2563 = vld [vmem:[#allocation3 + $0xd] sm:$0xff]
        %v2564 = vld [vmem:[#allocation3 + $0x15] sm:$0xff]
        %v2565 = vld [vmem:[#allocation3 + $0x1d] sm:$0xff]
        %v2566 = vld [vmem:[#allocation3 + $0x25] sm:$0xff]
        %v2567 = vld [vmem:[#allocation3 + $0x2d] sm:$0xff]
        %v2568 = vld [vmem:[#allocation3 + $0x35] sm:$0xff]
        %v2569 = vld [vmem:[#allocation3 + $0x3d] sm:$0xff]
        %v2570 = vld [vmem:[#allocation3 + $0x45] sm:$0xff]
        %v2571 = vld [vmem:[#allocation3 + $0x4d] sm:$0xff]
        %v2572 = vld [vmem:[#allocation3 + $0x55] sm:$0xff]
        %v2573 = vld [vmem:[#allocation3 + $0x5d] sm:$0xff]
        %v2574 = vld [vmem:[#allocation3 + $0x65] sm:$0xf]
        %2575 = vrot.lane.b32.xlu0 %v1440, 32
        %v2576 = vpop.permute.xlu0 %2575
        %v2578 = vsel %vm1401, %v2563, 0
        %v2581 = vsel %vm1401, %v2564, 0
        %v2584 = vsel %vm1401, %v2565, 0
        %v2587 = vsel %vm1401, %v2566, 0
        %v2590 = vsel %vm1401, %v2567, 0
        %v2593 = vsel %vm1401, %v2568, 0
        %v2596 = vsel %vm1401, %v2569, 0
        %v2599 = vsel %vm1401, %v2570, 0
        %v2602 = vsel %vm1401, %v2571, 0
        %v2605 = vsel %vm1401, %v2572, 0
        %v2608 = vsel %vm1401, %v2573, 0
        %v2611 = vsel %vm1401, %v2574, 0
        %v2613 = vsel %vm1477, %v2576, 0
        %2615 = vmatprep.subr.mxu0 0.0
        %2616 = vmatpush1.msra.mxu0 %v2613
        %2617 = vmatprep.subr.mxu0 0.0
        %2618 = vmatpush1.msra.mxu0 0.0
        %2619 = vmatprep.subr.mxu0 0.0
        %2620 = vmatpush1.msra.mxu0 0.0
        %2621 = vmatprep.subr.mxu0 0.0
        %2622 = vmatpush1.msra.mxu0 0.0
        %2623 = vmatprep.subr.mxu0 0.0
        %2624 = vmatpush1.msra.mxu0 0.0
        %2625 = vmatprep.subr.mxu0 0.0
        %2626 = vmatpush1.msra.mxu0 0.0
        %2627 = vmatprep.subr.mxu0 0.0
        %2628 = vmatpush1.msra.mxu0 0.0
        %2629 = vmatprep.subr.mxu0 0.0
        %2630 = vmatpush1.msra.mxu0 0.0
        %2631 = vmatprep.subr.mxu0 0.0
        %2632 = vmatpush1.msra.mxu0 0.0
        %2633 = vmatprep.subr.mxu0 0.0
        %2634 = vmatpush1.msra.mxu0 0.0
        %2635 = vmatprep.subr.mxu0 0.0
        %2636 = vmatpush1.msra.mxu0 0.0
        %2637 = vmatprep.subr.mxu0 0.0
        %2638 = vmatpush1.msra.mxu0 0.0
        %2639 = vmatprep.subr.mxu0 0.0
        %2640 = vmatpush1.msra.mxu0 0.0
        %2641 = vmatprep.subr.mxu0 0.0
        %2642 = vmatpush1.msra.mxu0 0.0
        %2643 = vmatprep.subr.mxu0 0.0
        %2644 = vmatpush1.msra.mxu0 0.0
        %2645 = vmatprep.subr.mxu0 0.0
        %2646 = vmatpush1.msra.mxu0 0.0
        %2647 = vmatprep.subr.mxu0 0.0
        %2648 = vmatpush1.msra.mxu0 0.0
        %2649 = vmatprep.subr.mxu0 0.0
        %2650 = vmatpush1.msra.mxu0 0.0
        %2651 = vmatprep.subr.mxu0 0.0
        %2652 = vmatpush1.msra.mxu0 0.0
        %2653 = vmatprep.subr.mxu0 0.0
        %2654 = vmatpush1.msra.mxu0 0.0
        %2655 = vmatprep.subr.mxu0 0.0
        %2656 = vmatpush1.msra.mxu0 0.0
        %2657 = vmatprep.subr.mxu0 0.0
        %2658 = vmatpush1.msra.mxu0 0.0
        %2659 = vmatprep.subr.mxu0 0.0
        %2660 = vmatpush1.msra.mxu0 0.0
        %2661 = vmatprep.subr.mxu0 0.0
        %2662 = vmatpush1.msra.mxu0 0.0
        %2663 = vmatprep.subr.mxu0 0.0
        %2664 = vmatpush1.msra.mxu0 0.0
        %2665 = vmatprep.subr.mxu0 0.0
        %2666 = vmatpush1.msra.mxu0 0.0
        %2667 = vmatprep.subr.mxu0 0.0
        %2668 = vmatpush1.msra.mxu0 0.0
        %2669 = vmatprep.subr.mxu0 0.0
        %2670 = vmatpush1.msra.mxu0 0.0
        %2671 = vmatprep.subr.mxu0 0.0
        %2672 = vmatpush1.msra.mxu0 0.0
        %2673 = vmatprep.subr.mxu0 0.0
        %2674 = vmatpush1.msra.mxu0 0.0
        %2675 = vmatprep.subr.mxu0 0.0
        %2676 = vmatpush1.msra.mxu0 0.0
        %2677 = vmatprep.subr.mxu0 0.0
        %2678 = vmatpush1.msra.mxu0 0.0
        %2679 = vmatprep.mubr.f32.mxu0 0.0
        %2680 = vmatmul.mubr.f32.gmra.mrb[0].mxu0 %v2578
        %v2681 = vpop.f32.mrb[0].mxu0
        %v2682 = vadd.f32 0.0, %v2681
        %v2683 = vpop.f32.mrb[0].mxu0
        %2684 = vmatprep.mubr.f32.mxu0 0.0
        %2685 = vmatmul.mubr.f32.gmra.mrb[0].mxu0 %v2581
        %v2686 = vpop.f32.mrb[0].mxu0
        %v2687 = vadd.f32 0.0, %v2686
        %v2688 = vpop.f32.mrb[0].mxu0
        %2689 = vmatprep.mubr.f32.mxu0 0.0
        %2690 = vmatmul.mubr.f32.gmra.mrb[0].mxu0 %v2584
        %v2691 = vpop.f32.mrb[0].mxu0
        %v2692 = vadd.f32 0.0, %v2691
        %v2693 = vpop.f32.mrb[0].mxu0
        %2694 = vmatprep.mubr.f32.mxu0 0.0
        %2695 = vmatmul.mubr.f32.gmra.mrb[0].mxu0 %v2587
        %v2696 = vpop.f32.mrb[0].mxu0
        %v2697 = vadd.f32 0.0, %v2696
        %v2698 = vpop.f32.mrb[0].mxu0
        %2699 = vmatprep.mubr.f32.mxu0 0.0
        %2700 = vmatmul.mubr.f32.gmra.mrb[0].mxu0 %v2590
        %v2701 = vpop.f32.mrb[0].mxu0
        %v2702 = vadd.f32 0.0, %v2701
        %v2703 = vpop.f32.mrb[0].mxu0
        %2704 = vmatprep.mubr.f32.mxu0 0.0
        %2705 = vmatmul.mubr.f32.gmra.mrb[0].mxu0 %v2593
        %v2706 = vpop.f32.mrb[0].mxu0
        %v2707 = vadd.f32 0.0, %v2706
        %v2708 = vpop.f32.mrb[0].mxu0
        %2709 = vmatprep.mubr.f32.mxu0 0.0
        %2710 = vmatmul.mubr.f32.gmra.mrb[0].mxu0 %v2596
        %v2711 = vpop.f32.mrb[0].mxu0
        %v2712 = vadd.f32 0.0, %v2711
        %v2713 = vpop.f32.mrb[0].mxu0
        %2714 = vmatprep.mubr.f32.mxu0 0.0
        %2715 = vmatmul.mubr.f32.gmra.mrb[0].mxu0 %v2599
        %v2716 = vpop.f32.mrb[0].mxu0
        %v2717 = vadd.f32 0.0, %v2716
        %v2718 = vpop.f32.mrb[0].mxu0
        %2719 = vmatprep.mubr.f32.mxu0 0.0
        %2720 = vmatmul.mubr.f32.gmra.mrb[0].mxu0 %v2602
        %v2721 = vpop.f32.mrb[0].mxu0
        %v2722 = vadd.f32 0.0, %v2721
        %v2723 = vpop.f32.mrb[0].mxu0
        %2724 = vmatprep.mubr.f32.mxu0 0.0
        %2725 = vmatmul.mubr.f32.gmra.mrb[0].mxu0 %v2605
        %v2726 = vpop.f32.mrb[0].mxu0
        %v2727 = vadd.f32 0.0, %v2726
        %v2728 = vpop.f32.mrb[0].mxu0
        %2729 = vmatprep.mubr.f32.mxu0 0.0
        %2730 = vmatmul.mubr.f32.gmra.mrb[0].mxu0 %v2608
        %v2731 = vpop.f32.mrb[0].mxu0
        %v2732 = vadd.f32 0.0, %v2731
        %v2733 = vpop.f32.mrb[0].mxu0
        %2734 = vmatprep.mubr.f32.mxu0 0.0
        %2735 = vmatmul.mubr.f32.gmra.mrb[0].mxu0 %v2611
        %v2736 = vpop.f32.mrb[0].mxu0
        %v2737 = vadd.f32 0.0, %v2736
        %v2738 = vpop.f32.mrb[0].mxu0
        %2739 = vdwg.mxu0
        %v2740 = vadd.f32 %v2551, %v2682
        %v2741 = vadd.f32 %v2552, %v2687
        %v2742 = vadd.f32 %v2553, %v2692
        %v2743 = vadd.f32 %v2554, %v2697
        %v2744 = vadd.f32 %v2555, %v2702
        %v2745 = vadd.f32 %v2556, %v2707
        %v2746 = vadd.f32 %v2557, %v2712
        %v2747 = vadd.f32 %v2558, %v2717
        %v2748 = vadd.f32 %v2559, %v2722
        %v2749 = vadd.f32 %v2560, %v2727
        %v2750 = vadd.f32 %v2561, %v2732
        %v2751 = vadd.f32 %v2562, %v2737
        %v2752 = vld [vmem:[#allocation3 + $0xe] sm:$0xff]
        %v2753 = vld [vmem:[#allocation3 + $0x16] sm:$0xff]
        %v2754 = vld [vmem:[#allocation3 + $0x1e] sm:$0xff]
        %v2755 = vld [vmem:[#allocation3 + $0x26] sm:$0xff]
        %v2756 = vld [vmem:[#allocation3 + $0x2e] sm:$0xff]
        %v2757 = vld [vmem:[#allocation3 + $0x36] sm:$0xff]
        %v2758 = vld [vmem:[#allocation3 + $0x3e] sm:$0xff]
        %v2759 = vld [vmem:[#allocation3 + $0x46] sm:$0xff]
        %v2760 = vld [vmem:[#allocation3 + $0x4e] sm:$0xff]
        %v2761 = vld [vmem:[#allocation3 + $0x56] sm:$0xff]
        %v2762 = vld [vmem:[#allocation3 + $0x5e] sm:$0xff]
        %v2763 = vld [vmem:[#allocation3 + $0x66] sm:$0xf]
        %2764 = vrot.lane.b32.xlu0 %v1440, 16
        %v2765 = vpop.permute.xlu0 %2764
        %v2767 = vsel %vm1401, %v2752, 0
        %v2770 = vsel %vm1401, %v2753, 0
        %v2773 = vsel %vm1401, %v2754, 0
        %v2776 = vsel %vm1401, %v2755, 0
        %v2779 = vsel %vm1401, %v2756, 0
        %v2782 = vsel %vm1401, %v2757, 0
        %v2785 = vsel %vm1401, %v2758, 0
        %v2788 = vsel %vm1401, %v2759, 0
        %v2791 = vsel %vm1401, %v2760, 0
        %v2794 = vsel %vm1401, %v2761, 0
        %v2797 = vsel %vm1401, %v2762, 0
        %v2800 = vsel %vm1401, %v2763, 0
        %v2802 = vsel %vm1477, %v2765, 0
        %2804 = vmatprep.subr.mxu0 0.0
        %2805 = vmatpush1.msra.mxu0 %v2802
        %2806 = vmatprep.subr.mxu0 0.0
        %2807 = vmatpush1.msra.mxu0 0.0
        %2808 = vmatprep.subr.mxu0 0.0
        %2809 = vmatpush1.msra.mxu0 0.0
        %2810 = vmatprep.subr.mxu0 0.0
        %2811 = vmatpush1.msra.mxu0 0.0
        %2812 = vmatprep.subr.mxu0 0.0
        %2813 = vmatpush1.msra.mxu0 0.0
        %2814 = vmatprep.subr.mxu0 0.0
        %2815 = vmatpush1.msra.mxu0 0.0
        %2816 = vmatprep.subr.mxu0 0.0
        %2817 = vmatpush1.msra.mxu0 0.0
        %2818 = vmatprep.subr.mxu0 0.0
        %2819 = vmatpush1.msra.mxu0 0.0
        %2820 = vmatprep.subr.mxu0 0.0
        %2821 = vmatpush1.msra.mxu0 0.0
        %2822 = vmatprep.subr.mxu0 0.0
        %2823 = vmatpush1.msra.mxu0 0.0
        %2824 = vmatprep.subr.mxu0 0.0
        %2825 = vmatpush1.msra.mxu0 0.0
        %2826 = vmatprep.subr.mxu0 0.0
        %2827 = vmatpush1.msra.mxu0 0.0
        %2828 = vmatprep.subr.mxu0 0.0
        %2829 = vmatpush1.msra.mxu0 0.0
        %2830 = vmatprep.subr.mxu0 0.0
        %2831 = vmatpush1.msra.mxu0 0.0
        %2832 = vmatprep.subr.mxu0 0.0
        %2833 = vmatpush1.msra.mxu0 0.0
        %2834 = vmatprep.subr.mxu0 0.0
        %2835 = vmatpush1.msra.mxu0 0.0
        %2836 = vmatprep.subr.mxu0 0.0
        %2837 = vmatpush1.msra.mxu0 0.0
        %2838 = vmatprep.subr.mxu0 0.0
        %2839 = vmatpush1.msra.mxu0 0.0
        %2840 = vmatprep.subr.mxu0 0.0
        %2841 = vmatpush1.msra.mxu0 0.0
        %2842 = vmatprep.subr.mxu0 0.0
        %2843 = vmatpush1.msra.mxu0 0.0
        %2844 = vmatprep.subr.mxu0 0.0
        %2845 = vmatpush1.msra.mxu0 0.0
        %2846 = vmatprep.subr.mxu0 0.0
        %2847 = vmatpush1.msra.mxu0 0.0
        %2848 = vmatprep.subr.mxu0 0.0
        %2849 = vmatpush1.msra.mxu0 0.0
        %2850 = vmatprep.subr.mxu0 0.0
        %2851 = vmatpush1.msra.mxu0 0.0
        %2852 = vmatprep.subr.mxu0 0.0
        %2853 = vmatpush1.msra.mxu0 0.0
        %2854 = vmatprep.subr.mxu0 0.0
        %2855 = vmatpush1.msra.mxu0 0.0
        %2856 = vmatprep.subr.mxu0 0.0
        %2857 = vmatpush1.msra.mxu0 0.0
        %2858 = vmatprep.subr.mxu0 0.0
        %2859 = vmatpush1.msra.mxu0 0.0
        %2860 = vmatprep.subr.mxu0 0.0
        %2861 = vmatpush1.msra.mxu0 0.0
        %2862 = vmatprep.subr.mxu0 0.0
        %2863 = vmatpush1.msra.mxu0 0.0
        %2864 = vmatprep.subr.mxu0 0.0
        %2865 = vmatpush1.msra.mxu0 0.0
        %2866 = vmatprep.subr.mxu0 0.0
        %2867 = vmatpush1.msra.mxu0 0.0
        %2868 = vmatprep.mubr.f32.mxu0 0.0
        %2869 = vmatmul.mubr.f32.gmra.mrb[0].mxu0 %v2767
        %v2870 = vpop.f32.mrb[0].mxu0
        %v2871 = vadd.f32 0.0, %v2870
        %v2872 = vpop.f32.mrb[0].mxu0
        %2873 = vmatprep.mubr.f32.mxu0 0.0
        %2874 = vmatmul.mubr.f32.gmra.mrb[0].mxu0 %v2770
        %v2875 = vpop.f32.mrb[0].mxu0
        %v2876 = vadd.f32 0.0, %v2875
        %v2877 = vpop.f32.mrb[0].mxu0
        %2878 = vmatprep.mubr.f32.mxu0 0.0
        %2879 = vmatmul.mubr.f32.gmra.mrb[0].mxu0 %v2773
        %v2880 = vpop.f32.mrb[0].mxu0
        %v2881 = vadd.f32 0.0, %v2880
        %v2882 = vpop.f32.mrb[0].mxu0
        %2883 = vmatprep.mubr.f32.mxu0 0.0
        %2884 = vmatmul.mubr.f32.gmra.mrb[0].mxu0 %v2776
        %v2885 = vpop.f32.mrb[0].mxu0
        %v2886 = vadd.f32 0.0, %v2885
        %v2887 = vpop.f32.mrb[0].mxu0
        %2888 = vmatprep.mubr.f32.mxu0 0.0
        %2889 = vmatmul.mubr.f32.gmra.mrb[0].mxu0 %v2779
        %v2890 = vpop.f32.mrb[0].mxu0
        %v2891 = vadd.f32 0.0, %v2890
        %v2892 = vpop.f32.mrb[0].mxu0
        %2893 = vmatprep.mubr.f32.mxu0 0.0
        %2894 = vmatmul.mubr.f32.gmra.mrb[0].mxu0 %v2782
        %v2895 = vpop.f32.mrb[0].mxu0
        %v2896 = vadd.f32 0.0, %v2895
        %v2897 = vpop.f32.mrb[0].mxu0
        %2898 = vmatprep.mubr.f32.mxu0 0.0
        %2899 = vmatmul.mubr.f32.gmra.mrb[0].mxu0 %v2785
        %v2900 = vpop.f32.mrb[0].mxu0
        %v2901 = vadd.f32 0.0, %v2900
        %v2902 = vpop.f32.mrb[0].mxu0
        %2903 = vmatprep.mubr.f32.mxu0 0.0
        %2904 = vmatmul.mubr.f32.gmra.mrb[0].mxu0 %v2788
        %v2905 = vpop.f32.mrb[0].mxu0
        %v2906 = vadd.f32 0.0, %v2905
        %v2907 = vpop.f32.mrb[0].mxu0
        %2908 = vmatprep.mubr.f32.mxu0 0.0
        %2909 = vmatmul.mubr.f32.gmra.mrb[0].mxu0 %v2791
        %v2910 = vpop.f32.mrb[0].mxu0
        %v2911 = vadd.f32 0.0, %v2910
        %v2912 = vpop.f32.mrb[0].mxu0
        %2913 = vmatprep.mubr.f32.mxu0 0.0
        %2914 = vmatmul.mubr.f32.gmra.mrb[0].mxu0 %v2794
        %v2915 = vpop.f32.mrb[0].mxu0
        %v2916 = vadd.f32 0.0, %v2915
        %v2917 = vpop.f32.mrb[0].mxu0
        %2918 = vmatprep.mubr.f32.mxu0 0.0
        %2919 = vmatmul.mubr.f32.gmra.mrb[0].mxu0 %v2797
        %v2920 = vpop.f32.mrb[0].mxu0
        %v2921 = vadd.f32 0.0, %v2920
        %v2922 = vpop.f32.mrb[0].mxu0
        %2923 = vmatprep.mubr.f32.mxu0 0.0
        %2924 = vmatmul.mubr.f32.gmra.mrb[0].mxu0 %v2800
        %v2925 = vpop.f32.mrb[0].mxu0
        %v2926 = vadd.f32 0.0, %v2925
        %v2927 = vpop.f32.mrb[0].mxu0
        %2928 = vdwg.mxu0
        %v2929 = vadd.f32 %v2740, %v2871
        %v2930 = vadd.f32 %v2741, %v2876
        %v2931 = vadd.f32 %v2742, %v2881
        %v2932 = vadd.f32 %v2743, %v2886
        %v2933 = vadd.f32 %v2744, %v2891
        %v2934 = vadd.f32 %v2745, %v2896
        %v2935 = vadd.f32 %v2746, %v2901
        %v2936 = vadd.f32 %v2747, %v2906
        %v2937 = vadd.f32 %v2748, %v2911
        %v2938 = vadd.f32 %v2749, %v2916
        %v2939 = vadd.f32 %v2750, %v2921
        %v2940 = vadd.f32 %v2751, %v2926
        %v2941 = vld [vmem:[#allocation3 + $0xf] sm:$0xff]
        %v2942 = vld [vmem:[#allocation3 + $0x17] sm:$0xff]
        %v2943 = vld [vmem:[#allocation3 + $0x1f] sm:$0xff]
        %v2944 = vld [vmem:[#allocation3 + $0x27] sm:$0xff]
        %v2945 = vld [vmem:[#allocation3 + $0x2f] sm:$0xff]
        %v2946 = vld [vmem:[#allocation3 + $0x37] sm:$0xff]
        %v2947 = vld [vmem:[#allocation3 + $0x3f] sm:$0xff]
        %v2948 = vld [vmem:[#allocation3 + $0x47] sm:$0xff]
        %v2949 = vld [vmem:[#allocation3 + $0x4f] sm:$0xff]
        %v2950 = vld [vmem:[#allocation3 + $0x57] sm:$0xff]
        %v2951 = vld [vmem:[#allocation3 + $0x5f] sm:$0xff]
        %v2952 = vld [vmem:[#allocation3 + $0x67] sm:$0xf]
        %v2953 = vld [vmem:[%s3 + $0x8] sm:$0x3f]
        %v2955 = vsel %vm1401, %v2941, 0
        %v2958 = vsel %vm1401, %v2942, 0
        %v2961 = vsel %vm1401, %v2943, 0
        %v2964 = vsel %vm1401, %v2944, 0
        %v2967 = vsel %vm1401, %v2945, 0
        %v2970 = vsel %vm1401, %v2946, 0
        %v2973 = vsel %vm1401, %v2947, 0
        %v2976 = vsel %vm1401, %v2948, 0
        %v2979 = vsel %vm1401, %v2949, 0
        %v2982 = vsel %vm1401, %v2950, 0
        %v2985 = vsel %vm1401, %v2951, 0
        %v2988 = vsel %vm1401, %v2952, 0
        %v2991 = vsel %vm1477, %v2953, 0
        %2993 = vmatprep.subr.mxu0 0.0
        %2994 = vmatpush1.msra.mxu0 %v2991
        %2995 = vmatprep.subr.mxu0 0.0
        %2996 = vmatpush1.msra.mxu0 0.0
        %2997 = vmatprep.subr.mxu0 0.0
        %2998 = vmatpush1.msra.mxu0 0.0
        %2999 = vmatprep.subr.mxu0 0.0
        %3000 = vmatpush1.msra.mxu0 0.0
        %3001 = vmatprep.subr.mxu0 0.0
        %3002 = vmatpush1.msra.mxu0 0.0
        %3003 = vmatprep.subr.mxu0 0.0
        %3004 = vmatpush1.msra.mxu0 0.0
        %3005 = vmatprep.subr.mxu0 0.0
        %3006 = vmatpush1.msra.mxu0 0.0
        %3007 = vmatprep.subr.mxu0 0.0
        %3008 = vmatpush1.msra.mxu0 0.0
        %3009 = vmatprep.subr.mxu0 0.0
        %3010 = vmatpush1.msra.mxu0 0.0
        %3011 = vmatprep.subr.mxu0 0.0
        %3012 = vmatpush1.msra.mxu0 0.0
        %3013 = vmatprep.subr.mxu0 0.0
        %3014 = vmatpush1.msra.mxu0 0.0
        %3015 = vmatprep.subr.mxu0 0.0
        %3016 = vmatpush1.msra.mxu0 0.0
        %3017 = vmatprep.subr.mxu0 0.0
        %3018 = vmatpush1.msra.mxu0 0.0
        %3019 = vmatprep.subr.mxu0 0.0
        %3020 = vmatpush1.msra.mxu0 0.0
        %3021 = vmatprep.subr.mxu0 0.0
        %3022 = vmatpush1.msra.mxu0 0.0
        %3023 = vmatprep.subr.mxu0 0.0
        %3024 = vmatpush1.msra.mxu0 0.0
        %3025 = vmatprep.subr.mxu0 0.0
        %3026 = vmatpush1.msra.mxu0 0.0
        %3027 = vmatprep.subr.mxu0 0.0
        %3028 = vmatpush1.msra.mxu0 0.0
        %3029 = vmatprep.subr.mxu0 0.0
        %3030 = vmatpush1.msra.mxu0 0.0
        %3031 = vmatprep.subr.mxu0 0.0
        %3032 = vmatpush1.msra.mxu0 0.0
        %3033 = vmatprep.subr.mxu0 0.0
        %3034 = vmatpush1.msra.mxu0 0.0
        %3035 = vmatprep.subr.mxu0 0.0
        %3036 = vmatpush1.msra.mxu0 0.0
        %3037 = vmatprep.subr.mxu0 0.0
        %3038 = vmatpush1.msra.mxu0 0.0
        %3039 = vmatprep.subr.mxu0 0.0
        %3040 = vmatpush1.msra.mxu0 0.0
        %3041 = vmatprep.subr.mxu0 0.0
        %3042 = vmatpush1.msra.mxu0 0.0
        %3043 = vmatprep.subr.mxu0 0.0
        %3044 = vmatpush1.msra.mxu0 0.0
        %3045 = vmatprep.subr.mxu0 0.0
        %3046 = vmatpush1.msra.mxu0 0.0
        %3047 = vmatprep.subr.mxu0 0.0
        %3048 = vmatpush1.msra.mxu0 0.0
        %3049 = vmatprep.subr.mxu0 0.0
        %3050 = vmatpush1.msra.mxu0 0.0
        %3051 = vmatprep.subr.mxu0 0.0
        %3052 = vmatpush1.msra.mxu0 0.0
        %3053 = vmatprep.subr.mxu0 0.0
        %3054 = vmatpush1.msra.mxu0 0.0
        %3055 = vmatprep.subr.mxu0 0.0
        %3056 = vmatpush1.msra.mxu0 0.0
        %3057 = vmatprep.mubr.f32.mxu0 0.0
        %3058 = vmatmul.mubr.f32.gmra.mrb[0].mxu0 %v2955
        %v3059 = vpop.f32.mrb[0].mxu0
        %v3060 = vadd.f32 0.0, %v3059
        %v3061 = vpop.f32.mrb[0].mxu0
        %3062 = vmatprep.mubr.f32.mxu0 0.0
        %3063 = vmatmul.mubr.f32.gmra.mrb[0].mxu0 %v2958
        %v3064 = vpop.f32.mrb[0].mxu0
        %v3065 = vadd.f32 0.0, %v3064
        %v3066 = vpop.f32.mrb[0].mxu0
        %3067 = vmatprep.mubr.f32.mxu0 0.0
        %3068 = vmatmul.mubr.f32.gmra.mrb[0].mxu0 %v2961
        %v3069 = vpop.f32.mrb[0].mxu0
        %v3070 = vadd.f32 0.0, %v3069
        %v3071 = vpop.f32.mrb[0].mxu0
        %3072 = vmatprep.mubr.f32.mxu0 0.0
        %3073 = vmatmul.mubr.f32.gmra.mrb[0].mxu0 %v2964
        %v3074 = vpop.f32.mrb[0].mxu0
        %v3075 = vadd.f32 0.0, %v3074
        %v3076 = vpop.f32.mrb[0].mxu0
        %3077 = vmatprep.mubr.f32.mxu0 0.0
        %3078 = vmatmul.mubr.f32.gmra.mrb[0].mxu0 %v2967
        %v3079 = vpop.f32.mrb[0].mxu0
        %v3080 = vadd.f32 0.0, %v3079
        %v3081 = vpop.f32.mrb[0].mxu0
        %3082 = vmatprep.mubr.f32.mxu0 0.0
        %3083 = vmatmul.mubr.f32.gmra.mrb[0].mxu0 %v2970
        %v3084 = vpop.f32.mrb[0].mxu0
        %v3085 = vadd.f32 0.0, %v3084
        %v3086 = vpop.f32.mrb[0].mxu0
        %3087 = vmatprep.mubr.f32.mxu0 0.0
        %3088 = vmatmul.mubr.f32.gmra.mrb[0].mxu0 %v2973
        %v3089 = vpop.f32.mrb[0].mxu0
        %v3090 = vadd.f32 0.0, %v3089
        %v3091 = vpop.f32.mrb[0].mxu0
        %3092 = vmatprep.mubr.f32.mxu0 0.0
        %3093 = vmatmul.mubr.f32.gmra.mrb[0].mxu0 %v2976
        %v3094 = vpop.f32.mrb[0].mxu0
        %v3095 = vadd.f32 0.0, %v3094
        %v3096 = vpop.f32.mrb[0].mxu0
        %3097 = vmatprep.mubr.f32.mxu0 0.0
        %3098 = vmatmul.mubr.f32.gmra.mrb[0].mxu0 %v2979
        %v3099 = vpop.f32.mrb[0].mxu0
        %v3100 = vadd.f32 0.0, %v3099
        %v3101 = vpop.f32.mrb[0].mxu0
        %3102 = vmatprep.mubr.f32.mxu0 0.0
        %3103 = vmatmul.mubr.f32.gmra.mrb[0].mxu0 %v2982
        %v3104 = vpop.f32.mrb[0].mxu0
        %v3105 = vadd.f32 0.0, %v3104
        %v3106 = vpop.f32.mrb[0].mxu0
        %3107 = vmatprep.mubr.f32.mxu0 0.0
        %3108 = vmatmul.mubr.f32.gmra.mrb[0].mxu0 %v2985
        %v3109 = vpop.f32.mrb[0].mxu0
        %v3110 = vadd.f32 0.0, %v3109
        %v3111 = vpop.f32.mrb[0].mxu0
        %3112 = vmatprep.mubr.f32.mxu0 0.0
        %3113 = vmatmul.mubr.f32.gmra.mrb[0].mxu0 %v2988
        %v3114 = vpop.f32.mrb[0].mxu0
        %v3115 = vadd.f32 0.0, %v3114
        %v3116 = vpop.f32.mrb[0].mxu0
        %3117 = vdwg.mxu0
        %v3118 = vadd.f32 %v2929, %v3060
        %v3119 = vadd.f32 %v2930, %v3065
        %v3120 = vadd.f32 %v2931, %v3070
        %v3121 = vadd.f32 %v2932, %v3075
        %v3122 = vadd.f32 %v2933, %v3080
        %v3123 = vadd.f32 %v2934, %v3085
        %v3124 = vadd.f32 %v2935, %v3090
        %v3125 = vadd.f32 %v2936, %v3095
        %v3126 = vadd.f32 %v2937, %v3100
        %v3127 = vadd.f32 %v2938, %v3105
        %v3128 = vadd.f32 %v2939, %v3110
        %v3129 = vadd.f32 %v2940, %v3115
        %v3130 = vld [vmem:[#allocation3 + $0x10] sm:$0xff]
        %v3131 = vld [vmem:[#allocation3 + $0x18] sm:$0xff]
        %v3132 = vld [vmem:[#allocation3 + $0x20] sm:$0xff]
        %v3133 = vld [vmem:[#allocation3 + $0x28] sm:$0xff]
        %v3134 = vld [vmem:[#allocation3 + $0x30] sm:$0xff]
        %v3135 = vld [vmem:[#allocation3 + $0x38] sm:$0xff]
        %v3136 = vld [vmem:[#allocation3 + $0x40] sm:$0xff]
        %v3137 = vld [vmem:[#allocation3 + $0x48] sm:$0xff]
        %v3138 = vld [vmem:[#allocation3 + $0x50] sm:$0xff]
        %v3139 = vld [vmem:[#allocation3 + $0x58] sm:$0xff]
        %v3140 = vld [vmem:[#allocation3 + $0x60] sm:$0xff]
        %v3141 = vld [vmem:[#allocation3 + $0x68] sm:$0xf]
        %3142 = vrot.lane.b32.xlu0 %v2953, 112
        %v3143 = vpop.permute.xlu0 %3142
        %v3145 = vsel %vm1401, %v3130, 0
        %v3148 = vsel %vm1401, %v3131, 0
        %v3151 = vsel %vm1401, %v3132, 0
        %v3154 = vsel %vm1401, %v3133, 0
        %v3157 = vsel %vm1401, %v3134, 0
        %v3160 = vsel %vm1401, %v3135, 0
        %v3163 = vsel %vm1401, %v3136, 0
        %v3166 = vsel %vm1401, %v3137, 0
        %v3169 = vsel %vm1401, %v3138, 0
        %v3172 = vsel %vm1401, %v3139, 0
        %v3175 = vsel %vm1401, %v3140, 0
        %v3178 = vsel %vm1401, %v3141, 0
        %v3180 = vsel %vm1477, %v3143, 0
        %3182 = vmatprep.subr.mxu0 0.0
        %3183 = vmatpush1.msra.mxu0 %v3180
        %3184 = vmatprep.subr.mxu0 0.0
        %3185 = vmatpush1.msra.mxu0 0.0
        %3186 = vmatprep.subr.mxu0 0.0
        %3187 = vmatpush1.msra.mxu0 0.0
        %3188 = vmatprep.subr.mxu0 0.0
        %3189 = vmatpush1.msra.mxu0 0.0
        %3190 = vmatprep.subr.mxu0 0.0
        %3191 = vmatpush1.msra.mxu0 0.0
        %3192 = vmatprep.subr.mxu0 0.0
        %3193 = vmatpush1.msra.mxu0 0.0
        %3194 = vmatprep.subr.mxu0 0.0
        %3195 = vmatpush1.msra.mxu0 0.0
        %3196 = vmatprep.subr.mxu0 0.0
        %3197 = vmatpush1.msra.mxu0 0.0
        %3198 = vmatprep.subr.mxu0 0.0
        %3199 = vmatpush1.msra.mxu0 0.0
        %3200 = vmatprep.subr.mxu0 0.0
        %3201 = vmatpush1.msra.mxu0 0.0
        %3202 = vmatprep.subr.mxu0 0.0
        %3203 = vmatpush1.msra.mxu0 0.0
        %3204 = vmatprep.subr.mxu0 0.0
        %3205 = vmatpush1.msra.mxu0 0.0
        %3206 = vmatprep.subr.mxu0 0.0
        %3207 = vmatpush1.msra.mxu0 0.0
        %3208 = vmatprep.subr.mxu0 0.0
        %3209 = vmatpush1.msra.mxu0 0.0
        %3210 = vmatprep.subr.mxu0 0.0
        %3211 = vmatpush1.msra.mxu0 0.0
        %3212 = vmatprep.subr.mxu0 0.0
        %3213 = vmatpush1.msra.mxu0 0.0
        %3214 = vmatprep.subr.mxu0 0.0
        %3215 = vmatpush1.msra.mxu0 0.0
        %3216 = vmatprep.subr.mxu0 0.0
        %3217 = vmatpush1.msra.mxu0 0.0
        %3218 = vmatprep.subr.mxu0 0.0
        %3219 = vmatpush1.msra.mxu0 0.0
        %3220 = vmatprep.subr.mxu0 0.0
        %3221 = vmatpush1.msra.mxu0 0.0
        %3222 = vmatprep.subr.mxu0 0.0
        %3223 = vmatpush1.msra.mxu0 0.0
        %3224 = vmatprep.subr.mxu0 0.0
        %3225 = vmatpush1.msra.mxu0 0.0
        %3226 = vmatprep.subr.mxu0 0.0
        %3227 = vmatpush1.msra.mxu0 0.0
        %3228 = vmatprep.subr.mxu0 0.0
        %3229 = vmatpush1.msra.mxu0 0.0
        %3230 = vmatprep.subr.mxu0 0.0
        %3231 = vmatpush1.msra.mxu0 0.0
        %3232 = vmatprep.subr.mxu0 0.0
        %3233 = vmatpush1.msra.mxu0 0.0
        %3234 = vmatprep.subr.mxu0 0.0
        %3235 = vmatpush1.msra.mxu0 0.0
        %3236 = vmatprep.subr.mxu0 0.0
        %3237 = vmatpush1.msra.mxu0 0.0
        %3238 = vmatprep.subr.mxu0 0.0
        %3239 = vmatpush1.msra.mxu0 0.0
        %3240 = vmatprep.subr.mxu0 0.0
        %3241 = vmatpush1.msra.mxu0 0.0
        %3242 = vmatprep.subr.mxu0 0.0
        %3243 = vmatpush1.msra.mxu0 0.0
        %3244 = vmatprep.subr.mxu0 0.0
        %3245 = vmatpush1.msra.mxu0 0.0
        %3246 = vmatprep.mubr.f32.mxu0 0.0
        %3247 = vmatmul.mubr.f32.gmra.mrb[0].mxu0 %v3145
        %v3248 = vpop.f32.mrb[0].mxu0
        %v3249 = vadd.f32 0.0, %v3248
        %v3250 = vpop.f32.mrb[0].mxu0
        %3251 = vmatprep.mubr.f32.mxu0 0.0
        %3252 = vmatmul.mubr.f32.gmra.mrb[0].mxu0 %v3148
        %v3253 = vpop.f32.mrb[0].mxu0
        %v3254 = vadd.f32 0.0, %v3253
        %v3255 = vpop.f32.mrb[0].mxu0
        %3256 = vmatprep.mubr.f32.mxu0 0.0
        %3257 = vmatmul.mubr.f32.gmra.mrb[0].mxu0 %v3151
        %v3258 = vpop.f32.mrb[0].mxu0
        %v3259 = vadd.f32 0.0, %v3258
        %v3260 = vpop.f32.mrb[0].mxu0
        %3261 = vmatprep.mubr.f32.mxu0 0.0
        %3262 = vmatmul.mubr.f32.gmra.mrb[0].mxu0 %v3154
        %v3263 = vpop.f32.mrb[0].mxu0
        %v3264 = vadd.f32 0.0, %v3263
        %v3265 = vpop.f32.mrb[0].mxu0
        %3266 = vmatprep.mubr.f32.mxu0 0.0
        %3267 = vmatmul.mubr.f32.gmra.mrb[0].mxu0 %v3157
        %v3268 = vpop.f32.mrb[0].mxu0
        %v3269 = vadd.f32 0.0, %v3268
        %v3270 = vpop.f32.mrb[0].mxu0
        %3271 = vmatprep.mubr.f32.mxu0 0.0
        %3272 = vmatmul.mubr.f32.gmra.mrb[0].mxu0 %v3160
        %v3273 = vpop.f32.mrb[0].mxu0
        %v3274 = vadd.f32 0.0, %v3273
        %v3275 = vpop.f32.mrb[0].mxu0
        %3276 = vmatprep.mubr.f32.mxu0 0.0
        %3277 = vmatmul.mubr.f32.gmra.mrb[0].mxu0 %v3163
        %v3278 = vpop.f32.mrb[0].mxu0
        %v3279 = vadd.f32 0.0, %v3278
        %v3280 = vpop.f32.mrb[0].mxu0
        %3281 = vmatprep.mubr.f32.mxu0 0.0
        %3282 = vmatmul.mubr.f32.gmra.mrb[0].mxu0 %v3166
        %v3283 = vpop.f32.mrb[0].mxu0
        %v3284 = vadd.f32 0.0, %v3283
        %v3285 = vpop.f32.mrb[0].mxu0
        %3286 = vmatprep.mubr.f32.mxu0 0.0
        %3287 = vmatmul.mubr.f32.gmra.mrb[0].mxu0 %v3169
        %v3288 = vpop.f32.mrb[0].mxu0
        %v3289 = vadd.f32 0.0, %v3288
        %v3290 = vpop.f32.mrb[0].mxu0
        %3291 = vmatprep.mubr.f32.mxu0 0.0
        %3292 = vmatmul.mubr.f32.gmra.mrb[0].mxu0 %v3172
        %v3293 = vpop.f32.mrb[0].mxu0
        %v3294 = vadd.f32 0.0, %v3293
        %v3295 = vpop.f32.mrb[0].mxu0
        %3296 = vmatprep.mubr.f32.mxu0 0.0
        %3297 = vmatmul.mubr.f32.gmra.mrb[0].mxu0 %v3175
        %v3298 = vpop.f32.mrb[0].mxu0
        %v3299 = vadd.f32 0.0, %v3298
        %v3300 = vpop.f32.mrb[0].mxu0
        %3301 = vmatprep.mubr.f32.mxu0 0.0
        %3302 = vmatmul.mubr.f32.gmra.mrb[0].mxu0 %v3178
        %v3303 = vpop.f32.mrb[0].mxu0
        %v3304 = vadd.f32 0.0, %v3303
        %v3305 = vpop.f32.mrb[0].mxu0
        %3306 = vdwg.mxu0
        %v3307 = vadd.f32 %v3118, %v3249
        %v3308 = vadd.f32 %v3119, %v3254
        %v3309 = vadd.f32 %v3120, %v3259
        %v3310 = vadd.f32 %v3121, %v3264
        %v3311 = vadd.f32 %v3122, %v3269
        %v3312 = vadd.f32 %v3123, %v3274
        %v3313 = vadd.f32 %v3124, %v3279
        %v3314 = vadd.f32 %v3125, %v3284
        %v3315 = vadd.f32 %v3126, %v3289
        %v3316 = vadd.f32 %v3127, %v3294
        %v3317 = vadd.f32 %v3128, %v3299
        %v3318 = vadd.f32 %v3129, %v3304
        %v3319 = vld [vmem:[#allocation3 + $0x18] sm:$0xff]
        %v3320 = vld [vmem:[#allocation3 + $0x20] sm:$0xff]
        %v3321 = vld [vmem:[#allocation3 + $0x28] sm:$0xff]
        %v3322 = vld [vmem:[#allocation3 + $0x30] sm:$0xff]
        %v3323 = vld [vmem:[#allocation3 + $0x38] sm:$0xff]
        %v3324 = vld [vmem:[#allocation3 + $0x40] sm:$0xff]
        %v3325 = vld [vmem:[#allocation3 + $0x48] sm:$0xff]
        %v3326 = vld [vmem:[#allocation3 + $0x50] sm:$0xff]
        %v3327 = vld [vmem:[#allocation3 + $0x58] sm:$0xff]
        %v3328 = vld [vmem:[#allocation3 + $0x60] sm:$0xff]
        %v3329 = vld [vmem:[#allocation3 + $0x68] sm:$0xff]
        %v3330 = vld [vmem:[#allocation3 + $0x70] sm:$0xf]
        %3331 = vrot.lane.b32.xlu0 %v2953, 96
        %v3332 = vpop.permute.xlu0 %3331
        %v3334 = vsel %vm1401, %v3319, 0
        %v3337 = vsel %vm1401, %v3320, 0
        %v3340 = vsel %vm1401, %v3321, 0
        %v3343 = vsel %vm1401, %v3322, 0
        %v3346 = vsel %vm1401, %v3323, 0
        %v3349 = vsel %vm1401, %v3324, 0
        %v3352 = vsel %vm1401, %v3325, 0
        %v3355 = vsel %vm1401, %v3326, 0
        %v3358 = vsel %vm1401, %v3327, 0
        %v3361 = vsel %vm1401, %v3328, 0
        %v3364 = vsel %vm1401, %v3329, 0
        %v3367 = vsel %vm1401, %v3330, 0
        %v3369 = vsel %vm1477, %v3332, 0
        %3371 = vmatprep.subr.mxu0 0.0
        %3372 = vmatpush1.msra.mxu0 %v3369
        %3373 = vmatprep.subr.mxu0 0.0
        %3374 = vmatpush1.msra.mxu0 0.0
        %3375 = vmatprep.subr.mxu0 0.0
        %3376 = vmatpush1.msra.mxu0 0.0
        %3377 = vmatprep.subr.mxu0 0.0
        %3378 = vmatpush1.msra.mxu0 0.0
        %3379 = vmatprep.subr.mxu0 0.0
        %3380 = vmatpush1.msra.mxu0 0.0
        %3381 = vmatprep.subr.mxu0 0.0
        %3382 = vmatpush1.msra.mxu0 0.0
        %3383 = vmatprep.subr.mxu0 0.0
        %3384 = vmatpush1.msra.mxu0 0.0
        %3385 = vmatprep.subr.mxu0 0.0
        %3386 = vmatpush1.msra.mxu0 0.0
        %3387 = vmatprep.subr.mxu0 0.0
        %3388 = vmatpush1.msra.mxu0 0.0
        %3389 = vmatprep.subr.mxu0 0.0
        %3390 = vmatpush1.msra.mxu0 0.0
        %3391 = vmatprep.subr.mxu0 0.0
        %3392 = vmatpush1.msra.mxu0 0.0
        %3393 = vmatprep.subr.mxu0 0.0
        %3394 = vmatpush1.msra.mxu0 0.0
        %3395 = vmatprep.subr.mxu0 0.0
        %3396 = vmatpush1.msra.mxu0 0.0
        %3397 = vmatprep.subr.mxu0 0.0
        %3398 = vmatpush1.msra.mxu0 0.0
        %3399 = vmatprep.subr.mxu0 0.0
        %3400 = vmatpush1.msra.mxu0 0.0
        %3401 = vmatprep.subr.mxu0 0.0
        %3402 = vmatpush1.msra.mxu0 0.0
        %3403 = vmatprep.subr.mxu0 0.0
        %3404 = vmatpush1.msra.mxu0 0.0
        %3405 = vmatprep.subr.mxu0 0.0
        %3406 = vmatpush1.msra.mxu0 0.0
        %3407 = vmatprep.subr.mxu0 0.0
        %3408 = vmatpush1.msra.mxu0 0.0
        %3409 = vmatprep.subr.mxu0 0.0
        %3410 = vmatpush1.msra.mxu0 0.0
        %3411 = vmatprep.subr.mxu0 0.0
        %3412 = vmatpush1.msra.mxu0 0.0
        %3413 = vmatprep.subr.mxu0 0.0
        %3414 = vmatpush1.msra.mxu0 0.0
        %3415 = vmatprep.subr.mxu0 0.0
        %3416 = vmatpush1.msra.mxu0 0.0
        %3417 = vmatprep.subr.mxu0 0.0
        %3418 = vmatpush1.msra.mxu0 0.0
        %3419 = vmatprep.subr.mxu0 0.0
        %3420 = vmatpush1.msra.mxu0 0.0
        %3421 = vmatprep.subr.mxu0 0.0
        %3422 = vmatpush1.msra.mxu0 0.0
        %3423 = vmatprep.subr.mxu0 0.0
        %3424 = vmatpush1.msra.mxu0 0.0
        %3425 = vmatprep.subr.mxu0 0.0
        %3426 = vmatpush1.msra.mxu0 0.0
        %3427 = vmatprep.subr.mxu0 0.0
        %3428 = vmatpush1.msra.mxu0 0.0
        %3429 = vmatprep.subr.mxu0 0.0
        %3430 = vmatpush1.msra.mxu0 0.0
        %3431 = vmatprep.subr.mxu0 0.0
        %3432 = vmatpush1.msra.mxu0 0.0
        %3433 = vmatprep.subr.mxu0 0.0
        %3434 = vmatpush1.msra.mxu0 0.0
        %3435 = vmatprep.mubr.f32.mxu0 0.0
        %3436 = vmatmul.mubr.f32.gmra.mrb[0].mxu0 %v3334
        %v3437 = vpop.f32.mrb[0].mxu0
        %v3438 = vadd.f32 0.0, %v3437
        %v3439 = vpop.f32.mrb[0].mxu0
        %3440 = vmatprep.mubr.f32.mxu0 0.0
        %3441 = vmatmul.mubr.f32.gmra.mrb[0].mxu0 %v3337
        %v3442 = vpop.f32.mrb[0].mxu0
        %v3443 = vadd.f32 0.0, %v3442
        %v3444 = vpop.f32.mrb[0].mxu0
        %3445 = vmatprep.mubr.f32.mxu0 0.0
        %3446 = vmatmul.mubr.f32.gmra.mrb[0].mxu0 %v3340
        %v3447 = vpop.f32.mrb[0].mxu0
        %v3448 = vadd.f32 0.0, %v3447
        %v3449 = vpop.f32.mrb[0].mxu0
        %3450 = vmatprep.mubr.f32.mxu0 0.0
        %3451 = vmatmul.mubr.f32.gmra.mrb[0].mxu0 %v3343
        %v3452 = vpop.f32.mrb[0].mxu0
        %v3453 = vadd.f32 0.0, %v3452
        %v3454 = vpop.f32.mrb[0].mxu0
        %3455 = vmatprep.mubr.f32.mxu0 0.0
        %3456 = vmatmul.mubr.f32.gmra.mrb[0].mxu0 %v3346
        %v3457 = vpop.f32.mrb[0].mxu0
        %v3458 = vadd.f32 0.0, %v3457
        %v3459 = vpop.f32.mrb[0].mxu0
        %3460 = vmatprep.mubr.f32.mxu0 0.0
        %3461 = vmatmul.mubr.f32.gmra.mrb[0].mxu0 %v3349
        %v3462 = vpop.f32.mrb[0].mxu0
        %v3463 = vadd.f32 0.0, %v3462
        %v3464 = vpop.f32.mrb[0].mxu0
        %3465 = vmatprep.mubr.f32.mxu0 0.0
        %3466 = vmatmul.mubr.f32.gmra.mrb[0].mxu0 %v3352
        %v3467 = vpop.f32.mrb[0].mxu0
        %v3468 = vadd.f32 0.0, %v3467
        %v3469 = vpop.f32.mrb[0].mxu0
        %3470 = vmatprep.mubr.f32.mxu0 0.0
        %3471 = vmatmul.mubr.f32.gmra.mrb[0].mxu0 %v3355
        %v3472 = vpop.f32.mrb[0].mxu0
        %v3473 = vadd.f32 0.0, %v3472
        %v3474 = vpop.f32.mrb[0].mxu0
        %3475 = vmatprep.mubr.f32.mxu0 0.0
        %3476 = vmatmul.mubr.f32.gmra.mrb[0].mxu0 %v3358
        %v3477 = vpop.f32.mrb[0].mxu0
        %v3478 = vadd.f32 0.0, %v3477
        %v3479 = vpop.f32.mrb[0].mxu0
        %3480 = vmatprep.mubr.f32.mxu0 0.0
        %3481 = vmatmul.mubr.f32.gmra.mrb[0].mxu0 %v3361
        %v3482 = vpop.f32.mrb[0].mxu0
        %v3483 = vadd.f32 0.0, %v3482
        %v3484 = vpop.f32.mrb[0].mxu0
        %3485 = vmatprep.mubr.f32.mxu0 0.0
        %3486 = vmatmul.mubr.f32.gmra.mrb[0].mxu0 %v3364
        %v3487 = vpop.f32.mrb[0].mxu0
        %v3488 = vadd.f32 0.0, %v3487
        %v3489 = vpop.f32.mrb[0].mxu0
        %3490 = vmatprep.mubr.f32.mxu0 0.0
        %3491 = vmatmul.mubr.f32.gmra.mrb[0].mxu0 %v3367
        %v3492 = vpop.f32.mrb[0].mxu0
        %v3493 = vadd.f32 0.0, %v3492
        %v3494 = vpop.f32.mrb[0].mxu0
        %3495 = vdwg.mxu0
        %v3496 = vadd.f32 %v3307, %v3438
        %v3497 = vadd.f32 %v3308, %v3443
        %v3498 = vadd.f32 %v3309, %v3448
        %v3499 = vadd.f32 %v3310, %v3453
        %v3500 = vadd.f32 %v3311, %v3458
        %v3501 = vadd.f32 %v3312, %v3463
        %v3502 = vadd.f32 %v3313, %v3468
        %v3503 = vadd.f32 %v3314, %v3473
        %v3504 = vadd.f32 %v3315, %v3478
        %v3505 = vadd.f32 %v3316, %v3483
        %v3506 = vadd.f32 %v3317, %v3488
        %v3507 = vadd.f32 %v3318, %v3493
        %v3508 = vld [vmem:[#allocation3 + $0x19] sm:$0xff]
        %v3509 = vld [vmem:[#allocation3 + $0x21] sm:$0xff]
        %v3510 = vld [vmem:[#allocation3 + $0x29] sm:$0xff]
        %v3511 = vld [vmem:[#allocation3 + $0x31] sm:$0xff]
        %v3512 = vld [vmem:[#allocation3 + $0x39] sm:$0xff]
        %v3513 = vld [vmem:[#allocation3 + $0x41] sm:$0xff]
        %v3514 = vld [vmem:[#allocation3 + $0x49] sm:$0xff]
        %v3515 = vld [vmem:[#allocation3 + $0x51] sm:$0xff]
        %v3516 = vld [vmem:[#allocation3 + $0x59] sm:$0xff]
        %v3517 = vld [vmem:[#allocation3 + $0x61] sm:$0xff]
        %v3518 = vld [vmem:[#allocation3 + $0x69] sm:$0xff]
        %v3519 = vld [vmem:[#allocation3 + $0x71] sm:$0xf]
        %3520 = vrot.lane.b32.xlu0 %v2953, 80
        %v3521 = vpop.permute.xlu0 %3520
        %v3523 = vsel %vm1401, %v3508, 0
        %v3526 = vsel %vm1401, %v3509, 0
        %v3529 = vsel %vm1401, %v3510, 0
        %v3532 = vsel %vm1401, %v3511, 0
        %v3535 = vsel %vm1401, %v3512, 0
        %v3538 = vsel %vm1401, %v3513, 0
        %v3541 = vsel %vm1401, %v3514, 0
        %v3544 = vsel %vm1401, %v3515, 0
        %v3547 = vsel %vm1401, %v3516, 0
        %v3550 = vsel %vm1401, %v3517, 0
        %v3553 = vsel %vm1401, %v3518, 0
        %v3556 = vsel %vm1401, %v3519, 0
        %v3558 = vsel %vm1477, %v3521, 0
        %3560 = vmatprep.subr.mxu0 0.0
        %3561 = vmatpush1.msra.mxu0 %v3558
        %3562 = vmatprep.subr.mxu0 0.0
        %3563 = vmatpush1.msra.mxu0 0.0
        %3564 = vmatprep.subr.mxu0 0.0
        %3565 = vmatpush1.msra.mxu0 0.0
        %3566 = vmatprep.subr.mxu0 0.0
        %3567 = vmatpush1.msra.mxu0 0.0
        %3568 = vmatprep.subr.mxu0 0.0
        %3569 = vmatpush1.msra.mxu0 0.0
        %3570 = vmatprep.subr.mxu0 0.0
        %3571 = vmatpush1.msra.mxu0 0.0
        %3572 = vmatprep.subr.mxu0 0.0
        %3573 = vmatpush1.msra.mxu0 0.0
        %3574 = vmatprep.subr.mxu0 0.0
        %3575 = vmatpush1.msra.mxu0 0.0
        %3576 = vmatprep.subr.mxu0 0.0
        %3577 = vmatpush1.msra.mxu0 0.0
        %3578 = vmatprep.subr.mxu0 0.0
        %3579 = vmatpush1.msra.mxu0 0.0
        %3580 = vmatprep.subr.mxu0 0.0
        %3581 = vmatpush1.msra.mxu0 0.0
        %3582 = vmatprep.subr.mxu0 0.0
        %3583 = vmatpush1.msra.mxu0 0.0
        %3584 = vmatprep.subr.mxu0 0.0
        %3585 = vmatpush1.msra.mxu0 0.0
        %3586 = vmatprep.subr.mxu0 0.0
        %3587 = vmatpush1.msra.mxu0 0.0
        %3588 = vmatprep.subr.mxu0 0.0
        %3589 = vmatpush1.msra.mxu0 0.0
        %3590 = vmatprep.subr.mxu0 0.0
        %3591 = vmatpush1.msra.mxu0 0.0
        %3592 = vmatprep.subr.mxu0 0.0
        %3593 = vmatpush1.msra.mxu0 0.0
        %3594 = vmatprep.subr.mxu0 0.0
        %3595 = vmatpush1.msra.mxu0 0.0
        %3596 = vmatprep.subr.mxu0 0.0
        %3597 = vmatpush1.msra.mxu0 0.0
        %3598 = vmatprep.subr.mxu0 0.0
        %3599 = vmatpush1.msra.mxu0 0.0
        %3600 = vmatprep.subr.mxu0 0.0
        %3601 = vmatpush1.msra.mxu0 0.0
        %3602 = vmatprep.subr.mxu0 0.0
        %3603 = vmatpush1.msra.mxu0 0.0
        %3604 = vmatprep.subr.mxu0 0.0
        %3605 = vmatpush1.msra.mxu0 0.0
        %3606 = vmatprep.subr.mxu0 0.0
        %3607 = vmatpush1.msra.mxu0 0.0
        %3608 = vmatprep.subr.mxu0 0.0
        %3609 = vmatpush1.msra.mxu0 0.0
        %3610 = vmatprep.subr.mxu0 0.0
        %3611 = vmatpush1.msra.mxu0 0.0
        %3612 = vmatprep.subr.mxu0 0.0
        %3613 = vmatpush1.msra.mxu0 0.0
        %3614 = vmatprep.subr.mxu0 0.0
        %3615 = vmatpush1.msra.mxu0 0.0
        %3616 = vmatprep.subr.mxu0 0.0
        %3617 = vmatpush1.msra.mxu0 0.0
        %3618 = vmatprep.subr.mxu0 0.0
        %3619 = vmatpush1.msra.mxu0 0.0
        %3620 = vmatprep.subr.mxu0 0.0
        %3621 = vmatpush1.msra.mxu0 0.0
        %3622 = vmatprep.subr.mxu0 0.0
        %3623 = vmatpush1.msra.mxu0 0.0
        %3624 = vmatprep.mubr.f32.mxu0 0.0
        %3625 = vmatmul.mubr.f32.gmra.mrb[0].mxu0 %v3523
        %v3626 = vpop.f32.mrb[0].mxu0
        %v3627 = vadd.f32 0.0, %v3626
        %v3628 = vpop.f32.mrb[0].mxu0
        %3629 = vmatprep.mubr.f32.mxu0 0.0
        %3630 = vmatmul.mubr.f32.gmra.mrb[0].mxu0 %v3526
        %v3631 = vpop.f32.mrb[0].mxu0
        %v3632 = vadd.f32 0.0, %v3631
        %v3633 = vpop.f32.mrb[0].mxu0
        %3634 = vmatprep.mubr.f32.mxu0 0.0
        %3635 = vmatmul.mubr.f32.gmra.mrb[0].mxu0 %v3529
        %v3636 = vpop.f32.mrb[0].mxu0
        %v3637 = vadd.f32 0.0, %v3636
        %v3638 = vpop.f32.mrb[0].mxu0
        %3639 = vmatprep.mubr.f32.mxu0 0.0
        %3640 = vmatmul.mubr.f32.gmra.mrb[0].mxu0 %v3532
        %v3641 = vpop.f32.mrb[0].mxu0
        %v3642 = vadd.f32 0.0, %v3641
        %v3643 = vpop.f32.mrb[0].mxu0
        %3644 = vmatprep.mubr.f32.mxu0 0.0
        %3645 = vmatmul.mubr.f32.gmra.mrb[0].mxu0 %v3535
        %v3646 = vpop.f32.mrb[0].mxu0
        %v3647 = vadd.f32 0.0, %v3646
        %v3648 = vpop.f32.mrb[0].mxu0
        %3649 = vmatprep.mubr.f32.mxu0 0.0
        %3650 = vmatmul.mubr.f32.gmra.mrb[0].mxu0 %v3538
        %v3651 = vpop.f32.mrb[0].mxu0
        %v3652 = vadd.f32 0.0, %v3651
        %v3653 = vpop.f32.mrb[0].mxu0
        %3654 = vmatprep.mubr.f32.mxu0 0.0
        %3655 = vmatmul.mubr.f32.gmra.mrb[0].mxu0 %v3541
        %v3656 = vpop.f32.mrb[0].mxu0
        %v3657 = vadd.f32 0.0, %v3656
        %v3658 = vpop.f32.mrb[0].mxu0
        %3659 = vmatprep.mubr.f32.mxu0 0.0
        %3660 = vmatmul.mubr.f32.gmra.mrb[0].mxu0 %v3544
        %v3661 = vpop.f32.mrb[0].mxu0
        %v3662 = vadd.f32 0.0, %v3661
        %v3663 = vpop.f32.mrb[0].mxu0
        %3664 = vmatprep.mubr.f32.mxu0 0.0
        %3665 = vmatmul.mubr.f32.gmra.mrb[0].mxu0 %v3547
        %v3666 = vpop.f32.mrb[0].mxu0
        %v3667 = vadd.f32 0.0, %v3666
        %v3668 = vpop.f32.mrb[0].mxu0
        %3669 = vmatprep.mubr.f32.mxu0 0.0
        %3670 = vmatmul.mubr.f32.gmra.mrb[0].mxu0 %v3550
        %v3671 = vpop.f32.mrb[0].mxu0
        %v3672 = vadd.f32 0.0, %v3671
        %v3673 = vpop.f32.mrb[0].mxu0
        %3674 = vmatprep.mubr.f32.mxu0 0.0
        %3675 = vmatmul.mubr.f32.gmra.mrb[0].mxu0 %v3553
        %v3676 = vpop.f32.mrb[0].mxu0
        %v3677 = vadd.f32 0.0, %v3676
        %v3678 = vpop.f32.mrb[0].mxu0
        %3679 = vmatprep.mubr.f32.mxu0 0.0
        %3680 = vmatmul.mubr.f32.gmra.mrb[0].mxu0 %v3556
        %v3681 = vpop.f32.mrb[0].mxu0
        %v3682 = vadd.f32 0.0, %v3681
        %v3683 = vpop.f32.mrb[0].mxu0
        %3684 = vdwg.mxu0
        %v3685 = vadd.f32 %v3496, %v3627
        %v3686 = vadd.f32 %v3497, %v3632
        %v3687 = vadd.f32 %v3498, %v3637
        %v3688 = vadd.f32 %v3499, %v3642
        %v3689 = vadd.f32 %v3500, %v3647
        %v3690 = vadd.f32 %v3501, %v3652
        %v3691 = vadd.f32 %v3502, %v3657
        %v3692 = vadd.f32 %v3503, %v3662
        %v3693 = vadd.f32 %v3504, %v3667
        %v3694 = vadd.f32 %v3505, %v3672
        %v3695 = vadd.f32 %v3506, %v3677
        %v3696 = vadd.f32 %v3507, %v3682
        %v3697 = vld [vmem:[#allocation3 + $0x1a] sm:$0xff]
        %v3698 = vld [vmem:[#allocation3 + $0x22] sm:$0xff]
        %v3699 = vld [vmem:[#allocation3 + $0x2a] sm:$0xff]
        %v3700 = vld [vmem:[#allocation3 + $0x32] sm:$0xff]
        %v3701 = vld [vmem:[#allocation3 + $0x3a] sm:$0xff]
        %v3702 = vld [vmem:[#allocation3 + $0x42] sm:$0xff]
        %v3703 = vld [vmem:[#allocation3 + $0x4a] sm:$0xff]
        %v3704 = vld [vmem:[#allocation3 + $0x52] sm:$0xff]
        %v3705 = vld [vmem:[#allocation3 + $0x5a] sm:$0xff]
        %v3706 = vld [vmem:[#allocation3 + $0x62] sm:$0xff]
        %v3707 = vld [vmem:[#allocation3 + $0x6a] sm:$0xff]
        %v3708 = vld [vmem:[#allocation3 + $0x72] sm:$0xf]
        %3709 = vrot.lane.b32.xlu0 %v2953, 64
        %v3710 = vpop.permute.xlu0 %3709
        %v3712 = vsel %vm1401, %v3697, 0
        %v3715 = vsel %vm1401, %v3698, 0
        %v3718 = vsel %vm1401, %v3699, 0
        %v3721 = vsel %vm1401, %v3700, 0
        %v3724 = vsel %vm1401, %v3701, 0
        %v3727 = vsel %vm1401, %v3702, 0
        %v3730 = vsel %vm1401, %v3703, 0
        %v3733 = vsel %vm1401, %v3704, 0
        %v3736 = vsel %vm1401, %v3705, 0
        %v3739 = vsel %vm1401, %v3706, 0
        %v3742 = vsel %vm1401, %v3707, 0
        %v3745 = vsel %vm1401, %v3708, 0
        %v3747 = vsel %vm1477, %v3710, 0
        %3749 = vmatprep.subr.mxu0 0.0
        %3750 = vmatpush1.msra.mxu0 %v3747
        %3751 = vmatprep.subr.mxu0 0.0
        %3752 = vmatpush1.msra.mxu0 0.0
        %3753 = vmatprep.subr.mxu0 0.0
        %3754 = vmatpush1.msra.mxu0 0.0
        %3755 = vmatprep.subr.mxu0 0.0
        %3756 = vmatpush1.msra.mxu0 0.0
        %3757 = vmatprep.subr.mxu0 0.0
        %3758 = vmatpush1.msra.mxu0 0.0
        %3759 = vmatprep.subr.mxu0 0.0
        %3760 = vmatpush1.msra.mxu0 0.0
        %3761 = vmatprep.subr.mxu0 0.0
        %3762 = vmatpush1.msra.mxu0 0.0
        %3763 = vmatprep.subr.mxu0 0.0
        %3764 = vmatpush1.msra.mxu0 0.0
        %3765 = vmatprep.subr.mxu0 0.0
        %3766 = vmatpush1.msra.mxu0 0.0
        %3767 = vmatprep.subr.mxu0 0.0
        %3768 = vmatpush1.msra.mxu0 0.0
        %3769 = vmatprep.subr.mxu0 0.0
        %3770 = vmatpush1.msra.mxu0 0.0
        %3771 = vmatprep.subr.mxu0 0.0
        %3772 = vmatpush1.msra.mxu0 0.0
        %3773 = vmatprep.subr.mxu0 0.0
        %3774 = vmatpush1.msra.mxu0 0.0
        %3775 = vmatprep.subr.mxu0 0.0
        %3776 = vmatpush1.msra.mxu0 0.0
        %3777 = vmatprep.subr.mxu0 0.0
        %3778 = vmatpush1.msra.mxu0 0.0
        %3779 = vmatprep.subr.mxu0 0.0
        %3780 = vmatpush1.msra.mxu0 0.0
        %3781 = vmatprep.subr.mxu0 0.0
        %3782 = vmatpush1.msra.mxu0 0.0
        %3783 = vmatprep.subr.mxu0 0.0
        %3784 = vmatpush1.msra.mxu0 0.0
        %3785 = vmatprep.subr.mxu0 0.0
        %3786 = vmatpush1.msra.mxu0 0.0
        %3787 = vmatprep.subr.mxu0 0.0
        %3788 = vmatpush1.msra.mxu0 0.0
        %3789 = vmatprep.subr.mxu0 0.0
        %3790 = vmatpush1.msra.mxu0 0.0
        %3791 = vmatprep.subr.mxu0 0.0
        %3792 = vmatpush1.msra.mxu0 0.0
        %3793 = vmatprep.subr.mxu0 0.0
        %3794 = vmatpush1.msra.mxu0 0.0
        %3795 = vmatprep.subr.mxu0 0.0
        %3796 = vmatpush1.msra.mxu0 0.0
        %3797 = vmatprep.subr.mxu0 0.0
        %3798 = vmatpush1.msra.mxu0 0.0
        %3799 = vmatprep.subr.mxu0 0.0
        %3800 = vmatpush1.msra.mxu0 0.0
        %3801 = vmatprep.subr.mxu0 0.0
        %3802 = vmatpush1.msra.mxu0 0.0
        %3803 = vmatprep.subr.mxu0 0.0
        %3804 = vmatpush1.msra.mxu0 0.0
        %3805 = vmatprep.subr.mxu0 0.0
        %3806 = vmatpush1.msra.mxu0 0.0
        %3807 = vmatprep.subr.mxu0 0.0
        %3808 = vmatpush1.msra.mxu0 0.0
        %3809 = vmatprep.subr.mxu0 0.0
        %3810 = vmatpush1.msra.mxu0 0.0
        %3811 = vmatprep.subr.mxu0 0.0
        %3812 = vmatpush1.msra.mxu0 0.0
        %3813 = vmatprep.mubr.f32.mxu0 0.0
        %3814 = vmatmul.mubr.f32.gmra.mrb[0].mxu0 %v3712
        %v3815 = vpop.f32.mrb[0].mxu0
        %v3816 = vadd.f32 0.0, %v3815
        %v3817 = vpop.f32.mrb[0].mxu0
        %3818 = vmatprep.mubr.f32.mxu0 0.0
        %3819 = vmatmul.mubr.f32.gmra.mrb[0].mxu0 %v3715
        %v3820 = vpop.f32.mrb[0].mxu0
        %v3821 = vadd.f32 0.0, %v3820
        %v3822 = vpop.f32.mrb[0].mxu0
        %3823 = vmatprep.mubr.f32.mxu0 0.0
        %3824 = vmatmul.mubr.f32.gmra.mrb[0].mxu0 %v3718
        %v3825 = vpop.f32.mrb[0].mxu0
        %v3826 = vadd.f32 0.0, %v3825
        %v3827 = vpop.f32.mrb[0].mxu0
        %3828 = vmatprep.mubr.f32.mxu0 0.0
        %3829 = vmatmul.mubr.f32.gmra.mrb[0].mxu0 %v3721
        %v3830 = vpop.f32.mrb[0].mxu0
        %v3831 = vadd.f32 0.0, %v3830
        %v3832 = vpop.f32.mrb[0].mxu0
        %3833 = vmatprep.mubr.f32.mxu0 0.0
        %3834 = vmatmul.mubr.f32.gmra.mrb[0].mxu0 %v3724
        %v3835 = vpop.f32.mrb[0].mxu0
        %v3836 = vadd.f32 0.0, %v3835
        %v3837 = vpop.f32.mrb[0].mxu0
        %3838 = vmatprep.mubr.f32.mxu0 0.0
        %3839 = vmatmul.mubr.f32.gmra.mrb[0].mxu0 %v3727
        %v3840 = vpop.f32.mrb[0].mxu0
        %v3841 = vadd.f32 0.0, %v3840
        %v3842 = vpop.f32.mrb[0].mxu0
        %3843 = vmatprep.mubr.f32.mxu0 0.0
        %3844 = vmatmul.mubr.f32.gmra.mrb[0].mxu0 %v3730
        %v3845 = vpop.f32.mrb[0].mxu0
        %v3846 = vadd.f32 0.0, %v3845
        %v3847 = vpop.f32.mrb[0].mxu0
        %3848 = vmatprep.mubr.f32.mxu0 0.0
        %3849 = vmatmul.mubr.f32.gmra.mrb[0].mxu0 %v3733
        %v3850 = vpop.f32.mrb[0].mxu0
        %v3851 = vadd.f32 0.0, %v3850
        %v3852 = vpop.f32.mrb[0].mxu0
        %3853 = vmatprep.mubr.f32.mxu0 0.0
        %3854 = vmatmul.mubr.f32.gmra.mrb[0].mxu0 %v3736
        %v3855 = vpop.f32.mrb[0].mxu0
        %v3856 = vadd.f32 0.0, %v3855
        %v3857 = vpop.f32.mrb[0].mxu0
        %3858 = vmatprep.mubr.f32.mxu0 0.0
        %3859 = vmatmul.mubr.f32.gmra.mrb[0].mxu0 %v3739
        %v3860 = vpop.f32.mrb[0].mxu0
        %v3861 = vadd.f32 0.0, %v3860
        %v3862 = vpop.f32.mrb[0].mxu0
        %3863 = vmatprep.mubr.f32.mxu0 0.0
        %3864 = vmatmul.mubr.f32.gmra.mrb[0].mxu0 %v3742
        %v3865 = vpop.f32.mrb[0].mxu0
        %v3866 = vadd.f32 0.0, %v3865
        %v3867 = vpop.f32.mrb[0].mxu0
        %3868 = vmatprep.mubr.f32.mxu0 0.0
        %3869 = vmatmul.mubr.f32.gmra.mrb[0].mxu0 %v3745
        %v3870 = vpop.f32.mrb[0].mxu0
        %v3871 = vadd.f32 0.0, %v3870
        %v3872 = vpop.f32.mrb[0].mxu0
        %3873 = vdwg.mxu0
        %v3874 = vadd.f32 %v3685, %v3816
        %v3875 = vadd.f32 %v3686, %v3821
        %v3876 = vadd.f32 %v3687, %v3826
        %v3877 = vadd.f32 %v3688, %v3831
        %v3878 = vadd.f32 %v3689, %v3836
        %v3879 = vadd.f32 %v3690, %v3841
        %v3880 = vadd.f32 %v3691, %v3846
        %v3881 = vadd.f32 %v3692, %v3851
        %v3882 = vadd.f32 %v3693, %v3856
        %v3883 = vadd.f32 %v3694, %v3861
        %v3884 = vadd.f32 %v3695, %v3866
        %v3885 = vadd.f32 %v3696, %v3871
        %v3886 = vld [vmem:[#allocation3 + $0x1b] sm:$0xff]
        %v3887 = vld [vmem:[#allocation3 + $0x23] sm:$0xff]
        %v3888 = vld [vmem:[#allocation3 + $0x2b] sm:$0xff]
        %v3889 = vld [vmem:[#allocation3 + $0x33] sm:$0xff]
        %v3890 = vld [vmem:[#allocation3 + $0x3b] sm:$0xff]
        %v3891 = vld [vmem:[#allocation3 + $0x43] sm:$0xff]
        %v3892 = vld [vmem:[#allocation3 + $0x4b] sm:$0xff]
        %v3893 = vld [vmem:[#allocation3 + $0x53] sm:$0xff]
        %v3894 = vld [vmem:[#allocation3 + $0x5b] sm:$0xff]
        %v3895 = vld [vmem:[#allocation3 + $0x63] sm:$0xff]
        %v3896 = vld [vmem:[#allocation3 + $0x6b] sm:$0xff]
        %v3897 = vld [vmem:[#allocation3 + $0x73] sm:$0xf]
        %3898 = vrot.lane.b32.xlu0 %v2953, 48
        %v3899 = vpop.permute.xlu0 %3898
        %v3901 = vsel %vm1401, %v3886, 0
        %v3904 = vsel %vm1401, %v3887, 0
        %v3907 = vsel %vm1401, %v3888, 0
        %v3910 = vsel %vm1401, %v3889, 0
        %v3913 = vsel %vm1401, %v3890, 0
        %v3916 = vsel %vm1401, %v3891, 0
        %v3919 = vsel %vm1401, %v3892, 0
        %v3922 = vsel %vm1401, %v3893, 0
        %v3925 = vsel %vm1401, %v3894, 0
        %v3928 = vsel %vm1401, %v3895, 0
        %v3931 = vsel %vm1401, %v3896, 0
        %v3934 = vsel %vm1401, %v3897, 0
        %v3936 = vsel %vm1477, %v3899, 0
        %3938 = vmatprep.subr.mxu0 0.0
        %3939 = vmatpush1.msra.mxu0 %v3936
        %3940 = vmatprep.subr.mxu0 0.0
        %3941 = vmatpush1.msra.mxu0 0.0
        %3942 = vmatprep.subr.mxu0 0.0
        %3943 = vmatpush1.msra.mxu0 0.0
        %3944 = vmatprep.subr.mxu0 0.0
        %3945 = vmatpush1.msra.mxu0 0.0
        %3946 = vmatprep.subr.mxu0 0.0
        %3947 = vmatpush1.msra.mxu0 0.0
        %3948 = vmatprep.subr.mxu0 0.0
        %3949 = vmatpush1.msra.mxu0 0.0
        %3950 = vmatprep.subr.mxu0 0.0
        %3951 = vmatpush1.msra.mxu0 0.0
        %3952 = vmatprep.subr.mxu0 0.0
        %3953 = vmatpush1.msra.mxu0 0.0
        %3954 = vmatprep.subr.mxu0 0.0
        %3955 = vmatpush1.msra.mxu0 0.0
        %3956 = vmatprep.subr.mxu0 0.0
        %3957 = vmatpush1.msra.mxu0 0.0
        %3958 = vmatprep.subr.mxu0 0.0
        %3959 = vmatpush1.msra.mxu0 0.0
        %3960 = vmatprep.subr.mxu0 0.0
        %3961 = vmatpush1.msra.mxu0 0.0
        %3962 = vmatprep.subr.mxu0 0.0
        %3963 = vmatpush1.msra.mxu0 0.0
        %3964 = vmatprep.subr.mxu0 0.0
        %3965 = vmatpush1.msra.mxu0 0.0
        %3966 = vmatprep.subr.mxu0 0.0
        %3967 = vmatpush1.msra.mxu0 0.0
        %3968 = vmatprep.subr.mxu0 0.0
        %3969 = vmatpush1.msra.mxu0 0.0
        %3970 = vmatprep.subr.mxu0 0.0
        %3971 = vmatpush1.msra.mxu0 0.0
        %3972 = vmatprep.subr.mxu0 0.0
        %3973 = vmatpush1.msra.mxu0 0.0
        %3974 = vmatprep.subr.mxu0 0.0
        %3975 = vmatpush1.msra.mxu0 0.0
        %3976 = vmatprep.subr.mxu0 0.0
        %3977 = vmatpush1.msra.mxu0 0.0
        %3978 = vmatprep.subr.mxu0 0.0
        %3979 = vmatpush1.msra.mxu0 0.0
        %3980 = vmatprep.subr.mxu0 0.0
        %3981 = vmatpush1.msra.mxu0 0.0
        %3982 = vmatprep.subr.mxu0 0.0
        %3983 = vmatpush1.msra.mxu0 0.0
        %3984 = vmatprep.subr.mxu0 0.0
        %3985 = vmatpush1.msra.mxu0 0.0
        %3986 = vmatprep.subr.mxu0 0.0
        %3987 = vmatpush1.msra.mxu0 0.0
        %3988 = vmatprep.subr.mxu0 0.0
        %3989 = vmatpush1.msra.mxu0 0.0
        %3990 = vmatprep.subr.mxu0 0.0
        %3991 = vmatpush1.msra.mxu0 0.0
        %3992 = vmatprep.subr.mxu0 0.0
        %3993 = vmatpush1.msra.mxu0 0.0
        %3994 = vmatprep.subr.mxu0 0.0
        %3995 = vmatpush1.msra.mxu0 0.0
        %3996 = vmatprep.subr.mxu0 0.0
        %3997 = vmatpush1.msra.mxu0 0.0
        %3998 = vmatprep.subr.mxu0 0.0
        %3999 = vmatpush1.msra.mxu0 0.0
        %4000 = vmatprep.subr.mxu0 0.0
        %4001 = vmatpush1.msra.mxu0 0.0
        %4002 = vmatprep.mubr.f32.mxu0 0.0
        %4003 = vmatmul.mubr.f32.gmra.mrb[0].mxu0 %v3901
        %v4004 = vpop.f32.mrb[0].mxu0
        %v4005 = vadd.f32 0.0, %v4004
        %v4006 = vpop.f32.mrb[0].mxu0
        %4007 = vmatprep.mubr.f32.mxu0 0.0
        %4008 = vmatmul.mubr.f32.gmra.mrb[0].mxu0 %v3904
        %v4009 = vpop.f32.mrb[0].mxu0
        %v4010 = vadd.f32 0.0, %v4009
        %v4011 = vpop.f32.mrb[0].mxu0
        %4012 = vmatprep.mubr.f32.mxu0 0.0
        %4013 = vmatmul.mubr.f32.gmra.mrb[0].mxu0 %v3907
        %v4014 = vpop.f32.mrb[0].mxu0
        %v4015 = vadd.f32 0.0, %v4014
        %v4016 = vpop.f32.mrb[0].mxu0
        %4017 = vmatprep.mubr.f32.mxu0 0.0
        %4018 = vmatmul.mubr.f32.gmra.mrb[0].mxu0 %v3910
        %v4019 = vpop.f32.mrb[0].mxu0
        %v4020 = vadd.f32 0.0, %v4019
        %v4021 = vpop.f32.mrb[0].mxu0
        %4022 = vmatprep.mubr.f32.mxu0 0.0
        %4023 = vmatmul.mubr.f32.gmra.mrb[0].mxu0 %v3913
        %v4024 = vpop.f32.mrb[0].mxu0
        %v4025 = vadd.f32 0.0, %v4024
        %v4026 = vpop.f32.mrb[0].mxu0
        %4027 = vmatprep.mubr.f32.mxu0 0.0
        %4028 = vmatmul.mubr.f32.gmra.mrb[0].mxu0 %v3916
        %v4029 = vpop.f32.mrb[0].mxu0
        %v4030 = vadd.f32 0.0, %v4029
        %v4031 = vpop.f32.mrb[0].mxu0
        %4032 = vmatprep.mubr.f32.mxu0 0.0
        %4033 = vmatmul.mubr.f32.gmra.mrb[0].mxu0 %v3919
        %v4034 = vpop.f32.mrb[0].mxu0
        %v4035 = vadd.f32 0.0, %v4034
        %v4036 = vpop.f32.mrb[0].mxu0
        %4037 = vmatprep.mubr.f32.mxu0 0.0
        %4038 = vmatmul.mubr.f32.gmra.mrb[0].mxu0 %v3922
        %v4039 = vpop.f32.mrb[0].mxu0
        %v4040 = vadd.f32 0.0, %v4039
        %v4041 = vpop.f32.mrb[0].mxu0
        %4042 = vmatprep.mubr.f32.mxu0 0.0
        %4043 = vmatmul.mubr.f32.gmra.mrb[0].mxu0 %v3925
        %v4044 = vpop.f32.mrb[0].mxu0
        %v4045 = vadd.f32 0.0, %v4044
        %v4046 = vpop.f32.mrb[0].mxu0
        %4047 = vmatprep.mubr.f32.mxu0 0.0
        %4048 = vmatmul.mubr.f32.gmra.mrb[0].mxu0 %v3928
        %v4049 = vpop.f32.mrb[0].mxu0
        %v4050 = vadd.f32 0.0, %v4049
        %v4051 = vpop.f32.mrb[0].mxu0
        %4052 = vmatprep.mubr.f32.mxu0 0.0
        %4053 = vmatmul.mubr.f32.gmra.mrb[0].mxu0 %v3931
        %v4054 = vpop.f32.mrb[0].mxu0
        %v4055 = vadd.f32 0.0, %v4054
        %v4056 = vpop.f32.mrb[0].mxu0
        %4057 = vmatprep.mubr.f32.mxu0 0.0
        %4058 = vmatmul.mubr.f32.gmra.mrb[0].mxu0 %v3934
        %v4059 = vpop.f32.mrb[0].mxu0
        %v4060 = vadd.f32 0.0, %v4059
        %v4061 = vpop.f32.mrb[0].mxu0
        %4062 = vdwg.mxu0
        %v4063 = vadd.f32 %v3874, %v4005
        %v4064 = vadd.f32 %v3875, %v4010
        %v4065 = vadd.f32 %v3876, %v4015
        %v4066 = vadd.f32 %v3877, %v4020
        %v4067 = vadd.f32 %v3878, %v4025
        %v4068 = vadd.f32 %v3879, %v4030
        %v4069 = vadd.f32 %v3880, %v4035
        %v4070 = vadd.f32 %v3881, %v4040
        %v4071 = vadd.f32 %v3882, %v4045
        %v4072 = vadd.f32 %v3883, %v4050
        %v4073 = vadd.f32 %v3884, %v4055
        %v4074 = vadd.f32 %v3885, %v4060
        %v4075 = vld [vmem:[#allocation3 + $0x1c] sm:$0xff]
        %v4076 = vld [vmem:[#allocation3 + $0x24] sm:$0xff]
        %v4077 = vld [vmem:[#allocation3 + $0x2c] sm:$0xff]
        %v4078 = vld [vmem:[#allocation3 + $0x34] sm:$0xff]
        %v4079 = vld [vmem:[#allocation3 + $0x3c] sm:$0xff]
        %v4080 = vld [vmem:[#allocation3 + $0x44] sm:$0xff]
        %v4081 = vld [vmem:[#allocation3 + $0x4c] sm:$0xff]
        %v4082 = vld [vmem:[#allocation3 + $0x54] sm:$0xff]
        %v4083 = vld [vmem:[#allocation3 + $0x5c] sm:$0xff]
        %v4084 = vld [vmem:[#allocation3 + $0x64] sm:$0xff]
        %v4085 = vld [vmem:[#allocation3 + $0x6c] sm:$0xff]
        %v4086 = vld [vmem:[#allocation3 + $0x74] sm:$0xf]
        %4087 = vrot.lane.b32.xlu0 %v2953, 32
        %v4088 = vpop.permute.xlu0 %4087
        %v4090 = vsel %vm1401, %v4075, 0
        %v4093 = vsel %vm1401, %v4076, 0
        %v4096 = vsel %vm1401, %v4077, 0
        %v4099 = vsel %vm1401, %v4078, 0
        %v4102 = vsel %vm1401, %v4079, 0
        %v4105 = vsel %vm1401, %v4080, 0
        %v4108 = vsel %vm1401, %v4081, 0
        %v4111 = vsel %vm1401, %v4082, 0
        %v4114 = vsel %vm1401, %v4083, 0
        %v4117 = vsel %vm1401, %v4084, 0
        %v4120 = vsel %vm1401, %v4085, 0
        %v4123 = vsel %vm1401, %v4086, 0
        %v4125 = vsel %vm1477, %v4088, 0
        %4127 = vmatprep.subr.mxu0 0.0
        %4128 = vmatpush1.msra.mxu0 %v4125
        %4129 = vmatprep.subr.mxu0 0.0
        %4130 = vmatpush1.msra.mxu0 0.0
        %4131 = vmatprep.subr.mxu0 0.0
        %4132 = vmatpush1.msra.mxu0 0.0
        %4133 = vmatprep.subr.mxu0 0.0
        %4134 = vmatpush1.msra.mxu0 0.0
        %4135 = vmatprep.subr.mxu0 0.0
        %4136 = vmatpush1.msra.mxu0 0.0
        %4137 = vmatprep.subr.mxu0 0.0
        %4138 = vmatpush1.msra.mxu0 0.0
        %4139 = vmatprep.subr.mxu0 0.0
        %4140 = vmatpush1.msra.mxu0 0.0
        %4141 = vmatprep.subr.mxu0 0.0
        %4142 = vmatpush1.msra.mxu0 0.0
        %4143 = vmatprep.subr.mxu0 0.0
        %4144 = vmatpush1.msra.mxu0 0.0
        %4145 = vmatprep.subr.mxu0 0.0
        %4146 = vmatpush1.msra.mxu0 0.0
        %4147 = vmatprep.subr.mxu0 0.0
        %4148 = vmatpush1.msra.mxu0 0.0
        %4149 = vmatprep.subr.mxu0 0.0
        %4150 = vmatpush1.msra.mxu0 0.0
        %4151 = vmatprep.subr.mxu0 0.0
        %4152 = vmatpush1.msra.mxu0 0.0
        %4153 = vmatprep.subr.mxu0 0.0
        %4154 = vmatpush1.msra.mxu0 0.0
        %4155 = vmatprep.subr.mxu0 0.0
        %4156 = vmatpush1.msra.mxu0 0.0
        %4157 = vmatprep.subr.mxu0 0.0
        %4158 = vmatpush1.msra.mxu0 0.0
        %4159 = vmatprep.subr.mxu0 0.0
        %4160 = vmatpush1.msra.mxu0 0.0
        %4161 = vmatprep.subr.mxu0 0.0
        %4162 = vmatpush1.msra.mxu0 0.0
        %4163 = vmatprep.subr.mxu0 0.0
        %4164 = vmatpush1.msra.mxu0 0.0
        %4165 = vmatprep.subr.mxu0 0.0
        %4166 = vmatpush1.msra.mxu0 0.0
        %4167 = vmatprep.subr.mxu0 0.0
        %4168 = vmatpush1.msra.mxu0 0.0
        %4169 = vmatprep.subr.mxu0 0.0
        %4170 = vmatpush1.msra.mxu0 0.0
        %4171 = vmatprep.subr.mxu0 0.0
        %4172 = vmatpush1.msra.mxu0 0.0
        %4173 = vmatprep.subr.mxu0 0.0
        %4174 = vmatpush1.msra.mxu0 0.0
        %4175 = vmatprep.subr.mxu0 0.0
        %4176 = vmatpush1.msra.mxu0 0.0
        %4177 = vmatprep.subr.mxu0 0.0
        %4178 = vmatpush1.msra.mxu0 0.0
        %4179 = vmatprep.subr.mxu0 0.0
        %4180 = vmatpush1.msra.mxu0 0.0
        %4181 = vmatprep.subr.mxu0 0.0
        %4182 = vmatpush1.msra.mxu0 0.0
        %4183 = vmatprep.subr.mxu0 0.0
        %4184 = vmatpush1.msra.mxu0 0.0
        %4185 = vmatprep.subr.mxu0 0.0
        %4186 = vmatpush1.msra.mxu0 0.0
        %4187 = vmatprep.subr.mxu0 0.0
        %4188 = vmatpush1.msra.mxu0 0.0
        %4189 = vmatprep.subr.mxu0 0.0
        %4190 = vmatpush1.msra.mxu0 0.0
        %4191 = vmatprep.mubr.f32.mxu0 0.0
        %4192 = vmatmul.mubr.f32.gmra.mrb[0].mxu0 %v4090
        %v4193 = vpop.f32.mrb[0].mxu0
        %v4194 = vadd.f32 0.0, %v4193
        %v4195 = vpop.f32.mrb[0].mxu0
        %4196 = vmatprep.mubr.f32.mxu0 0.0
        %4197 = vmatmul.mubr.f32.gmra.mrb[0].mxu0 %v4093
        %v4198 = vpop.f32.mrb[0].mxu0
        %v4199 = vadd.f32 0.0, %v4198
        %v4200 = vpop.f32.mrb[0].mxu0
        %4201 = vmatprep.mubr.f32.mxu0 0.0
        %4202 = vmatmul.mubr.f32.gmra.mrb[0].mxu0 %v4096
        %v4203 = vpop.f32.mrb[0].mxu0
        %v4204 = vadd.f32 0.0, %v4203
        %v4205 = vpop.f32.mrb[0].mxu0
        %4206 = vmatprep.mubr.f32.mxu0 0.0
        %4207 = vmatmul.mubr.f32.gmra.mrb[0].mxu0 %v4099
        %v4208 = vpop.f32.mrb[0].mxu0
        %v4209 = vadd.f32 0.0, %v4208
        %v4210 = vpop.f32.mrb[0].mxu0
        %4211 = vmatprep.mubr.f32.mxu0 0.0
        %4212 = vmatmul.mubr.f32.gmra.mrb[0].mxu0 %v4102
        %v4213 = vpop.f32.mrb[0].mxu0
        %v4214 = vadd.f32 0.0, %v4213
        %v4215 = vpop.f32.mrb[0].mxu0
        %4216 = vmatprep.mubr.f32.mxu0 0.0
        %4217 = vmatmul.mubr.f32.gmra.mrb[0].mxu0 %v4105
        %v4218 = vpop.f32.mrb[0].mxu0
        %v4219 = vadd.f32 0.0, %v4218
        %v4220 = vpop.f32.mrb[0].mxu0
        %4221 = vmatprep.mubr.f32.mxu0 0.0
        %4222 = vmatmul.mubr.f32.gmra.mrb[0].mxu0 %v4108
        %v4223 = vpop.f32.mrb[0].mxu0
        %v4224 = vadd.f32 0.0, %v4223
        %v4225 = vpop.f32.mrb[0].mxu0
        %4226 = vmatprep.mubr.f32.mxu0 0.0
        %4227 = vmatmul.mubr.f32.gmra.mrb[0].mxu0 %v4111
        %v4228 = vpop.f32.mrb[0].mxu0
        %v4229 = vadd.f32 0.0, %v4228
        %v4230 = vpop.f32.mrb[0].mxu0
        %4231 = vmatprep.mubr.f32.mxu0 0.0
        %4232 = vmatmul.mubr.f32.gmra.mrb[0].mxu0 %v4114
        %v4233 = vpop.f32.mrb[0].mxu0
        %v4234 = vadd.f32 0.0, %v4233
        %v4235 = vpop.f32.mrb[0].mxu0
        %4236 = vmatprep.mubr.f32.mxu0 0.0
        %4237 = vmatmul.mubr.f32.gmra.mrb[0].mxu0 %v4117
        %v4238 = vpop.f32.mrb[0].mxu0
        %v4239 = vadd.f32 0.0, %v4238
        %v4240 = vpop.f32.mrb[0].mxu0
        %4241 = vmatprep.mubr.f32.mxu0 0.0
        %4242 = vmatmul.mubr.f32.gmra.mrb[0].mxu0 %v4120
        %v4243 = vpop.f32.mrb[0].mxu0
        %v4244 = vadd.f32 0.0, %v4243
        %v4245 = vpop.f32.mrb[0].mxu0
        %4246 = vmatprep.mubr.f32.mxu0 0.0
        %4247 = vmatmul.mubr.f32.gmra.mrb[0].mxu0 %v4123
        %v4248 = vpop.f32.mrb[0].mxu0
        %v4249 = vadd.f32 0.0, %v4248
        %v4250 = vpop.f32.mrb[0].mxu0
        %4251 = vdwg.mxu0
        %v4252 = vadd.f32 %v4063, %v4194
        %v4253 = vadd.f32 %v4064, %v4199
        %v4254 = vadd.f32 %v4065, %v4204
        %v4255 = vadd.f32 %v4066, %v4209
        %v4256 = vadd.f32 %v4067, %v4214
        %v4257 = vadd.f32 %v4068, %v4219
        %v4258 = vadd.f32 %v4069, %v4224
        %v4259 = vadd.f32 %v4070, %v4229
        %v4260 = vadd.f32 %v4071, %v4234
        %v4261 = vadd.f32 %v4072, %v4239
        %v4262 = vadd.f32 %v4073, %v4244
        %v4263 = vadd.f32 %v4074, %v4249
        %v4264 = vld [vmem:[#allocation3 + $0x24] sm:$0xff]
        %v4265 = vld [vmem:[#allocation3 + $0x2c] sm:$0xff]
        %v4266 = vld [vmem:[#allocation3 + $0x34] sm:$0xff]
        %v4267 = vld [vmem:[#allocation3 + $0x3c] sm:$0xff]
        %v4268 = vld [vmem:[#allocation3 + $0x44] sm:$0xff]
        %v4269 = vld [vmem:[#allocation3 + $0x4c] sm:$0xff]
        %v4270 = vld [vmem:[#allocation3 + $0x54] sm:$0xff]
        %v4271 = vld [vmem:[#allocation3 + $0x5c] sm:$0xff]
        %v4272 = vld [vmem:[#allocation3 + $0x64] sm:$0xff]
        %v4273 = vld [vmem:[#allocation3 + $0x6c] sm:$0xff]
        %v4274 = vld [vmem:[#allocation3 + $0x74] sm:$0xff]
        %v4275 = vld [vmem:[#allocation3 + $0x7c] sm:$0xf]
        %4276 = vrot.lane.b32.xlu0 %v2953, 16
        %v4277 = vpop.permute.xlu0 %4276
        %v4279 = vsel %vm1401, %v4264, 0
        %v4282 = vsel %vm1401, %v4265, 0
        %v4285 = vsel %vm1401, %v4266, 0
        %v4288 = vsel %vm1401, %v4267, 0
        %v4291 = vsel %vm1401, %v4268, 0
        %v4294 = vsel %vm1401, %v4269, 0
        %v4297 = vsel %vm1401, %v4270, 0
        %v4300 = vsel %vm1401, %v4271, 0
        %v4303 = vsel %vm1401, %v4272, 0
        %v4306 = vsel %vm1401, %v4273, 0
        %v4309 = vsel %vm1401, %v4274, 0
        %v4312 = vsel %vm1401, %v4275, 0
        %v4314 = vsel %vm1477, %v4277, 0
        %4316 = vmatprep.subr.mxu0 0.0
        %4317 = vmatpush1.msra.mxu0 %v4314
        %4318 = vmatprep.subr.mxu0 0.0
        %4319 = vmatpush1.msra.mxu0 0.0
        %4320 = vmatprep.subr.mxu0 0.0
        %4321 = vmatpush1.msra.mxu0 0.0
        %4322 = vmatprep.subr.mxu0 0.0
        %4323 = vmatpush1.msra.mxu0 0.0
        %4324 = vmatprep.subr.mxu0 0.0
        %4325 = vmatpush1.msra.mxu0 0.0
        %4326 = vmatprep.subr.mxu0 0.0
        %4327 = vmatpush1.msra.mxu0 0.0
        %4328 = vmatprep.subr.mxu0 0.0
        %4329 = vmatpush1.msra.mxu0 0.0
        %4330 = vmatprep.subr.mxu0 0.0
        %4331 = vmatpush1.msra.mxu0 0.0
        %4332 = vmatprep.subr.mxu0 0.0
        %4333 = vmatpush1.msra.mxu0 0.0
        %4334 = vmatprep.subr.mxu0 0.0
        %4335 = vmatpush1.msra.mxu0 0.0
        %4336 = vmatprep.subr.mxu0 0.0
        %4337 = vmatpush1.msra.mxu0 0.0
        %4338 = vmatprep.subr.mxu0 0.0
        %4339 = vmatpush1.msra.mxu0 0.0
        %4340 = vmatprep.subr.mxu0 0.0
        %4341 = vmatpush1.msra.mxu0 0.0
        %4342 = vmatprep.subr.mxu0 0.0
        %4343 = vmatpush1.msra.mxu0 0.0
        %4344 = vmatprep.subr.mxu0 0.0
        %4345 = vmatpush1.msra.mxu0 0.0
        %4346 = vmatprep.subr.mxu0 0.0
        %4347 = vmatpush1.msra.mxu0 0.0
        %4348 = vmatprep.subr.mxu0 0.0
        %4349 = vmatpush1.msra.mxu0 0.0
        %4350 = vmatprep.subr.mxu0 0.0
        %4351 = vmatpush1.msra.mxu0 0.0
        %4352 = vmatprep.subr.mxu0 0.0
        %4353 = vmatpush1.msra.mxu0 0.0
        %4354 = vmatprep.subr.mxu0 0.0
        %4355 = vmatpush1.msra.mxu0 0.0
        %4356 = vmatprep.subr.mxu0 0.0
        %4357 = vmatpush1.msra.mxu0 0.0
        %4358 = vmatprep.subr.mxu0 0.0
        %4359 = vmatpush1.msra.mxu0 0.0
        %4360 = vmatprep.subr.mxu0 0.0
        %4361 = vmatpush1.msra.mxu0 0.0
        %4362 = vmatprep.subr.mxu0 0.0
        %4363 = vmatpush1.msra.mxu0 0.0
        %4364 = vmatprep.subr.mxu0 0.0
        %4365 = vmatpush1.msra.mxu0 0.0
        %4366 = vmatprep.subr.mxu0 0.0
        %4367 = vmatpush1.msra.mxu0 0.0
        %4368 = vmatprep.subr.mxu0 0.0
        %4369 = vmatpush1.msra.mxu0 0.0
        %4370 = vmatprep.subr.mxu0 0.0
        %4371 = vmatpush1.msra.mxu0 0.0
        %4372 = vmatprep.subr.mxu0 0.0
        %4373 = vmatpush1.msra.mxu0 0.0
        %4374 = vmatprep.subr.mxu0 0.0
        %4375 = vmatpush1.msra.mxu0 0.0
        %4376 = vmatprep.subr.mxu0 0.0
        %4377 = vmatpush1.msra.mxu0 0.0
        %4378 = vmatprep.subr.mxu0 0.0
        %4379 = vmatpush1.msra.mxu0 0.0
        %4380 = vmatprep.mubr.f32.mxu0 0.0
        %4381 = vmatmul.mubr.f32.gmra.mrb[0].mxu0 %v4279
        %v4382 = vpop.f32.mrb[0].mxu0
        %v4383 = vadd.f32 0.0, %v4382
        %v4384 = vpop.f32.mrb[0].mxu0
        %4385 = vmatprep.mubr.f32.mxu0 0.0
        %4386 = vmatmul.mubr.f32.gmra.mrb[0].mxu0 %v4282
        %v4387 = vpop.f32.mrb[0].mxu0
        %v4388 = vadd.f32 0.0, %v4387
        %v4389 = vpop.f32.mrb[0].mxu0
        %4390 = vmatprep.mubr.f32.mxu0 0.0
        %4391 = vmatmul.mubr.f32.gmra.mrb[0].mxu0 %v4285
        %v4392 = vpop.f32.mrb[0].mxu0
        %v4393 = vadd.f32 0.0, %v4392
        %v4394 = vpop.f32.mrb[0].mxu0
        %4395 = vmatprep.mubr.f32.mxu0 0.0
        %4396 = vmatmul.mubr.f32.gmra.mrb[0].mxu0 %v4288
        %v4397 = vpop.f32.mrb[0].mxu0
        %v4398 = vadd.f32 0.0, %v4397
        %v4399 = vpop.f32.mrb[0].mxu0
        %4400 = vmatprep.mubr.f32.mxu0 0.0
        %4401 = vmatmul.mubr.f32.gmra.mrb[0].mxu0 %v4291
        %v4402 = vpop.f32.mrb[0].mxu0
        %v4403 = vadd.f32 0.0, %v4402
        %v4404 = vpop.f32.mrb[0].mxu0
        %4405 = vmatprep.mubr.f32.mxu0 0.0
        %4406 = vmatmul.mubr.f32.gmra.mrb[0].mxu0 %v4294
        %v4407 = vpop.f32.mrb[0].mxu0
        %v4408 = vadd.f32 0.0, %v4407
        %v4409 = vpop.f32.mrb[0].mxu0
        %4410 = vmatprep.mubr.f32.mxu0 0.0
        %4411 = vmatmul.mubr.f32.gmra.mrb[0].mxu0 %v4297
        %v4412 = vpop.f32.mrb[0].mxu0
        %v4413 = vadd.f32 0.0, %v4412
        %v4414 = vpop.f32.mrb[0].mxu0
        %4415 = vmatprep.mubr.f32.mxu0 0.0
        %4416 = vmatmul.mubr.f32.gmra.mrb[0].mxu0 %v4300
        %v4417 = vpop.f32.mrb[0].mxu0
        %v4418 = vadd.f32 0.0, %v4417
        %v4419 = vpop.f32.mrb[0].mxu0
        %4420 = vmatprep.mubr.f32.mxu0 0.0
        %4421 = vmatmul.mubr.f32.gmra.mrb[0].mxu0 %v4303
        %v4422 = vpop.f32.mrb[0].mxu0
        %v4423 = vadd.f32 0.0, %v4422
        %v4424 = vpop.f32.mrb[0].mxu0
        %4425 = vmatprep.mubr.f32.mxu0 0.0
        %4426 = vmatmul.mubr.f32.gmra.mrb[0].mxu0 %v4306
        %v4427 = vpop.f32.mrb[0].mxu0
        %v4428 = vadd.f32 0.0, %v4427
        %v4429 = vpop.f32.mrb[0].mxu0
        %4430 = vmatprep.mubr.f32.mxu0 0.0
        %4431 = vmatmul.mubr.f32.gmra.mrb[0].mxu0 %v4309
        %v4432 = vpop.f32.mrb[0].mxu0
        %v4433 = vadd.f32 0.0, %v4432
        %v4434 = vpop.f32.mrb[0].mxu0
        %4435 = vmatprep.mubr.f32.mxu0 0.0
        %4436 = vmatmul.mubr.f32.gmra.mrb[0].mxu0 %v4312
        %v4437 = vpop.f32.mrb[0].mxu0
        %v4438 = vadd.f32 0.0, %v4437
        %v4439 = vpop.f32.mrb[0].mxu0
        %4440 = vdwg.mxu0
        %v4441 = vadd.f32 %v4252, %v4383
        %v4442 = vadd.f32 %v4253, %v4388
        %v4443 = vadd.f32 %v4254, %v4393
        %v4444 = vadd.f32 %v4255, %v4398
        %v4445 = vadd.f32 %v4256, %v4403
        %v4446 = vadd.f32 %v4257, %v4408
        %v4447 = vadd.f32 %v4258, %v4413
        %v4448 = vadd.f32 %v4259, %v4418
        %v4449 = vadd.f32 %v4260, %v4423
        %v4450 = vadd.f32 %v4261, %v4428
        %v4451 = vadd.f32 %v4262, %v4433
        %v4452 = vadd.f32 %v4263, %v4438
        %v4453 = vld [vmem:[#allocation3 + $0x25] sm:$0xff]
        %v4454 = vld [vmem:[#allocation3 + $0x2d] sm:$0xff]
        %v4455 = vld [vmem:[#allocation3 + $0x35] sm:$0xff]
        %v4456 = vld [vmem:[#allocation3 + $0x3d] sm:$0xff]
        %v4457 = vld [vmem:[#allocation3 + $0x45] sm:$0xff]
        %v4458 = vld [vmem:[#allocation3 + $0x4d] sm:$0xff]
        %v4459 = vld [vmem:[#allocation3 + $0x55] sm:$0xff]
        %v4460 = vld [vmem:[#allocation3 + $0x5d] sm:$0xff]
        %v4461 = vld [vmem:[#allocation3 + $0x65] sm:$0xff]
        %v4462 = vld [vmem:[#allocation3 + $0x6d] sm:$0xff]
        %v4463 = vld [vmem:[#allocation3 + $0x75] sm:$0xff]
        %v4464 = vld [vmem:[#allocation3 + $0x7d] sm:$0xf]
        %v4465 = vld [vmem:[%s3 + $0x10] sm:$0x3f]
        %v4467 = vsel %vm1401, %v4453, 0
        %v4470 = vsel %vm1401, %v4454, 0
        %v4473 = vsel %vm1401, %v4455, 0
        %v4476 = vsel %vm1401, %v4456, 0
        %v4479 = vsel %vm1401, %v4457, 0
        %v4482 = vsel %vm1401, %v4458, 0
        %v4485 = vsel %vm1401, %v4459, 0
        %v4488 = vsel %vm1401, %v4460, 0
        %v4491 = vsel %vm1401, %v4461, 0
        %v4494 = vsel %vm1401, %v4462, 0
        %v4497 = vsel %vm1401, %v4463, 0
        %v4500 = vsel %vm1401, %v4464, 0
        %v4503 = vsel %vm1477, %v4465, 0
        %4505 = vmatprep.subr.mxu0 0.0
        %4506 = vmatpush1.msra.mxu0 %v4503
        %4507 = vmatprep.subr.mxu0 0.0
        %4508 = vmatpush1.msra.mxu0 0.0
        %4509 = vmatprep.subr.mxu0 0.0
        %4510 = vmatpush1.msra.mxu0 0.0
        %4511 = vmatprep.subr.mxu0 0.0
        %4512 = vmatpush1.msra.mxu0 0.0
        %4513 = vmatprep.subr.mxu0 0.0
        %4514 = vmatpush1.msra.mxu0 0.0
        %4515 = vmatprep.subr.mxu0 0.0
        %4516 = vmatpush1.msra.mxu0 0.0
        %4517 = vmatprep.subr.mxu0 0.0
        %4518 = vmatpush1.msra.mxu0 0.0
        %4519 = vmatprep.subr.mxu0 0.0
        %4520 = vmatpush1.msra.mxu0 0.0
        %4521 = vmatprep.subr.mxu0 0.0
        %4522 = vmatpush1.msra.mxu0 0.0
        %4523 = vmatprep.subr.mxu0 0.0
        %4524 = vmatpush1.msra.mxu0 0.0
        %4525 = vmatprep.subr.mxu0 0.0
        %4526 = vmatpush1.msra.mxu0 0.0
        %4527 = vmatprep.subr.mxu0 0.0
        %4528 = vmatpush1.msra.mxu0 0.0
        %4529 = vmatprep.subr.mxu0 0.0
        %4530 = vmatpush1.msra.mxu0 0.0
        %4531 = vmatprep.subr.mxu0 0.0
        %4532 = vmatpush1.msra.mxu0 0.0
        %4533 = vmatprep.subr.mxu0 0.0
        %4534 = vmatpush1.msra.mxu0 0.0
        %4535 = vmatprep.subr.mxu0 0.0
        %4536 = vmatpush1.msra.mxu0 0.0
        %4537 = vmatprep.subr.mxu0 0.0
        %4538 = vmatpush1.msra.mxu0 0.0
        %4539 = vmatprep.subr.mxu0 0.0
        %4540 = vmatpush1.msra.mxu0 0.0
        %4541 = vmatprep.subr.mxu0 0.0
        %4542 = vmatpush1.msra.mxu0 0.0
        %4543 = vmatprep.subr.mxu0 0.0
        %4544 = vmatpush1.msra.mxu0 0.0
        %4545 = vmatprep.subr.mxu0 0.0
        %4546 = vmatpush1.msra.mxu0 0.0
        %4547 = vmatprep.subr.mxu0 0.0
        %4548 = vmatpush1.msra.mxu0 0.0
        %4549 = vmatprep.subr.mxu0 0.0
        %4550 = vmatpush1.msra.mxu0 0.0
        %4551 = vmatprep.subr.mxu0 0.0
        %4552 = vmatpush1.msra.mxu0 0.0
        %4553 = vmatprep.subr.mxu0 0.0
        %4554 = vmatpush1.msra.mxu0 0.0
        %4555 = vmatprep.subr.mxu0 0.0
        %4556 = vmatpush1.msra.mxu0 0.0
        %4557 = vmatprep.subr.mxu0 0.0
        %4558 = vmatpush1.msra.mxu0 0.0
        %4559 = vmatprep.subr.mxu0 0.0
        %4560 = vmatpush1.msra.mxu0 0.0
        %4561 = vmatprep.subr.mxu0 0.0
        %4562 = vmatpush1.msra.mxu0 0.0
        %4563 = vmatprep.subr.mxu0 0.0
        %4564 = vmatpush1.msra.mxu0 0.0
        %4565 = vmatprep.subr.mxu0 0.0
        %4566 = vmatpush1.msra.mxu0 0.0
        %4567 = vmatprep.subr.mxu0 0.0
        %4568 = vmatpush1.msra.mxu0 0.0
        %4569 = vmatprep.mubr.f32.mxu0 0.0
        %4570 = vmatmul.mubr.f32.gmra.mrb[0].mxu0 %v4467
        %v4571 = vpop.f32.mrb[0].mxu0
        %v4572 = vadd.f32 0.0, %v4571
        %v4573 = vpop.f32.mrb[0].mxu0
        %4574 = vmatprep.mubr.f32.mxu0 0.0
        %4575 = vmatmul.mubr.f32.gmra.mrb[0].mxu0 %v4470
        %v4576 = vpop.f32.mrb[0].mxu0
        %v4577 = vadd.f32 0.0, %v4576
        %v4578 = vpop.f32.mrb[0].mxu0
        %4579 = vmatprep.mubr.f32.mxu0 0.0
        %4580 = vmatmul.mubr.f32.gmra.mrb[0].mxu0 %v4473
        %v4581 = vpop.f32.mrb[0].mxu0
        %v4582 = vadd.f32 0.0, %v4581
        %v4583 = vpop.f32.mrb[0].mxu0
        %4584 = vmatprep.mubr.f32.mxu0 0.0
        %4585 = vmatmul.mubr.f32.gmra.mrb[0].mxu0 %v4476
        %v4586 = vpop.f32.mrb[0].mxu0
        %v4587 = vadd.f32 0.0, %v4586
        %v4588 = vpop.f32.mrb[0].mxu0
        %4589 = vmatprep.mubr.f32.mxu0 0.0
        %4590 = vmatmul.mubr.f32.gmra.mrb[0].mxu0 %v4479
        %v4591 = vpop.f32.mrb[0].mxu0
        %v4592 = vadd.f32 0.0, %v4591
        %v4593 = vpop.f32.mrb[0].mxu0
        %4594 = vmatprep.mubr.f32.mxu0 0.0
        %4595 = vmatmul.mubr.f32.gmra.mrb[0].mxu0 %v4482
        %v4596 = vpop.f32.mrb[0].mxu0
        %v4597 = vadd.f32 0.0, %v4596
        %v4598 = vpop.f32.mrb[0].mxu0
        %4599 = vmatprep.mubr.f32.mxu0 0.0
        %4600 = vmatmul.mubr.f32.gmra.mrb[0].mxu0 %v4485
        %v4601 = vpop.f32.mrb[0].mxu0
        %v4602 = vadd.f32 0.0, %v4601
        %v4603 = vpop.f32.mrb[0].mxu0
        %4604 = vmatprep.mubr.f32.mxu0 0.0
        %4605 = vmatmul.mubr.f32.gmra.mrb[0].mxu0 %v4488
        %v4606 = vpop.f32.mrb[0].mxu0
        %v4607 = vadd.f32 0.0, %v4606
        %v4608 = vpop.f32.mrb[0].mxu0
        %4609 = vmatprep.mubr.f32.mxu0 0.0
        %4610 = vmatmul.mubr.f32.gmra.mrb[0].mxu0 %v4491
        %v4611 = vpop.f32.mrb[0].mxu0
        %v4612 = vadd.f32 0.0, %v4611
        %v4613 = vpop.f32.mrb[0].mxu0
        %4614 = vmatprep.mubr.f32.mxu0 0.0
        %4615 = vmatmul.mubr.f32.gmra.mrb[0].mxu0 %v4494
        %v4616 = vpop.f32.mrb[0].mxu0
        %v4617 = vadd.f32 0.0, %v4616
        %v4618 = vpop.f32.mrb[0].mxu0
        %4619 = vmatprep.mubr.f32.mxu0 0.0
        %4620 = vmatmul.mubr.f32.gmra.mrb[0].mxu0 %v4497
        %v4621 = vpop.f32.mrb[0].mxu0
        %v4622 = vadd.f32 0.0, %v4621
        %v4623 = vpop.f32.mrb[0].mxu0
        %4624 = vmatprep.mubr.f32.mxu0 0.0
        %4625 = vmatmul.mubr.f32.gmra.mrb[0].mxu0 %v4500
        %v4626 = vpop.f32.mrb[0].mxu0
        %v4627 = vadd.f32 0.0, %v4626
        %v4628 = vpop.f32.mrb[0].mxu0
        %4629 = vdwg.mxu0
        %v4630 = vadd.f32 %v4441, %v4572
        %v4631 = vadd.f32 %v4442, %v4577
        %v4632 = vadd.f32 %v4443, %v4582
        %v4633 = vadd.f32 %v4444, %v4587
        %v4634 = vadd.f32 %v4445, %v4592
        %v4635 = vadd.f32 %v4446, %v4597
        %v4636 = vadd.f32 %v4447, %v4602
        %v4637 = vadd.f32 %v4448, %v4607
        %v4638 = vadd.f32 %v4449, %v4612
        %v4639 = vadd.f32 %v4450, %v4617
        %v4640 = vadd.f32 %v4451, %v4622
        %v4641 = vadd.f32 %v4452, %v4627
        %v4642 = vld [vmem:[#allocation3 + $0x26] sm:$0xff]
        %v4643 = vld [vmem:[#allocation3 + $0x2e] sm:$0xff]
        %v4644 = vld [vmem:[#allocation3 + $0x36] sm:$0xff]
        %v4645 = vld [vmem:[#allocation3 + $0x3e] sm:$0xff]
        %v4646 = vld [vmem:[#allocation3 + $0x46] sm:$0xff]
        %v4647 = vld [vmem:[#allocation3 + $0x4e] sm:$0xff]
        %v4648 = vld [vmem:[#allocation3 + $0x56] sm:$0xff]
        %v4649 = vld [vmem:[#allocation3 + $0x5e] sm:$0xff]
        %v4650 = vld [vmem:[#allocation3 + $0x66] sm:$0xff]
        %v4651 = vld [vmem:[#allocation3 + $0x6e] sm:$0xff]
        %v4652 = vld [vmem:[#allocation3 + $0x76] sm:$0xff]
        %v4653 = vld [vmem:[#allocation3 + $0x7e] sm:$0xf]
        %4654 = vrot.lane.b32.xlu0 %v4465, 112
        %v4655 = vpop.permute.xlu0 %4654
        %v4657 = vsel %vm1401, %v4642, 0
        %v4660 = vsel %vm1401, %v4643, 0
        %v4663 = vsel %vm1401, %v4644, 0
        %v4666 = vsel %vm1401, %v4645, 0
        %v4669 = vsel %vm1401, %v4646, 0
        %v4672 = vsel %vm1401, %v4647, 0
        %v4675 = vsel %vm1401, %v4648, 0
        %v4678 = vsel %vm1401, %v4649, 0
        %v4681 = vsel %vm1401, %v4650, 0
        %v4684 = vsel %vm1401, %v4651, 0
        %v4687 = vsel %vm1401, %v4652, 0
        %v4690 = vsel %vm1401, %v4653, 0
        %v4692 = vsel %vm1477, %v4655, 0
        %4694 = vmatprep.subr.mxu0 0.0
        %4695 = vmatpush1.msra.mxu0 %v4692
        %4696 = vmatprep.subr.mxu0 0.0
        %4697 = vmatpush1.msra.mxu0 0.0
        %4698 = vmatprep.subr.mxu0 0.0
        %4699 = vmatpush1.msra.mxu0 0.0
        %4700 = vmatprep.subr.mxu0 0.0
        %4701 = vmatpush1.msra.mxu0 0.0
        %4702 = vmatprep.subr.mxu0 0.0
        %4703 = vmatpush1.msra.mxu0 0.0
        %4704 = vmatprep.subr.mxu0 0.0
        %4705 = vmatpush1.msra.mxu0 0.0
        %4706 = vmatprep.subr.mxu0 0.0
        %4707 = vmatpush1.msra.mxu0 0.0
        %4708 = vmatprep.subr.mxu0 0.0
        %4709 = vmatpush1.msra.mxu0 0.0
        %4710 = vmatprep.subr.mxu0 0.0
        %4711 = vmatpush1.msra.mxu0 0.0
        %4712 = vmatprep.subr.mxu0 0.0
        %4713 = vmatpush1.msra.mxu0 0.0
        %4714 = vmatprep.subr.mxu0 0.0
        %4715 = vmatpush1.msra.mxu0 0.0
        %4716 = vmatprep.subr.mxu0 0.0
        %4717 = vmatpush1.msra.mxu0 0.0
        %4718 = vmatprep.subr.mxu0 0.0
        %4719 = vmatpush1.msra.mxu0 0.0
        %4720 = vmatprep.subr.mxu0 0.0
        %4721 = vmatpush1.msra.mxu0 0.0
        %4722 = vmatprep.subr.mxu0 0.0
        %4723 = vmatpush1.msra.mxu0 0.0
        %4724 = vmatprep.subr.mxu0 0.0
        %4725 = vmatpush1.msra.mxu0 0.0
        %4726 = vmatprep.subr.mxu0 0.0
        %4727 = vmatpush1.msra.mxu0 0.0
        %4728 = vmatprep.subr.mxu0 0.0
        %4729 = vmatpush1.msra.mxu0 0.0
        %4730 = vmatprep.subr.mxu0 0.0
        %4731 = vmatpush1.msra.mxu0 0.0
        %4732 = vmatprep.subr.mxu0 0.0
        %4733 = vmatpush1.msra.mxu0 0.0
        %4734 = vmatprep.subr.mxu0 0.0
        %4735 = vmatpush1.msra.mxu0 0.0
        %4736 = vmatprep.subr.mxu0 0.0
        %4737 = vmatpush1.msra.mxu0 0.0
        %4738 = vmatprep.subr.mxu0 0.0
        %4739 = vmatpush1.msra.mxu0 0.0
        %4740 = vmatprep.subr.mxu0 0.0
        %4741 = vmatpush1.msra.mxu0 0.0
        %4742 = vmatprep.subr.mxu0 0.0
        %4743 = vmatpush1.msra.mxu0 0.0
        %4744 = vmatprep.subr.mxu0 0.0
        %4745 = vmatpush1.msra.mxu0 0.0
        %4746 = vmatprep.subr.mxu0 0.0
        %4747 = vmatpush1.msra.mxu0 0.0
        %4748 = vmatprep.subr.mxu0 0.0
        %4749 = vmatpush1.msra.mxu0 0.0
        %4750 = vmatprep.subr.mxu0 0.0
        %4751 = vmatpush1.msra.mxu0 0.0
        %4752 = vmatprep.subr.mxu0 0.0
        %4753 = vmatpush1.msra.mxu0 0.0
        %4754 = vmatprep.subr.mxu0 0.0
        %4755 = vmatpush1.msra.mxu0 0.0
        %4756 = vmatprep.subr.mxu0 0.0
        %4757 = vmatpush1.msra.mxu0 0.0
        %4758 = vmatprep.mubr.f32.mxu0 0.0
        %4759 = vmatmul.mubr.f32.gmra.mrb[0].mxu0 %v4657
        %v4760 = vpop.f32.mrb[0].mxu0
        %v4761 = vadd.f32 0.0, %v4760
        %v4762 = vpop.f32.mrb[0].mxu0
        %4763 = vmatprep.mubr.f32.mxu0 0.0
        %4764 = vmatmul.mubr.f32.gmra.mrb[0].mxu0 %v4660
        %v4765 = vpop.f32.mrb[0].mxu0
        %v4766 = vadd.f32 0.0, %v4765
        %v4767 = vpop.f32.mrb[0].mxu0
        %4768 = vmatprep.mubr.f32.mxu0 0.0
        %4769 = vmatmul.mubr.f32.gmra.mrb[0].mxu0 %v4663
        %v4770 = vpop.f32.mrb[0].mxu0
        %v4771 = vadd.f32 0.0, %v4770
        %v4772 = vpop.f32.mrb[0].mxu0
        %4773 = vmatprep.mubr.f32.mxu0 0.0
        %4774 = vmatmul.mubr.f32.gmra.mrb[0].mxu0 %v4666
        %v4775 = vpop.f32.mrb[0].mxu0
        %v4776 = vadd.f32 0.0, %v4775
        %v4777 = vpop.f32.mrb[0].mxu0
        %4778 = vmatprep.mubr.f32.mxu0 0.0
        %4779 = vmatmul.mubr.f32.gmra.mrb[0].mxu0 %v4669
        %v4780 = vpop.f32.mrb[0].mxu0
        %v4781 = vadd.f32 0.0, %v4780
        %v4782 = vpop.f32.mrb[0].mxu0
        %4783 = vmatprep.mubr.f32.mxu0 0.0
        %4784 = vmatmul.mubr.f32.gmra.mrb[0].mxu0 %v4672
        %v4785 = vpop.f32.mrb[0].mxu0
        %v4786 = vadd.f32 0.0, %v4785
        %v4787 = vpop.f32.mrb[0].mxu0
        %4788 = vmatprep.mubr.f32.mxu0 0.0
        %4789 = vmatmul.mubr.f32.gmra.mrb[0].mxu0 %v4675
        %v4790 = vpop.f32.mrb[0].mxu0
        %v4791 = vadd.f32 0.0, %v4790
        %v4792 = vpop.f32.mrb[0].mxu0
        %4793 = vmatprep.mubr.f32.mxu0 0.0
        %4794 = vmatmul.mubr.f32.gmra.mrb[0].mxu0 %v4678
        %v4795 = vpop.f32.mrb[0].mxu0
        %v4796 = vadd.f32 0.0, %v4795
        %v4797 = vpop.f32.mrb[0].mxu0
        %4798 = vmatprep.mubr.f32.mxu0 0.0
        %4799 = vmatmul.mubr.f32.gmra.mrb[0].mxu0 %v4681
        %v4800 = vpop.f32.mrb[0].mxu0
        %v4801 = vadd.f32 0.0, %v4800
        %v4802 = vpop.f32.mrb[0].mxu0
        %4803 = vmatprep.mubr.f32.mxu0 0.0
        %4804 = vmatmul.mubr.f32.gmra.mrb[0].mxu0 %v4684
        %v4805 = vpop.f32.mrb[0].mxu0
        %v4806 = vadd.f32 0.0, %v4805
        %v4807 = vpop.f32.mrb[0].mxu0
        %4808 = vmatprep.mubr.f32.mxu0 0.0
        %4809 = vmatmul.mubr.f32.gmra.mrb[0].mxu0 %v4687
        %v4810 = vpop.f32.mrb[0].mxu0
        %v4811 = vadd.f32 0.0, %v4810
        %v4812 = vpop.f32.mrb[0].mxu0
        %4813 = vmatprep.mubr.f32.mxu0 0.0
        %4814 = vmatmul.mubr.f32.gmra.mrb[0].mxu0 %v4690
        %v4815 = vpop.f32.mrb[0].mxu0
        %v4816 = vadd.f32 0.0, %v4815
        %v4817 = vpop.f32.mrb[0].mxu0
        %4818 = vdwg.mxu0
        %v4819 = vadd.f32 %v4630, %v4761
        %v4820 = vadd.f32 %v4631, %v4766
        %v4821 = vadd.f32 %v4632, %v4771
        %v4822 = vadd.f32 %v4633, %v4776
        %v4823 = vadd.f32 %v4634, %v4781
        %v4824 = vadd.f32 %v4635, %v4786
        %v4825 = vadd.f32 %v4636, %v4791
        %v4826 = vadd.f32 %v4637, %v4796
        %v4827 = vadd.f32 %v4638, %v4801
        %v4828 = vadd.f32 %v4639, %v4806
        %v4829 = vadd.f32 %v4640, %v4811
        %v4830 = vadd.f32 %v4641, %v4816
        %v4831 = vld [vmem:[#allocation3 + $0x27] sm:$0xff]
        %v4832 = vld [vmem:[#allocation3 + $0x2f] sm:$0xff]
        %v4833 = vld [vmem:[#allocation3 + $0x37] sm:$0xff]
        %v4834 = vld [vmem:[#allocation3 + $0x3f] sm:$0xff]
        %v4835 = vld [vmem:[#allocation3 + $0x47] sm:$0xff]
        %v4836 = vld [vmem:[#allocation3 + $0x4f] sm:$0xff]
        %v4837 = vld [vmem:[#allocation3 + $0x57] sm:$0xff]
        %v4838 = vld [vmem:[#allocation3 + $0x5f] sm:$0xff]
        %v4839 = vld [vmem:[#allocation3 + $0x67] sm:$0xff]
        %v4840 = vld [vmem:[#allocation3 + $0x6f] sm:$0xff]
        %v4841 = vld [vmem:[#allocation3 + $0x77] sm:$0xff]
        %v4842 = vld [vmem:[#allocation3 + $0x7f] sm:$0xf]
        %4843 = vrot.lane.b32.xlu0 %v4465, 96
        %v4844 = vpop.permute.xlu0 %4843
        %v4846 = vsel %vm1401, %v4831, 0
        %v4849 = vsel %vm1401, %v4832, 0
        %v4852 = vsel %vm1401, %v4833, 0
        %v4855 = vsel %vm1401, %v4834, 0
        %v4858 = vsel %vm1401, %v4835, 0
        %v4861 = vsel %vm1401, %v4836, 0
        %v4864 = vsel %vm1401, %v4837, 0
        %v4867 = vsel %vm1401, %v4838, 0
        %v4870 = vsel %vm1401, %v4839, 0
        %v4873 = vsel %vm1401, %v4840, 0
        %v4876 = vsel %vm1401, %v4841, 0
        %v4879 = vsel %vm1401, %v4842, 0
        %v4881 = vsel %vm1477, %v4844, 0
        %4883 = vmatprep.subr.mxu0 0.0
        %4884 = vmatpush1.msra.mxu0 %v4881
        %4885 = vmatprep.subr.mxu0 0.0
        %4886 = vmatpush1.msra.mxu0 0.0
        %4887 = vmatprep.subr.mxu0 0.0
        %4888 = vmatpush1.msra.mxu0 0.0
        %4889 = vmatprep.subr.mxu0 0.0
        %4890 = vmatpush1.msra.mxu0 0.0
        %4891 = vmatprep.subr.mxu0 0.0
        %4892 = vmatpush1.msra.mxu0 0.0
        %4893 = vmatprep.subr.mxu0 0.0
        %4894 = vmatpush1.msra.mxu0 0.0
        %4895 = vmatprep.subr.mxu0 0.0
        %4896 = vmatpush1.msra.mxu0 0.0
        %4897 = vmatprep.subr.mxu0 0.0
        %4898 = vmatpush1.msra.mxu0 0.0
        %4899 = vmatprep.subr.mxu0 0.0
        %4900 = vmatpush1.msra.mxu0 0.0
        %4901 = vmatprep.subr.mxu0 0.0
        %4902 = vmatpush1.msra.mxu0 0.0
        %4903 = vmatprep.subr.mxu0 0.0
        %4904 = vmatpush1.msra.mxu0 0.0
        %4905 = vmatprep.subr.mxu0 0.0
        %4906 = vmatpush1.msra.mxu0 0.0
        %4907 = vmatprep.subr.mxu0 0.0
        %4908 = vmatpush1.msra.mxu0 0.0
        %4909 = vmatprep.subr.mxu0 0.0
        %4910 = vmatpush1.msra.mxu0 0.0
        %4911 = vmatprep.subr.mxu0 0.0
        %4912 = vmatpush1.msra.mxu0 0.0
        %4913 = vmatprep.subr.mxu0 0.0
        %4914 = vmatpush1.msra.mxu0 0.0
        %4915 = vmatprep.subr.mxu0 0.0
        %4916 = vmatpush1.msra.mxu0 0.0
        %4917 = vmatprep.subr.mxu0 0.0
        %4918 = vmatpush1.msra.mxu0 0.0
        %4919 = vmatprep.subr.mxu0 0.0
        %4920 = vmatpush1.msra.mxu0 0.0
        %4921 = vmatprep.subr.mxu0 0.0
        %4922 = vmatpush1.msra.mxu0 0.0
        %4923 = vmatprep.subr.mxu0 0.0
        %4924 = vmatpush1.msra.mxu0 0.0
        %4925 = vmatprep.subr.mxu0 0.0
        %4926 = vmatpush1.msra.mxu0 0.0
        %4927 = vmatprep.subr.mxu0 0.0
        %4928 = vmatpush1.msra.mxu0 0.0
        %4929 = vmatprep.subr.mxu0 0.0
        %4930 = vmatpush1.msra.mxu0 0.0
        %4931 = vmatprep.subr.mxu0 0.0
        %4932 = vmatpush1.msra.mxu0 0.0
        %4933 = vmatprep.subr.mxu0 0.0
        %4934 = vmatpush1.msra.mxu0 0.0
        %4935 = vmatprep.subr.mxu0 0.0
        %4936 = vmatpush1.msra.mxu0 0.0
        %4937 = vmatprep.subr.mxu0 0.0
        %4938 = vmatpush1.msra.mxu0 0.0
        %4939 = vmatprep.subr.mxu0 0.0
        %4940 = vmatpush1.msra.mxu0 0.0
        %4941 = vmatprep.subr.mxu0 0.0
        %4942 = vmatpush1.msra.mxu0 0.0
        %4943 = vmatprep.subr.mxu0 0.0
        %4944 = vmatpush1.msra.mxu0 0.0
        %4945 = vmatprep.subr.mxu0 0.0
        %4946 = vmatpush1.msra.mxu0 0.0
        %4947 = vmatprep.mubr.f32.mxu0 0.0
        %4948 = vmatmul.mubr.f32.gmra.mrb[0].mxu0 %v4846
        %v4949 = vpop.f32.mrb[0].mxu0
        %v4950 = vadd.f32 0.0, %v4949
        %v4951 = vpop.f32.mrb[0].mxu0
        %4952 = vmatprep.mubr.f32.mxu0 0.0
        %4953 = vmatmul.mubr.f32.gmra.mrb[0].mxu0 %v4849
        %v4954 = vpop.f32.mrb[0].mxu0
        %v4955 = vadd.f32 0.0, %v4954
        %v4956 = vpop.f32.mrb[0].mxu0
        %4957 = vmatprep.mubr.f32.mxu0 0.0
        %4958 = vmatmul.mubr.f32.gmra.mrb[0].mxu0 %v4852
        %v4959 = vpop.f32.mrb[0].mxu0
        %v4960 = vadd.f32 0.0, %v4959
        %v4961 = vpop.f32.mrb[0].mxu0
        %4962 = vmatprep.mubr.f32.mxu0 0.0
        %4963 = vmatmul.mubr.f32.gmra.mrb[0].mxu0 %v4855
        %v4964 = vpop.f32.mrb[0].mxu0
        %v4965 = vadd.f32 0.0, %v4964
        %v4966 = vpop.f32.mrb[0].mxu0
        %4967 = vmatprep.mubr.f32.mxu0 0.0
        %4968 = vmatmul.mubr.f32.gmra.mrb[0].mxu0 %v4858
        %v4969 = vpop.f32.mrb[0].mxu0
        %v4970 = vadd.f32 0.0, %v4969
        %v4971 = vpop.f32.mrb[0].mxu0
        %4972 = vmatprep.mubr.f32.mxu0 0.0
        %4973 = vmatmul.mubr.f32.gmra.mrb[0].mxu0 %v4861
        %v4974 = vpop.f32.mrb[0].mxu0
        %v4975 = vadd.f32 0.0, %v4974
        %v4976 = vpop.f32.mrb[0].mxu0
        %4977 = vmatprep.mubr.f32.mxu0 0.0
        %4978 = vmatmul.mubr.f32.gmra.mrb[0].mxu0 %v4864
        %v4979 = vpop.f32.mrb[0].mxu0
        %v4980 = vadd.f32 0.0, %v4979
        %v4981 = vpop.f32.mrb[0].mxu0
        %4982 = vmatprep.mubr.f32.mxu0 0.0
        %4983 = vmatmul.mubr.f32.gmra.mrb[0].mxu0 %v4867
        %v4984 = vpop.f32.mrb[0].mxu0
        %v4985 = vadd.f32 0.0, %v4984
        %v4986 = vpop.f32.mrb[0].mxu0
        %4987 = vmatprep.mubr.f32.mxu0 0.0
        %4988 = vmatmul.mubr.f32.gmra.mrb[0].mxu0 %v4870
        %v4989 = vpop.f32.mrb[0].mxu0
        %v4990 = vadd.f32 0.0, %v4989
        %v4991 = vpop.f32.mrb[0].mxu0
        %4992 = vmatprep.mubr.f32.mxu0 0.0
        %4993 = vmatmul.mubr.f32.gmra.mrb[0].mxu0 %v4873
        %v4994 = vpop.f32.mrb[0].mxu0
        %v4995 = vadd.f32 0.0, %v4994
        %v4996 = vpop.f32.mrb[0].mxu0
        %4997 = vmatprep.mubr.f32.mxu0 0.0
        %4998 = vmatmul.mubr.f32.gmra.mrb[0].mxu0 %v4876
        %v4999 = vpop.f32.mrb[0].mxu0
        %v5000 = vadd.f32 0.0, %v4999
        %v5001 = vpop.f32.mrb[0].mxu0
        %5002 = vmatprep.mubr.f32.mxu0 0.0
        %5003 = vmatmul.mubr.f32.gmra.mrb[0].mxu0 %v4879
        %v5004 = vpop.f32.mrb[0].mxu0
        %v5005 = vadd.f32 0.0, %v5004
        %v5006 = vpop.f32.mrb[0].mxu0
        %5007 = vdwg.mxu0
        %v5008 = vadd.f32 %v4819, %v4950
        %v5009 = vadd.f32 %v4820, %v4955
        %v5010 = vadd.f32 %v4821, %v4960
        %v5011 = vadd.f32 %v4822, %v4965
        %v5012 = vadd.f32 %v4823, %v4970
        %v5013 = vadd.f32 %v4824, %v4975
        %v5014 = vadd.f32 %v4825, %v4980
        %v5015 = vadd.f32 %v4826, %v4985
        %v5016 = vadd.f32 %v4827, %v4990
        %v5017 = vadd.f32 %v4828, %v4995
        %v5018 = vadd.f32 %v4829, %v5000
        %v5019 = vadd.f32 %v4830, %v5005
        %v5020 = vld [vmem:[#allocation3 + $0x28] sm:$0xff]
        %v5021 = vld [vmem:[#allocation3 + $0x30] sm:$0xff]
        %v5022 = vld [vmem:[#allocation3 + $0x38] sm:$0xff]
        %v5023 = vld [vmem:[#allocation3 + $0x40] sm:$0xff]
        %v5024 = vld [vmem:[#allocation3 + $0x48] sm:$0xff]
        %v5025 = vld [vmem:[#allocation3 + $0x50] sm:$0xff]
        %v5026 = vld [vmem:[#allocation3 + $0x58] sm:$0xff]
        %v5027 = vld [vmem:[#allocation3 + $0x60] sm:$0xff]
        %v5028 = vld [vmem:[#allocation3 + $0x68] sm:$0xff]
        %v5029 = vld [vmem:[#allocation3 + $0x70] sm:$0xff]
        %v5030 = vld [vmem:[#allocation3 + $0x78] sm:$0xff]
        %v5031 = vld [vmem:[#allocation3 + $0x80] sm:$0xf]
        %5032 = vrot.lane.b32.xlu0 %v4465, 80
        %v5033 = vpop.permute.xlu0 %5032
        %v5035 = vsel %vm1401, %v5020, 0
        %v5038 = vsel %vm1401, %v5021, 0
        %v5041 = vsel %vm1401, %v5022, 0
        %v5044 = vsel %vm1401, %v5023, 0
        %v5047 = vsel %vm1401, %v5024, 0
        %v5050 = vsel %vm1401, %v5025, 0
        %v5053 = vsel %vm1401, %v5026, 0
        %v5056 = vsel %vm1401, %v5027, 0
        %v5059 = vsel %vm1401, %v5028, 0
        %v5062 = vsel %vm1401, %v5029, 0
        %v5065 = vsel %vm1401, %v5030, 0
        %v5068 = vsel %vm1401, %v5031, 0
        %v5070 = vsel %vm1477, %v5033, 0
        %5072 = vmatprep.subr.mxu0 0.0
        %5073 = vmatpush1.msra.mxu0 %v5070
        %5074 = vmatprep.subr.mxu0 0.0
        %5075 = vmatpush1.msra.mxu0 0.0
        %5076 = vmatprep.subr.mxu0 0.0
        %5077 = vmatpush1.msra.mxu0 0.0
        %5078 = vmatprep.subr.mxu0 0.0
        %5079 = vmatpush1.msra.mxu0 0.0
        %5080 = vmatprep.subr.mxu0 0.0
        %5081 = vmatpush1.msra.mxu0 0.0
        %5082 = vmatprep.subr.mxu0 0.0
        %5083 = vmatpush1.msra.mxu0 0.0
        %5084 = vmatprep.subr.mxu0 0.0
        %5085 = vmatpush1.msra.mxu0 0.0
        %5086 = vmatprep.subr.mxu0 0.0
        %5087 = vmatpush1.msra.mxu0 0.0
        %5088 = vmatprep.subr.mxu0 0.0
        %5089 = vmatpush1.msra.mxu0 0.0
        %5090 = vmatprep.subr.mxu0 0.0
        %5091 = vmatpush1.msra.mxu0 0.0
        %5092 = vmatprep.subr.mxu0 0.0
        %5093 = vmatpush1.msra.mxu0 0.0
        %5094 = vmatprep.subr.mxu0 0.0
        %5095 = vmatpush1.msra.mxu0 0.0
        %5096 = vmatprep.subr.mxu0 0.0
        %5097 = vmatpush1.msra.mxu0 0.0
        %5098 = vmatprep.subr.mxu0 0.0
        %5099 = vmatpush1.msra.mxu0 0.0
        %5100 = vmatprep.subr.mxu0 0.0
        %5101 = vmatpush1.msra.mxu0 0.0
        %5102 = vmatprep.subr.mxu0 0.0
        %5103 = vmatpush1.msra.mxu0 0.0
        %5104 = vmatprep.subr.mxu0 0.0
        %5105 = vmatpush1.msra.mxu0 0.0
        %5106 = vmatprep.subr.mxu0 0.0
        %5107 = vmatpush1.msra.mxu0 0.0
        %5108 = vmatprep.subr.mxu0 0.0
        %5109 = vmatpush1.msra.mxu0 0.0
        %5110 = vmatprep.subr.mxu0 0.0
        %5111 = vmatpush1.msra.mxu0 0.0
        %5112 = vmatprep.subr.mxu0 0.0
        %5113 = vmatpush1.msra.mxu0 0.0
        %5114 = vmatprep.subr.mxu0 0.0
        %5115 = vmatpush1.msra.mxu0 0.0
        %5116 = vmatprep.subr.mxu0 0.0
        %5117 = vmatpush1.msra.mxu0 0.0
        %5118 = vmatprep.subr.mxu0 0.0
        %5119 = vmatpush1.msra.mxu0 0.0
        %5120 = vmatprep.subr.mxu0 0.0
        %5121 = vmatpush1.msra.mxu0 0.0
        %5122 = vmatprep.subr.mxu0 0.0
        %5123 = vmatpush1.msra.mxu0 0.0
        %5124 = vmatprep.subr.mxu0 0.0
        %5125 = vmatpush1.msra.mxu0 0.0
        %5126 = vmatprep.subr.mxu0 0.0
        %5127 = vmatpush1.msra.mxu0 0.0
        %5128 = vmatprep.subr.mxu0 0.0
        %5129 = vmatpush1.msra.mxu0 0.0
        %5130 = vmatprep.subr.mxu0 0.0
        %5131 = vmatpush1.msra.mxu0 0.0
        %5132 = vmatprep.subr.mxu0 0.0
        %5133 = vmatpush1.msra.mxu0 0.0
        %5134 = vmatprep.subr.mxu0 0.0
        %5135 = vmatpush1.msra.mxu0 0.0
        %5136 = vmatprep.mubr.f32.mxu0 0.0
        %5137 = vmatmul.mubr.f32.gmra.mrb[0].mxu0 %v5035
        %v5138 = vpop.f32.mrb[0].mxu0
        %v5139 = vadd.f32 0.0, %v5138
        %v5140 = vpop.f32.mrb[0].mxu0
        %5141 = vmatprep.mubr.f32.mxu0 0.0
        %5142 = vmatmul.mubr.f32.gmra.mrb[0].mxu0 %v5038
        %v5143 = vpop.f32.mrb[0].mxu0
        %v5144 = vadd.f32 0.0, %v5143
        %v5145 = vpop.f32.mrb[0].mxu0
        %5146 = vmatprep.mubr.f32.mxu0 0.0
        %5147 = vmatmul.mubr.f32.gmra.mrb[0].mxu0 %v5041
        %v5148 = vpop.f32.mrb[0].mxu0
        %v5149 = vadd.f32 0.0, %v5148
        %v5150 = vpop.f32.mrb[0].mxu0
        %5151 = vmatprep.mubr.f32.mxu0 0.0
        %5152 = vmatmul.mubr.f32.gmra.mrb[0].mxu0 %v5044
        %v5153 = vpop.f32.mrb[0].mxu0
        %v5154 = vadd.f32 0.0, %v5153
        %v5155 = vpop.f32.mrb[0].mxu0
        %5156 = vmatprep.mubr.f32.mxu0 0.0
        %5157 = vmatmul.mubr.f32.gmra.mrb[0].mxu0 %v5047
        %v5158 = vpop.f32.mrb[0].mxu0
        %v5159 = vadd.f32 0.0, %v5158
        %v5160 = vpop.f32.mrb[0].mxu0
        %5161 = vmatprep.mubr.f32.mxu0 0.0
        %5162 = vmatmul.mubr.f32.gmra.mrb[0].mxu0 %v5050
        %v5163 = vpop.f32.mrb[0].mxu0
        %v5164 = vadd.f32 0.0, %v5163
        %v5165 = vpop.f32.mrb[0].mxu0
        %5166 = vmatprep.mubr.f32.mxu0 0.0
        %5167 = vmatmul.mubr.f32.gmra.mrb[0].mxu0 %v5053
        %v5168 = vpop.f32.mrb[0].mxu0
        %v5169 = vadd.f32 0.0, %v5168
        %v5170 = vpop.f32.mrb[0].mxu0
        %5171 = vmatprep.mubr.f32.mxu0 0.0
        %5172 = vmatmul.mubr.f32.gmra.mrb[0].mxu0 %v5056
        %v5173 = vpop.f32.mrb[0].mxu0
        %v5174 = vadd.f32 0.0, %v5173
        %v5175 = vpop.f32.mrb[0].mxu0
        %5176 = vmatprep.mubr.f32.mxu0 0.0
        %5177 = vmatmul.mubr.f32.gmra.mrb[0].mxu0 %v5059
        %v5178 = vpop.f32.mrb[0].mxu0
        %v5179 = vadd.f32 0.0, %v5178
        %v5180 = vpop.f32.mrb[0].mxu0
        %5181 = vmatprep.mubr.f32.mxu0 0.0
        %5182 = vmatmul.mubr.f32.gmra.mrb[0].mxu0 %v5062
        %v5183 = vpop.f32.mrb[0].mxu0
        %v5184 = vadd.f32 0.0, %v5183
        %v5185 = vpop.f32.mrb[0].mxu0
        %5186 = vmatprep.mubr.f32.mxu0 0.0
        %5187 = vmatmul.mubr.f32.gmra.mrb[0].mxu0 %v5065
        %v5188 = vpop.f32.mrb[0].mxu0
        %v5189 = vadd.f32 0.0, %v5188
        %v5190 = vpop.f32.mrb[0].mxu0
        %5191 = vmatprep.mubr.f32.mxu0 0.0
        %5192 = vmatmul.mubr.f32.gmra.mrb[0].mxu0 %v5068
        %v5193 = vpop.f32.mrb[0].mxu0
        %v5194 = vadd.f32 0.0, %v5193
        %v5195 = vpop.f32.mrb[0].mxu0
        %5196 = vdwg.mxu0
        %v5197 = vadd.f32 %v5008, %v5139
        %v5198 = vadd.f32 %v5009, %v5144
        %v5199 = vadd.f32 %v5010, %v5149
        %v5200 = vadd.f32 %v5011, %v5154
        %v5201 = vadd.f32 %v5012, %v5159
        %v5202 = vadd.f32 %v5013, %v5164
        %v5203 = vadd.f32 %v5014, %v5169
        %v5204 = vadd.f32 %v5015, %v5174
        %v5205 = vadd.f32 %v5016, %v5179
        %v5206 = vadd.f32 %v5017, %v5184
        %v5207 = vadd.f32 %v5018, %v5189
        %v5208 = vadd.f32 %v5019, %v5194
        %v5209 = vld [vmem:[#allocation3 + $0x30] sm:$0xff]
        %v5210 = vld [vmem:[#allocation3 + $0x38] sm:$0xff]
        %v5211 = vld [vmem:[#allocation3 + $0x40] sm:$0xff]
        %v5212 = vld [vmem:[#allocation3 + $0x48] sm:$0xff]
        %v5213 = vld [vmem:[#allocation3 + $0x50] sm:$0xff]
        %v5214 = vld [vmem:[#allocation3 + $0x58] sm:$0xff]
        %v5215 = vld [vmem:[#allocation3 + $0x60] sm:$0xff]
        %v5216 = vld [vmem:[#allocation3 + $0x68] sm:$0xff]
        %v5217 = vld [vmem:[#allocation3 + $0x70] sm:$0xff]
        %v5218 = vld [vmem:[#allocation3 + $0x78] sm:$0xff]
        %v5219 = vld [vmem:[#allocation3 + $0x80] sm:$0xff]
        %v5220 = vld [vmem:[#allocation3 + $0x88] sm:$0xf]
        %5221 = vrot.lane.b32.xlu0 %v4465, 64
        %v5222 = vpop.permute.xlu0 %5221
        %v5224 = vsel %vm1401, %v5209, 0
        %v5227 = vsel %vm1401, %v5210, 0
        %v5230 = vsel %vm1401, %v5211, 0
        %v5233 = vsel %vm1401, %v5212, 0
        %v5236 = vsel %vm1401, %v5213, 0
        %v5239 = vsel %vm1401, %v5214, 0
        %v5242 = vsel %vm1401, %v5215, 0
        %v5245 = vsel %vm1401, %v5216, 0
        %v5248 = vsel %vm1401, %v5217, 0
        %v5251 = vsel %vm1401, %v5218, 0
        %v5254 = vsel %vm1401, %v5219, 0
        %v5257 = vsel %vm1401, %v5220, 0
        %v5259 = vsel %vm1477, %v5222, 0
        %5261 = vmatprep.subr.mxu0 0.0
        %5262 = vmatpush1.msra.mxu0 %v5259
        %5263 = vmatprep.subr.mxu0 0.0
        %5264 = vmatpush1.msra.mxu0 0.0
        %5265 = vmatprep.subr.mxu0 0.0
        %5266 = vmatpush1.msra.mxu0 0.0
        %5267 = vmatprep.subr.mxu0 0.0
        %5268 = vmatpush1.msra.mxu0 0.0
        %5269 = vmatprep.subr.mxu0 0.0
        %5270 = vmatpush1.msra.mxu0 0.0
        %5271 = vmatprep.subr.mxu0 0.0
        %5272 = vmatpush1.msra.mxu0 0.0
        %5273 = vmatprep.subr.mxu0 0.0
        %5274 = vmatpush1.msra.mxu0 0.0
        %5275 = vmatprep.subr.mxu0 0.0
        %5276 = vmatpush1.msra.mxu0 0.0
        %5277 = vmatprep.subr.mxu0 0.0
        %5278 = vmatpush1.msra.mxu0 0.0
        %5279 = vmatprep.subr.mxu0 0.0
        %5280 = vmatpush1.msra.mxu0 0.0
        %5281 = vmatprep.subr.mxu0 0.0
        %5282 = vmatpush1.msra.mxu0 0.0
        %5283 = vmatprep.subr.mxu0 0.0
        %5284 = vmatpush1.msra.mxu0 0.0
        %5285 = vmatprep.subr.mxu0 0.0
        %5286 = vmatpush1.msra.mxu0 0.0
        %5287 = vmatprep.subr.mxu0 0.0
        %5288 = vmatpush1.msra.mxu0 0.0
        %5289 = vmatprep.subr.mxu0 0.0
        %5290 = vmatpush1.msra.mxu0 0.0
        %5291 = vmatprep.subr.mxu0 0.0
        %5292 = vmatpush1.msra.mxu0 0.0
        %5293 = vmatprep.subr.mxu0 0.0
        %5294 = vmatpush1.msra.mxu0 0.0
        %5295 = vmatprep.subr.mxu0 0.0
        %5296 = vmatpush1.msra.mxu0 0.0
        %5297 = vmatprep.subr.mxu0 0.0
        %5298 = vmatpush1.msra.mxu0 0.0
        %5299 = vmatprep.subr.mxu0 0.0
        %5300 = vmatpush1.msra.mxu0 0.0
        %5301 = vmatprep.subr.mxu0 0.0
        %5302 = vmatpush1.msra.mxu0 0.0
        %5303 = vmatprep.subr.mxu0 0.0
        %5304 = vmatpush1.msra.mxu0 0.0
        %5305 = vmatprep.subr.mxu0 0.0
        %5306 = vmatpush1.msra.mxu0 0.0
        %5307 = vmatprep.subr.mxu0 0.0
        %5308 = vmatpush1.msra.mxu0 0.0
        %5309 = vmatprep.subr.mxu0 0.0
        %5310 = vmatpush1.msra.mxu0 0.0
        %5311 = vmatprep.subr.mxu0 0.0
        %5312 = vmatpush1.msra.mxu0 0.0
        %5313 = vmatprep.subr.mxu0 0.0
        %5314 = vmatpush1.msra.mxu0 0.0
        %5315 = vmatprep.subr.mxu0 0.0
        %5316 = vmatpush1.msra.mxu0 0.0
        %5317 = vmatprep.subr.mxu0 0.0
        %5318 = vmatpush1.msra.mxu0 0.0
        %5319 = vmatprep.subr.mxu0 0.0
        %5320 = vmatpush1.msra.mxu0 0.0
        %5321 = vmatprep.subr.mxu0 0.0
        %5322 = vmatpush1.msra.mxu0 0.0
        %5323 = vmatprep.subr.mxu0 0.0
        %5324 = vmatpush1.msra.mxu0 0.0
        %5325 = vmatprep.mubr.f32.mxu0 0.0
        %5326 = vmatmul.mubr.f32.gmra.mrb[0].mxu0 %v5224
        %v5327 = vpop.f32.mrb[0].mxu0
        %v5328 = vadd.f32 0.0, %v5327
        %v5329 = vpop.f32.mrb[0].mxu0
        %5330 = vmatprep.mubr.f32.mxu0 0.0
        %5331 = vmatmul.mubr.f32.gmra.mrb[0].mxu0 %v5227
        %v5332 = vpop.f32.mrb[0].mxu0
        %v5333 = vadd.f32 0.0, %v5332
        %v5334 = vpop.f32.mrb[0].mxu0
        %5335 = vmatprep.mubr.f32.mxu0 0.0
        %5336 = vmatmul.mubr.f32.gmra.mrb[0].mxu0 %v5230
        %v5337 = vpop.f32.mrb[0].mxu0
        %v5338 = vadd.f32 0.0, %v5337
        %v5339 = vpop.f32.mrb[0].mxu0
        %5340 = vmatprep.mubr.f32.mxu0 0.0
        %5341 = vmatmul.mubr.f32.gmra.mrb[0].mxu0 %v5233
        %v5342 = vpop.f32.mrb[0].mxu0
        %v5343 = vadd.f32 0.0, %v5342
        %v5344 = vpop.f32.mrb[0].mxu0
        %5345 = vmatprep.mubr.f32.mxu0 0.0
        %5346 = vmatmul.mubr.f32.gmra.mrb[0].mxu0 %v5236
        %v5347 = vpop.f32.mrb[0].mxu0
        %v5348 = vadd.f32 0.0, %v5347
        %v5349 = vpop.f32.mrb[0].mxu0
        %5350 = vmatprep.mubr.f32.mxu0 0.0
        %5351 = vmatmul.mubr.f32.gmra.mrb[0].mxu0 %v5239
        %v5352 = vpop.f32.mrb[0].mxu0
        %v5353 = vadd.f32 0.0, %v5352
        %v5354 = vpop.f32.mrb[0].mxu0
        %5355 = vmatprep.mubr.f32.mxu0 0.0
        %5356 = vmatmul.mubr.f32.gmra.mrb[0].mxu0 %v5242
        %v5357 = vpop.f32.mrb[0].mxu0
        %v5358 = vadd.f32 0.0, %v5357
        %v5359 = vpop.f32.mrb[0].mxu0
        %5360 = vmatprep.mubr.f32.mxu0 0.0
        %5361 = vmatmul.mubr.f32.gmra.mrb[0].mxu0 %v5245
        %v5362 = vpop.f32.mrb[0].mxu0
        %v5363 = vadd.f32 0.0, %v5362
        %v5364 = vpop.f32.mrb[0].mxu0
        %5365 = vmatprep.mubr.f32.mxu0 0.0
        %5366 = vmatmul.mubr.f32.gmra.mrb[0].mxu0 %v5248
        %v5367 = vpop.f32.mrb[0].mxu0
        %v5368 = vadd.f32 0.0, %v5367
        %v5369 = vpop.f32.mrb[0].mxu0
        %5370 = vmatprep.mubr.f32.mxu0 0.0
        %5371 = vmatmul.mubr.f32.gmra.mrb[0].mxu0 %v5251
        %v5372 = vpop.f32.mrb[0].mxu0
        %v5373 = vadd.f32 0.0, %v5372
        %v5374 = vpop.f32.mrb[0].mxu0
        %5375 = vmatprep.mubr.f32.mxu0 0.0
        %5376 = vmatmul.mubr.f32.gmra.mrb[0].mxu0 %v5254
        %v5377 = vpop.f32.mrb[0].mxu0
        %v5378 = vadd.f32 0.0, %v5377
        %v5379 = vpop.f32.mrb[0].mxu0
        %5380 = vmatprep.mubr.f32.mxu0 0.0
        %5381 = vmatmul.mubr.f32.gmra.mrb[0].mxu0 %v5257
        %v5382 = vpop.f32.mrb[0].mxu0
        %v5383 = vadd.f32 0.0, %v5382
        %v5384 = vpop.f32.mrb[0].mxu0
        %5385 = vdwg.mxu0
        %v5386 = vadd.f32 %v5197, %v5328
        %v5387 = vadd.f32 %v5198, %v5333
        %v5388 = vadd.f32 %v5199, %v5338
        %v5389 = vadd.f32 %v5200, %v5343
        %v5390 = vadd.f32 %v5201, %v5348
        %v5391 = vadd.f32 %v5202, %v5353
        %v5392 = vadd.f32 %v5203, %v5358
        %v5393 = vadd.f32 %v5204, %v5363
        %v5394 = vadd.f32 %v5205, %v5368
        %v5395 = vadd.f32 %v5206, %v5373
        %v5396 = vadd.f32 %v5207, %v5378
        %v5397 = vadd.f32 %v5208, %v5383
        %v5398 = vld [vmem:[#allocation3 + $0x31] sm:$0xff]
        %v5399 = vld [vmem:[#allocation3 + $0x39] sm:$0xff]
        %v5400 = vld [vmem:[#allocation3 + $0x41] sm:$0xff]
        %v5401 = vld [vmem:[#allocation3 + $0x49] sm:$0xff]
        %v5402 = vld [vmem:[#allocation3 + $0x51] sm:$0xff]
        %v5403 = vld [vmem:[#allocation3 + $0x59] sm:$0xff]
        %v5404 = vld [vmem:[#allocation3 + $0x61] sm:$0xff]
        %v5405 = vld [vmem:[#allocation3 + $0x69] sm:$0xff]
        %v5406 = vld [vmem:[#allocation3 + $0x71] sm:$0xff]
        %v5407 = vld [vmem:[#allocation3 + $0x79] sm:$0xff]
        %v5408 = vld [vmem:[#allocation3 + $0x81] sm:$0xff]
        %v5409 = vld [vmem:[#allocation3 + $0x89] sm:$0xf]
        %5410 = vrot.lane.b32.xlu0 %v4465, 48
        %v5411 = vpop.permute.xlu0 %5410
        %v5413 = vsel %vm1401, %v5398, 0
        %v5416 = vsel %vm1401, %v5399, 0
        %v5419 = vsel %vm1401, %v5400, 0
        %v5422 = vsel %vm1401, %v5401, 0
        %v5425 = vsel %vm1401, %v5402, 0
        %v5428 = vsel %vm1401, %v5403, 0
        %v5431 = vsel %vm1401, %v5404, 0
        %v5434 = vsel %vm1401, %v5405, 0
        %v5437 = vsel %vm1401, %v5406, 0
        %v5440 = vsel %vm1401, %v5407, 0
        %v5443 = vsel %vm1401, %v5408, 0
        %v5446 = vsel %vm1401, %v5409, 0
        %v5448 = vsel %vm1477, %v5411, 0
        %5450 = vmatprep.subr.mxu0 0.0
        %5451 = vmatpush1.msra.mxu0 %v5448
        %5452 = vmatprep.subr.mxu0 0.0
        %5453 = vmatpush1.msra.mxu0 0.0
        %5454 = vmatprep.subr.mxu0 0.0
        %5455 = vmatpush1.msra.mxu0 0.0
        %5456 = vmatprep.subr.mxu0 0.0
        %5457 = vmatpush1.msra.mxu0 0.0
        %5458 = vmatprep.subr.mxu0 0.0
        %5459 = vmatpush1.msra.mxu0 0.0
        %5460 = vmatprep.subr.mxu0 0.0
        %5461 = vmatpush1.msra.mxu0 0.0
        %5462 = vmatprep.subr.mxu0 0.0
        %5463 = vmatpush1.msra.mxu0 0.0
        %5464 = vmatprep.subr.mxu0 0.0
        %5465 = vmatpush1.msra.mxu0 0.0
        %5466 = vmatprep.subr.mxu0 0.0
        %5467 = vmatpush1.msra.mxu0 0.0
        %5468 = vmatprep.subr.mxu0 0.0
        %5469 = vmatpush1.msra.mxu0 0.0
        %5470 = vmatprep.subr.mxu0 0.0
        %5471 = vmatpush1.msra.mxu0 0.0
        %5472 = vmatprep.subr.mxu0 0.0
        %5473 = vmatpush1.msra.mxu0 0.0
        %5474 = vmatprep.subr.mxu0 0.0
        %5475 = vmatpush1.msra.mxu0 0.0
        %5476 = vmatprep.subr.mxu0 0.0
        %5477 = vmatpush1.msra.mxu0 0.0
        %5478 = vmatprep.subr.mxu0 0.0
        %5479 = vmatpush1.msra.mxu0 0.0
        %5480 = vmatprep.subr.mxu0 0.0
        %5481 = vmatpush1.msra.mxu0 0.0
        %5482 = vmatprep.subr.mxu0 0.0
        %5483 = vmatpush1.msra.mxu0 0.0
        %5484 = vmatprep.subr.mxu0 0.0
        %5485 = vmatpush1.msra.mxu0 0.0
        %5486 = vmatprep.subr.mxu0 0.0
        %5487 = vmatpush1.msra.mxu0 0.0
        %5488 = vmatprep.subr.mxu0 0.0
        %5489 = vmatpush1.msra.mxu0 0.0
        %5490 = vmatprep.subr.mxu0 0.0
        %5491 = vmatpush1.msra.mxu0 0.0
        %5492 = vmatprep.subr.mxu0 0.0
        %5493 = vmatpush1.msra.mxu0 0.0
        %5494 = vmatprep.subr.mxu0 0.0
        %5495 = vmatpush1.msra.mxu0 0.0
        %5496 = vmatprep.subr.mxu0 0.0
        %5497 = vmatpush1.msra.mxu0 0.0
        %5498 = vmatprep.subr.mxu0 0.0
        %5499 = vmatpush1.msra.mxu0 0.0
        %5500 = vmatprep.subr.mxu0 0.0
        %5501 = vmatpush1.msra.mxu0 0.0
        %5502 = vmatprep.subr.mxu0 0.0
        %5503 = vmatpush1.msra.mxu0 0.0
        %5504 = vmatprep.subr.mxu0 0.0
        %5505 = vmatpush1.msra.mxu0 0.0
        %5506 = vmatprep.subr.mxu0 0.0
        %5507 = vmatpush1.msra.mxu0 0.0
        %5508 = vmatprep.subr.mxu0 0.0
        %5509 = vmatpush1.msra.mxu0 0.0
        %5510 = vmatprep.subr.mxu0 0.0
        %5511 = vmatpush1.msra.mxu0 0.0
        %5512 = vmatprep.subr.mxu0 0.0
        %5513 = vmatpush1.msra.mxu0 0.0
        %5514 = vmatprep.mubr.f32.mxu0 0.0
        %5515 = vmatmul.mubr.f32.gmra.mrb[0].mxu0 %v5413
        %v5516 = vpop.f32.mrb[0].mxu0
        %v5517 = vadd.f32 0.0, %v5516
        %v5518 = vpop.f32.mrb[0].mxu0
        %5519 = vmatprep.mubr.f32.mxu0 0.0
        %5520 = vmatmul.mubr.f32.gmra.mrb[0].mxu0 %v5416
        %v5521 = vpop.f32.mrb[0].mxu0
        %v5522 = vadd.f32 0.0, %v5521
        %v5523 = vpop.f32.mrb[0].mxu0
        %5524 = vmatprep.mubr.f32.mxu0 0.0
        %5525 = vmatmul.mubr.f32.gmra.mrb[0].mxu0 %v5419
        %v5526 = vpop.f32.mrb[0].mxu0
        %v5527 = vadd.f32 0.0, %v5526
        %v5528 = vpop.f32.mrb[0].mxu0
        %5529 = vmatprep.mubr.f32.mxu0 0.0
        %5530 = vmatmul.mubr.f32.gmra.mrb[0].mxu0 %v5422
        %v5531 = vpop.f32.mrb[0].mxu0
        %v5532 = vadd.f32 0.0, %v5531
        %v5533 = vpop.f32.mrb[0].mxu0
        %5534 = vmatprep.mubr.f32.mxu0 0.0
        %5535 = vmatmul.mubr.f32.gmra.mrb[0].mxu0 %v5425
        %v5536 = vpop.f32.mrb[0].mxu0
        %v5537 = vadd.f32 0.0, %v5536
        %v5538 = vpop.f32.mrb[0].mxu0
        %5539 = vmatprep.mubr.f32.mxu0 0.0
        %5540 = vmatmul.mubr.f32.gmra.mrb[0].mxu0 %v5428
        %v5541 = vpop.f32.mrb[0].mxu0
        %v5542 = vadd.f32 0.0, %v5541
        %v5543 = vpop.f32.mrb[0].mxu0
        %5544 = vmatprep.mubr.f32.mxu0 0.0
        %5545 = vmatmul.mubr.f32.gmra.mrb[0].mxu0 %v5431
        %v5546 = vpop.f32.mrb[0].mxu0
        %v5547 = vadd.f32 0.0, %v5546
        %v5548 = vpop.f32.mrb[0].mxu0
        %5549 = vmatprep.mubr.f32.mxu0 0.0
        %5550 = vmatmul.mubr.f32.gmra.mrb[0].mxu0 %v5434
        %v5551 = vpop.f32.mrb[0].mxu0
        %v5552 = vadd.f32 0.0, %v5551
        %v5553 = vpop.f32.mrb[0].mxu0
        %5554 = vmatprep.mubr.f32.mxu0 0.0
        %5555 = vmatmul.mubr.f32.gmra.mrb[0].mxu0 %v5437
        %v5556 = vpop.f32.mrb[0].mxu0
        %v5557 = vadd.f32 0.0, %v5556
        %v5558 = vpop.f32.mrb[0].mxu0
        %5559 = vmatprep.mubr.f32.mxu0 0.0
        %5560 = vmatmul.mubr.f32.gmra.mrb[0].mxu0 %v5440
        %v5561 = vpop.f32.mrb[0].mxu0
        %v5562 = vadd.f32 0.0, %v5561
        %v5563 = vpop.f32.mrb[0].mxu0
        %5564 = vmatprep.mubr.f32.mxu0 0.0
        %5565 = vmatmul.mubr.f32.gmra.mrb[0].mxu0 %v5443
        %v5566 = vpop.f32.mrb[0].mxu0
        %v5567 = vadd.f32 0.0, %v5566
        %v5568 = vpop.f32.mrb[0].mxu0
        %5569 = vmatprep.mubr.f32.mxu0 0.0
        %5570 = vmatmul.mubr.f32.gmra.mrb[0].mxu0 %v5446
        %v5571 = vpop.f32.mrb[0].mxu0
        %v5572 = vadd.f32 0.0, %v5571
        %v5573 = vpop.f32.mrb[0].mxu0
        %5574 = vdwg.mxu0
        %v5575 = vadd.f32 %v5386, %v5517
        %v5576 = vadd.f32 %v5387, %v5522
        %v5577 = vadd.f32 %v5388, %v5527
        %v5578 = vadd.f32 %v5389, %v5532
        %v5579 = vadd.f32 %v5390, %v5537
        %v5580 = vadd.f32 %v5391, %v5542
        %v5581 = vadd.f32 %v5392, %v5547
        %v5582 = vadd.f32 %v5393, %v5552
        %v5583 = vadd.f32 %v5394, %v5557
        %v5584 = vadd.f32 %v5395, %v5562
        %v5585 = vadd.f32 %v5396, %v5567
        %v5586 = vadd.f32 %v5397, %v5572
        %v5587 = vld [vmem:[#allocation3 + $0x32] sm:$0xff]
        %v5588 = vld [vmem:[#allocation3 + $0x3a] sm:$0xff]
        %v5589 = vld [vmem:[#allocation3 + $0x42] sm:$0xff]
        %v5590 = vld [vmem:[#allocation3 + $0x4a] sm:$0xff]
        %v5591 = vld [vmem:[#allocation3 + $0x52] sm:$0xff]
        %v5592 = vld [vmem:[#allocation3 + $0x5a] sm:$0xff]
        %v5593 = vld [vmem:[#allocation3 + $0x62] sm:$0xff]
        %v5594 = vld [vmem:[#allocation3 + $0x6a] sm:$0xff]
        %v5595 = vld [vmem:[#allocation3 + $0x72] sm:$0xff]
        %v5596 = vld [vmem:[#allocation3 + $0x7a] sm:$0xff]
        %v5597 = vld [vmem:[#allocation3 + $0x82] sm:$0xff]
        %v5598 = vld [vmem:[#allocation3 + $0x8a] sm:$0xf]
        %5599 = vrot.lane.b32.xlu0 %v4465, 32
        %v5600 = vpop.permute.xlu0 %5599
        %v5602 = vsel %vm1401, %v5587, 0
        %v5605 = vsel %vm1401, %v5588, 0
        %v5608 = vsel %vm1401, %v5589, 0
        %v5611 = vsel %vm1401, %v5590, 0
        %v5614 = vsel %vm1401, %v5591, 0
        %v5617 = vsel %vm1401, %v5592, 0
        %v5620 = vsel %vm1401, %v5593, 0
        %v5623 = vsel %vm1401, %v5594, 0
        %v5626 = vsel %vm1401, %v5595, 0
        %v5629 = vsel %vm1401, %v5596, 0
        %v5632 = vsel %vm1401, %v5597, 0
        %v5635 = vsel %vm1401, %v5598, 0
        %v5637 = vsel %vm1477, %v5600, 0
        %5639 = vmatprep.subr.mxu0 0.0
        %5640 = vmatpush1.msra.mxu0 %v5637
        %5641 = vmatprep.subr.mxu0 0.0
        %5642 = vmatpush1.msra.mxu0 0.0
        %5643 = vmatprep.subr.mxu0 0.0
        %5644 = vmatpush1.msra.mxu0 0.0
        %5645 = vmatprep.subr.mxu0 0.0
        %5646 = vmatpush1.msra.mxu0 0.0
        %5647 = vmatprep.subr.mxu0 0.0
        %5648 = vmatpush1.msra.mxu0 0.0
        %5649 = vmatprep.subr.mxu0 0.0
        %5650 = vmatpush1.msra.mxu0 0.0
        %5651 = vmatprep.subr.mxu0 0.0
        %5652 = vmatpush1.msra.mxu0 0.0
        %5653 = vmatprep.subr.mxu0 0.0
        %5654 = vmatpush1.msra.mxu0 0.0
        %5655 = vmatprep.subr.mxu0 0.0
        %5656 = vmatpush1.msra.mxu0 0.0
        %5657 = vmatprep.subr.mxu0 0.0
        %5658 = vmatpush1.msra.mxu0 0.0
        %5659 = vmatprep.subr.mxu0 0.0
        %5660 = vmatpush1.msra.mxu0 0.0
        %5661 = vmatprep.subr.mxu0 0.0
        %5662 = vmatpush1.msra.mxu0 0.0
        %5663 = vmatprep.subr.mxu0 0.0
        %5664 = vmatpush1.msra.mxu0 0.0
        %5665 = vmatprep.subr.mxu0 0.0
        %5666 = vmatpush1.msra.mxu0 0.0
        %5667 = vmatprep.subr.mxu0 0.0
        %5668 = vmatpush1.msra.mxu0 0.0
        %5669 = vmatprep.subr.mxu0 0.0
        %5670 = vmatpush1.msra.mxu0 0.0
        %5671 = vmatprep.subr.mxu0 0.0
        %5672 = vmatpush1.msra.mxu0 0.0
        %5673 = vmatprep.subr.mxu0 0.0
        %5674 = vmatpush1.msra.mxu0 0.0
        %5675 = vmatprep.subr.mxu0 0.0
        %5676 = vmatpush1.msra.mxu0 0.0
        %5677 = vmatprep.subr.mxu0 0.0
        %5678 = vmatpush1.msra.mxu0 0.0
        %5679 = vmatprep.subr.mxu0 0.0
        %5680 = vmatpush1.msra.mxu0 0.0
        %5681 = vmatprep.subr.mxu0 0.0
        %5682 = vmatpush1.msra.mxu0 0.0
        %5683 = vmatprep.subr.mxu0 0.0
        %5684 = vmatpush1.msra.mxu0 0.0
        %5685 = vmatprep.subr.mxu0 0.0
        %5686 = vmatpush1.msra.mxu0 0.0
        %5687 = vmatprep.subr.mxu0 0.0
        %5688 = vmatpush1.msra.mxu0 0.0
        %5689 = vmatprep.subr.mxu0 0.0
        %5690 = vmatpush1.msra.mxu0 0.0
        %5691 = vmatprep.subr.mxu0 0.0
        %5692 = vmatpush1.msra.mxu0 0.0
        %5693 = vmatprep.subr.mxu0 0.0
        %5694 = vmatpush1.msra.mxu0 0.0
        %5695 = vmatprep.subr.mxu0 0.0
        %5696 = vmatpush1.msra.mxu0 0.0
        %5697 = vmatprep.subr.mxu0 0.0
        %5698 = vmatpush1.msra.mxu0 0.0
        %5699 = vmatprep.subr.mxu0 0.0
        %5700 = vmatpush1.msra.mxu0 0.0
        %5701 = vmatprep.subr.mxu0 0.0
        %5702 = vmatpush1.msra.mxu0 0.0
        %5703 = vmatprep.mubr.f32.mxu0 0.0
        %5704 = vmatmul.mubr.f32.gmra.mrb[0].mxu0 %v5602
        %v5705 = vpop.f32.mrb[0].mxu0
        %v5706 = vadd.f32 0.0, %v5705
        %v5707 = vpop.f32.mrb[0].mxu0
        %5708 = vmatprep.mubr.f32.mxu0 0.0
        %5709 = vmatmul.mubr.f32.gmra.mrb[0].mxu0 %v5605
        %v5710 = vpop.f32.mrb[0].mxu0
        %v5711 = vadd.f32 0.0, %v5710
        %v5712 = vpop.f32.mrb[0].mxu0
        %5713 = vmatprep.mubr.f32.mxu0 0.0
        %5714 = vmatmul.mubr.f32.gmra.mrb[0].mxu0 %v5608
        %v5715 = vpop.f32.mrb[0].mxu0
        %v5716 = vadd.f32 0.0, %v5715
        %v5717 = vpop.f32.mrb[0].mxu0
        %5718 = vmatprep.mubr.f32.mxu0 0.0
        %5719 = vmatmul.mubr.f32.gmra.mrb[0].mxu0 %v5611
        %v5720 = vpop.f32.mrb[0].mxu0
        %v5721 = vadd.f32 0.0, %v5720
        %v5722 = vpop.f32.mrb[0].mxu0
        %5723 = vmatprep.mubr.f32.mxu0 0.0
        %5724 = vmatmul.mubr.f32.gmra.mrb[0].mxu0 %v5614
        %v5725 = vpop.f32.mrb[0].mxu0
        %v5726 = vadd.f32 0.0, %v5725
        %v5727 = vpop.f32.mrb[0].mxu0
        %5728 = vmatprep.mubr.f32.mxu0 0.0
        %5729 = vmatmul.mubr.f32.gmra.mrb[0].mxu0 %v5617
        %v5730 = vpop.f32.mrb[0].mxu0
        %v5731 = vadd.f32 0.0, %v5730
        %v5732 = vpop.f32.mrb[0].mxu0
        %5733 = vmatprep.mubr.f32.mxu0 0.0
        %5734 = vmatmul.mubr.f32.gmra.mrb[0].mxu0 %v5620
        %v5735 = vpop.f32.mrb[0].mxu0
        %v5736 = vadd.f32 0.0, %v5735
        %v5737 = vpop.f32.mrb[0].mxu0
        %5738 = vmatprep.mubr.f32.mxu0 0.0
        %5739 = vmatmul.mubr.f32.gmra.mrb[0].mxu0 %v5623
        %v5740 = vpop.f32.mrb[0].mxu0
        %v5741 = vadd.f32 0.0, %v5740
        %v5742 = vpop.f32.mrb[0].mxu0
        %5743 = vmatprep.mubr.f32.mxu0 0.0
        %5744 = vmatmul.mubr.f32.gmra.mrb[0].mxu0 %v5626
        %v5745 = vpop.f32.mrb[0].mxu0
        %v5746 = vadd.f32 0.0, %v5745
        %v5747 = vpop.f32.mrb[0].mxu0
        %5748 = vmatprep.mubr.f32.mxu0 0.0
        %5749 = vmatmul.mubr.f32.gmra.mrb[0].mxu0 %v5629
        %v5750 = vpop.f32.mrb[0].mxu0
        %v5751 = vadd.f32 0.0, %v5750
        %v5752 = vpop.f32.mrb[0].mxu0
        %5753 = vmatprep.mubr.f32.mxu0 0.0
        %5754 = vmatmul.mubr.f32.gmra.mrb[0].mxu0 %v5632
        %v5755 = vpop.f32.mrb[0].mxu0
        %v5756 = vadd.f32 0.0, %v5755
        %v5757 = vpop.f32.mrb[0].mxu0
        %5758 = vmatprep.mubr.f32.mxu0 0.0
        %5759 = vmatmul.mubr.f32.gmra.mrb[0].mxu0 %v5635
        %v5760 = vpop.f32.mrb[0].mxu0
        %v5761 = vadd.f32 0.0, %v5760
        %v5762 = vpop.f32.mrb[0].mxu0
        %5763 = vdwg.mxu0
        %v5764 = vadd.f32 %v5575, %v5706
        %v5765 = vadd.f32 %v5576, %v5711
        %v5766 = vadd.f32 %v5577, %v5716
        %v5767 = vadd.f32 %v5578, %v5721
        %v5768 = vadd.f32 %v5579, %v5726
        %v5769 = vadd.f32 %v5580, %v5731
        %v5770 = vadd.f32 %v5581, %v5736
        %v5771 = vadd.f32 %v5582, %v5741
        %v5772 = vadd.f32 %v5583, %v5746
        %v5773 = vadd.f32 %v5584, %v5751
        %v5774 = vadd.f32 %v5585, %v5756
        %v5775 = vadd.f32 %v5586, %v5761
        %v5776 = vld [vmem:[#allocation3 + $0x33] sm:$0xff]
        %v5777 = vld [vmem:[#allocation3 + $0x3b] sm:$0xff]
        %v5778 = vld [vmem:[#allocation3 + $0x43] sm:$0xff]
        %v5779 = vld [vmem:[#allocation3 + $0x4b] sm:$0xff]
        %v5780 = vld [vmem:[#allocation3 + $0x53] sm:$0xff]
        %v5781 = vld [vmem:[#allocation3 + $0x5b] sm:$0xff]
        %v5782 = vld [vmem:[#allocation3 + $0x63] sm:$0xff]
        %v5783 = vld [vmem:[#allocation3 + $0x6b] sm:$0xff]
        %v5784 = vld [vmem:[#allocation3 + $0x73] sm:$0xff]
        %v5785 = vld [vmem:[#allocation3 + $0x7b] sm:$0xff]
        %v5786 = vld [vmem:[#allocation3 + $0x83] sm:$0xff]
        %v5787 = vld [vmem:[#allocation3 + $0x8b] sm:$0xf]
        %5788 = vrot.lane.b32.xlu0 %v4465, 16
        %v5789 = vpop.permute.xlu0 %5788
        %v5791 = vsel %vm1401, %v5776, 0
        %v5794 = vsel %vm1401, %v5777, 0
        %v5797 = vsel %vm1401, %v5778, 0
        %v5800 = vsel %vm1401, %v5779, 0
        %v5803 = vsel %vm1401, %v5780, 0
        %v5806 = vsel %vm1401, %v5781, 0
        %v5809 = vsel %vm1401, %v5782, 0
        %v5812 = vsel %vm1401, %v5783, 0
        %v5815 = vsel %vm1401, %v5784, 0
        %v5818 = vsel %vm1401, %v5785, 0
        %v5821 = vsel %vm1401, %v5786, 0
        %v5824 = vsel %vm1401, %v5787, 0
        %v5826 = vsel %vm1477, %v5789, 0
        %5828 = vmatprep.subr.mxu0 0.0
        %5829 = vmatpush1.msra.mxu0 %v5826
        %5830 = vmatprep.subr.mxu0 0.0
        %5831 = vmatpush1.msra.mxu0 0.0
        %5832 = vmatprep.subr.mxu0 0.0
        %5833 = vmatpush1.msra.mxu0 0.0
        %5834 = vmatprep.subr.mxu0 0.0
        %5835 = vmatpush1.msra.mxu0 0.0
        %5836 = vmatprep.subr.mxu0 0.0
        %5837 = vmatpush1.msra.mxu0 0.0
        %5838 = vmatprep.subr.mxu0 0.0
        %5839 = vmatpush1.msra.mxu0 0.0
        %5840 = vmatprep.subr.mxu0 0.0
        %5841 = vmatpush1.msra.mxu0 0.0
        %5842 = vmatprep.subr.mxu0 0.0
        %5843 = vmatpush1.msra.mxu0 0.0
        %5844 = vmatprep.subr.mxu0 0.0
        %5845 = vmatpush1.msra.mxu0 0.0
        %5846 = vmatprep.subr.mxu0 0.0
        %5847 = vmatpush1.msra.mxu0 0.0
        %5848 = vmatprep.subr.mxu0 0.0
        %5849 = vmatpush1.msra.mxu0 0.0
        %5850 = vmatprep.subr.mxu0 0.0
        %5851 = vmatpush1.msra.mxu0 0.0
        %5852 = vmatprep.subr.mxu0 0.0
        %5853 = vmatpush1.msra.mxu0 0.0
        %5854 = vmatprep.subr.mxu0 0.0
        %5855 = vmatpush1.msra.mxu0 0.0
        %5856 = vmatprep.subr.mxu0 0.0
        %5857 = vmatpush1.msra.mxu0 0.0
        %5858 = vmatprep.subr.mxu0 0.0
        %5859 = vmatpush1.msra.mxu0 0.0
        %5860 = vmatprep.subr.mxu0 0.0
        %5861 = vmatpush1.msra.mxu0 0.0
        %5862 = vmatprep.subr.mxu0 0.0
        %5863 = vmatpush1.msra.mxu0 0.0
        %5864 = vmatprep.subr.mxu0 0.0
        %5865 = vmatpush1.msra.mxu0 0.0
        %5866 = vmatprep.subr.mxu0 0.0
        %5867 = vmatpush1.msra.mxu0 0.0
        %5868 = vmatprep.subr.mxu0 0.0
        %5869 = vmatpush1.msra.mxu0 0.0
        %5870 = vmatprep.subr.mxu0 0.0
        %5871 = vmatpush1.msra.mxu0 0.0
        %5872 = vmatprep.subr.mxu0 0.0
        %5873 = vmatpush1.msra.mxu0 0.0
        %5874 = vmatprep.subr.mxu0 0.0
        %5875 = vmatpush1.msra.mxu0 0.0
        %5876 = vmatprep.subr.mxu0 0.0
        %5877 = vmatpush1.msra.mxu0 0.0
        %5878 = vmatprep.subr.mxu0 0.0
        %5879 = vmatpush1.msra.mxu0 0.0
        %5880 = vmatprep.subr.mxu0 0.0
        %5881 = vmatpush1.msra.mxu0 0.0
        %5882 = vmatprep.subr.mxu0 0.0
        %5883 = vmatpush1.msra.mxu0 0.0
        %5884 = vmatprep.subr.mxu0 0.0
        %5885 = vmatpush1.msra.mxu0 0.0
        %5886 = vmatprep.subr.mxu0 0.0
        %5887 = vmatpush1.msra.mxu0 0.0
        %5888 = vmatprep.subr.mxu0 0.0
        %5889 = vmatpush1.msra.mxu0 0.0
        %5890 = vmatprep.subr.mxu0 0.0
        %5891 = vmatpush1.msra.mxu0 0.0
        %5892 = vmatprep.mubr.f32.mxu0 0.0
        %5893 = vmatmul.mubr.f32.gmra.mrb[0].mxu0 %v5791
        %v5894 = vpop.f32.mrb[0].mxu0
        %v5895 = vadd.f32 0.0, %v5894
        %v5896 = vpop.f32.mrb[0].mxu0
        %5897 = vmatprep.mubr.f32.mxu0 0.0
        %5898 = vmatmul.mubr.f32.gmra.mrb[0].mxu0 %v5794
        %v5899 = vpop.f32.mrb[0].mxu0
        %v5900 = vadd.f32 0.0, %v5899
        %v5901 = vpop.f32.mrb[0].mxu0
        %5902 = vmatprep.mubr.f32.mxu0 0.0
        %5903 = vmatmul.mubr.f32.gmra.mrb[0].mxu0 %v5797
        %v5904 = vpop.f32.mrb[0].mxu0
        %v5905 = vadd.f32 0.0, %v5904
        %v5906 = vpop.f32.mrb[0].mxu0
        %5907 = vmatprep.mubr.f32.mxu0 0.0
        %5908 = vmatmul.mubr.f32.gmra.mrb[0].mxu0 %v5800
        %v5909 = vpop.f32.mrb[0].mxu0
        %v5910 = vadd.f32 0.0, %v5909
        %v5911 = vpop.f32.mrb[0].mxu0
        %5912 = vmatprep.mubr.f32.mxu0 0.0
        %5913 = vmatmul.mubr.f32.gmra.mrb[0].mxu0 %v5803
        %v5914 = vpop.f32.mrb[0].mxu0
        %v5915 = vadd.f32 0.0, %v5914
        %v5916 = vpop.f32.mrb[0].mxu0
        %5917 = vmatprep.mubr.f32.mxu0 0.0
        %5918 = vmatmul.mubr.f32.gmra.mrb[0].mxu0 %v5806
        %v5919 = vpop.f32.mrb[0].mxu0
        %v5920 = vadd.f32 0.0, %v5919
        %v5921 = vpop.f32.mrb[0].mxu0
        %5922 = vmatprep.mubr.f32.mxu0 0.0
        %5923 = vmatmul.mubr.f32.gmra.mrb[0].mxu0 %v5809
        %v5924 = vpop.f32.mrb[0].mxu0
        %v5925 = vadd.f32 0.0, %v5924
        %v5926 = vpop.f32.mrb[0].mxu0
        %5927 = vmatprep.mubr.f32.mxu0 0.0
        %5928 = vmatmul.mubr.f32.gmra.mrb[0].mxu0 %v5812
        %v5929 = vpop.f32.mrb[0].mxu0
        %v5930 = vadd.f32 0.0, %v5929
        %v5931 = vpop.f32.mrb[0].mxu0
        %5932 = vmatprep.mubr.f32.mxu0 0.0
        %5933 = vmatmul.mubr.f32.gmra.mrb[0].mxu0 %v5815
        %v5934 = vpop.f32.mrb[0].mxu0
        %v5935 = vadd.f32 0.0, %v5934
        %v5936 = vpop.f32.mrb[0].mxu0
        %5937 = vmatprep.mubr.f32.mxu0 0.0
        %5938 = vmatmul.mubr.f32.gmra.mrb[0].mxu0 %v5818
        %v5939 = vpop.f32.mrb[0].mxu0
        %v5940 = vadd.f32 0.0, %v5939
        %v5941 = vpop.f32.mrb[0].mxu0
        %5942 = vmatprep.mubr.f32.mxu0 0.0
        %5943 = vmatmul.mubr.f32.gmra.mrb[0].mxu0 %v5821
        %v5944 = vpop.f32.mrb[0].mxu0
        %v5945 = vadd.f32 0.0, %v5944
        %v5946 = vpop.f32.mrb[0].mxu0
        %5947 = vmatprep.mubr.f32.mxu0 0.0
        %5948 = vmatmul.mubr.f32.gmra.mrb[0].mxu0 %v5824
        %v5949 = vpop.f32.mrb[0].mxu0
        %v5950 = vadd.f32 0.0, %v5949
        %v5951 = vpop.f32.mrb[0].mxu0
        %5952 = vdwg.mxu0
        %v5953 = vadd.f32 %v5764, %v5895
        %v5954 = vadd.f32 %v5765, %v5900
        %v5955 = vadd.f32 %v5766, %v5905
        %v5956 = vadd.f32 %v5767, %v5910
        %v5957 = vadd.f32 %v5768, %v5915
        %v5958 = vadd.f32 %v5769, %v5920
        %v5959 = vadd.f32 %v5770, %v5925
        %v5960 = vadd.f32 %v5771, %v5930
        %v5961 = vadd.f32 %v5772, %v5935
        %v5962 = vadd.f32 %v5773, %v5940
        %v5963 = vadd.f32 %v5774, %v5945
        %v5964 = vadd.f32 %v5775, %v5950
        %v5965 = vld [vmem:[#allocation3 + $0x34] sm:$0xff]
        %v5966 = vld [vmem:[#allocation3 + $0x3c] sm:$0xff]
        %v5967 = vld [vmem:[#allocation3 + $0x44] sm:$0xff]
        %v5968 = vld [vmem:[#allocation3 + $0x4c] sm:$0xff]
        %v5969 = vld [vmem:[#allocation3 + $0x54] sm:$0xff]
        %v5970 = vld [vmem:[#allocation3 + $0x5c] sm:$0xff]
        %v5971 = vld [vmem:[#allocation3 + $0x64] sm:$0xff]
        %v5972 = vld [vmem:[#allocation3 + $0x6c] sm:$0xff]
        %v5973 = vld [vmem:[#allocation3 + $0x74] sm:$0xff]
        %v5974 = vld [vmem:[#allocation3 + $0x7c] sm:$0xff]
        %v5975 = vld [vmem:[#allocation3 + $0x84] sm:$0xff]
        %v5976 = vld [vmem:[#allocation3 + $0x8c] sm:$0xf]
        %v5977 = vld [vmem:[%s3 + $0x18] sm:$0x3f]
        %v5979 = vsel %vm1401, %v5965, 0
        %v5982 = vsel %vm1401, %v5966, 0
        %v5985 = vsel %vm1401, %v5967, 0
        %v5988 = vsel %vm1401, %v5968, 0
        %v5991 = vsel %vm1401, %v5969, 0
        %v5994 = vsel %vm1401, %v5970, 0
        %v5997 = vsel %vm1401, %v5971, 0
        %v6000 = vsel %vm1401, %v5972, 0
        %v6003 = vsel %vm1401, %v5973, 0
        %v6006 = vsel %vm1401, %v5974, 0
        %v6009 = vsel %vm1401, %v5975, 0
        %v6012 = vsel %vm1401, %v5976, 0
        %v6015 = vsel %vm1477, %v5977, 0
        %6017 = vmatprep.subr.mxu0 0.0
        %6018 = vmatpush1.msra.mxu0 %v6015
        %6019 = vmatprep.subr.mxu0 0.0
        %6020 = vmatpush1.msra.mxu0 0.0
        %6021 = vmatprep.subr.mxu0 0.0
        %6022 = vmatpush1.msra.mxu0 0.0
        %6023 = vmatprep.subr.mxu0 0.0
        %6024 = vmatpush1.msra.mxu0 0.0
        %6025 = vmatprep.subr.mxu0 0.0
        %6026 = vmatpush1.msra.mxu0 0.0
        %6027 = vmatprep.subr.mxu0 0.0
        %6028 = vmatpush1.msra.mxu0 0.0
        %6029 = vmatprep.subr.mxu0 0.0
        %6030 = vmatpush1.msra.mxu0 0.0
        %6031 = vmatprep.subr.mxu0 0.0
        %6032 = vmatpush1.msra.mxu0 0.0
        %6033 = vmatprep.subr.mxu0 0.0
        %6034 = vmatpush1.msra.mxu0 0.0
        %6035 = vmatprep.subr.mxu0 0.0
        %6036 = vmatpush1.msra.mxu0 0.0
        %6037 = vmatprep.subr.mxu0 0.0
        %6038 = vmatpush1.msra.mxu0 0.0
        %6039 = vmatprep.subr.mxu0 0.0
        %6040 = vmatpush1.msra.mxu0 0.0
        %6041 = vmatprep.subr.mxu0 0.0
        %6042 = vmatpush1.msra.mxu0 0.0
        %6043 = vmatprep.subr.mxu0 0.0
        %6044 = vmatpush1.msra.mxu0 0.0
        %6045 = vmatprep.subr.mxu0 0.0
        %6046 = vmatpush1.msra.mxu0 0.0
        %6047 = vmatprep.subr.mxu0 0.0
        %6048 = vmatpush1.msra.mxu0 0.0
        %6049 = vmatprep.subr.mxu0 0.0
        %6050 = vmatpush1.msra.mxu0 0.0
        %6051 = vmatprep.subr.mxu0 0.0
        %6052 = vmatpush1.msra.mxu0 0.0
        %6053 = vmatprep.subr.mxu0 0.0
        %6054 = vmatpush1.msra.mxu0 0.0
        %6055 = vmatprep.subr.mxu0 0.0
        %6056 = vmatpush1.msra.mxu0 0.0
        %6057 = vmatprep.subr.mxu0 0.0
        %6058 = vmatpush1.msra.mxu0 0.0
        %6059 = vmatprep.subr.mxu0 0.0
        %6060 = vmatpush1.msra.mxu0 0.0
        %6061 = vmatprep.subr.mxu0 0.0
        %6062 = vmatpush1.msra.mxu0 0.0
        %6063 = vmatprep.subr.mxu0 0.0
        %6064 = vmatpush1.msra.mxu0 0.0
        %6065 = vmatprep.subr.mxu0 0.0
        %6066 = vmatpush1.msra.mxu0 0.0
        %6067 = vmatprep.subr.mxu0 0.0
        %6068 = vmatpush1.msra.mxu0 0.0
        %6069 = vmatprep.subr.mxu0 0.0
        %6070 = vmatpush1.msra.mxu0 0.0
        %6071 = vmatprep.subr.mxu0 0.0
        %6072 = vmatpush1.msra.mxu0 0.0
        %6073 = vmatprep.subr.mxu0 0.0
        %6074 = vmatpush1.msra.mxu0 0.0
        %6075 = vmatprep.subr.mxu0 0.0
        %6076 = vmatpush1.msra.mxu0 0.0
        %6077 = vmatprep.subr.mxu0 0.0
        %6078 = vmatpush1.msra.mxu0 0.0
        %6079 = vmatprep.subr.mxu0 0.0
        %6080 = vmatpush1.msra.mxu0 0.0
        %6081 = vmatprep.mubr.f32.mxu0 0.0
        %6082 = vmatmul.mubr.f32.gmra.mrb[0].mxu0 %v5979
        %v6083 = vpop.f32.mrb[0].mxu0
        %v6084 = vadd.f32 0.0, %v6083
        %v6085 = vpop.f32.mrb[0].mxu0
        %6086 = vmatprep.mubr.f32.mxu0 0.0
        %6087 = vmatmul.mubr.f32.gmra.mrb[0].mxu0 %v5982
        %v6088 = vpop.f32.mrb[0].mxu0
        %v6089 = vadd.f32 0.0, %v6088
        %v6090 = vpop.f32.mrb[0].mxu0
        %6091 = vmatprep.mubr.f32.mxu0 0.0
        %6092 = vmatmul.mubr.f32.gmra.mrb[0].mxu0 %v5985
        %v6093 = vpop.f32.mrb[0].mxu0
        %v6094 = vadd.f32 0.0, %v6093
        %v6095 = vpop.f32.mrb[0].mxu0
        %6096 = vmatprep.mubr.f32.mxu0 0.0
        %6097 = vmatmul.mubr.f32.gmra.mrb[0].mxu0 %v5988
        %v6098 = vpop.f32.mrb[0].mxu0
        %v6099 = vadd.f32 0.0, %v6098
        %v6100 = vpop.f32.mrb[0].mxu0
        %6101 = vmatprep.mubr.f32.mxu0 0.0
        %6102 = vmatmul.mubr.f32.gmra.mrb[0].mxu0 %v5991
        %v6103 = vpop.f32.mrb[0].mxu0
        %v6104 = vadd.f32 0.0, %v6103
        %v6105 = vpop.f32.mrb[0].mxu0
        %6106 = vmatprep.mubr.f32.mxu0 0.0
        %6107 = vmatmul.mubr.f32.gmra.mrb[0].mxu0 %v5994
        %v6108 = vpop.f32.mrb[0].mxu0
        %v6109 = vadd.f32 0.0, %v6108
        %v6110 = vpop.f32.mrb[0].mxu0
        %6111 = vmatprep.mubr.f32.mxu0 0.0
        %6112 = vmatmul.mubr.f32.gmra.mrb[0].mxu0 %v5997
        %v6113 = vpop.f32.mrb[0].mxu0
        %v6114 = vadd.f32 0.0, %v6113
        %v6115 = vpop.f32.mrb[0].mxu0
        %6116 = vmatprep.mubr.f32.mxu0 0.0
        %6117 = vmatmul.mubr.f32.gmra.mrb[0].mxu0 %v6000
        %v6118 = vpop.f32.mrb[0].mxu0
        %v6119 = vadd.f32 0.0, %v6118
        %v6120 = vpop.f32.mrb[0].mxu0
        %6121 = vmatprep.mubr.f32.mxu0 0.0
        %6122 = vmatmul.mubr.f32.gmra.mrb[0].mxu0 %v6003
        %v6123 = vpop.f32.mrb[0].mxu0
        %v6124 = vadd.f32 0.0, %v6123
        %v6125 = vpop.f32.mrb[0].mxu0
        %6126 = vmatprep.mubr.f32.mxu0 0.0
        %6127 = vmatmul.mubr.f32.gmra.mrb[0].mxu0 %v6006
        %v6128 = vpop.f32.mrb[0].mxu0
        %v6129 = vadd.f32 0.0, %v6128
        %v6130 = vpop.f32.mrb[0].mxu0
        %6131 = vmatprep.mubr.f32.mxu0 0.0
        %6132 = vmatmul.mubr.f32.gmra.mrb[0].mxu0 %v6009
        %v6133 = vpop.f32.mrb[0].mxu0
        %v6134 = vadd.f32 0.0, %v6133
        %v6135 = vpop.f32.mrb[0].mxu0
        %6136 = vmatprep.mubr.f32.mxu0 0.0
        %6137 = vmatmul.mubr.f32.gmra.mrb[0].mxu0 %v6012
        %v6138 = vpop.f32.mrb[0].mxu0
        %v6139 = vadd.f32 0.0, %v6138
        %v6140 = vpop.f32.mrb[0].mxu0
        %6141 = vdwg.mxu0
        %v6142 = vadd.f32 %v5953, %v6084
        %v6143 = vadd.f32 %v5954, %v6089
        %v6144 = vadd.f32 %v5955, %v6094
        %v6145 = vadd.f32 %v5956, %v6099
        %v6146 = vadd.f32 %v5957, %v6104
        %v6147 = vadd.f32 %v5958, %v6109
        %v6148 = vadd.f32 %v5959, %v6114
        %v6149 = vadd.f32 %v5960, %v6119
        %v6150 = vadd.f32 %v5961, %v6124
        %v6151 = vadd.f32 %v5962, %v6129
        %v6152 = vadd.f32 %v5963, %v6134
        %v6153 = vadd.f32 %v5964, %v6139
        %v6154 = vmax.f32 %v6142, 0.0
        %v6155 = vmax.f32 %v6143, 0.0
        %v6156 = vmax.f32 %v6144, 0.0
        %v6157 = vmax.f32 %v6145, 0.0
        %v6158 = vmax.f32 %v6146, 0.0
        %v6159 = vmax.f32 %v6147, 0.0
        %v6160 = vmax.f32 %v6148, 0.0
        %v6161 = vmax.f32 %v6149, 0.0
        %v6162 = vmax.f32 %v6150, 0.0
        %v6163 = vmax.f32 %v6151, 0.0
        %v6164 = vmax.f32 %v6152, 0.0
        %v6165 = vmax.f32 %v6153, 0.0
        %vm6166 = vcmask 130048
        %6167 = vst.msk [vmem:[#allocation4] sm:$0xff] %vm6166, %v6154
        %6168 = vst.msk [vmem:[#allocation4 + $0x8] sm:$0xff] %vm6166, %v6155
        %6169 = vst.msk [vmem:[#allocation4 + $0x10] sm:$0xff] %vm6166, %v6156
        %6170 = vst.msk [vmem:[#allocation4 + $0x18] sm:$0xff] %vm6166, %v6157
        %6171 = vst.msk [vmem:[#allocation4 + $0x20] sm:$0xff] %vm6166, %v6158
        %6172 = vst.msk [vmem:[#allocation4 + $0x28] sm:$0xff] %vm6166, %v6159
        %6173 = vst.msk [vmem:[#allocation4 + $0x30] sm:$0xff] %vm6166, %v6160
        %6174 = vst.msk [vmem:[#allocation4 + $0x38] sm:$0xff] %vm6166, %v6161
        %6175 = vst.msk [vmem:[#allocation4 + $0x40] sm:$0xff] %vm6166, %v6162
        %6176 = vst.msk [vmem:[#allocation4 + $0x48] sm:$0xff] %vm6166, %v6163
        %6177 = vst.msk [vmem:[#allocation4 + $0x50] sm:$0xff] %vm6166, %v6164
        %vm6178 = vcmask 125952
        %6179 = vst.msk [vmem:[#allocation4 + $0x58] sm:$0xf] %vm6178, %v6165
        %v6180 = vld [vmem:[#allocation4] sm:$0xff]
        %v6181 = vld [vmem:[#allocation4 + $0x8] sm:$0xff]
        %v6182 = vld [vmem:[#allocation4 + $0x10] sm:$0xff]
        %v6183 = vld [vmem:[#allocation4 + $0x18] sm:$0xff]
        %v6184 = vld [vmem:[#allocation4 + $0x20] sm:$0xff]
        %v6185 = vld [vmem:[#allocation4 + $0x28] sm:$0xff]
        %v6186 = vld [vmem:[#allocation4 + $0x30] sm:$0xff]
        %v6187 = vld [vmem:[#allocation4 + $0x38] sm:$0xff]
        %v6188 = vld [vmem:[#allocation4 + $0x40] sm:$0xff]
        %v6189 = vld [vmem:[#allocation4 + $0x48] sm:$0x7f]
        %v6190 = vld [vmem:[#allocation4 + $0x1] sm:$0xff]
        %v6191 = vld [vmem:[#allocation4 + $0x9] sm:$0xff]
        %v6192 = vld [vmem:[#allocation4 + $0x11] sm:$0xff]
        %v6193 = vld [vmem:[#allocation4 + $0x19] sm:$0xff]
        %v6194 = vld [vmem:[#allocation4 + $0x21] sm:$0xff]
        %v6195 = vld [vmem:[#allocation4 + $0x29] sm:$0xff]
        %v6196 = vld [vmem:[#allocation4 + $0x31] sm:$0xff]
        %v6197 = vld [vmem:[#allocation4 + $0x39] sm:$0xff]
        %v6198 = vld [vmem:[#allocation4 + $0x41] sm:$0xff]
        %v6199 = vld [vmem:[#allocation4 + $0x49] sm:$0x7f]
        %v6200 = vmax.f32 %v6180, %v6190
        %v6201 = vmax.f32 %v6181, %v6191
        %v6202 = vmax.f32 %v6182, %v6192
        %v6203 = vmax.f32 %v6183, %v6193
        %v6204 = vmax.f32 %v6184, %v6194
        %v6205 = vmax.f32 %v6185, %v6195
        %v6206 = vmax.f32 %v6186, %v6196
        %v6207 = vmax.f32 %v6187, %v6197
        %v6208 = vmax.f32 %v6188, %v6198
        %v6209 = vmax.f32 %v6189, %v6199
        %v6210 = vld [vmem:[#allocation4 + $0xc] sm:$0xff]
        %v6211 = vld [vmem:[#allocation4 + $0x14] sm:$0xff]
        %v6212 = vld [vmem:[#allocation4 + $0x1c] sm:$0xff]
        %v6213 = vld [vmem:[#allocation4 + $0x24] sm:$0xff]
        %v6214 = vld [vmem:[#allocation4 + $0x2c] sm:$0xff]
        %v6215 = vld [vmem:[#allocation4 + $0x34] sm:$0xff]
        %v6216 = vld [vmem:[#allocation4 + $0x3c] sm:$0xff]
        %v6217 = vld [vmem:[#allocation4 + $0x44] sm:$0xff]
        %v6218 = vld [vmem:[#allocation4 + $0x4c] sm:$0xff]
        %v6219 = vld [vmem:[#allocation4 + $0x54] sm:$0x7f]
        %v6220 = vld [vmem:[#allocation4 + $0xd] sm:$0xff]
        %v6221 = vld [vmem:[#allocation4 + $0x15] sm:$0xff]
        %v6222 = vld [vmem:[#allocation4 + $0x1d] sm:$0xff]
        %v6223 = vld [vmem:[#allocation4 + $0x25] sm:$0xff]
        %v6224 = vld [vmem:[#allocation4 + $0x2d] sm:$0xff]
        %v6225 = vld [vmem:[#allocation4 + $0x35] sm:$0xff]
        %v6226 = vld [vmem:[#allocation4 + $0x3d] sm:$0xff]
        %v6227 = vld [vmem:[#allocation4 + $0x45] sm:$0xff]
        %v6228 = vld [vmem:[#allocation4 + $0x4d] sm:$0xff]
        %v6229 = vld [vmem:[#allocation4 + $0x55] sm:$0x7f]
        %v6230 = vmax.f32 %v6210, %v6220
        %v6231 = vmax.f32 %v6211, %v6221
        %v6232 = vmax.f32 %v6212, %v6222
        %v6233 = vmax.f32 %v6213, %v6223
        %v6234 = vmax.f32 %v6214, %v6224
        %v6235 = vmax.f32 %v6215, %v6225
        %v6236 = vmax.f32 %v6216, %v6226
        %v6237 = vmax.f32 %v6217, %v6227
        %v6238 = vmax.f32 %v6218, %v6228
        %v6239 = vmax.f32 %v6219, %v6229
        %v6240 = vmax.f32 %v6200, %v6230
        %v6241 = vmax.f32 %v6201, %v6231
        %v6242 = vmax.f32 %v6202, %v6232
        %v6243 = vmax.f32 %v6203, %v6233
        %v6244 = vmax.f32 %v6204, %v6234
        %v6245 = vmax.f32 %v6205, %v6235
        %v6246 = vmax.f32 %v6206, %v6236
        %v6247 = vmax.f32 %v6207, %v6237
        %v6248 = vmax.f32 %v6208, %v6238
        %v6249 = vmax.f32 %v6209, %v6239
        %6250 = vst.msk [vmem:[#allocation5] sm:$0xff] %vm6166, %v6240
        %6251 = vst.msk [vmem:[#allocation5 + $0x8] sm:$0xff] %vm6166, %v6241
        %6252 = vst.msk [vmem:[#allocation5 + $0x10] sm:$0xff] %vm6166, %v6242
        %6253 = vst.msk [vmem:[#allocation5 + $0x18] sm:$0xff] %vm6166, %v6243
        %6254 = vst.msk [vmem:[#allocation5 + $0x20] sm:$0xff] %vm6166, %v6244
        %6255 = vst.msk [vmem:[#allocation5 + $0x28] sm:$0xff] %vm6166, %v6245
        %6256 = vst.msk [vmem:[#allocation5 + $0x30] sm:$0xff] %vm6166, %v6246
        %6257 = vst.msk [vmem:[#allocation5 + $0x38] sm:$0xff] %vm6166, %v6247
        %6258 = vst.msk [vmem:[#allocation5 + $0x40] sm:$0xff] %vm6166, %v6248
        %vm6259 = vcmask 129024
        %6260 = vst.msk [vmem:[#allocation5 + $0x48] sm:$0x7f] %vm6259, %v6249
        %v6261 = vld [vmem:[#allocation5] sm:$0x1]
        %v6262 = vlaneseq
        %vm6263 = vcmp.ge.s32.totalorder %v6262, 0
        %vm6264 = vcmp.lt.s32.totalorder %v6262, 16
        %vm6265 = vmand %vm6263, %vm6264
        %6266 = vst.msk [vmem:[#allocation2] sm:$0x1] %vm6265, %v6261
        %v6267 = vld [vmem:[#allocation5 + $0x2] sm:$0x1]
        %v6270 = vunpack.c.l.s4 1966171168
        %v6271 = vunpack.c.0.s8 %v6270
        %v6272 = vlaneseq
        %v6273 = vshrl.u32 %v6272, 7
        %v6274 = vsub.s32 %v6271, %v6273
        %v6275 = vrot.slane %v6267, %v6274
        %v6277 = vunpack.c.l.s4 1966171168
        %v6278 = vunpack.c.0.s8 %v6277
        %v6279 = vlaneseq
        %v6280 = vshrl.u32 %v6279, 7
        %v6281 = vsub.s32 %v6278, %v6280
        %v6282 = vrot.slane %v6275, %v6281
        %6283 = vrot.lane.b32.xlu0 %v6282, 16
        %v6284 = vpop.permute.xlu0 %6283
        %vm6286 = vcmp.ge.s32.totalorder %v6262, 16
        %vm6287 = vcmp.lt.s32.totalorder %v6262, 32
        %vm6288 = vmand %vm6286, %vm6287
        %6289 = vst.msk [vmem:[#allocation2] sm:$0x1] %vm6288, %v6284
        %v6290 = vld [vmem:[#allocation5 + $0x4] sm:$0x1]
        %v6293 = vunpack.c.l.s4 1966171168
        %v6294 = vunpack.c.0.s8 %v6293
        %v6295 = vlaneseq
        %v6296 = vshrl.u32 %v6295, 7
        %v6297 = vsub.s32 %v6294, %v6296
        %v6298 = vrot.slane %v6290, %v6297
        %v6300 = vunpack.c.l.s4 1966171168
        %v6301 = vunpack.c.0.s8 %v6300
        %v6302 = vlaneseq
        %v6303 = vshrl.u32 %v6302, 7
        %v6304 = vsub.s32 %v6301, %v6303
        %v6305 = vrot.slane %v6298, %v6304
        %6306 = vrot.lane.b32.xlu0 %v6305, 32
        %v6307 = vpop.permute.xlu0 %6306
        %vm6309 = vcmp.ge.s32.totalorder %v6262, 32
        %vm6310 = vcmp.lt.s32.totalorder %v6262, 48
        %vm6311 = vmand %vm6309, %vm6310
        %6312 = vst.msk [vmem:[#allocation2] sm:$0x1] %vm6311, %v6307
        %v6313 = vld [vmem:[#allocation5 + $0x6] sm:$0x1]
        %v6316 = vunpack.c.l.s4 1966171168
        %v6317 = vunpack.c.0.s8 %v6316
        %v6318 = vlaneseq
        %v6319 = vshrl.u32 %v6318, 7
        %v6320 = vsub.s32 %v6317, %v6319
        %v6321 = vrot.slane %v6313, %v6320
        %v6323 = vunpack.c.l.s4 1966171168
        %v6324 = vunpack.c.0.s8 %v6323
        %v6325 = vlaneseq
        %v6326 = vshrl.u32 %v6325, 7
        %v6327 = vsub.s32 %v6324, %v6326
        %v6328 = vrot.slane %v6321, %v6327
        %6329 = vrot.lane.b32.xlu0 %v6328, 48
        %v6330 = vpop.permute.xlu0 %6329
        %vm6332 = vcmp.ge.s32.totalorder %v6262, 48
        %vm6333 = vcmp.lt.s32.totalorder %v6262, 64
        %vm6334 = vmand %vm6332, %vm6333
        %6335 = vst.msk [vmem:[#allocation2] sm:$0x1] %vm6334, %v6330
        %v6336 = vld [vmem:[#allocation5 + $0x18] sm:$0x1]
        %v6339 = vunpack.c.l.s4 1966171168
        %v6340 = vunpack.c.0.s8 %v6339
        %v6341 = vlaneseq
        %v6342 = vshrl.u32 %v6341, 7
        %v6343 = vsub.s32 %v6340, %v6342
        %v6344 = vrot.slane %v6336, %v6343
        %v6346 = vunpack.c.l.s4 1966171168
        %v6347 = vunpack.c.0.s8 %v6346
        %v6348 = vlaneseq
        %v6349 = vshrl.u32 %v6348, 7
        %v6350 = vsub.s32 %v6347, %v6349
        %v6351 = vrot.slane %v6344, %v6350
        %6352 = vrot.lane.b32.xlu0 %v6351, 64
        %v6353 = vpop.permute.xlu0 %6352
        %vm6355 = vcmp.ge.s32.totalorder %v6262, 64
        %vm6356 = vcmp.lt.s32.totalorder %v6262, 80
        %vm6357 = vmand %vm6355, %vm6356
        %6358 = vst.msk [vmem:[#allocation2] sm:$0x1] %vm6357, %v6353
        %v6359 = vld [vmem:[#allocation5 + $0x1a] sm:$0x1]
        %v6362 = vunpack.c.l.s4 1966171168
        %v6363 = vunpack.c.0.s8 %v6362
        %v6364 = vlaneseq
        %v6365 = vshrl.u32 %v6364, 7
        %v6366 = vsub.s32 %v6363, %v6365
        %v6367 = vrot.slane %v6359, %v6366
        %v6369 = vunpack.c.l.s4 1966171168
        %v6370 = vunpack.c.0.s8 %v6369
        %v6371 = vlaneseq
        %v6372 = vshrl.u32 %v6371, 7
        %v6373 = vsub.s32 %v6370, %v6372
        %v6374 = vrot.slane %v6367, %v6373
        %6375 = vrot.lane.b32.xlu0 %v6374, 80
        %v6376 = vpop.permute.xlu0 %6375
        %vm6378 = vcmp.ge.s32.totalorder %v6262, 80
        %vm6379 = vcmp.lt.s32.totalorder %v6262, 96
        %vm6380 = vmand %vm6378, %vm6379
        %6381 = vst.msk [vmem:[#allocation2] sm:$0x1] %vm6380, %v6376
        %v6382 = vld [vmem:[#allocation5 + $0x1c] sm:$0x1]
        %v6385 = vunpack.c.l.s4 1966171168
        %v6386 = vunpack.c.0.s8 %v6385
        %v6387 = vlaneseq
        %v6388 = vshrl.u32 %v6387, 7
        %v6389 = vsub.s32 %v6386, %v6388
        %v6390 = vrot.slane %v6382, %v6389
        %v6392 = vunpack.c.l.s4 1966171168
        %v6393 = vunpack.c.0.s8 %v6392
        %v6394 = vlaneseq
        %v6395 = vshrl.u32 %v6394, 7
        %v6396 = vsub.s32 %v6393, %v6395
        %v6397 = vrot.slane %v6390, %v6396
        %6398 = vrot.lane.b32.xlu0 %v6397, 96
        %v6399 = vpop.permute.xlu0 %6398
        %vm6401 = vcmp.ge.s32.totalorder %v6262, 96
        %vm6402 = vcmp.lt.s32.totalorder %v6262, 112
        %vm6403 = vmand %vm6401, %vm6402
        %6404 = vst.msk [vmem:[#allocation2] sm:$0x1] %vm6403, %v6399
        %v6405 = vld [vmem:[#allocation5 + $0x1e] sm:$0x1]
        %v6408 = vunpack.c.l.s4 1966171168
        %v6409 = vunpack.c.0.s8 %v6408
        %v6410 = vlaneseq
        %v6411 = vshrl.u32 %v6410, 7
        %v6412 = vsub.s32 %v6409, %v6411
        %v6413 = vrot.slane %v6405, %v6412
        %v6415 = vunpack.c.l.s4 1966171168
        %v6416 = vunpack.c.0.s8 %v6415
        %v6417 = vlaneseq
        %v6418 = vshrl.u32 %v6417, 7
        %v6419 = vsub.s32 %v6416, %v6418
        %v6420 = vrot.slane %v6413, %v6419
        %6421 = vrot.lane.b32.xlu0 %v6420, 112
        %v6422 = vpop.permute.xlu0 %6421
        %vm6424 = vcmp.ge.s32.totalorder %v6262, 112
        %vm6425 = vcmp.lt.s32.totalorder %v6262, 128
        %vm6426 = vmand %vm6424, %vm6425
        %6427 = vst.msk [vmem:[#allocation2] sm:$0x1] %vm6426, %v6422
        %v6428 = vld [vmem:[#allocation5 + $0x30] sm:$0x1]
        %6429 = vst.msk [vmem:[#allocation2 + $0x1] sm:$0x1] %vm6265, %v6428
        %v6430 = vld [vmem:[#allocation5 + $0x32] sm:$0x1]
        %v6433 = vunpack.c.l.s4 1966171168
        %v6434 = vunpack.c.0.s8 %v6433
        %v6435 = vlaneseq
        %v6436 = vshrl.u32 %v6435, 7
        %v6437 = vsub.s32 %v6434, %v6436
        %v6438 = vrot.slane %v6430, %v6437
        %v6440 = vunpack.c.l.s4 1966171168
        %v6441 = vunpack.c.0.s8 %v6440
        %v6442 = vlaneseq
        %v6443 = vshrl.u32 %v6442, 7
        %v6444 = vsub.s32 %v6441, %v6443
        %v6445 = vrot.slane %v6438, %v6444
        %6446 = vrot.lane.b32.xlu0 %v6445, 16
        %v6447 = vpop.permute.xlu0 %6446
        %6449 = vst.msk [vmem:[#allocation2 + $0x1] sm:$0x1] %vm6288, %v6447
        %v6450 = vld [vmem:[#allocation5 + $0x34] sm:$0x1]
        %v6453 = vunpack.c.l.s4 1966171168
        %v6454 = vunpack.c.0.s8 %v6453
        %v6455 = vlaneseq
        %v6456 = vshrl.u32 %v6455, 7
        %v6457 = vsub.s32 %v6454, %v6456
        %v6458 = vrot.slane %v6450, %v6457
        %v6460 = vunpack.c.l.s4 1966171168
        %v6461 = vunpack.c.0.s8 %v6460
        %v6462 = vlaneseq
        %v6463 = vshrl.u32 %v6462, 7
        %v6464 = vsub.s32 %v6461, %v6463
        %v6465 = vrot.slane %v6458, %v6464
        %6466 = vrot.lane.b32.xlu0 %v6465, 32
        %v6467 = vpop.permute.xlu0 %6466
        %6469 = vst.msk [vmem:[#allocation2 + $0x1] sm:$0x1] %vm6311, %v6467
        %v6470 = vld [vmem:[#allocation5 + $0x36] sm:$0x1]
        %v6473 = vunpack.c.l.s4 1966171168
        %v6474 = vunpack.c.0.s8 %v6473
        %v6475 = vlaneseq
        %v6476 = vshrl.u32 %v6475, 7
        %v6477 = vsub.s32 %v6474, %v6476
        %v6478 = vrot.slane %v6470, %v6477
        %v6480 = vunpack.c.l.s4 1966171168
        %v6481 = vunpack.c.0.s8 %v6480
        %v6482 = vlaneseq
        %v6483 = vshrl.u32 %v6482, 7
        %v6484 = vsub.s32 %v6481, %v6483
        %v6485 = vrot.slane %v6478, %v6484
        %6486 = vrot.lane.b32.xlu0 %v6485, 48
        %v6487 = vpop.permute.xlu0 %6486
        %6489 = vst.msk [vmem:[#allocation2 + $0x1] sm:$0x1] %vm6334, %v6487
        %v6490 = vld [vmem:[#allocation5 + $0x48] sm:$0x1]
        %v6493 = vunpack.c.l.s4 1966171168
        %v6494 = vunpack.c.0.s8 %v6493
        %v6495 = vlaneseq
        %v6496 = vshrl.u32 %v6495, 7
        %v6497 = vsub.s32 %v6494, %v6496
        %v6498 = vrot.slane %v6490, %v6497
        %v6500 = vunpack.c.l.s4 1966171168
        %v6501 = vunpack.c.0.s8 %v6500
        %v6502 = vlaneseq
        %v6503 = vshrl.u32 %v6502, 7
        %v6504 = vsub.s32 %v6501, %v6503
        %v6505 = vrot.slane %v6498, %v6504
        %6506 = vrot.lane.b32.xlu0 %v6505, 64
        %v6507 = vpop.permute.xlu0 %6506
        %6509 = vst.msk [vmem:[#allocation2 + $0x1] sm:$0x1] %vm6357, %v6507
        %v6510 = vld [vmem:[#allocation5 + $0x4a] sm:$0x1]
        %v6513 = vunpack.c.l.s4 1966171168
        %v6514 = vunpack.c.0.s8 %v6513
        %v6515 = vlaneseq
        %v6516 = vshrl.u32 %v6515, 7
        %v6517 = vsub.s32 %v6514, %v6516
        %v6518 = vrot.slane %v6510, %v6517
        %v6520 = vunpack.c.l.s4 1966171168
        %v6521 = vunpack.c.0.s8 %v6520
        %v6522 = vlaneseq
        %v6523 = vshrl.u32 %v6522, 7
        %v6524 = vsub.s32 %v6521, %v6523
        %v6525 = vrot.slane %v6518, %v6524
        %6526 = vrot.lane.b32.xlu0 %v6525, 80
        %v6527 = vpop.permute.xlu0 %6526
        %6529 = vst.msk [vmem:[#allocation2 + $0x1] sm:$0x1] %vm6380, %v6527
        %v6530 = vld [vmem:[#allocation5 + $0x4c] sm:$0x1]
        %v6533 = vunpack.c.l.s4 1966171168
        %v6534 = vunpack.c.0.s8 %v6533
        %v6535 = vlaneseq
        %v6536 = vshrl.u32 %v6535, 7
        %v6537 = vsub.s32 %v6534, %v6536
        %v6538 = vrot.slane %v6530, %v6537
        %v6540 = vunpack.c.l.s4 1966171168
        %v6541 = vunpack.c.0.s8 %v6540
        %v6542 = vlaneseq
        %v6543 = vshrl.u32 %v6542, 7
        %v6544 = vsub.s32 %v6541, %v6543
        %v6545 = vrot.slane %v6538, %v6544
        %6546 = vrot.lane.b32.xlu0 %v6545, 96
        %v6547 = vpop.permute.xlu0 %6546
        %6549 = vst.msk [vmem:[#allocation2 + $0x1] sm:$0x1] %vm6403, %v6547
        %v6550 = vld [vmem:[#allocation5 + $0x4e] sm:$0x1]
        %v6553 = vunpack.c.l.s4 1966171168
        %v6554 = vunpack.c.0.s8 %v6553
        %v6555 = vlaneseq
        %v6556 = vshrl.u32 %v6555, 7
        %v6557 = vsub.s32 %v6554, %v6556
        %v6558 = vrot.slane %v6550, %v6557
        %v6560 = vunpack.c.l.s4 1966171168
        %v6561 = vunpack.c.0.s8 %v6560
        %v6562 = vlaneseq
        %v6563 = vshrl.u32 %v6562, 7
        %v6564 = vsub.s32 %v6561, %v6563
        %v6565 = vrot.slane %v6558, %v6564
        %6566 = vrot.lane.b32.xlu0 %v6565, 112
        %v6567 = vpop.permute.xlu0 %6566
        %6569 = vst.msk [vmem:[#allocation2 + $0x1] sm:$0x1] %vm6426, %v6567
        %v6570 = vld [vmem:[#allocation2] sm:$0x3]
        %v6571 = vld [vmem:[%s5] sm:$0xff]
        %v6572 = vld [vmem:[%s5 + $0x8] sm:$0xff]
        %v6573 = vld [vmem:[%s5 + $0x10] sm:$0xff]
        %v6574 = vld [vmem:[%s5 + $0x18] sm:$0xff]
        %v6575 = vld [vmem:[%s5 + $0x20] sm:$0xff]
        %v6576 = vld [vmem:[%s5 + $0x28] sm:$0xff]
        %v6577 = vld [vmem:[%s5 + $0x30] sm:$0xff]
        %v6578 = vld [vmem:[%s5 + $0x38] sm:$0xff]
        %v6579 = vld [vmem:[%s5 + $0x40] sm:$0xff]
        %v6580 = vld [vmem:[%s5 + $0x48] sm:$0xff]
        %v6581 = vld [vmem:[%s5 + $0x50] sm:$0xff]
        %v6582 = vld [vmem:[%s5 + $0x58] sm:$0xff]
        %v6583 = vld [vmem:[%s5 + $0x60] sm:$0xff]
        %v6584 = vld [vmem:[%s5 + $0x68] sm:$0xff]
        %v6585 = vld [vmem:[%s5 + $0x70] sm:$0xff]
        %v6586 = vld [vmem:[%s5 + $0x78] sm:$0xff]
        %v6587 = vld [vmem:[%s5 + $0x80] sm:$0xff]
        %v6588 = vld [vmem:[%s5 + $0x88] sm:$0xff]
        %v6589 = vld [vmem:[%s5 + $0x90] sm:$0xff]
        %v6590 = vld [vmem:[%s5 + $0x98] sm:$0xff]
        %v6591 = vld [vmem:[%s5 + $0xa0] sm:$0xff]
        %v6592 = vld [vmem:[%s5 + $0xa8] sm:$0xff]
        %v6593 = vld [vmem:[%s5 + $0xb0] sm:$0xff]
        %v6594 = vld [vmem:[%s5 + $0xb8] sm:$0xff]
        %v6595 = vld [vmem:[%s5 + $0xc0] sm:$0xff]
        %v6596 = vld [vmem:[%s5 + $0xc8] sm:$0xff]
        %v6597 = vld [vmem:[%s5 + $0xd0] sm:$0xff]
        %v6598 = vld [vmem:[%s5 + $0xd8] sm:$0xff]
        %v6599 = vld [vmem:[%s5 + $0xe0] sm:$0xff]
        %v6600 = vld [vmem:[%s5 + $0xe8] sm:$0xff]
        %v6601 = vld [vmem:[%s5 + $0xf0] sm:$0xff]
        %v6602 = vld [vmem:[%s5 + $0xf8] sm:$0xff]
        %v6603 = vld [vmem:[%s6] sm:$0x1]
        %v6605 = vlaneseq
        %v6606 = vshrl.u32 %v6605, 7
        %v6607 = vsub.s32 0, %v6606
        %v6608 = vrot.slane %v6570, %v6607
        %v6609 = vlaneseq
        %v6610 = vshrl.u32 %v6609, 7
        %v6611 = vsub.s32 1, %v6610
        %v6612 = vrot.slane %v6570, %v6611
        %6615 = vmatprep.subr.mxu0 0.0
        %6616 = vmatpush1.msra.mxu0 %v6571
        %6617 = vmatprep.subr.mxu0 0.0
        %6618 = vmatpush1.msra.mxu0 %v6572
        %6619 = vmatprep.subr.mxu0 0.0
        %6620 = vmatpush1.msra.mxu0 %v6573
        %6621 = vmatprep.subr.mxu0 0.0
        %6622 = vmatpush1.msra.mxu0 %v6574
        %6623 = vmatprep.subr.mxu0 0.0
        %6624 = vmatpush1.msra.mxu0 %v6575
        %6625 = vmatprep.subr.mxu0 0.0
        %6626 = vmatpush1.msra.mxu0 %v6576
        %6627 = vmatprep.subr.mxu0 0.0
        %6628 = vmatpush1.msra.mxu0 %v6577
        %6629 = vmatprep.subr.mxu0 0.0
        %6630 = vmatpush1.msra.mxu0 %v6578
        %6631 = vmatprep.subr.mxu0 0.0
        %6632 = vmatpush1.msra.mxu0 %v6579
        %6633 = vmatprep.subr.mxu0 0.0
        %6634 = vmatpush1.msra.mxu0 %v6580
        %6635 = vmatprep.subr.mxu0 0.0
        %6636 = vmatpush1.msra.mxu0 %v6581
        %6637 = vmatprep.subr.mxu0 0.0
        %6638 = vmatpush1.msra.mxu0 %v6582
        %6639 = vmatprep.subr.mxu0 0.0
        %6640 = vmatpush1.msra.mxu0 %v6583
        %6641 = vmatprep.subr.mxu0 0.0
        %6642 = vmatpush1.msra.mxu0 %v6584
        %6643 = vmatprep.subr.mxu0 0.0
        %6644 = vmatpush1.msra.mxu0 %v6585
        %6645 = vmatprep.subr.mxu0 0.0
        %6646 = vmatpush1.msra.mxu0 %v6586
        %6647 = vmatprep.subr.mxu0 0.0
        %6648 = vmatpush1.msra.mxu0 %v6587
        %6649 = vmatprep.subr.mxu0 0.0
        %6650 = vmatpush1.msra.mxu0 %v6588
        %6651 = vmatprep.subr.mxu0 0.0
        %6652 = vmatpush1.msra.mxu0 %v6589
        %6653 = vmatprep.subr.mxu0 0.0
        %6654 = vmatpush1.msra.mxu0 %v6590
        %6655 = vmatprep.subr.mxu0 0.0
        %6656 = vmatpush1.msra.mxu0 %v6591
        %6657 = vmatprep.subr.mxu0 0.0
        %6658 = vmatpush1.msra.mxu0 %v6592
        %6659 = vmatprep.subr.mxu0 0.0
        %6660 = vmatpush1.msra.mxu0 %v6593
        %6661 = vmatprep.subr.mxu0 0.0
        %6662 = vmatpush1.msra.mxu0 %v6594
        %6663 = vmatprep.subr.mxu0 0.0
        %6664 = vmatpush1.msra.mxu0 %v6595
        %6665 = vmatprep.subr.mxu0 0.0
        %6666 = vmatpush1.msra.mxu0 %v6596
        %6667 = vmatprep.subr.mxu0 0.0
        %6668 = vmatpush1.msra.mxu0 %v6597
        %6669 = vmatprep.subr.mxu0 0.0
        %6670 = vmatpush1.msra.mxu0 %v6598
        %6671 = vmatprep.subr.mxu0 0.0
        %6672 = vmatpush1.msra.mxu0 %v6599
        %6673 = vmatprep.subr.mxu0 0.0
        %6674 = vmatpush1.msra.mxu0 %v6600
        %6675 = vmatprep.subr.mxu0 0.0
        %6676 = vmatpush1.msra.mxu0 %v6601
        %6677 = vmatprep.subr.mxu0 0.0
        %6678 = vmatpush1.msra.mxu0 %v6602
        %6679 = vmatprep.mubr.f32.mxu0 %v6612
        %6680 = vmatmul.mubr.f32.gmra.mrb[0].mxu0 %v6608
        %v6681 = vpop.f32.mrb[0].mxu0
        %v6682 = vadd.f32 %v6603, %v6681
        %v6683 = vpop.f32.mrb[0].mxu0
        %6684 = vdwg.mxu0
        %v6685 = vmax.f32 %v6682, 0.0
        %v6686 = vld [vmem:[%s7] sm:$0xff]
        %v6687 = vld [vmem:[%s7 + $0x8] sm:$0xff]
        %v6688 = vld [vmem:[%s7 + $0x10] sm:$0xff]
        %v6689 = vld [vmem:[%s7 + $0x18] sm:$0xff]
        %v6690 = vld [vmem:[%s7 + $0x20] sm:$0xff]
        %v6691 = vld [vmem:[%s7 + $0x28] sm:$0xff]
        %v6692 = vld [vmem:[%s7 + $0x30] sm:$0xff]
        %v6693 = vld [vmem:[%s7 + $0x38] sm:$0xff]
        %v6694 = vld [vmem:[%s7 + $0x40] sm:$0xff]
        %v6695 = vld [vmem:[%s7 + $0x48] sm:$0xff]
        %v6696 = vld [vmem:[%s7 + $0x50] sm:$0xff]
        %v6697 = vld [vmem:[%s7 + $0x58] sm:$0xff]
        %v6698 = vld [vmem:[%s7 + $0x60] sm:$0xff]
        %v6699 = vld [vmem:[%s7 + $0x68] sm:$0xff]
        %v6700 = vld [vmem:[%s7 + $0x70] sm:$0xff]
        %v6701 = vld [vmem:[%s8] sm:$0x1]
        %vm6702 = vcmask 982016
        %v6704 = vsel %vm6702, %v6685, 0
        %6706 = vmatprep.subr.mxu0 0.0
        %6707 = vmatpush1.msra.mxu0 %v6686
        %6708 = vmatprep.subr.mxu0 0.0
        %6709 = vmatpush1.msra.mxu0 %v6687
        %6710 = vmatprep.subr.mxu0 0.0
        %6711 = vmatpush1.msra.mxu0 %v6688
        %6712 = vmatprep.subr.mxu0 0.0
        %6713 = vmatpush1.msra.mxu0 %v6689
        %6714 = vmatprep.subr.mxu0 0.0
        %6715 = vmatpush1.msra.mxu0 %v6690
        %6716 = vmatprep.subr.mxu0 0.0
        %6717 = vmatpush1.msra.mxu0 %v6691
        %6718 = vmatprep.subr.mxu0 0.0
        %6719 = vmatpush1.msra.mxu0 %v6692
        %6720 = vmatprep.subr.mxu0 0.0
        %6721 = vmatpush1.msra.mxu0 %v6693
        %6722 = vmatprep.subr.mxu0 0.0
        %6723 = vmatpush1.msra.mxu0 %v6694
        %6724 = vmatprep.subr.mxu0 0.0
        %6725 = vmatpush1.msra.mxu0 %v6695
        %6726 = vmatprep.subr.mxu0 0.0
        %6727 = vmatpush1.msra.mxu0 %v6696
        %6728 = vmatprep.subr.mxu0 0.0
        %6729 = vmatpush1.msra.mxu0 %v6697
        %6730 = vmatprep.subr.mxu0 0.0
        %6731 = vmatpush1.msra.mxu0 %v6698
        %6732 = vmatprep.subr.mxu0 0.0
        %6733 = vmatpush1.msra.mxu0 %v6699
        %6734 = vmatprep.subr.mxu0 0.0
        %6735 = vmatpush1.msra.mxu0 %v6700
        %6736 = vmatprep.subr.mxu0 0.0
        %6737 = vmatpush1.msra.mxu0 0.0
        %6738 = vmatprep.subr.mxu0 0.0
        %6739 = vmatpush1.msra.mxu0 0.0
        %6740 = vmatprep.subr.mxu0 0.0
        %6741 = vmatpush1.msra.mxu0 0.0
        %6742 = vmatprep.subr.mxu0 0.0
        %6743 = vmatpush1.msra.mxu0 0.0
        %6744 = vmatprep.subr.mxu0 0.0
        %6745 = vmatpush1.msra.mxu0 0.0
        %6746 = vmatprep.subr.mxu0 0.0
        %6747 = vmatpush1.msra.mxu0 0.0
        %6748 = vmatprep.subr.mxu0 0.0
        %6749 = vmatpush1.msra.mxu0 0.0
        %6750 = vmatprep.subr.mxu0 0.0
        %6751 = vmatpush1.msra.mxu0 0.0
        %6752 = vmatprep.subr.mxu0 0.0
        %6753 = vmatpush1.msra.mxu0 0.0
        %6754 = vmatprep.subr.mxu0 0.0
        %6755 = vmatpush1.msra.mxu0 0.0
        %6756 = vmatprep.subr.mxu0 0.0
        %6757 = vmatpush1.msra.mxu0 0.0
        %6758 = vmatprep.subr.mxu0 0.0
        %6759 = vmatpush1.msra.mxu0 0.0
        %6760 = vmatprep.subr.mxu0 0.0
        %6761 = vmatpush1.msra.mxu0 0.0
        %6762 = vmatprep.subr.mxu0 0.0
        %6763 = vmatpush1.msra.mxu0 0.0
        %6764 = vmatprep.subr.mxu0 0.0
        %6765 = vmatpush1.msra.mxu0 0.0
        %6766 = vmatprep.subr.mxu0 0.0
        %6767 = vmatpush1.msra.mxu0 0.0
        %6768 = vmatprep.subr.mxu0 0.0
        %6769 = vmatpush1.msra.mxu0 0.0
        %6770 = vmatprep.mubr.f32.mxu0 0.0
        %6771 = vmatmul.mubr.f32.gmra.mrb[0].mxu0 %v6704
        %v6772 = vpop.f32.mrb[0].mxu0
        %v6773 = vadd.f32 %v6701, %v6772
        %v6774 = vpop.f32.mrb[0].mxu0
        %6775 = vdwg.mxu0
        %v6776 = vmax.f32 %v6773, 0.0
        %v6777 = vld [vmem:[%s9] sm:$0xff]
        %v6778 = vld [vmem:[%s9 + $0x8] sm:$0xff]
        %v6779 = vld [vmem:[%s9 + $0x10] sm:$0xff]
        %v6780 = vld [vmem:[%s9 + $0x18] sm:$0xff]
        %v6781 = vld [vmem:[%s9 + $0x20] sm:$0xff]
        %v6782 = vld [vmem:[%s9 + $0x28] sm:$0xff]
        %v6783 = vld [vmem:[%s9 + $0x30] sm:$0xff]
        %v6784 = vld [vmem:[%s9 + $0x38] sm:$0xff]
        %v6785 = vld [vmem:[%s9 + $0x40] sm:$0xff]
        %v6786 = vld [vmem:[%s9 + $0x48] sm:$0xff]
        %v6787 = vld [vmem:[%s9 + $0x50] sm:$0xf]
        %v6788 = vld [vmem:[%s10] sm:$0x1]
        %vm6789 = vcmask 687104
        %v6791 = vsel %vm6789, %v6776, 0
        %vm6793 = vcmask 1043456
        %v6795 = vsel %vm6793, %v6787, 0
        %6797 = vmatprep.subr.mxu0 0.0
        %6798 = vmatpush1.msra.mxu0 %v6777
        %6799 = vmatprep.subr.mxu0 0.0
        %6800 = vmatpush1.msra.mxu0 %v6778
        %6801 = vmatprep.subr.mxu0 0.0
        %6802 = vmatpush1.msra.mxu0 %v6779
        %6803 = vmatprep.subr.mxu0 0.0
        %6804 = vmatpush1.msra.mxu0 %v6780
        %6805 = vmatprep.subr.mxu0 0.0
        %6806 = vmatpush1.msra.mxu0 %v6781
        %6807 = vmatprep.subr.mxu0 0.0
        %6808 = vmatpush1.msra.mxu0 %v6782
        %6809 = vmatprep.subr.mxu0 0.0
        %6810 = vmatpush1.msra.mxu0 %v6783
        %6811 = vmatprep.subr.mxu0 0.0
        %6812 = vmatpush1.msra.mxu0 %v6784
        %6813 = vmatprep.subr.mxu0 0.0
        %6814 = vmatpush1.msra.mxu0 %v6785
        %6815 = vmatprep.subr.mxu0 0.0
        %6816 = vmatpush1.msra.mxu0 %v6786
        %6817 = vmatprep.subr.mxu0 0.0
        %6818 = vmatpush1.msra.mxu0 %v6795
        %6819 = vmatprep.subr.mxu0 0.0
        %6820 = vmatpush1.msra.mxu0 0.0
        %6821 = vmatprep.subr.mxu0 0.0
        %6822 = vmatpush1.msra.mxu0 0.0
        %6823 = vmatprep.subr.mxu0 0.0
        %6824 = vmatpush1.msra.mxu0 0.0
        %6825 = vmatprep.subr.mxu0 0.0
        %6826 = vmatpush1.msra.mxu0 0.0
        %6827 = vmatprep.subr.mxu0 0.0
        %6828 = vmatpush1.msra.mxu0 0.0
        %6829 = vmatprep.subr.mxu0 0.0
        %6830 = vmatpush1.msra.mxu0 0.0
        %6831 = vmatprep.subr.mxu0 0.0
        %6832 = vmatpush1.msra.mxu0 0.0
        %6833 = vmatprep.subr.mxu0 0.0
        %6834 = vmatpush1.msra.mxu0 0.0
        %6835 = vmatprep.subr.mxu0 0.0
        %6836 = vmatpush1.msra.mxu0 0.0
        %6837 = vmatprep.subr.mxu0 0.0
        %6838 = vmatpush1.msra.mxu0 0.0
        %6839 = vmatprep.subr.mxu0 0.0
        %6840 = vmatpush1.msra.mxu0 0.0
        %6841 = vmatprep.subr.mxu0 0.0
        %6842 = vmatpush1.msra.mxu0 0.0
        %6843 = vmatprep.subr.mxu0 0.0
        %6844 = vmatpush1.msra.mxu0 0.0
        %6845 = vmatprep.subr.mxu0 0.0
        %6846 = vmatpush1.msra.mxu0 0.0
        %6847 = vmatprep.subr.mxu0 0.0
        %6848 = vmatpush1.msra.mxu0 0.0
        %6849 = vmatprep.subr.mxu0 0.0
        %6850 = vmatpush1.msra.mxu0 0.0
        %6851 = vmatprep.subr.mxu0 0.0
        %6852 = vmatpush1.msra.mxu0 0.0
        %6853 = vmatprep.subr.mxu0 0.0
        %6854 = vmatpush1.msra.mxu0 0.0
        %6855 = vmatprep.subr.mxu0 0.0
        %6856 = vmatpush1.msra.mxu0 0.0
        %6857 = vmatprep.subr.mxu0 0.0
        %6858 = vmatpush1.msra.mxu0 0.0
        %6859 = vmatprep.subr.mxu0 0.0
        %6860 = vmatpush1.msra.mxu0 0.0
        %6861 = vmatprep.mubr.f32.mxu0 0.0
        %6862 = vmatmul.mubr.f32.gmra.mrb[0].mxu0 %v6791
        %v6863 = vpop.f32.mrb[0].mxu0
        %v6864 = vadd.f32 %v6788, %v6863
        %v6865 = vpop.f32.mrb[0].mxu0
        %6866 = vdwg.mxu0
        %v6867 = vmul.f32 %v6864, 0.5
        %vm6868 = vcmask 73728
        %6869 = vst.msk [vmem:[%s378] sm:$0x1] %vm6868, %v6867
        %s6870 = sand.u32 %s269, 1
        %s6871 = scalar_lea.sflag [#allocation7], %s6870
        %s6872 = sand.u32 %s269, 1
        %s6873 = scalar_lea.vmem [#allocation6], %s6872
        // Predicated region
        $region65: #{_lambda_.1} parent=63 // pred_check
          %p6874 = pneg %p279
        $region66: #{_lambda_.1} parent=63 // pred_check_branch
          %6876 = sbr.rel (%p6874) target = $region68
        $region67: #{_lambda_.1} parent=63 // pred_region
          %s6878 = ssub.s32 16, 16
          %6879 = vsyncadd %s6871, %s6878
          %s6880 = smul.addr %s25, 16
          %s6881 = scalar_lea.hbm %s11, %s6880
          %s6883 = sshll.u32 %s6873, 4
          %s6884 = int_to_ptr.vmem [resolvable:$true] %s6883
          %6886 = dma.vmem_to_hbm [thread:$0]  %s6884, 16, %s6881, %s6871
        $region68: #{_lambda_.1} parent=63 // pred_fallthru
          _
      $region64: #{_lambda_.1} parent=5 // pred_fallthru
        _
      %p6887 = scmp.le.s32.totalorder 2, %s20
      // Predicated region
      $region69: #{_lambda_.1} parent=5 // pred_check
        %p6888 = pneg %p6887
      $region70: #{_lambda_.1} parent=5 // pred_check_branch
        %6890 = sbr.rel (%p6888) target = $region72
      $region71: #{_lambda_.1} parent=5 // pred_region
        %s6891 = ssub.s32 %s20, 2
        // Predicated region
        $region73: #{_lambda_.1} parent=71 // pred_check
          %p6892 = pneg %p285
        $region74: #{_lambda_.1} parent=71 // pred_check_branch
          %6894 = sbr.rel (%p6892) target = $region76
        $region75: #{_lambda_.1} parent=71 // pred_region
          %s6895 = sand.u32 %s270, 1
          %s6896 = scalar_lea.sflag [#allocation7], %s6895
          %s6897 = sand.u32 %s270, 1
          %s6898 = scalar_lea.vmem [#allocation6], %s6897
          %6899 = dma.done %s6896, 16
        $region76: #{_lambda_.1} parent=71 // pred_fallthru
          _
      $region72: #{_lambda_.1} parent=5 // pred_fallthru
        _
    $region6: #{_lambda_.1} parent=1 // loop_footer
      %s24 = sadd.s32 1, %s20
    $region7: #{_lambda_.1} parent=1 // loop_footer_branch
      %19 = sbr.rel target = $region3
    $region8: #{_lambda_.1} parent=1 // loop_exit
      _
    %6900 = vsyncpa [#allocation7], 1
    %s6901 = scalar_lea.sflag [#allocation7], 1
    %6902 = vsyncpa %s6901, 1

</llo_original>
